<compile_context>
chip_gen: v7x
topology: tpu7x:2x2x1
jax: 0.10.0
libtpu: 0.0.40
codegen_flags: <defaults>
</compile_context>

<pallas_src>
import jax
import jax.numpy as jnp
import numpy as np
from jax.experimental import pallas as pl
from jax.experimental.pallas import tpu as pltpu

LAYERS = 5            # self.layer_num
M_FILTERS = 9         # rows of A ("SpectralResponse_9")
C_BANDS = 31          # cols of A -> size of eye / Delta
C_PAD = 32            # band axis padded to a clean sublane multiple
ROW_TILE_MAX = 2048   # pixel rows (lane axis) per grid step, upper bound
ROW_ALIGN = 512       # tile granularity (multiple of 128)


def _soft_thresh(x, t):
    # Reference-only helper: SoftThresh(v, t) = sign(v) * max(|v| - t, 0)
    return jnp.sign(x) * jnp.maximum(jnp.abs(x) - t, 0.0)


def _pick_row_tile(rows):
    """Largest ROW_ALIGN multiple <= ROW_TILE_MAX that still leaves grid >= 2
    (feeds both TensorCores on v7x); falls back to ROW_ALIGN for tiny inputs."""
    half = -(-rows // 2)                              # ceil(rows / 2)
    half_aligned = -(-half // ROW_ALIGN) * ROW_ALIGN  # round up to ROW_ALIGN
    return max(ROW_ALIGN, min(ROW_TILE_MAX, half_aligned))


def ladmm_kernel(params_ref,   # SMEM (5, LAYERS): |g|, |a|, 1/|g|, 1/|a|, |lam/g|
                 bT_ref,       # (M+1, ROW_TILE)   b^T tile with appended ones row
                 w0_ref,       # (5*C_PAD, M+1)    layer-0 stacked weight
                 wl_ref,       # (LAYERS-1, 2*C_PAD, 3*C_PAD) per-layer fused weights
                 x_out_ref,    # (C_PAD, ROW_TILE) x^T tile
                 op_ref):      # VMEM scratch (3*C_PAD, ROW_TILE): [R1; u_tv; eta_tv]
    # ---- layer 0 (x=1, eta=tau=0): ONE stacked matmul gives every initial state ----
    s0 = jnp.dot(w0_ref[...], bT_ref[...], preferred_element_type=jnp.float32)
    bAT = s0[0 * C_PAD:1 * C_PAD]     # (b @ A)^T        -- loop invariant
    X = s0[1 * C_PAD:2 * C_PAD]       # x_1^T
    DX = s0[2 * C_PAD:3 * C_PAD]      # (x_1 @ DeltaT)^T
    T = s0[3 * C_PAD:4 * C_PAD]       # tau_1^T
    op_ref[2 * C_PAD:3 * C_PAD, :] = s0[4 * C_PAD:5 * C_PAD]   # eta_tv_1^T (in place)

    for i in range(1, LAYERS):        # static unroll over layers
        g = params_ref[0, i]
        a = params_ref[1, i]
        inv_g = params_ref[2, i]
        inv_a = params_ref[3, i]
        thr = params_ref[4, i]

        E = op_ref[2 * C_PAD:3 * C_PAD, :]

        # u_tv = SoftThresh(x@DeltaT + eta/|g|, thr)  ==  v - clip(v, -thr, thr)
        V = DX + E * inv_g
        U = V - jnp.clip(V, -thr, thr)
        op_ref[1 * C_PAD:2 * C_PAD, :] = U

        # w = relu(x + tau/|a|) ;  R1 = b@A + |a| w - tau   (transposed)
        W = jnp.maximum(X + T * inv_a, 0.0)
        op_ref[0 * C_PAD:1 * C_PAD, :] = bAT + a * W - T

        if i < LAYERS - 1:
            # [x ; x@DeltaT]^T in a single MXU pass on the stacked operand slab.
            XD = jnp.dot(wl_ref[i - 1], op_ref[...],
                         preferred_element_type=jnp.float32)
            Xn = XD[0:C_PAD]
            DX = XD[C_PAD:2 * C_PAD]
            op_ref[2 * C_PAD:3 * C_PAD, :] = E + g * (DX - U)   # eta_tv update
            T = T + a * (Xn - W)                                # tau update
            X = Xn
        else:
            # Final layer: eta/tau updates are dead; only x (top weight rows) needed.
            x_out_ref[...] = jnp.dot(wl_ref[i - 1][0:C_PAD, :], op_ref[...],
                                     preferred_element_type=jnp.float32)


def ladmm_forward(b, target, gamma_tv, alpha, lambda_tv, A):
    """b: (B, N, M) float32, target: (B, N, C) float32 (only shape/dtype used)."""
    B, N, M = b.shape
    C = target.shape[-1]
    assert A.shape == (M, C) and C == C_BANDS and M == M_FILTERS and LAYERS >= 2

    f32 = jnp.float32
    A = A.astype(f32)
    I = jnp.eye(C, dtype=f32)
    Delta = jnp.roll(I, 1, axis=1) - I
    DeltaT = Delta.T
    DtD = DeltaT @ Delta
    ATA = A.T @ A
    g = jnp.abs(gamma_tv).astype(f32)
    a = jnp.abs(alpha).astype(f32)

    # TODO(synk): torch.linalg.inv has no Pallas equivalent; add_item is
    # data-independent, so the 5 small (31,31) inverses are precomputed in plain JAX.
    inv_items = jnp.stack([jnp.linalg.inv(ATA + a[i] * I + g[i] * DtD)
                           for i in range(LAYERS)]).astype(f32)
    P = jnp.transpose(inv_items, (0, 2, 1))     # inv^T per layer
    Q = P @ DeltaT                              # inv^T @ Delta^T per layer

    # Padding hygiene: every padded channel row/col is ZERO, so x/eta/tau/u/w row 31
    # stays exactly 0 through all layers and is sliced off at the end.  Do not pad
    # the inverses (or A^T / Delta) with anything non-zero.
    def pad_rows(m):    # (C, k) -> (C_PAD, k)
        return jnp.concatenate([m, jnp.zeros((C_PAD - C, m.shape[1]), f32)], axis=0)

    def pad_sq(m):      # (C, C) -> (C_PAD, C_PAD)
        return jnp.zeros((C_PAD, C_PAD), f32).at[:C, :C].set(m)

    # ---- layer-0 stacked weight (5*C_PAD, M+1).  b^T gets an appended ones row so
    # the a0*ones / -a0*ones constants ride in the extra weight column.
    ones_c = jnp.ones((C, 1), f32)
    Kx = jnp.concatenate([P[0] @ A.T, a[0] * (P[0] @ ones_c)], axis=1)   # -> x_1
    Kb = jnp.concatenate([A.T, jnp.zeros((C, 1), f32)], axis=1)          # -> b@A
    Kd = Delta @ Kx                                                      # -> x_1@DeltaT
    Kt = a[0] * Kx - jnp.concatenate(                                    # -> tau_1
        [jnp.zeros((C, M), f32), a[0] * ones_c], axis=1)
    Ke = g[0] * Kd                                                       # -> eta_1
    W0 = jnp.concatenate([pad_rows(Kb), pad_rows(Kx), pad_rows(Kd),
                          pad_rows(Kt), pad_rows(Ke)], axis=0)           # (160, M+1)

    # ---- per-layer fused weights (LAYERS-1, 2*C_PAD, 3*C_PAD):
    #   x^T      = invT@R1 + (g invT DeltaT)@u_tv - (invT DeltaT)@eta_tv
    #   (x@DT)^T = Delta @ (the same three terms)
    wl = []
    for i in range(1, LAYERS):
        top = jnp.concatenate([pad_sq(P[i]), pad_sq(g[i] * Q[i]), pad_sq(-Q[i])],
                              axis=1)
        bot = jnp.concatenate([pad_sq(Delta @ P[i]), pad_sq(g[i] * (Delta @ Q[i])),
                               pad_sq(-(Delta @ Q[i]))], axis=1)
        wl.append(jnp.concatenate([top, bot], axis=0))
    WL = jnp.stack(wl)                                                   # (4, 64, 96)

    # SMEM per-layer scalars (abs / divides hoisted to the host).
    # Note: 1/|g|, |lam/g| are inf if gamma_tv[i]==0 -- same as the PyTorch reference.
    params = jnp.stack([g, a, 1.0 / g, 1.0 / a,
                        jnp.abs(lambda_tv).astype(f32) / g]).astype(f32)  # (5, LAYERS)

    # ---- transposed working layout: pixels on the lane axis, + ones row for layer 0.
    rows = B * N
    row_tile = _pick_row_tile(rows)
    rows_pad = pl.cdiv(rows, row_tile) * row_tile
    bT = jnp.zeros((M + 1, rows_pad), f32)
    bT = bT.at[:M, :rows].set(b.reshape(rows, M).astype(f32).T)
    bT = bT.at[M, :].set(1.0)

    grid = (rows_pad // row_tile,)

    xT = pl.pallas_call(
        ladmm_kernel,
        out_shape=jax.ShapeDtypeStruct((C_PAD, rows_pad), f32),
        grid_spec=pltpu.PrefetchScalarGridSpec(
            num_scalar_prefetch=1,          # params land in SMEM
            grid=grid,
            in_specs=[
                pl.BlockSpec((M + 1, row_tile), lambda r, p: (0, r)),
                pl.BlockSpec((5 * C_PAD, M + 1), lambda r, p: (0, 0)),
                pl.BlockSpec((LAYERS - 1, 2 * C_PAD, 3 * C_PAD),
                             lambda r, p: (0, 0, 0)),
            ],
            out_specs=pl.BlockSpec((C_PAD, row_tile), lambda r, p: (0, r)),
            scratch_shapes=[pltpu.VMEM((3 * C_PAD, row_tile), f32)],
        ),
        compiler_params=pltpu.CompilerParams(
            dimension_semantics=("parallel",)),
    )(params, bT, W0, WL)

    # Matches the module's (B, N, C) output.  A channel-major consumer could take
    # xT[:C, :rows] directly and skip this wrapper-side HBM transpose.
    return xT[:C, :rows].T.reshape(B, N, C)


def ladmm_reference(b, target, gamma_tv, alpha, lambda_tv, A):
    """Pure-JAX mirror of the PyTorch forward (mode='only_tv', has_res=False)."""
    B, N, M = b.shape
    C = target.shape[-1]
    I = jnp.eye(C, dtype=jnp.float32)
    Delta = jnp.roll(I, 1, axis=1) - I
    DeltaT = Delta.T
    DeltaTDelta = DeltaT @ Delta
    ATA = A.T @ A

    x = jnp.ones_like(target)
    eta_tv = jnp.zeros_like(x)
    tau = jnp.zeros_like(x)
    for i in range(LAYERS):
        g = jnp.abs(gamma_tv[i]); a = jnp.abs(alpha[i])
        thresh = jnp.abs(lambda_tv[i] / gamma_tv[i])
        u_tv = _soft_thresh(x @ DeltaT + eta_tv / g, thresh)
        w = jnp.maximum(x + tau / a, 0.0)
        residual = b @ A + a * w - tau + (g * u_tv - eta_tv) @ Delta
        add_item = ATA + a * I + g * DeltaTDelta
        x = residual @ jnp.linalg.inv(add_item)
        eta_tv = eta_tv + g * (x @ DeltaT - u_tv)
        tau = tau + a * (x - w)
    return x


if __name__ == "__main__":
    key = jax.random.PRNGKey(0)
    kA, kb, kt = jax.random.split(key, 3)

    B, N = 2, 32 * 32  # N = flattened H*W pixels (32x32) -> 2048 rows, grid = 2
    # Synthetic spectral-response matrix A (M_FILTERS, C_BANDS), deterministic.
    A = jax.random.uniform(kA, (M_FILTERS, C_BANDS), jnp.float32, 0.0, 0.2)

    # Module parameters (as in __init__).
    gamma_tv = jnp.full((LAYERS,), 10.0, jnp.float32)
    alpha = jnp.full((LAYERS,), 10.0, jnp.float32)
    lambda_tv = jnp.full((LAYERS,), 0.001, jnp.float32)

    b = jax.random.normal(kb, (B, N, M_FILTERS), jnp.float32)
    target = jax.random.normal(kt, (B, N, C_BANDS), jnp.float32)

    out = jax.block_until_ready(
        jax.jit(ladmm_forward)(b, target, gamma_tv, alpha, lambda_tv, A))
    ref = jax.block_until_ready(
        ladmm_reference(b, target, gamma_tv, alpha, lambda_tv, A))

    np.testing.assert_allclose(np.asarray(out), np.asarray(ref),
                               rtol=1e-3, atol=1e-3)
    print("KERNEL_OK")
</pallas_src>

<mosaic_0001>
module attributes {stable_mosaic.version = 11 : i64} {
  func.func @ladmm_kernel(%arg0: i32, %arg1: memref<5x5xf32, #tpu.memory_space<smem>>, %arg2: memref<10x1024xf32, #tpu.memory_space<vmem>>, %arg3: memref<160x10xf32, #tpu.memory_space<vmem>>, %arg4: memref<4x64x96xf32, #tpu.memory_space<vmem>>, %arg5: memref<32x1024xf32, #tpu.memory_space<vmem>>, %arg6: memref<96x1024xf32, #tpu.memory_space<vmem>>) attributes {dimension_semantics = [#tpu.dimension_semantics<parallel>], iteration_bounds = array<i64: 2>, scalar_prefetch = 1 : i64, scratch_operands = 1 : i64, tpu.core_type = #tpu.core_type<tc>, window_params = [{transform_indices = @transform_0, window_bounds = array<i64: 10, 1024>}, {pipeline_mode = #tpu.pipeline_mode<synchronous>, transform_indices = @transform_1, window_bounds = array<i64: 160, 10>}, {pipeline_mode = #tpu.pipeline_mode<synchronous>, transform_indices = @transform_2, window_bounds = array<i64: 4, 64, 96>}, {transform_indices = @transform_3, window_bounds = array<i64: 32, 1024>}]} {
    %c0 = arith.constant 0 : index
    %c0_0 = arith.constant 0 : index
    %0 = vector.load %arg3[%c0, %c0_0] : memref<160x10xf32, #tpu.memory_space<vmem>>, vector<160x10xf32>
    %c0_1 = arith.constant 0 : index
    %c0_2 = arith.constant 0 : index
    %1 = vector.load %arg2[%c0_1, %c0_2] : memref<10x1024xf32, #tpu.memory_space<vmem>>, vector<10x1024xf32>
    %cst = arith.constant dense<0.000000e+00> : vector<160x1024xf32>
    %2 = tpu.matmul %0, %1, %cst {dimension_numbers = #tpu.dot_dimension_numbers<[1], [0], [0], [1], [0, 0, 1, 1], [], []>} : vector<160x10xf32>, vector<10x1024xf32>, vector<160x1024xf32> -> vector<160x1024xf32>
    %3 = vector.extract_strided_slice %2 {offsets = [0, 0], sizes = [32, 1024], strides = [1, 1]} : vector<160x1024xf32> to vector<32x1024xf32>
    %4 = vector.extract_strided_slice %2 {offsets = [32, 0], sizes = [32, 1024], strides = [1, 1]} : vector<160x1024xf32> to vector<32x1024xf32>
    %5 = vector.extract_strided_slice %2 {offsets = [64, 0], sizes = [32, 1024], strides = [1, 1]} : vector<160x1024xf32> to vector<32x1024xf32>
    %6 = vector.extract_strided_slice %2 {offsets = [96, 0], sizes = [32, 1024], strides = [1, 1]} : vector<160x1024xf32> to vector<32x1024xf32>
    %7 = vector.extract_strided_slice %2 {offsets = [128, 0], sizes = [32, 1024], strides = [1, 1]} : vector<160x1024xf32> to vector<32x1024xf32>
    %c64 = arith.constant 64 : index
    %c0_3 = arith.constant 0 : index
    %8 = vector.load %arg6[%c64, %c0_3] : memref<96x1024xf32, #tpu.memory_space<vmem>>, vector<32x1024xf32>
    tpu.vector_store %arg6[%c64, %c0_3], %7 {strides = array<i32>} : memref<96x1024xf32, #tpu.memory_space<vmem>>, vector<32x1024xf32>,
    %c0_4 = arith.constant 0 : index
    %c1 = arith.constant 1 : index
    %9 = memref.load %arg1[%c0_4, %c1] : memref<5x5xf32, #tpu.memory_space<smem>>
    %c1_5 = arith.constant 1 : index
    %c1_6 = arith.constant 1 : index
    %10 = memref.load %arg1[%c1_5, %c1_6] : memref<5x5xf32, #tpu.memory_space<smem>>
    %c2 = arith.constant 2 : index
    %c1_7 = arith.constant 1 : index
    %11 = memref.load %arg1[%c2, %c1_7] : memref<5x5xf32, #tpu.memory_space<smem>>
    %c3 = arith.constant 3 : index
    %c1_8 = arith.constant 1 : index
    %12 = memref.load %arg1[%c3, %c1_8] : memref<5x5xf32, #tpu.memory_space<smem>>
    %c4 = arith.constant 4 : index
    %c1_9 = arith.constant 1 : index
    %13 = memref.load %arg1[%c4, %c1_9] : memref<5x5xf32, #tpu.memory_space<smem>>
    %c64_10 = arith.constant 64 : index
    %c0_11 = arith.constant 0 : index
    %14 = vector.load %arg6[%c64_10, %c0_11] : memref<96x1024xf32, #tpu.memory_space<vmem>>, vector<32x1024xf32>
    %15 = vector.broadcast %11 : f32 to vector<32x1024xf32>
    %16 = arith.mulf %14, %15 : vector<32x1024xf32>
    %17 = arith.addf %5, %16 : vector<32x1024xf32>
    %cst_12 = arith.constant 0.000000e+00 : f32
    %18 = arith.subf %cst_12, %13 : f32
    %19 = vector.broadcast %18 : f32 to vector<32x1024xf32>
    %20 = arith.maximumf %19, %17 : vector<32x1024xf32>
    %21 = vector.broadcast %13 : f32 to vector<32x1024xf32>
    %22 = arith.minimumf %21, %20 : vector<32x1024xf32>
    %23 = arith.subf %17, %22 : vector<32x1024xf32>
    %c32 = arith.constant 32 : index
    %c0_13 = arith.constant 0 : index
    %24 = vector.load %arg6[%c32, %c0_13] : memref<96x1024xf32, #tpu.memory_space<vmem>>, vector<32x1024xf32>
    tpu.vector_store %arg6[%c32, %c0_13], %23 {strides = array<i32>} : memref<96x1024xf32, #tpu.memory_space<vmem>>, vector<32x1024xf32>,
    %25 = vector.broadcast %12 : f32 to vector<32x1024xf32>
    %26 = arith.mulf %6, %25 : vector<32x1024xf32>
    %27 = arith.addf %4, %26 : vector<32x1024xf32>
    %cst_14 = arith.constant 0.000000e+00 : f32
    %28 = vector.broadcast %cst_14 : f32 to vector<32x1024xf32>
    %29 = arith.maximumf %27, %28 : vector<32x1024xf32>
    %30 = vector.broadcast %10 : f32 to vector<32x1024xf32>
    %31 = arith.mulf %30, %29 : vector<32x1024xf32>
    %32 = arith.addf %3, %31 : vector<32x1024xf32>
    %33 = arith.subf %32, %6 : vector<32x1024xf32>
    %c0_15 = arith.constant 0 : index
    %c0_16 = arith.constant 0 : index
    %34 = vector.load %arg6[%c0_15, %c0_16] : memref<96x1024xf32, #tpu.memory_space<vmem>>, vector<32x1024xf32>
    tpu.vector_store %arg6[%c0_15, %c0_16], %33 {strides = array<i32>} : memref<96x1024xf32, #tpu.memory_space<vmem>>, vector<32x1024xf32>,
    %c0_17 = arith.constant 0 : index
    %c0_18 = arith.constant 0 : index
    %c0_19 = arith.constant 0 : index
    %35 = vector.load %arg4[%c0_17, %c0_18, %c0_19] : memref<4x64x96xf32, #tpu.memory_space<vmem>>, vector<1x64x96xf32>
    %36 = vector.shape_cast %35 : vector<1x64x96xf32> to vector<64x96xf32>
    %c0_20 = arith.constant 0 : index
    %c0_21 = arith.constant 0 : index
    %37 = vector.load %arg6[%c0_20, %c0_21] : memref<96x1024xf32, #tpu.memory_space<vmem>>, vector<96x1024xf32>
    %cst_22 = arith.constant dense<0.000000e+00> : vector<64x1024xf32>
    %38 = tpu.matmul %36, %37, %cst_22 {dimension_numbers = #tpu.dot_dimension_numbers<[1], [0], [0], [1], [0, 0, 1, 1], [], []>} : vector<64x96xf32>, vector<96x1024xf32>, vector<64x1024xf32> -> vector<64x1024xf32>
    %39 = vector.extract_strided_slice %38 {offsets = [0, 0], sizes = [32, 1024], strides = [1, 1]} : vector<64x1024xf32> to vector<32x1024xf32>
    %40 = vector.extract_strided_slice %38 {offsets = [32, 0], sizes = [32, 1024], strides = [1, 1]} : vector<64x1024xf32> to vector<32x1024xf32>
    %41 = arith.subf %40, %23 : vector<32x1024xf32>
    %42 = vector.broadcast %9 : f32 to vector<32x1024xf32>
    %43 = arith.mulf %42, %41 : vector<32x1024xf32>
    %44 = arith.addf %14, %43 : vector<32x1024xf32>
    %c64_23 = arith.constant 64 : index
    %c0_24 = arith.constant 0 : index
    %45 = vector.load %arg6[%c64_23, %c0_24] : memref<96x1024xf32, #tpu.memory_space<vmem>>, vector<32x1024xf32>
    tpu.vector_store %arg6[%c64_23, %c0_24], %44 {strides = array<i32>} : memref<96x1024xf32, #tpu.memory_space<vmem>>, vector<32x1024xf32>,
    %46 = arith.subf %39, %29 : vector<32x1024xf32>
    %47 = vector.broadcast %10 : f32 to vector<32x1024xf32>
    %48 = arith.mulf %47, %46 : vector<32x1024xf32>
    %49 = arith.addf %6, %48 : vector<32x1024xf32>
    %c0_25 = arith.constant 0 : index
    %c2_26 = arith.constant 2 : index
    %50 = memref.load %arg1[%c0_25, %c2_26] : memref<5x5xf32, #tpu.memory_space<smem>>
    %c1_27 = arith.constant 1 : index
    %c2_28 = arith.constant 2 : index
    %51 = memref.load %arg1[%c1_27, %c2_28] : memref<5x5xf32, #tpu.memory_space<smem>>
    %c2_29 = arith.constant 2 : index
    %c2_30 = arith.constant 2 : index
    %52 = memref.load %arg1[%c2_29, %c2_30] : memref<5x5xf32, #tpu.memory_space<smem>>
    %c3_31 = arith.constant 3 : index
    %c2_32 = arith.constant 2 : index
    %53 = memref.load %arg1[%c3_31, %c2_32] : memref<5x5xf32, #tpu.memory_space<smem>>
    %c4_33 = arith.constant 4 : index
    %c2_34 = arith.constant 2 : index
    %54 = memref.load %arg1[%c4_33, %c2_34] : memref<5x5xf32, #tpu.memory_space<smem>>
    %c64_35 = arith.constant 64 : index
    %c0_36 = arith.constant 0 : index
    %55 = vector.load %arg6[%c64_35, %c0_36] : memref<96x1024xf32, #tpu.memory_space<vmem>>, vector<32x1024xf32>
    %56 = vector.broadcast %52 : f32 to vector<32x1024xf32>
    %57 = arith.mulf %55, %56 : vector<32x1024xf32>
    %58 = arith.addf %40, %57 : vector<32x1024xf32>
    %cst_37 = arith.constant 0.000000e+00 : f32
    %59 = arith.subf %cst_37, %54 : f32
    %60 = vector.broadcast %59 : f32 to vector<32x1024xf32>
    %61 = arith.maximumf %60, %58 : vector<32x1024xf32>
    %62 = vector.broadcast %54 : f32 to vector<32x1024xf32>
    %63 = arith.minimumf %62, %61 : vector<32x1024xf32>
    %64 = arith.subf %58, %63 : vector<32x1024xf32>
    %c32_38 = arith.constant 32 : index
    %c0_39 = arith.constant 0 : index
    %65 = vector.load %arg6[%c32_38, %c0_39] : memref<96x1024xf32, #tpu.memory_space<vmem>>, vector<32x1024xf32>
    tpu.vector_store %arg6[%c32_38, %c0_39], %64 {strides = array<i32>} : memref<96x1024xf32, #tpu.memory_space<vmem>>, vector<32x1024xf32>,
    %66 = vector.broadcast %53 : f32 to vector<32x1024xf32>
    %67 = arith.mulf %49, %66 : vector<32x1024xf32>
    %68 = arith.addf %39, %67 : vector<32x1024xf32>
    %cst_40 = arith.constant 0.000000e+00 : f32
    %69 = vector.broadcast %cst_40 : f32 to vector<32x1024xf32>
    %70 = arith.maximumf %68, %69 : vector<32x1024xf32>
    %71 = vector.broadcast %51 : f32 to vector<32x1024xf32>
    %72 = arith.mulf %71, %70 : vector<32x1024xf32>
    %73 = arith.addf %3, %72 : vector<32x1024xf32>
    %74 = arith.subf %73, %49 : vector<32x1024xf32>
    %c0_41 = arith.constant 0 : index
    %c0_42 = arith.constant 0 : index
    %75 = vector.load %arg6[%c0_41, %c0_42] : memref<96x1024xf32, #tpu.memory_space<vmem>>, vector<32x1024xf32>
    tpu.vector_store %arg6[%c0_41, %c0_42], %74 {strides = array<i32>} : memref<96x1024xf32, #tpu.memory_space<vmem>>, vector<32x1024xf32>,
    %c1_43 = arith.constant 1 : index
    %c0_44 = arith.constant 0 : index
    %c0_45 = arith.constant 0 : index
    %76 = vector.load %arg4[%c1_43, %c0_44, %c0_45] : memref<4x64x96xf32, #tpu.memory_space<vmem>>, vector<1x64x96xf32>
    %77 = vector.shape_cast %76 : vector<1x64x96xf32> to vector<64x96xf32>
    %c0_46 = arith.constant 0 : index
    %c0_47 = arith.constant 0 : index
    %78 = vector.load %arg6[%c0_46, %c0_47] : memref<96x1024xf32, #tpu.memory_space<vmem>>, vector<96x1024xf32>
    %cst_48 = arith.constant dense<0.000000e+00> : vector<64x1024xf32>
    %79 = tpu.matmul %77, %78, %cst_48 {dimension_numbers = #tpu.dot_dimension_numbers<[1], [0], [0], [1], [0, 0, 1, 1], [], []>} : vector<64x96xf32>, vector<96x1024xf32>, vector<64x1024xf32> -> vector<64x1024xf32>
    %80 = vector.extract_strided_slice %79 {offsets = [0, 0], sizes = [32, 1024], strides = [1, 1]} : vector<64x1024xf32> to vector<32x1024xf32>
    %81 = vector.extract_strided_slice %79 {offsets = [32, 0], sizes = [32, 1024], strides = [1, 1]} : vector<64x1024xf32> to vector<32x1024xf32>
    %82 = arith.subf %81, %64 : vector<32x1024xf32>
    %83 = vector.broadcast %50 : f32 to vector<32x1024xf32>
    %84 = arith.mulf %83, %82 : vector<32x1024xf32>
    %85 = arith.addf %55, %84 : vector<32x1024xf32>
    %c64_49 = arith.constant 64 : index
    %c0_50 = arith.constant 0 : index
    %86 = vector.load %arg6[%c64_49, %c0_50] : memref<96x1024xf32, #tpu.memory_space<vmem>>, vector<32x1024xf32>
    tpu.vector_store %arg6[%c64_49, %c0_50], %85 {strides = array<i32>} : memref<96x1024xf32, #tpu.memory_space<vmem>>, vector<32x1024xf32>,
    %87 = arith.subf %80, %70 : vector<32x1024xf32>
    %88 = vector.broadcast %51 : f32 to vector<32x1024xf32>
    %89 = arith.mulf %88, %87 : vector<32x1024xf32>
    %90 = arith.addf %49, %89 : vector<32x1024xf32>
    %c0_51 = arith.constant 0 : index
    %c3_52 = arith.constant 3 : index
    %91 = memref.load %arg1[%c0_51, %c3_52] : memref<5x5xf32, #tpu.memory_space<smem>>
    %c1_53 = arith.constant 1 : index
    %c3_54 = arith.constant 3 : index
    %92 = memref.load %arg1[%c1_53, %c3_54] : memref<5x5xf32, #tpu.memory_space<smem>>
    %c2_55 = arith.constant 2 : index
    %c3_56 = arith.constant 3 : index
    %93 = memref.load %arg1[%c2_55, %c3_56] : memref<5x5xf32, #tpu.memory_space<smem>>
    %c3_57 = arith.constant 3 : index
    %c3_58 = arith.constant 3 : index
    %94 = memref.load %arg1[%c3_57, %c3_58] : memref<5x5xf32, #tpu.memory_space<smem>>
    %c4_59 = arith.constant 4 : index
    %c3_60 = arith.constant 3 : index
    %95 = memref.load %arg1[%c4_59, %c3_60] : memref<5x5xf32, #tpu.memory_space<smem>>
    %c64_61 = arith.constant 64 : index
    %c0_62 = arith.constant 0 : index
    %96 = vector.load %arg6[%c64_61, %c0_62] : memref<96x1024xf32, #tpu.memory_space<vmem>>, vector<32x1024xf32>
    %97 = vector.broadcast %93 : f32 to vector<32x1024xf32>
    %98 = arith.mulf %96, %97 : vector<32x1024xf32>
    %99 = arith.addf %81, %98 : vector<32x1024xf32>
    %cst_63 = arith.constant 0.000000e+00 : f32
    %100 = arith.subf %cst_63, %95 : f32
    %101 = vector.broadcast %100 : f32 to vector<32x1024xf32>
    %102 = arith.maximumf %101, %99 : vector<32x1024xf32>
    %103 = vector.broadcast %95 : f32 to vector<32x1024xf32>
    %104 = arith.minimumf %103, %102 : vector<32x1024xf32>
    %105 = arith.subf %99, %104 : vector<32x1024xf32>
    %c32_64 = arith.constant 32 : index
    %c0_65 = arith.constant 0 : index
    %106 = vector.load %arg6[%c32_64, %c0_65] : memref<96x1024xf32, #tpu.memory_space<vmem>>, vector<32x1024xf32>
    tpu.vector_store %arg6[%c32_64, %c0_65], %105 {strides = array<i32>} : memref<96x1024xf32, #tpu.memory_space<vmem>>, vector<32x1024xf32>,
    %107 = vector.broadcast %94 : f32 to vector<32x1024xf32>
    %108 = arith.mulf %90, %107 : vector<32x1024xf32>
    %109 = arith.addf %80, %108 : vector<32x1024xf32>
    %cst_66 = arith.constant 0.000000e+00 : f32
    %110 = vector.broadcast %cst_66 : f32 to vector<32x1024xf32>
    %111 = arith.maximumf %109, %110 : vector<32x1024xf32>
    %112 = vector.broadcast %92 : f32 to vector<32x1024xf32>
    %113 = arith.mulf %112, %111 : vector<32x1024xf32>
    %114 = arith.addf %3, %113 : vector<32x1024xf32>
    %115 = arith.subf %114, %90 : vector<32x1024xf32>
    %c0_67 = arith.constant 0 : index
    %c0_68 = arith.constant 0 : index
    %116 = vector.load %arg6[%c0_67, %c0_68] : memref<96x1024xf32, #tpu.memory_space<vmem>>, vector<32x1024xf32>
    tpu.vector_store %arg6[%c0_67, %c0_68], %115 {strides = array<i32>} : memref<96x1024xf32, #tpu.memory_space<vmem>>, vector<32x1024xf32>,
    %c2_69 = arith.constant 2 : index
    %c0_70 = arith.constant 0 : index
    %c0_71 = arith.constant 0 : index
    %117 = vector.load %arg4[%c2_69, %c0_70, %c0_71] : memref<4x64x96xf32, #tpu.memory_space<vmem>>, vector<1x64x96xf32>
    %118 = vector.shape_cast %117 : vector<1x64x96xf32> to vector<64x96xf32>
    %c0_72 = arith.constant 0 : index
    %c0_73 = arith.constant 0 : index
    %119 = vector.load %arg6[%c0_72, %c0_73] : memref<96x1024xf32, #tpu.memory_space<vmem>>, vector<96x1024xf32>
    %cst_74 = arith.constant dense<0.000000e+00> : vector<64x1024xf32>
    %120 = tpu.matmul %118, %119, %cst_74 {dimension_numbers = #tpu.dot_dimension_numbers<[1], [0], [0], [1], [0, 0, 1, 1], [], []>} : vector<64x96xf32>, vector<96x1024xf32>, vector<64x1024xf32> -> vector<64x1024xf32>
    %121 = vector.extract_strided_slice %120 {offsets = [0, 0], sizes = [32, 1024], strides = [1, 1]} : vector<64x1024xf32> to vector<32x1024xf32>
    %122 = vector.extract_strided_slice %120 {offsets = [32, 0], sizes = [32, 1024], strides = [1, 1]} : vector<64x1024xf32> to vector<32x1024xf32>
    %123 = arith.subf %122, %105 : vector<32x1024xf32>
    %124 = vector.broadcast %91 : f32 to vector<32x1024xf32>
    %125 = arith.mulf %124, %123 : vector<32x1024xf32>
    %126 = arith.addf %96, %125 : vector<32x1024xf32>
    %c64_75 = arith.constant 64 : index
    %c0_76 = arith.constant 0 : index
    %127 = vector.load %arg6[%c64_75, %c0_76] : memref<96x1024xf32, #tpu.memory_space<vmem>>, vector<32x1024xf32>
    tpu.vector_store %arg6[%c64_75, %c0_76], %126 {strides = array<i32>} : memref<96x1024xf32, #tpu.memory_space<vmem>>, vector<32x1024xf32>,
    %128 = arith.subf %121, %111 : vector<32x1024xf32>
    %129 = vector.broadcast %92 : f32 to vector<32x1024xf32>
    %130 = arith.mulf %129, %128 : vector<32x1024xf32>
    %131 = arith.addf %90, %130 : vector<32x1024xf32>
    %c1_77 = arith.constant 1 : index
    %c4_78 = arith.constant 4 : index
    %132 = memref.load %arg1[%c1_77, %c4_78] : memref<5x5xf32, #tpu.memory_space<smem>>
    %c2_79 = arith.constant 2 : index
    %c4_80 = arith.constant 4 : index
    %133 = memref.load %arg1[%c2_79, %c4_80] : memref<5x5xf32, #tpu.memory_space<smem>>
    %c3_81 = arith.constant 3 : index
    %c4_82 = arith.constant 4 : index
    %134 = memref.load %arg1[%c3_81, %c4_82] : memref<5x5xf32, #tpu.memory_space<smem>>
    %c4_83 = arith.constant 4 : index
    %c4_84 = arith.constant 4 : index
    %135 = memref.load %arg1[%c4_83, %c4_84] : memref<5x5xf32, #tpu.memory_space<smem>>
    %c64_85 = arith.constant 64 : index
    %c0_86 = arith.constant 0 : index
    %136 = vector.load %arg6[%c64_85, %c0_86] : memref<96x1024xf32, #tpu.memory_space<vmem>>, vector<32x1024xf32>
    %137 = vector.broadcast %133 : f32 to vector<32x1024xf32>
    %138 = arith.mulf %136, %137 : vector<32x1024xf32>
    %139 = arith.addf %122, %138 : vector<32x1024xf32>
    %cst_87 = arith.constant 0.000000e+00 : f32
    %140 = arith.subf %cst_87, %135 : f32
    %141 = vector.broadcast %140 : f32 to vector<32x1024xf32>
    %142 = arith.maximumf %141, %139 : vector<32x1024xf32>
    %143 = vector.broadcast %135 : f32 to vector<32x1024xf32>
    %144 = arith.minimumf %143, %142 : vector<32x1024xf32>
    %145 = arith.subf %139, %144 : vector<32x1024xf32>
    %c32_88 = arith.constant 32 : index
    %c0_89 = arith.constant 0 : index
    %146 = vector.load %arg6[%c32_88, %c0_89] : memref<96x1024xf32, #tpu.memory_space<vmem>>, vector<32x1024xf32>
    tpu.vector_store %arg6[%c32_88, %c0_89], %145 {strides = array<i32>} : memref<96x1024xf32, #tpu.memory_space<vmem>>, vector<32x1024xf32>,
    %147 = vector.broadcast %134 : f32 to vector<32x1024xf32>
    %148 = arith.mulf %131, %147 : vector<32x1024xf32>
    %149 = arith.addf %121, %148 : vector<32x1024xf32>
    %cst_90 = arith.constant 0.000000e+00 : f32
    %150 = vector.broadcast %cst_90 : f32 to vector<32x1024xf32>
    %151 = arith.maximumf %149, %150 : vector<32x1024xf32>
    %152 = vector.broadcast %132 : f32 to vector<32x1024xf32>
    %153 = arith.mulf %152, %151 : vector<32x1024xf32>
    %154 = arith.addf %3, %153 : vector<32x1024xf32>
    %155 = arith.subf %154, %131 : vector<32x1024xf32>
    %c0_91 = arith.constant 0 : index
    %c0_92 = arith.constant 0 : index
    %156 = vector.load %arg6[%c0_91, %c0_92] : memref<96x1024xf32, #tpu.memory_space<vmem>>, vector<32x1024xf32>
    tpu.vector_store %arg6[%c0_91, %c0_92], %155 {strides = array<i32>} : memref<96x1024xf32, #tpu.memory_space<vmem>>, vector<32x1024xf32>,
    %c3_93 = arith.constant 3 : index
    %c0_94 = arith.constant 0 : index
    %c0_95 = arith.constant 0 : index
    %157 = vector.load %arg4[%c3_93, %c0_94, %c0_95] : memref<4x64x96xf32, #tpu.memory_space<vmem>>, vector<1x64x96xf32>
    %158 = vector.shape_cast %157 : vector<1x64x96xf32> to vector<64x96xf32>
    %159 = vector.extract_strided_slice %158 {offsets = [0, 0], sizes = [32, 96], strides = [1, 1]} : vector<64x96xf32> to vector<32x96xf32>
    %c0_96 = arith.constant 0 : index
    %c0_97 = arith.constant 0 : index
    %160 = vector.load %arg6[%c0_96, %c0_97] : memref<96x1024xf32, #tpu.memory_space<vmem>>, vector<96x1024xf32>
    %cst_98 = arith.constant dense<0.000000e+00> : vector<32x1024xf32>
    %161 = tpu.matmul %159, %160, %cst_98 {dimension_numbers = #tpu.dot_dimension_numbers<[1], [0], [0], [1], [0, 0, 1, 1], [], []>} : vector<32x96xf32>, vector<96x1024xf32>, vector<32x1024xf32> -> vector<32x1024xf32>
    %c0_99 = arith.constant 0 : index
    %c0_100 = arith.constant 0 : index
    %162 = vector.load %arg5[%c0_99, %c0_100] : memref<32x1024xf32, #tpu.memory_space<vmem>>, vector<32x1024xf32>
    tpu.vector_store %arg5[%c0_99, %c0_100], %161 {strides = array<i32>} : memref<32x1024xf32, #tpu.memory_space<vmem>>, vector<32x1024xf32>,
    return
  }
  func.func @transform_0(%arg0: i32, %arg1: memref<5x5xf32, #tpu.memory_space<smem>>) -> (i32, i32) {
    %c0_i32 = arith.constant 0 : i32
    %c0_i32_0 = arith.constant 0 : i32
    return %c0_i32, %arg0 : i32, i32
  }
  func.func @transform_1(%arg0: i32, %arg1: memref<5x5xf32, #tpu.memory_space<smem>>) -> (i32, i32) {
    %c0_i32 = arith.constant 0 : i32
    %c0_i32_0 = arith.constant 0 : i32
    %c0_i32_1 = arith.constant 0 : i32
    return %c0_i32, %c0_i32_0 : i32, i32
  }
  func.func @transform_2(%arg0: i32, %arg1: memref<5x5xf32, #tpu.memory_space<smem>>) -> (i32, i32, i32) {
    %c0_i32 = arith.constant 0 : i32
    %c0_i32_0 = arith.constant 0 : i32
    %c0_i32_1 = arith.constant 0 : i32
    %c0_i32_2 = arith.constant 0 : i32
    return %c0_i32, %c0_i32_0, %c0_i32_1 : i32, i32, i32
  }
  func.func @transform_3(%arg0: i32, %arg1: memref<5x5xf32, #tpu.memory_space<smem>>) -> (i32, i32) {
    %c0_i32 = arith.constant 0 : i32
    %c0_i32_0 = arith.constant 0 : i32
    return %c0_i32, %arg0 : i32, i32
  }
}

</mosaic_0001>

<llo_original>
// kernel: custom-call.35
$region0: #{custom-call.35}
  %s0 = inlined_call_operand.vmem [shape: f32[31,31], index: 0, kind: input, shape index: {}]
  %s1 = inlined_call_operand.vmem [shape: f32[31,31], index: 1, kind: output, shape index: {0}]
  %s2 = inlined_call_operand.hbm [shape: s32[31], index: 2, kind: output, shape index: {1}]
  %s3 = inlined_call_operand.vmem [shape: s32[31], index: 3, kind: output, shape index: {2}]
  %4 = xla_tuple %s1, %s2, %s3
  $region1: #{custom-call.35} parent=0
    #allocation0 [shape = 'u8[16384]{0}', space=vmem, size = 0x4000, scoped, tag = 'operand span for operand 0']
    #allocation1 [shape = 'u8[16384]{0}', space=vmem, size = 0x4000, scoped, tag = 'operand span for operand 1']
    #allocation2 [shape = 'u8[4096]{0}', space=vmem, size = 0x1000, scoped, tag = 'operand span for operand 2']
    #allocation3 [shape = 'u8[512]{0}', space=vmem, size = 0x400, scoped, tag = 'packed  for operand 2']
    #allocation4 [shape = 's32[1]{0}', space=sflag, size = 0x4, scoped, tag = 'scoped memory for custom-call.35']
    #allocation5 [shape = 'u8[4096]{0}', space=vmem, size = 0x1000, scoped, tag = 'operand span for operand 3']
    #allocation6 [shape = 'u8[512]{0}', space=vmem, size = 0x400, scoped, tag = 'packed  for operand 3']
    #allocation7 [shape = 's32[31,128]{1,0}', space=vmem, size = 0x4000, scoped, tag = 'scratch for permutations']
    %5 = vsyncpa [#allocation4], 0
    %p7 = scmp.gt.s32.totalorder 32, 0
    // Predicated region
    $region2: #{custom-call.35} parent=1 // pred_check
      %p8 = pneg %p7
    $region3: #{custom-call.35} parent=1 // pred_check_branch
      %10 = sbr.rel (%p8) target = $region5
    $region4: #{custom-call.35} parent=1 // pred_region
      %s11 = sshra.s32 32, 3
      %p12 = scmp.gt.s32.totalorder %s11, 0
      // Predicated region
      $region6: #{custom-call.35} parent=4 // pred_check
        %p13 = pneg %p12
      $region7: #{custom-call.35} parent=4 // pred_check_branch
        %15 = sbr.rel (%p13) target = $region9
      $region8: #{custom-call.35} parent=4 // pred_region
        %s16 = ssub.s32 %s11, 1
        %s17 = smul.u32 %s16, 128
        %s18 = sshra.s32 %s17, 4
        %s19 = scalar_lea.vmem %s0, %s18
        %v20 = vld [vmem:[%s0] sm:$0xff]
        // While loop
        $region10: #{custom-call.35} parent=8 // loop_pre_header
          _
        $region11: #{custom-call.35} parent=8 // loop_header
          %s21 = sphi %s0, %s43
          %s22 = sphi [#allocation0], %s44
          %v23 = vphi %v20, %v45
          %s24 = ssub.s32 %s19, 64
          %p25 = scmp.gt.s32.totalorder %s21, %s24
        $region12: #{custom-call.35} parent=8 // loop_header_branch
          %27 = sbr.rel (%p25) target = $region16
        $region13: #{custom-call.35} parent=8 // loop_body
          %28 = vst [vmem:[%s22] sm:$0xff] %v23
          %v29 = vld [vmem:[%s21 + $0x8] sm:$0xff]
          %30 = vst [vmem:[%s22 + $0x8] sm:$0xff] %v29
          %v31 = vld [vmem:[%s21 + $0x10] sm:$0xff]
          %32 = vst [vmem:[%s22 + $0x10] sm:$0xff] %v31
          %v33 = vld [vmem:[%s21 + $0x18] sm:$0xff]
          %34 = vst [vmem:[%s22 + $0x18] sm:$0xff] %v33
          %v35 = vld [vmem:[%s21 + $0x20] sm:$0xff]
          %36 = vst [vmem:[%s22 + $0x20] sm:$0xff] %v35
          %v37 = vld [vmem:[%s21 + $0x28] sm:$0xff]
          %38 = vst [vmem:[%s22 + $0x28] sm:$0xff] %v37
          %v39 = vld [vmem:[%s21 + $0x30] sm:$0xff]
          %40 = vst [vmem:[%s22 + $0x30] sm:$0xff] %v39
          %v41 = vld [vmem:[%s21 + $0x38] sm:$0xff]
          %42 = vst [vmem:[%s22 + $0x38] sm:$0xff] %v41
        $region14: #{custom-call.35} parent=8 // loop_footer
          %s43 = scalar_lea.vmem %s21, 64
          %s44 = scalar_lea.vmem %s22, 64
          %v45 = vld [vmem:[%s21 + $0x40] sm:$0xff]
        $region15: #{custom-call.35} parent=8 // loop_footer_branch
          %46 = sbr.rel target = $region11
        $region16: #{custom-call.35} parent=8 // loop_exit
          _
        // While loop
        $region17: #{custom-call.35} parent=8 // loop_pre_header
          _
        $region18: #{custom-call.35} parent=8 // loop_header
          %s47 = sphi %s21, %s55
          %s48 = sphi %s22, %s56
          %v49 = vphi %v23, %v49
          %p50 = scmp.gt.s32.totalorder %s47, %s19
        $region19: #{custom-call.35} parent=8 // loop_header_branch
          %52 = sbr.rel (%p50) target = $region23
        $region20: #{custom-call.35} parent=8 // loop_body
          %v53 = vld [vmem:[%s47] sm:$0xff]
          %54 = vst [vmem:[%s48] sm:$0xff] %v53
        $region21: #{custom-call.35} parent=8 // loop_footer
          %s55 = scalar_lea.vmem %s47, 8
          %s56 = scalar_lea.vmem %s48, 8
        $region22: #{custom-call.35} parent=8 // loop_footer_branch
          %57 = sbr.rel target = $region18
        $region23: #{custom-call.35} parent=8 // loop_exit
          _
      $region9: #{custom-call.35} parent=4 // pred_fallthru
        _
      %s58 = sand.u32 32, 7
      %s59 = sshllo.u32 0, %s58
      %s60 = smul.u32 %s11, 128
      %s61 = sshra.s32 %s60, 4
      %s62 = scalar_lea.vmem [#allocation0], %s61
      %s63 = smul.u32 %s11, 128
      %s64 = sshra.s32 %s63, 4
      %s65 = scalar_lea.vmem %s0, %s64
      %v66 = vld [vmem:[%s65] sm:%s59]
      %67 = vst [vmem:[%s62] sm:%s59] %v66
    $region5: #{custom-call.35} parent=1 // pred_fallthru
      _
    %v68 = vld [vmem:[#allocation0] sm:$0xff]
    %69 = vst [vmem:[#allocation1] sm:$0xff] %v68
    %s70 = scalar_lea.vmem [#allocation1], 8
    %s71 = scalar_lea.vmem [#allocation0], 8
    %v72 = vld [vmem:[%s71] sm:$0xff]
    %73 = vst [vmem:[%s70] sm:$0xff] %v72
    %s74 = scalar_lea.vmem [#allocation1], 16
    %s75 = scalar_lea.vmem [#allocation0], 16
    %v76 = vld [vmem:[%s75] sm:$0xff]
    %77 = vst [vmem:[%s74] sm:$0xff] %v76
    %s78 = scalar_lea.vmem [#allocation1], 24
    %s79 = scalar_lea.vmem [#allocation0], 24
    %v80 = vld [vmem:[%s79] sm:$0xff]
    %81 = vst [vmem:[%s78] sm:$0xff] %v80
    %82 = vst [vmem:[#allocation2] sm:$0x1] 0
    %v83 = vlaneseq
    %v84 = vshrl.u32 %v83, 7
    %v85 = vmov %v84
    loop: start=0, step=1, limit=4
    $region24: #{custom-call.35} parent=1 // loop_pre_header
      _
    $region25: #{custom-call.35} parent=1 // loop_header
      %s87 = sphi 0, %s91
      %p88 = scmp.ge.s32.totalorder %s87, 4
    $region26: #{custom-call.35} parent=1 // loop_header_branch
      %90 = sbr.rel (%p88) target = $region30
    $region27: #{custom-call.35} parent=1 // loop_body
      %s92 = smul.addr %s87, 8
      %s93 = scalar_lea.vmem [#allocation7], %s92
      %s94 = smul.u32 %s87, 8
      %v95 = vstv %s94
      %v96 = vadd.s32 %v85, %v95
      %97 = vst [vmem:[%s93] sm:$0xff] %v96
    $region28: #{custom-call.35} parent=1 // loop_footer
      %s91 = sadd.s32 1, %s87
    $region29: #{custom-call.35} parent=1 // loop_footer_branch
      %86 = sbr.rel target = $region25
    $region30: #{custom-call.35} parent=1 // loop_exit
      _
    loop: start=0, step=1, limit=31
    $region31: #{custom-call.35} parent=1 // loop_pre_header
      _
    $region32: #{custom-call.35} parent=1 // loop_header
      %s99 = sphi 0, %s103
      %p100 = scmp.ge.s32.totalorder %s99, 31
    $region33: #{custom-call.35} parent=1 // loop_header_branch
      %102 = sbr.rel (%p100) target = $region37
    $region34: #{custom-call.35} parent=1 // loop_body
      %v104 = vstv %s99
      %v105 = vlaneseq
      %v106 = vshrl.u32 %v105, 7
      %v107 = vmov %v106
      %v108 = vld [vmem:[#allocation1] sm:$0xff]
      %v109 = vand.u32 2147483647, %v108
      %v111 = vstv %s99
      %vm112 = vcmp.ge.s32.totalorder %v107, %v111
      %vm113 = vcmp.lt.s32.totalorder %v107, 31
      %vm114 = vmand %vm112, %vm113
      %vm115 = vcmp.lt.f32.partialorder -inf, %v109
      %vm116 = vmand %vm114, %vm115
      %v117 = vsel %vm116, %v107, %v104
      %v118 = vsel %vm116, %v109, -inf
      %s119 = scalar_lea.vmem [#allocation1], 8
      %v120 = vld [vmem:[%s119] sm:$0xff]
      %v121 = vand.u32 2147483647, %v120
      %v122 = vadd.s32 %v107, 8
      %v123 = vstv %s99
      %vm124 = vcmp.ge.s32.totalorder %v122, %v123
      %vm125 = vcmp.lt.s32.totalorder %v122, 31
      %vm126 = vmand %vm124, %vm125
      %vm127 = vcmp.lt.f32.partialorder %v118, %v121
      %vm128 = vmand %vm126, %vm127
      %v129 = vsel %vm128, %v122, %v117
      %v130 = vsel %vm128, %v121, %v118
      %s131 = scalar_lea.vmem [#allocation1], 16
      %v132 = vld [vmem:[%s131] sm:$0xff]
      %v133 = vand.u32 2147483647, %v132
      %v134 = vadd.s32 %v107, 16
      %v135 = vstv %s99
      %vm136 = vcmp.ge.s32.totalorder %v134, %v135
      %vm137 = vcmp.lt.s32.totalorder %v134, 31
      %vm138 = vmand %vm136, %vm137
      %vm139 = vcmp.lt.f32.partialorder %v130, %v133
      %vm140 = vmand %vm138, %vm139
      %v141 = vsel %vm140, %v134, %v129
      %v142 = vsel %vm140, %v133, %v130
      %s143 = scalar_lea.vmem [#allocation1], 24
      %v144 = vld [vmem:[%s143] sm:$0xff]
      %v145 = vand.u32 2147483647, %v144
      %v146 = vadd.s32 %v107, 24
      %v147 = vstv %s99
      %vm148 = vcmp.ge.s32.totalorder %v146, %v147
      %vm149 = vcmp.lt.s32.totalorder %v146, 31
      %vm150 = vmand %vm148, %vm149
      %vm151 = vcmp.lt.f32.partialorder %v142, %v145
      %vm152 = vmand %vm150, %vm151
      %v153 = vsel %vm152, %v146, %v141
      %v154 = vsel %vm152, %v145, %v142
      %v155 = vrot.slane %v154, 1
      %v156 = vrot.slane %v153, 1
      %vm157 = vcmp.ge.f32.partialorder %v155, %v154
      %v158 = vsel %vm157, %v155, %v154
      %v159 = vsel %vm157, %v156, %v153
      %v160 = vrot.slane %v155, 1
      %v161 = vrot.slane %v156, 1
      %vm162 = vcmp.ge.f32.partialorder %v160, %v158
      %v163 = vsel %vm162, %v160, %v158
      %v164 = vsel %vm162, %v161, %v159
      %v165 = vrot.slane %v160, 1
      %v166 = vrot.slane %v161, 1
      %vm167 = vcmp.ge.f32.partialorder %v165, %v163
      %v168 = vsel %vm167, %v165, %v163
      %v169 = vsel %vm167, %v166, %v164
      %v170 = vrot.slane %v165, 1
      %v171 = vrot.slane %v166, 1
      %vm172 = vcmp.ge.f32.partialorder %v170, %v168
      %v173 = vsel %vm172, %v170, %v168
      %v174 = vsel %vm172, %v171, %v169
      %v175 = vrot.slane %v170, 1
      %v176 = vrot.slane %v171, 1
      %vm177 = vcmp.ge.f32.partialorder %v175, %v173
      %v178 = vsel %vm177, %v175, %v173
      %v179 = vsel %vm177, %v176, %v174
      %v180 = vrot.slane %v175, 1
      %v181 = vrot.slane %v176, 1
      %vm182 = vcmp.ge.f32.partialorder %v180, %v178
      %v183 = vsel %vm182, %v180, %v178
      %v184 = vsel %vm182, %v181, %v179
      %v185 = vrot.slane %v180, 1
      %v186 = vrot.slane %v181, 1
      %vm187 = vcmp.ge.f32.partialorder %v185, %v183
      %v188 = vsel %vm187, %v185, %v183
      %v189 = vsel %vm187, %v186, %v184
      %s190 = ssub.s32 128, %s99
      %191 = vrot.lane.b32.xlu0 %v189, %s190
      %v192 = vpop.permute.xlu0 %191
      %s193 = vtos %v192
      %v194 = vstv %s99
      %v195 = vlaneseq
      %v196 = vand.u32 %v195, 127
      %vm197 = vcmp.eq.s32.totalorder %v196, %v194
      %v198 = vstv %s193
      %v199 = vld [vmem:[#allocation2] ss:$0 sm:$0xff]
      %v200 = vsel %vm197, %v198, %v199
      %201 = vst [vmem:[#allocation2] sm:$0x1] %v200
      %s202 = scalar_lea.vmem [#allocation1], %s99
      %s203 = scalar_lea.vmem [#allocation1], %s193
      %v204 = vld [vmem:[%s202] ss:$0 sm:$0xff]
      %v205 = vld [vmem:[%s203] ss:$0 sm:$0xff]
      %206 = vst [vmem:[%s203] sm:$0x1] %v204
      %207 = vst [vmem:[%s202] sm:$0x1] %v205
      %s208 = scalar_lea.vmem [#allocation7], %s99
      %s209 = scalar_lea.vmem [#allocation7], %s193
      %v210 = vld [vmem:[%s208] ss:$0 sm:$0xff]
      %v211 = vld [vmem:[%s209] ss:$0 sm:$0xff]
      %212 = vst [vmem:[%s209] sm:$0x1] %v210
      %213 = vst [vmem:[%s208] sm:$0x1] %v211
      %vm214 = vcmp.ne.f32.partialorder %v205, 0.0
      %vm215 = vmand %vm197, %vm214
      %v216 = vsel %vm215, %v205, 1.0
      %v217 = vlaneseq
      %v218 = vand.u32 %v217, 127
      %v219 = vstv %s99
      %vm220 = vcmp.gt.s32.totalorder %v218, %v219
      %v221 = vsel %vm220, %v205, 0.0
      %v222 = vlaneseq
      %v223 = vshrl.u32 %v222, 7
      %v224 = vmov %v223
      %v225 = vld [vmem:[#allocation1] sm:$0xff]
      %v227 = vstv %s99
      %vm228 = vcmp.gt.s32.totalorder %v224, %v227
      %v229 = vsel %vm228, %v216, 1.0
      %v230 = vrcp.pop %v229
      %v231 = vmul.f32 %v225, %v230
      %vm232 = vmand %vm228, %vm197
      %v233 = vsel %vm232, %v231, 0.0
      %234 = vadd.xlane.f32.xlu0 %v233
      %v235 = vpop.xlane.xlu0 %234
      %v236 = vmul.f32 %v235, %v221
      %v237 = vsub.f32 %v231, %v236
      %238 = vst [vmem:[#allocation1] sm:$0xff] %v237
      %s239 = scalar_lea.vmem [#allocation1], 8
      %v240 = vld [vmem:[%s239] sm:$0xff]
      %v241 = vadd.s32 %v224, 8
      %v242 = vstv %s99
      %vm243 = vcmp.gt.s32.totalorder %v241, %v242
      %v244 = vsel %vm243, %v216, 1.0
      %v245 = vrcp.pop %v244
      %v246 = vmul.f32 %v240, %v245
      %vm247 = vmand %vm243, %vm197
      %v248 = vsel %vm247, %v246, 0.0
      %249 = vadd.xlane.f32.xlu0 %v248
      %v250 = vpop.xlane.xlu0 %249
      %v251 = vmul.f32 %v250, %v221
      %v252 = vsub.f32 %v246, %v251
      %253 = vst [vmem:[%s239] sm:$0xff] %v252
      %s254 = scalar_lea.vmem [#allocation1], 16
      %v255 = vld [vmem:[%s254] sm:$0xff]
      %v256 = vadd.s32 %v224, 16
      %v257 = vstv %s99
      %vm258 = vcmp.gt.s32.totalorder %v256, %v257
      %v259 = vsel %vm258, %v216, 1.0
      %v260 = vrcp.pop %v259
      %v261 = vmul.f32 %v255, %v260
      %vm262 = vmand %vm258, %vm197
      %v263 = vsel %vm262, %v261, 0.0
      %264 = vadd.xlane.f32.xlu0 %v263
      %v265 = vpop.xlane.xlu0 %264
      %v266 = vmul.f32 %v265, %v221
      %v267 = vsub.f32 %v261, %v266
      %268 = vst [vmem:[%s254] sm:$0xff] %v267
      %s269 = scalar_lea.vmem [#allocation1], 24
      %v270 = vld [vmem:[%s269] sm:$0xff]
      %v271 = vadd.s32 %v224, 24
      %v272 = vstv %s99
      %vm273 = vcmp.gt.s32.totalorder %v271, %v272
      %v274 = vsel %vm273, %v216, 1.0
      %v275 = vrcp.pop %v274
      %v276 = vmul.f32 %v270, %v275
      %vm277 = vmand %vm273, %vm197
      %v278 = vsel %vm277, %v276, 0.0
      %279 = vadd.xlane.f32.xlu0 %v278
      %v280 = vpop.xlane.xlu0 %279
      %v281 = vmul.f32 %v280, %v221
      %v282 = vsub.f32 %v276, %v281
      %283 = vst [vmem:[%s269] sm:$0xff] %v282
    $region35: #{custom-call.35} parent=1 // loop_footer
      %s103 = sadd.s32 1, %s99
    $region36: #{custom-call.35} parent=1 // loop_footer_branch
      %98 = sbr.rel target = $region32
    $region37: #{custom-call.35} parent=1 // loop_exit
      _
    %v284 = vld [vmem:[#allocation7] sm:$0xff]
    %s285 = scalar_lea.vmem [#allocation7], 8
    %v286 = vld [vmem:[%s285] sm:$0xff]
    %s287 = scalar_lea.vmem [#allocation7], 16
    %v288 = vld [vmem:[%s287] sm:$0xff]
    %s289 = scalar_lea.vmem [#allocation7], 24
    %v290 = vld [vmem:[%s289] sm:$0xff]
    %s291 = scalar_lea.vmem [#allocation7], 32
    %s292 = scalar_lea.vmem [#allocation7], 40
    %s293 = scalar_lea.vmem [#allocation7], 48
    %s294 = scalar_lea.vmem [#allocation7], 56
    %s295 = scalar_lea.vmem [#allocation7], 64
    %s296 = scalar_lea.vmem [#allocation7], 72
    %s297 = scalar_lea.vmem [#allocation7], 80
    %s298 = scalar_lea.vmem [#allocation7], 88
    %s299 = scalar_lea.vmem [#allocation7], 96
    %s300 = scalar_lea.vmem [#allocation7], 104
    %s301 = scalar_lea.vmem [#allocation7], 112
    %s302 = scalar_lea.vmem [#allocation7], 120
    %303 = vxpose.xlu0.b32.start [1/16] %v284, 128
    %304 = vxpose.xlu0.b32.cont [2/16] %v286, 128
    %305 = vxpose.xlu0.b32.cont [3/16] %v288, 128
    %306 = vxpose.xlu0.b32.cont [4/16] %v290, 128
    %307 = vxpose.xlu0.b32.cont [5/16] 0, 128
    %308 = vxpose.xlu0.b32.cont [6/16] 0, 128
    %309 = vxpose.xlu0.b32.cont [7/16] 0, 128
    %310 = vxpose.xlu0.b32.cont [8/16] 0, 128
    %311 = vxpose.xlu0.b32.cont [9/16] 0, 128
    %312 = vxpose.xlu0.b32.cont [10/16] 0, 128
    %313 = vxpose.xlu0.b32.cont [11/16] 0, 128
    %314 = vxpose.xlu0.b32.cont [12/16] 0, 128
    %315 = vxpose.xlu0.b32.cont [13/16] 0, 128
    %316 = vxpose.xlu0.b32.cont [14/16] 0, 128
    %317 = vxpose.xlu0.b32.cont [15/16] 0, 128
    %318 = vxpose.xlu0.b32.end [16/16] 0, 128
    %v319 = vpop.trf.xlu0
    %v320 = vpop.trf.xlu0
    %v321 = vpop.trf.xlu0
    %v322 = vpop.trf.xlu0
    %v323 = vpop.trf.xlu0
    %v324 = vpop.trf.xlu0
    %v325 = vpop.trf.xlu0
    %v326 = vpop.trf.xlu0
    %v327 = vpop.trf.xlu0
    %v328 = vpop.trf.xlu0
    %v329 = vpop.trf.xlu0
    %v330 = vpop.trf.xlu0
    %v331 = vpop.trf.xlu0
    %v332 = vpop.trf.xlu0
    %v333 = vpop.trf.xlu0
    %v334 = vpop.trf.xlu0
    %335 = vst [vmem:[#allocation5] sm:$0x1] %v319
    %s337 = sshllo.u32 0, 1
    %v339 = vld [vmem:[#allocation2] sm:%s337]
    %s340 = sshllo.u32 0, 1
    %341 = vst [vmem:[#allocation3] sm:%s340] %v339
    %s343 = sshllo.u32 0, 1
    %v345 = vld [vmem:[#allocation5] sm:%s343]
    %s346 = sshllo.u32 0, 1
    %347 = vst [vmem:[#allocation6] sm:%s346] %v345
    %p349 = scmp.gt.s32.totalorder 32, 0
    // Predicated region
    $region38: #{custom-call.35} parent=1 // pred_check
      %p350 = pneg %p349
    $region39: #{custom-call.35} parent=1 // pred_check_branch
      %352 = sbr.rel (%p350) target = $region41
    $region40: #{custom-call.35} parent=1 // pred_region
      %s353 = sshra.s32 32, 3
      %p354 = scmp.gt.s32.totalorder %s353, 0
      // Predicated region
      $region42: #{custom-call.35} parent=40 // pred_check
        %p355 = pneg %p354
      $region43: #{custom-call.35} parent=40 // pred_check_branch
        %357 = sbr.rel (%p355) target = $region45
      $region44: #{custom-call.35} parent=40 // pred_region
        %s358 = ssub.s32 %s353, 1
        %s359 = smul.u32 %s358, 128
        %s360 = sshra.s32 %s359, 4
        %s361 = scalar_lea.vmem [#allocation1], %s360
        %v362 = vld [vmem:[#allocation1] sm:$0xff]
        // While loop
        $region46: #{custom-call.35} parent=44 // loop_pre_header
          _
        $region47: #{custom-call.35} parent=44 // loop_header
          %s363 = sphi [#allocation1], %s385
          %s364 = sphi %s1, %s386
          %v365 = vphi %v362, %v387
          %s366 = ssub.s32 %s361, 64
          %p367 = scmp.gt.s32.totalorder %s363, %s366
        $region48: #{custom-call.35} parent=44 // loop_header_branch
          %369 = sbr.rel (%p367) target = $region52
        $region49: #{custom-call.35} parent=44 // loop_body
          %370 = vst [vmem:[%s364] sm:$0xff] %v365
          %v371 = vld [vmem:[%s363 + $0x8] sm:$0xff]
          %372 = vst [vmem:[%s364 + $0x8] sm:$0xff] %v371
          %v373 = vld [vmem:[%s363 + $0x10] sm:$0xff]
          %374 = vst [vmem:[%s364 + $0x10] sm:$0xff] %v373
          %v375 = vld [vmem:[%s363 + $0x18] sm:$0xff]
          %376 = vst [vmem:[%s364 + $0x18] sm:$0xff] %v375
          %v377 = vld [vmem:[%s363 + $0x20] sm:$0xff]
          %378 = vst [vmem:[%s364 + $0x20] sm:$0xff] %v377
          %v379 = vld [vmem:[%s363 + $0x28] sm:$0xff]
          %380 = vst [vmem:[%s364 + $0x28] sm:$0xff] %v379
          %v381 = vld [vmem:[%s363 + $0x30] sm:$0xff]
          %382 = vst [vmem:[%s364 + $0x30] sm:$0xff] %v381
          %v383 = vld [vmem:[%s363 + $0x38] sm:$0xff]
          %384 = vst [vmem:[%s364 + $0x38] sm:$0xff] %v383
        $region50: #{custom-call.35} parent=44 // loop_footer
          %s385 = scalar_lea.vmem %s363, 64
          %s386 = scalar_lea.vmem %s364, 64
          %v387 = vld [vmem:[%s363 + $0x40] sm:$0xff]
        $region51: #{custom-call.35} parent=44 // loop_footer_branch
          %388 = sbr.rel target = $region47
        $region52: #{custom-call.35} parent=44 // loop_exit
          _
        // While loop
        $region53: #{custom-call.35} parent=44 // loop_pre_header
          _
        $region54: #{custom-call.35} parent=44 // loop_header
          %s389 = sphi %s363, %s397
          %s390 = sphi %s364, %s398
          %v391 = vphi %v365, %v391
          %p392 = scmp.gt.s32.totalorder %s389, %s361
        $region55: #{custom-call.35} parent=44 // loop_header_branch
          %394 = sbr.rel (%p392) target = $region59
        $region56: #{custom-call.35} parent=44 // loop_body
          %v395 = vld [vmem:[%s389] sm:$0xff]
          %396 = vst [vmem:[%s390] sm:$0xff] %v395
        $region57: #{custom-call.35} parent=44 // loop_footer
          %s397 = scalar_lea.vmem %s389, 8
          %s398 = scalar_lea.vmem %s390, 8
        $region58: #{custom-call.35} parent=44 // loop_footer_branch
          %399 = sbr.rel target = $region54
        $region59: #{custom-call.35} parent=44 // loop_exit
          _
      $region45: #{custom-call.35} parent=40 // pred_fallthru
        _
      %s400 = sand.u32 32, 7
      %s401 = sshllo.u32 0, %s400
      %s402 = smul.u32 %s353, 128
      %s403 = sshra.s32 %s402, 4
      %s404 = scalar_lea.vmem %s1, %s403
      %s405 = smul.u32 %s353, 128
      %s406 = sshra.s32 %s405, 4
      %s407 = scalar_lea.vmem [#allocation1], %s406
      %v408 = vld [vmem:[%s407] sm:%s401]
      %409 = vst [vmem:[%s404] sm:%s401] %v408
    $region41: #{custom-call.35} parent=1 // pred_fallthru
      _
    // Predicated region
    $region60: #{custom-call.35} parent=1 // pred_check
      _
    $region61: #{custom-call.35} parent=1 // pred_check_branch
      %411 = sbr.rel (0) target = $region63
    $region62: #{custom-call.35} parent=1 // pred_region
      %s413 = ssub.s32 16, 16
      %414 = vsyncadd [#allocation4], %s413
      %s415 = sshll.u32 [#allocation3], 4
      %s416 = int_to_ptr.vmem [resolvable:$true] %s415
      %418 = dma.vmem_to_hbm [thread:$0]  %s416, 16, %s2, [#allocation4]
    $region63: #{custom-call.35} parent=1 // pred_fallthru
      _
    // Predicated region
    $region64: #{custom-call.35} parent=1 // pred_check
      _
    $region65: #{custom-call.35} parent=1 // pred_check_branch
      %420 = sbr.rel (0) target = $region67
    $region66: #{custom-call.35} parent=1 // pred_region
      %p422 = scmp.gt.s32.totalorder 1, 0
      // Predicated region
      $region68: #{custom-call.35} parent=66 // pred_check
        %p423 = pneg %p422
      $region69: #{custom-call.35} parent=66 // pred_check_branch
        %425 = sbr.rel (%p423) target = $region71
      $region70: #{custom-call.35} parent=66 // pred_region
        %s426 = sshra.s32 1, 3
        %p427 = scmp.gt.s32.totalorder %s426, 0
        // Predicated region
        $region72: #{custom-call.35} parent=70 // pred_check
          %p428 = pneg %p427
        $region73: #{custom-call.35} parent=70 // pred_check_branch
          %430 = sbr.rel (%p428) target = $region75
        $region74: #{custom-call.35} parent=70 // pred_region
          %s431 = ssub.s32 %s426, 1
          %s432 = smul.u32 %s431, 128
          %s433 = sshra.s32 %s432, 4
          %s434 = scalar_lea.vmem [#allocation6], %s433
          %v435 = vld [vmem:[#allocation6] sm:$0xff]
          // While loop
          $region76: #{custom-call.35} parent=74 // loop_pre_header
            _
          $region77: #{custom-call.35} parent=74 // loop_header
            %s436 = sphi [#allocation6], %s458
            %s437 = sphi %s3, %s459
            %v438 = vphi %v435, %v460
            %s439 = ssub.s32 %s434, 64
            %p440 = scmp.gt.s32.totalorder %s436, %s439
          $region78: #{custom-call.35} parent=74 // loop_header_branch
            %442 = sbr.rel (%p440) target = $region82
          $region79: #{custom-call.35} parent=74 // loop_body
            %443 = vst [vmem:[%s437] sm:$0xff] %v438
            %v444 = vld [vmem:[%s436 + $0x8] sm:$0xff]
            %445 = vst [vmem:[%s437 + $0x8] sm:$0xff] %v444
            %v446 = vld [vmem:[%s436 + $0x10] sm:$0xff]
            %447 = vst [vmem:[%s437 + $0x10] sm:$0xff] %v446
            %v448 = vld [vmem:[%s436 + $0x18] sm:$0xff]
            %449 = vst [vmem:[%s437 + $0x18] sm:$0xff] %v448
            %v450 = vld [vmem:[%s436 + $0x20] sm:$0xff]
            %451 = vst [vmem:[%s437 + $0x20] sm:$0xff] %v450
            %v452 = vld [vmem:[%s436 + $0x28] sm:$0xff]
            %453 = vst [vmem:[%s437 + $0x28] sm:$0xff] %v452
            %v454 = vld [vmem:[%s436 + $0x30] sm:$0xff]
            %455 = vst [vmem:[%s437 + $0x30] sm:$0xff] %v454
            %v456 = vld [vmem:[%s436 + $0x38] sm:$0xff]
            %457 = vst [vmem:[%s437 + $0x38] sm:$0xff] %v456
          $region80: #{custom-call.35} parent=74 // loop_footer
            %s458 = scalar_lea.vmem %s436, 64
            %s459 = scalar_lea.vmem %s437, 64
            %v460 = vld [vmem:[%s436 + $0x40] sm:$0xff]
          $region81: #{custom-call.35} parent=74 // loop_footer_branch
            %461 = sbr.rel target = $region77
          $region82: #{custom-call.35} parent=74 // loop_exit
            _
          // While loop
          $region83: #{custom-call.35} parent=74 // loop_pre_header
            _
          $region84: #{custom-call.35} parent=74 // loop_header
            %s462 = sphi %s436, %s470
            %s463 = sphi %s437, %s471
            %v464 = vphi %v438, %v464
            %p465 = scmp.gt.s32.totalorder %s462, %s434
          $region85: #{custom-call.35} parent=74 // loop_header_branch
            %467 = sbr.rel (%p465) target = $region89
          $region86: #{custom-call.35} parent=74 // loop_body
            %v468 = vld [vmem:[%s462] sm:$0xff]
            %469 = vst [vmem:[%s463] sm:$0xff] %v468
          $region87: #{custom-call.35} parent=74 // loop_footer
            %s470 = scalar_lea.vmem %s462, 8
            %s471 = scalar_lea.vmem %s463, 8
          $region88: #{custom-call.35} parent=74 // loop_footer_branch
            %472 = sbr.rel target = $region84
          $region89: #{custom-call.35} parent=74 // loop_exit
            _
        $region75: #{custom-call.35} parent=70 // pred_fallthru
          _
        %s473 = sand.u32 1, 7
        %s474 = sshllo.u32 0, %s473
        %s475 = smul.u32 %s426, 128
        %s476 = sshra.s32 %s475, 4
        %s477 = scalar_lea.vmem %s3, %s476
        %s478 = smul.u32 %s426, 128
        %s479 = sshra.s32 %s478, 4
        %s480 = scalar_lea.vmem [#allocation6], %s479
        %v481 = vld [vmem:[%s480] sm:%s474]
        %482 = vst [vmem:[%s477] sm:%s474] %v481
      $region71: #{custom-call.35} parent=66 // pred_fallthru
        _
    $region67: #{custom-call.35} parent=1 // pred_fallthru
      _
    // Predicated region
    $region90: #{custom-call.35} parent=1 // pred_check
      _
    $region91: #{custom-call.35} parent=1 // pred_check_branch
      %484 = sbr.rel (0) target = $region93
    $region92: #{custom-call.35} parent=1 // pred_region
      %485 = dma.done [#allocation4], 16
    $region93: #{custom-call.35} parent=1 // pred_fallthru
      _
    // Predicated region
    $region94: #{custom-call.35} parent=1 // pred_check
      _
    $region95: #{custom-call.35} parent=1 // pred_check_branch
      %487 = sbr.rel (0) target = $region97
    $region96: #{custom-call.35} parent=1 // pred_region
      _
    $region97: #{custom-call.35} parent=1 // pred_fallthru
      _
    %488 = vsyncpa [#allocation4], 1

// kernel: custom-call.36
$region0: #{custom-call.36}
  %s0 = inlined_call_operand.vmem [shape: f32[1,31,31], index: 0, kind: input, shape index: {}]
  %s1 = inlined_call_operand.vmem [shape: f32[1,31,31], index: 1, kind: output, shape index: {}]
  $region1: #{custom-call.36} parent=0
    #allocation0 [shape = 'u8[16384]{0}', space=vmem, size = 0x4000, scoped, tag = 'operand span for operand 0']
    #allocation1 [shape = 'u8[16384]{0}', space=vmem, size = 0x4000, scoped, tag = 'operand span for operand 1']
    #allocation2 [shape = 'f32[31,31]{1,0}', space=vmem, size = 0x4000, scoped, tag = 'rescaled input a']
    // Predicated region
    $region2: #{custom-call.36} parent=1 // pred_check
      _
    $region3: #{custom-call.36} parent=1 // pred_check_branch
      %3 = sbr.rel (0) target = $region5
    $region4: #{custom-call.36} parent=1 // pred_region
      // Predicated region
      $region6: #{custom-call.36} parent=4 // pred_check
        _
      $region7: #{custom-call.36} parent=4 // pred_check_branch
        %5 = sbr.rel (0) target = $region9
      $region8: #{custom-call.36} parent=4 // pred_region
        // Predicated region
        $region21: #{custom-call.36} parent=8 // pred_check
          _
        $region22: #{custom-call.36} parent=8 // pred_check_branch
          %26 = sbr.rel (0) target = $region24
        $region23: #{custom-call.36} parent=8 // pred_region
          loop: start=0, step=1, limit=1
          $region25: #{custom-call.36} parent=23 // loop_pre_header
            _
          $region26: #{custom-call.36} parent=23 // loop_header
            %s28 = sphi 0, %s32
            %p29 = scmp.ge.s32.totalorder %s28, 1
            %s33 = sphi %s0, %s0
            %s34 = sphi [#allocation0], [#allocation0]
          $region27: #{custom-call.36} parent=23 // loop_header_branch
            %31 = sbr.rel (%p29) target = $region31
          $region28: #{custom-call.36} parent=23 // loop_body
            %v35 = vld [vmem:[%s33] sm:$0xff]
            %36 = vst [vmem:[%s34] sm:$0xff] %v35
            %v37 = vld [vmem:[%s33 + $0x8] sm:$0xff]
            %38 = vst [vmem:[%s34 + $0x8] sm:$0xff] %v37
            %v39 = vld [vmem:[%s33 + $0x10] sm:$0xff]
            %40 = vst [vmem:[%s34 + $0x10] sm:$0xff] %v39
            %v41 = vld [vmem:[%s33 + $0x18] sm:$0xff]
            %42 = vst [vmem:[%s34 + $0x18] sm:$0xff] %v41
          $region29: #{custom-call.36} parent=23 // loop_footer
            %s32 = sadd.s32 1, %s28
          $region30: #{custom-call.36} parent=23 // loop_footer_branch
            %27 = sbr.rel target = $region26
          $region31: #{custom-call.36} parent=23 // loop_exit
            _
        $region24: #{custom-call.36} parent=8 // pred_fallthru
          _
        // Predicated region
        $region32: #{custom-call.36} parent=8 // pred_check
          _
        $region33: #{custom-call.36} parent=8 // pred_check_branch
          %44 = sbr.rel target = $region35
        $region34: #{custom-call.36} parent=8 // pred_region
          _
        $region35: #{custom-call.36} parent=8 // pred_fallthru
          _
      $region9: #{custom-call.36} parent=4 // pred_fallthru
        _
      // Predicated region
      $region10: #{custom-call.36} parent=4 // pred_check
        _
      $region11: #{custom-call.36} parent=4 // pred_check_branch
        %7 = sbr.rel target = $region13
      $region12: #{custom-call.36} parent=4 // pred_region
        loop: start=0, step=1, limit=1
        $region14: #{custom-call.36} parent=12 // loop_pre_header
          _
        $region15: #{custom-call.36} parent=12 // loop_header
          %s10 = sphi 0, %s14
          %p11 = scmp.ge.s32.totalorder %s10, 1
          %s15 = sphi %s0, %s0
          %s16 = sphi [#allocation0], [#allocation0]
        $region16: #{custom-call.36} parent=12 // loop_header_branch
          %13 = sbr.rel (%p11) target = $region20
        $region17: #{custom-call.36} parent=12 // loop_body
          %v17 = vld [vmem:[%s15] sm:$0xff]
          %18 = vst [vmem:[%s16] sm:$0xff] %v17
          %v19 = vld [vmem:[%s15 + $0x8] sm:$0xff]
          %20 = vst [vmem:[%s16 + $0x8] sm:$0xff] %v19
          %v21 = vld [vmem:[%s15 + $0x10] sm:$0xff]
          %22 = vst [vmem:[%s16 + $0x10] sm:$0xff] %v21
          %v23 = vld [vmem:[%s15 + $0x18] sm:$0xff]
          %24 = vst [vmem:[%s16 + $0x18] sm:$0xff] %v23
        $region18: #{custom-call.36} parent=12 // loop_footer
          %s14 = sadd.s32 1, %s10
        $region19: #{custom-call.36} parent=12 // loop_footer_branch
          %9 = sbr.rel target = $region15
        $region20: #{custom-call.36} parent=12 // loop_exit
          _
      $region13: #{custom-call.36} parent=4 // pred_fallthru
        _
    $region5: #{custom-call.36} parent=1 // pred_fallthru
      _
    %45 = vnop
    %v46 = vlaneseq
    %v47 = vand.u32 %v46, 127
    %vm48 = vcmp.lt.s32.totalorder %v47, 31
    %v49 = vlaneseq
    %v50 = vshrl.u32 %v49, 7
    %vm52 = vcmp.eq.s32.totalorder %v50, %v47
    %v53 = vld [vmem:[#allocation0] sm:$0xff]
    %v54 = vsel %vm52, %v53, 0.0
    %55 = vadd.xlane.f32.xlu0 %v54
    %v56 = vpop.xlane.xlu0 %55
    %vm57 = vcmp.le.s32.totalorder %v50, %v47
    %vm58 = vmand %vm57, %vm48
    %v59 = vsel %vm58, %v53, 0.0
    %v60 = vrcp.pop %v56
    %v61 = vmul.f32 %v59, %v60
    %62 = vst [vmem:[#allocation2] sm:$0xff] %v61
    %s63 = scalar_lea.vmem [#allocation0], 8
    %s64 = scalar_lea.vmem [#allocation2], 8
    %v65 = vlaneseq
    %v66 = vshrl.u32 %v65, 7
    %v67 = vadd.s32 %v66, 8
    %vm68 = vcmp.eq.s32.totalorder %v67, %v47
    %v69 = vld [vmem:[%s63] sm:$0xff]
    %v70 = vsel %vm68, %v69, 0.0
    %71 = vadd.xlane.f32.xlu0 %v70
    %v72 = vpop.xlane.xlu0 %71
    %vm73 = vcmp.le.s32.totalorder %v67, %v47
    %vm74 = vmand %vm73, %vm48
    %v75 = vsel %vm74, %v69, 0.0
    %v76 = vrcp.pop %v72
    %v77 = vmul.f32 %v75, %v76
    %78 = vst [vmem:[%s64] sm:$0xff] %v77
    %s79 = scalar_lea.vmem [#allocation0], 16
    %s80 = scalar_lea.vmem [#allocation2], 16
    %v81 = vlaneseq
    %v82 = vshrl.u32 %v81, 7
    %v83 = vadd.s32 %v82, 16
    %vm84 = vcmp.eq.s32.totalorder %v83, %v47
    %v85 = vld [vmem:[%s79] sm:$0xff]
    %v86 = vsel %vm84, %v85, 0.0
    %87 = vadd.xlane.f32.xlu0 %v86
    %v88 = vpop.xlane.xlu0 %87
    %vm89 = vcmp.le.s32.totalorder %v83, %v47
    %vm90 = vmand %vm89, %vm48
    %v91 = vsel %vm90, %v85, 0.0
    %v92 = vrcp.pop %v88
    %v93 = vmul.f32 %v91, %v92
    %94 = vst [vmem:[%s80] sm:$0xff] %v93
    %s95 = scalar_lea.vmem [#allocation0], 24
    %s96 = scalar_lea.vmem [#allocation2], 24
    %v97 = vlaneseq
    %v98 = vshrl.u32 %v97, 7
    %v99 = vadd.s32 %v98, 24
    %vm100 = vcmp.eq.s32.totalorder %v99, %v47
    %v101 = vld [vmem:[%s95] sm:$0xff]
    %v102 = vsel %vm100, %v101, 0.0
    %103 = vadd.xlane.f32.xlu0 %v102
    %v104 = vpop.xlane.xlu0 %103
    %vm105 = vcmp.le.s32.totalorder %v99, %v47
    %vm106 = vmand %vm105, %vm48
    %v107 = vsel %vm106, %v101, 0.0
    %v108 = vrcp.pop %v104
    %v109 = vmul.f32 %v107, %v108
    %110 = vst [vmem:[%s96] sm:$0xff] %v109
    %v111 = vlaneseq
    %v112 = vand.u32 %v111, 127
    %v113 = vlaneseq
    %v114 = vshrl.u32 %v113, 7
    %vm116 = vcmp.eq.s32.totalorder %v112, %v114
    %v117 = vsel %vm116, -1.0, 0.0
    %v118 = vlaneseq
    %v119 = vand.u32 %v118, 127
    %v120 = vlaneseq
    %v121 = vshrl.u32 %v120, 7
    %v122 = vadd.s32 %v121, 8
    %vm123 = vcmp.eq.s32.totalorder %v119, %v122
    %v124 = vsel %vm123, -1.0, 0.0
    %v125 = vlaneseq
    %v126 = vand.u32 %v125, 127
    %v127 = vlaneseq
    %v128 = vshrl.u32 %v127, 7
    %v129 = vadd.s32 %v128, 16
    %vm130 = vcmp.eq.s32.totalorder %v126, %v129
    %v131 = vsel %vm130, -1.0, 0.0
    %v132 = vlaneseq
    %v133 = vand.u32 %v132, 127
    %v134 = vlaneseq
    %v135 = vshrl.u32 %v134, 7
    %v136 = vadd.s32 %v135, 24
    %vm137 = vcmp.eq.s32.totalorder %v133, %v136
    %v138 = vlaneseq
    %v139 = vand.u32 %v138, 127
    %vm140 = vcmp.eq.s32.totalorder %v139, 30
    %v141 = vsel %vm140, 1.0, -1.0
    %v142 = vsel %vm137, %v141, 0.0
    %s143 = scalar_lea.vmem [#allocation2], 29
    %v144 = vld [vmem:[%s143] ss:$0 sm:$0xff]
    %v145 = vxor.u32 %v144, 2147483648
    %v146 = vlaneseq
    %v147 = vand.u32 %v146, 127
    %vm148 = vcmp.eq.s32.totalorder %v147, 29
    %v149 = vmul.f32 %v145, %v142
    %150 = vadd.xlane.f32.xlu0 %v149
    %v151 = vpop.xlane.xlu0 %150
    %v152 = vsel %vm148, %v151, %v142
    %s153 = scalar_lea.vmem [#allocation2], 28
    %v154 = vld [vmem:[%s153] ss:$0 sm:$0xff]
    %v155 = vxor.u32 %v154, 2147483648
    %v156 = vlaneseq
    %v157 = vand.u32 %v156, 127
    %vm158 = vcmp.eq.s32.totalorder %v157, 28
    %v159 = vmul.f32 %v155, %v152
    %160 = vadd.xlane.f32.xlu0 %v159
    %v161 = vpop.xlane.xlu0 %160
    %v162 = vsel %vm158, %v161, %v152
    %s163 = scalar_lea.vmem [#allocation2], 27
    %v164 = vld [vmem:[%s163] ss:$0 sm:$0xff]
    %v165 = vxor.u32 %v164, 2147483648
    %v166 = vlaneseq
    %v167 = vand.u32 %v166, 127
    %vm168 = vcmp.eq.s32.totalorder %v167, 27
    %v169 = vmul.f32 %v165, %v162
    %170 = vadd.xlane.f32.xlu0 %v169
    %v171 = vpop.xlane.xlu0 %170
    %v172 = vsel %vm168, %v171, %v162
    %s173 = scalar_lea.vmem [#allocation2], 26
    %v174 = vld [vmem:[%s173] ss:$0 sm:$0xff]
    %v175 = vxor.u32 %v174, 2147483648
    %v176 = vlaneseq
    %v177 = vand.u32 %v176, 127
    %vm178 = vcmp.eq.s32.totalorder %v177, 26
    %v179 = vmul.f32 %v175, %v172
    %180 = vadd.xlane.f32.xlu0 %v179
    %v181 = vpop.xlane.xlu0 %180
    %v182 = vsel %vm178, %v181, %v172
    %s183 = scalar_lea.vmem [#allocation2], 25
    %v184 = vld [vmem:[%s183] ss:$0 sm:$0xff]
    %v185 = vxor.u32 %v184, 2147483648
    %v186 = vlaneseq
    %v187 = vand.u32 %v186, 127
    %vm188 = vcmp.eq.s32.totalorder %v187, 25
    %v189 = vmul.f32 %v185, %v182
    %190 = vadd.xlane.f32.xlu0 %v189
    %v191 = vpop.xlane.xlu0 %190
    %v192 = vsel %vm188, %v191, %v182
    %s193 = scalar_lea.vmem [#allocation2], 24
    %v194 = vld [vmem:[%s193] ss:$0 sm:$0xff]
    %v195 = vxor.u32 %v194, 2147483648
    %v196 = vlaneseq
    %v197 = vand.u32 %v196, 127
    %vm198 = vcmp.eq.s32.totalorder %v197, 24
    %v199 = vmul.f32 %v195, %v192
    %200 = vadd.xlane.f32.xlu0 %v199
    %v201 = vpop.xlane.xlu0 %200
    %v202 = vsel %vm198, %v201, %v192
    %s203 = scalar_lea.vmem [#allocation2], 23
    %v204 = vld [vmem:[%s203] ss:$0 sm:$0xff]
    %v205 = vxor.u32 %v204, 2147483648
    %v206 = vlaneseq
    %v207 = vand.u32 %v206, 127
    %vm208 = vcmp.eq.s32.totalorder %v207, 23
    %v209 = vmul.f32 %v205, %v131
    %210 = vadd.xlane.f32.xlu0 %v209
    %v211 = vpop.xlane.xlu0 %210
    %v212 = vsel %vm208, %v211, %v131
    %v213 = vmul.f32 %v205, %v202
    %214 = vadd.xlane.f32.xlu0 %v213
    %v215 = vpop.xlane.xlu0 %214
    %v216 = vsel %vm208, %v215, %v202
    %s217 = scalar_lea.vmem [#allocation2], 22
    %v218 = vld [vmem:[%s217] ss:$0 sm:$0xff]
    %v219 = vxor.u32 %v218, 2147483648
    %v220 = vlaneseq
    %v221 = vand.u32 %v220, 127
    %vm222 = vcmp.eq.s32.totalorder %v221, 22
    %v223 = vmul.f32 %v219, %v212
    %224 = vadd.xlane.f32.xlu0 %v223
    %v225 = vpop.xlane.xlu0 %224
    %v226 = vsel %vm222, %v225, %v212
    %v227 = vmul.f32 %v219, %v216
    %228 = vadd.xlane.f32.xlu0 %v227
    %v229 = vpop.xlane.xlu0 %228
    %v230 = vsel %vm222, %v229, %v216
    %s231 = scalar_lea.vmem [#allocation2], 21
    %v232 = vld [vmem:[%s231] ss:$0 sm:$0xff]
    %v233 = vxor.u32 %v232, 2147483648
    %v234 = vlaneseq
    %v235 = vand.u32 %v234, 127
    %vm236 = vcmp.eq.s32.totalorder %v235, 21
    %v237 = vmul.f32 %v233, %v226
    %238 = vadd.xlane.f32.xlu0 %v237
    %v239 = vpop.xlane.xlu0 %238
    %v240 = vsel %vm236, %v239, %v226
    %v241 = vmul.f32 %v233, %v230
    %242 = vadd.xlane.f32.xlu0 %v241
    %v243 = vpop.xlane.xlu0 %242
    %v244 = vsel %vm236, %v243, %v230
    %s245 = scalar_lea.vmem [#allocation2], 20
    %v246 = vld [vmem:[%s245] ss:$0 sm:$0xff]
    %v247 = vxor.u32 %v246, 2147483648
    %v248 = vlaneseq
    %v249 = vand.u32 %v248, 127
    %vm250 = vcmp.eq.s32.totalorder %v249, 20
    %v251 = vmul.f32 %v247, %v240
    %252 = vadd.xlane.f32.xlu0 %v251
    %v253 = vpop.xlane.xlu0 %252
    %v254 = vsel %vm250, %v253, %v240
    %v255 = vmul.f32 %v247, %v244
    %256 = vadd.xlane.f32.xlu0 %v255
    %v257 = vpop.xlane.xlu0 %256
    %v258 = vsel %vm250, %v257, %v244
    %s259 = scalar_lea.vmem [#allocation2], 19
    %v260 = vld [vmem:[%s259] ss:$0 sm:$0xff]
    %v261 = vxor.u32 %v260, 2147483648
    %v262 = vlaneseq
    %v263 = vand.u32 %v262, 127
    %vm264 = vcmp.eq.s32.totalorder %v263, 19
    %v265 = vmul.f32 %v261, %v254
    %266 = vadd.xlane.f32.xlu0 %v265
    %v267 = vpop.xlane.xlu0 %266
    %v268 = vsel %vm264, %v267, %v254
    %v269 = vmul.f32 %v261, %v258
    %270 = vadd.xlane.f32.xlu0 %v269
    %v271 = vpop.xlane.xlu0 %270
    %v272 = vsel %vm264, %v271, %v258
    %s273 = scalar_lea.vmem [#allocation2], 18
    %v274 = vld [vmem:[%s273] ss:$0 sm:$0xff]
    %v275 = vxor.u32 %v274, 2147483648
    %v276 = vlaneseq
    %v277 = vand.u32 %v276, 127
    %vm278 = vcmp.eq.s32.totalorder %v277, 18
    %v279 = vmul.f32 %v275, %v268
    %280 = vadd.xlane.f32.xlu0 %v279
    %v281 = vpop.xlane.xlu0 %280
    %v282 = vsel %vm278, %v281, %v268
    %v283 = vmul.f32 %v275, %v272
    %284 = vadd.xlane.f32.xlu0 %v283
    %v285 = vpop.xlane.xlu0 %284
    %v286 = vsel %vm278, %v285, %v272
    %s287 = scalar_lea.vmem [#allocation2], 17
    %v288 = vld [vmem:[%s287] ss:$0 sm:$0xff]
    %v289 = vxor.u32 %v288, 2147483648
    %v290 = vlaneseq
    %v291 = vand.u32 %v290, 127
    %vm292 = vcmp.eq.s32.totalorder %v291, 17
    %v293 = vmul.f32 %v289, %v282
    %294 = vadd.xlane.f32.xlu0 %v293
    %v295 = vpop.xlane.xlu0 %294
    %v296 = vsel %vm292, %v295, %v282
    %v297 = vmul.f32 %v289, %v286
    %298 = vadd.xlane.f32.xlu0 %v297
    %v299 = vpop.xlane.xlu0 %298
    %v300 = vsel %vm292, %v299, %v286
    %s301 = scalar_lea.vmem [#allocation2], 16
    %v302 = vld [vmem:[%s301] ss:$0 sm:$0xff]
    %v303 = vxor.u32 %v302, 2147483648
    %v304 = vlaneseq
    %v305 = vand.u32 %v304, 127
    %vm306 = vcmp.eq.s32.totalorder %v305, 16
    %v307 = vmul.f32 %v303, %v296
    %308 = vadd.xlane.f32.xlu0 %v307
    %v309 = vpop.xlane.xlu0 %308
    %v310 = vsel %vm306, %v309, %v296
    %v311 = vmul.f32 %v303, %v300
    %312 = vadd.xlane.f32.xlu0 %v311
    %v313 = vpop.xlane.xlu0 %312
    %v314 = vsel %vm306, %v313, %v300
    %s315 = scalar_lea.vmem [#allocation2], 15
    %v316 = vld [vmem:[%s315] ss:$0 sm:$0xff]
    %v317 = vxor.u32 %v316, 2147483648
    %v318 = vlaneseq
    %v319 = vand.u32 %v318, 127
    %vm320 = vcmp.eq.s32.totalorder %v319, 15
    %v321 = vmul.f32 %v317, %v124
    %322 = vadd.xlane.f32.xlu0 %v321
    %v323 = vpop.xlane.xlu0 %322
    %v324 = vsel %vm320, %v323, %v124
    %v325 = vmul.f32 %v317, %v310
    %326 = vadd.xlane.f32.xlu0 %v325
    %v327 = vpop.xlane.xlu0 %326
    %v328 = vsel %vm320, %v327, %v310
    %v329 = vmul.f32 %v317, %v314
    %330 = vadd.xlane.f32.xlu0 %v329
    %v331 = vpop.xlane.xlu0 %330
    %v332 = vsel %vm320, %v331, %v314
    %s333 = scalar_lea.vmem [#allocation2], 14
    %v334 = vld [vmem:[%s333] ss:$0 sm:$0xff]
    %v335 = vxor.u32 %v334, 2147483648
    %v336 = vlaneseq
    %v337 = vand.u32 %v336, 127
    %vm338 = vcmp.eq.s32.totalorder %v337, 14
    %v339 = vmul.f32 %v335, %v324
    %340 = vadd.xlane.f32.xlu0 %v339
    %v341 = vpop.xlane.xlu0 %340
    %v342 = vsel %vm338, %v341, %v324
    %v343 = vmul.f32 %v335, %v328
    %344 = vadd.xlane.f32.xlu0 %v343
    %v345 = vpop.xlane.xlu0 %344
    %v346 = vsel %vm338, %v345, %v328
    %v347 = vmul.f32 %v335, %v332
    %348 = vadd.xlane.f32.xlu0 %v347
    %v349 = vpop.xlane.xlu0 %348
    %v350 = vsel %vm338, %v349, %v332
    %s351 = scalar_lea.vmem [#allocation2], 13
    %v352 = vld [vmem:[%s351] ss:$0 sm:$0xff]
    %v353 = vxor.u32 %v352, 2147483648
    %v354 = vlaneseq
    %v355 = vand.u32 %v354, 127
    %vm356 = vcmp.eq.s32.totalorder %v355, 13
    %v357 = vmul.f32 %v353, %v342
    %358 = vadd.xlane.f32.xlu0 %v357
    %v359 = vpop.xlane.xlu0 %358
    %v360 = vsel %vm356, %v359, %v342
    %v361 = vmul.f32 %v353, %v346
    %362 = vadd.xlane.f32.xlu0 %v361
    %v363 = vpop.xlane.xlu0 %362
    %v364 = vsel %vm356, %v363, %v346
    %v365 = vmul.f32 %v353, %v350
    %366 = vadd.xlane.f32.xlu0 %v365
    %v367 = vpop.xlane.xlu0 %366
    %v368 = vsel %vm356, %v367, %v350
    %s369 = scalar_lea.vmem [#allocation2], 12
    %v370 = vld [vmem:[%s369] ss:$0 sm:$0xff]
    %v371 = vxor.u32 %v370, 2147483648
    %v372 = vlaneseq
    %v373 = vand.u32 %v372, 127
    %vm374 = vcmp.eq.s32.totalorder %v373, 12
    %v375 = vmul.f32 %v371, %v360
    %376 = vadd.xlane.f32.xlu0 %v375
    %v377 = vpop.xlane.xlu0 %376
    %v378 = vsel %vm374, %v377, %v360
    %v379 = vmul.f32 %v371, %v364
    %380 = vadd.xlane.f32.xlu0 %v379
    %v381 = vpop.xlane.xlu0 %380
    %v382 = vsel %vm374, %v381, %v364
    %v383 = vmul.f32 %v371, %v368
    %384 = vadd.xlane.f32.xlu0 %v383
    %v385 = vpop.xlane.xlu0 %384
    %v386 = vsel %vm374, %v385, %v368
    %s387 = scalar_lea.vmem [#allocation2], 11
    %v388 = vld [vmem:[%s387] ss:$0 sm:$0xff]
    %v389 = vxor.u32 %v388, 2147483648
    %v390 = vlaneseq
    %v391 = vand.u32 %v390, 127
    %vm392 = vcmp.eq.s32.totalorder %v391, 11
    %v393 = vmul.f32 %v389, %v378
    %394 = vadd.xlane.f32.xlu0 %v393
    %v395 = vpop.xlane.xlu0 %394
    %v396 = vsel %vm392, %v395, %v378
    %v397 = vmul.f32 %v389, %v382
    %398 = vadd.xlane.f32.xlu0 %v397
    %v399 = vpop.xlane.xlu0 %398
    %v400 = vsel %vm392, %v399, %v382
    %v401 = vmul.f32 %v389, %v386
    %402 = vadd.xlane.f32.xlu0 %v401
    %v403 = vpop.xlane.xlu0 %402
    %v404 = vsel %vm392, %v403, %v386
    %s405 = scalar_lea.vmem [#allocation2], 10
    %v406 = vld [vmem:[%s405] ss:$0 sm:$0xff]
    %v407 = vxor.u32 %v406, 2147483648
    %v408 = vlaneseq
    %v409 = vand.u32 %v408, 127
    %vm410 = vcmp.eq.s32.totalorder %v409, 10
    %v411 = vmul.f32 %v407, %v396
    %412 = vadd.xlane.f32.xlu0 %v411
    %v413 = vpop.xlane.xlu0 %412
    %v414 = vsel %vm410, %v413, %v396
    %v415 = vmul.f32 %v407, %v400
    %416 = vadd.xlane.f32.xlu0 %v415
    %v417 = vpop.xlane.xlu0 %416
    %v418 = vsel %vm410, %v417, %v400
    %v419 = vmul.f32 %v407, %v404
    %420 = vadd.xlane.f32.xlu0 %v419
    %v421 = vpop.xlane.xlu0 %420
    %v422 = vsel %vm410, %v421, %v404
    %s423 = scalar_lea.vmem [#allocation2], 9
    %v424 = vld [vmem:[%s423] ss:$0 sm:$0xff]
    %v425 = vxor.u32 %v424, 2147483648
    %v426 = vlaneseq
    %v427 = vand.u32 %v426, 127
    %vm428 = vcmp.eq.s32.totalorder %v427, 9
    %v429 = vmul.f32 %v425, %v414
    %430 = vadd.xlane.f32.xlu0 %v429
    %v431 = vpop.xlane.xlu0 %430
    %v432 = vsel %vm428, %v431, %v414
    %v433 = vmul.f32 %v425, %v418
    %434 = vadd.xlane.f32.xlu0 %v433
    %v435 = vpop.xlane.xlu0 %434
    %v436 = vsel %vm428, %v435, %v418
    %v437 = vmul.f32 %v425, %v422
    %438 = vadd.xlane.f32.xlu0 %v437
    %v439 = vpop.xlane.xlu0 %438
    %v440 = vsel %vm428, %v439, %v422
    %s441 = scalar_lea.vmem [#allocation2], 8
    %v442 = vld [vmem:[%s441] ss:$0 sm:$0xff]
    %v443 = vxor.u32 %v442, 2147483648
    %v444 = vlaneseq
    %v445 = vand.u32 %v444, 127
    %vm446 = vcmp.eq.s32.totalorder %v445, 8
    %v447 = vmul.f32 %v443, %v432
    %448 = vadd.xlane.f32.xlu0 %v447
    %v449 = vpop.xlane.xlu0 %448
    %v450 = vsel %vm446, %v449, %v432
    %v451 = vmul.f32 %v443, %v436
    %452 = vadd.xlane.f32.xlu0 %v451
    %v453 = vpop.xlane.xlu0 %452
    %v454 = vsel %vm446, %v453, %v436
    %v455 = vmul.f32 %v443, %v440
    %456 = vadd.xlane.f32.xlu0 %v455
    %v457 = vpop.xlane.xlu0 %456
    %v458 = vsel %vm446, %v457, %v440
    %s459 = scalar_lea.vmem [#allocation2], 7
    %v460 = vld [vmem:[%s459] ss:$0 sm:$0xff]
    %v461 = vxor.u32 %v460, 2147483648
    %v462 = vlaneseq
    %v463 = vand.u32 %v462, 127
    %vm464 = vcmp.eq.s32.totalorder %v463, 7
    %v465 = vmul.f32 %v461, %v117
    %466 = vadd.xlane.f32.xlu0 %v465
    %v467 = vpop.xlane.xlu0 %466
    %v468 = vsel %vm464, %v467, %v117
    %v469 = vmul.f32 %v461, %v450
    %470 = vadd.xlane.f32.xlu0 %v469
    %v471 = vpop.xlane.xlu0 %470
    %v472 = vsel %vm464, %v471, %v450
    %v473 = vmul.f32 %v461, %v454
    %474 = vadd.xlane.f32.xlu0 %v473
    %v475 = vpop.xlane.xlu0 %474
    %v476 = vsel %vm464, %v475, %v454
    %v477 = vmul.f32 %v461, %v458
    %478 = vadd.xlane.f32.xlu0 %v477
    %v479 = vpop.xlane.xlu0 %478
    %v480 = vsel %vm464, %v479, %v458
    %s481 = scalar_lea.vmem [#allocation2], 6
    %v482 = vld [vmem:[%s481] ss:$0 sm:$0xff]
    %v483 = vxor.u32 %v482, 2147483648
    %v484 = vlaneseq
    %v485 = vand.u32 %v484, 127
    %vm486 = vcmp.eq.s32.totalorder %v485, 6
    %v487 = vmul.f32 %v483, %v468
    %488 = vadd.xlane.f32.xlu0 %v487
    %v489 = vpop.xlane.xlu0 %488
    %v490 = vsel %vm486, %v489, %v468
    %v491 = vmul.f32 %v483, %v472
    %492 = vadd.xlane.f32.xlu0 %v491
    %v493 = vpop.xlane.xlu0 %492
    %v494 = vsel %vm486, %v493, %v472
    %v495 = vmul.f32 %v483, %v476
    %496 = vadd.xlane.f32.xlu0 %v495
    %v497 = vpop.xlane.xlu0 %496
    %v498 = vsel %vm486, %v497, %v476
    %v499 = vmul.f32 %v483, %v480
    %500 = vadd.xlane.f32.xlu0 %v499
    %v501 = vpop.xlane.xlu0 %500
    %v502 = vsel %vm486, %v501, %v480
    %s503 = scalar_lea.vmem [#allocation2], 5
    %v504 = vld [vmem:[%s503] ss:$0 sm:$0xff]
    %v505 = vxor.u32 %v504, 2147483648
    %v506 = vlaneseq
    %v507 = vand.u32 %v506, 127
    %vm508 = vcmp.eq.s32.totalorder %v507, 5
    %v509 = vmul.f32 %v505, %v490
    %510 = vadd.xlane.f32.xlu0 %v509
    %v511 = vpop.xlane.xlu0 %510
    %v512 = vsel %vm508, %v511, %v490
    %v513 = vmul.f32 %v505, %v494
    %514 = vadd.xlane.f32.xlu0 %v513
    %v515 = vpop.xlane.xlu0 %514
    %v516 = vsel %vm508, %v515, %v494
    %v517 = vmul.f32 %v505, %v498
    %518 = vadd.xlane.f32.xlu0 %v517
    %v519 = vpop.xlane.xlu0 %518
    %v520 = vsel %vm508, %v519, %v498
    %v521 = vmul.f32 %v505, %v502
    %522 = vadd.xlane.f32.xlu0 %v521
    %v523 = vpop.xlane.xlu0 %522
    %v524 = vsel %vm508, %v523, %v502
    %s525 = scalar_lea.vmem [#allocation2], 4
    %v526 = vld [vmem:[%s525] ss:$0 sm:$0xff]
    %v527 = vxor.u32 %v526, 2147483648
    %v528 = vlaneseq
    %v529 = vand.u32 %v528, 127
    %vm530 = vcmp.eq.s32.totalorder %v529, 4
    %v531 = vmul.f32 %v527, %v512
    %532 = vadd.xlane.f32.xlu0 %v531
    %v533 = vpop.xlane.xlu0 %532
    %v534 = vsel %vm530, %v533, %v512
    %v535 = vmul.f32 %v527, %v516
    %536 = vadd.xlane.f32.xlu0 %v535
    %v537 = vpop.xlane.xlu0 %536
    %v538 = vsel %vm530, %v537, %v516
    %v539 = vmul.f32 %v527, %v520
    %540 = vadd.xlane.f32.xlu0 %v539
    %v541 = vpop.xlane.xlu0 %540
    %v542 = vsel %vm530, %v541, %v520
    %v543 = vmul.f32 %v527, %v524
    %544 = vadd.xlane.f32.xlu0 %v543
    %v545 = vpop.xlane.xlu0 %544
    %v546 = vsel %vm530, %v545, %v524
    %s547 = scalar_lea.vmem [#allocation2], 3
    %v548 = vld [vmem:[%s547] ss:$0 sm:$0xff]
    %v549 = vxor.u32 %v548, 2147483648
    %v550 = vlaneseq
    %v551 = vand.u32 %v550, 127
    %vm552 = vcmp.eq.s32.totalorder %v551, 3
    %v553 = vmul.f32 %v549, %v534
    %554 = vadd.xlane.f32.xlu0 %v553
    %v555 = vpop.xlane.xlu0 %554
    %v556 = vsel %vm552, %v555, %v534
    %v557 = vmul.f32 %v549, %v538
    %558 = vadd.xlane.f32.xlu0 %v557
    %v559 = vpop.xlane.xlu0 %558
    %v560 = vsel %vm552, %v559, %v538
    %v561 = vmul.f32 %v549, %v542
    %562 = vadd.xlane.f32.xlu0 %v561
    %v563 = vpop.xlane.xlu0 %562
    %v564 = vsel %vm552, %v563, %v542
    %v565 = vmul.f32 %v549, %v546
    %566 = vadd.xlane.f32.xlu0 %v565
    %v567 = vpop.xlane.xlu0 %566
    %v568 = vsel %vm552, %v567, %v546
    %s569 = scalar_lea.vmem [#allocation2], 2
    %v570 = vld [vmem:[%s569] ss:$0 sm:$0xff]
    %v571 = vxor.u32 %v570, 2147483648
    %v572 = vlaneseq
    %v573 = vand.u32 %v572, 127
    %vm574 = vcmp.eq.s32.totalorder %v573, 2
    %v575 = vmul.f32 %v571, %v556
    %576 = vadd.xlane.f32.xlu0 %v575
    %v577 = vpop.xlane.xlu0 %576
    %v578 = vsel %vm574, %v577, %v556
    %v579 = vmul.f32 %v571, %v560
    %580 = vadd.xlane.f32.xlu0 %v579
    %v581 = vpop.xlane.xlu0 %580
    %v582 = vsel %vm574, %v581, %v560
    %v583 = vmul.f32 %v571, %v564
    %584 = vadd.xlane.f32.xlu0 %v583
    %v585 = vpop.xlane.xlu0 %584
    %v586 = vsel %vm574, %v585, %v564
    %v587 = vmul.f32 %v571, %v568
    %588 = vadd.xlane.f32.xlu0 %v587
    %v589 = vpop.xlane.xlu0 %588
    %v590 = vsel %vm574, %v589, %v568
    %s591 = scalar_lea.vmem [#allocation2], 1
    %v592 = vld [vmem:[%s591] ss:$0 sm:$0xff]
    %v593 = vxor.u32 %v592, 2147483648
    %v594 = vlaneseq
    %v595 = vand.u32 %v594, 127
    %vm596 = vcmp.eq.s32.totalorder %v595, 1
    %v597 = vmul.f32 %v593, %v578
    %598 = vadd.xlane.f32.xlu0 %v597
    %v599 = vpop.xlane.xlu0 %598
    %v600 = vsel %vm596, %v599, %v578
    %v601 = vmul.f32 %v593, %v582
    %602 = vadd.xlane.f32.xlu0 %v601
    %v603 = vpop.xlane.xlu0 %602
    %v604 = vsel %vm596, %v603, %v582
    %v605 = vmul.f32 %v593, %v586
    %606 = vadd.xlane.f32.xlu0 %v605
    %v607 = vpop.xlane.xlu0 %606
    %v608 = vsel %vm596, %v607, %v586
    %v609 = vmul.f32 %v593, %v590
    %610 = vadd.xlane.f32.xlu0 %v609
    %v611 = vpop.xlane.xlu0 %610
    %v612 = vsel %vm596, %v611, %v590
    %v613 = vld [vmem:[#allocation2] ss:$0 sm:$0xff]
    %v614 = vxor.u32 %v613, 2147483648
    %v615 = vlaneseq
    %v616 = vand.u32 %v615, 127
    %vm617 = vcmp.eq.s32.totalorder %v616, 0
    %v618 = vmul.f32 %v614, %v600
    %619 = vadd.xlane.f32.xlu0 %v618
    %v620 = vpop.xlane.xlu0 %619
    %v621 = vsel %vm617, %v620, %v600
    %v622 = vmul.f32 %v614, %v604
    %623 = vadd.xlane.f32.xlu0 %v622
    %v624 = vpop.xlane.xlu0 %623
    %v625 = vsel %vm617, %v624, %v604
    %v626 = vmul.f32 %v614, %v608
    %627 = vadd.xlane.f32.xlu0 %v626
    %v628 = vpop.xlane.xlu0 %627
    %v629 = vsel %vm617, %v628, %v608
    %v630 = vmul.f32 %v614, %v612
    %631 = vadd.xlane.f32.xlu0 %v630
    %v632 = vpop.xlane.xlu0 %631
    %v633 = vsel %vm617, %v632, %v612
    %v634 = vrcp.pop %v56
    %v635 = vmul.f32 %v621, %v634
    %vm636 = vweird.f32 %v56
    %v637 = vsel %vm636, %v621, %v635
    %638 = vst [vmem:[#allocation1] sm:$0xff] %v637
    %v639 = vrcp.pop %v72
    %v640 = vmul.f32 %v625, %v639
    %vm641 = vweird.f32 %v72
    %v642 = vsel %vm641, %v625, %v640
    %s643 = scalar_lea.vmem [#allocation1], 8
    %644 = vst [vmem:[%s643] sm:$0xff] %v642
    %v645 = vrcp.pop %v88
    %v646 = vmul.f32 %v629, %v645
    %vm647 = vweird.f32 %v88
    %v648 = vsel %vm647, %v629, %v646
    %s649 = scalar_lea.vmem [#allocation1], 16
    %650 = vst [vmem:[%s649] sm:$0xff] %v648
    %v651 = vrcp.pop %v104
    %v652 = vmul.f32 %v633, %v651
    %vm653 = vweird.f32 %v104
    %v654 = vsel %vm653, %v633, %v652
    %s655 = scalar_lea.vmem [#allocation1], 24
    %656 = vst [vmem:[%s655] sm:$0xff] %v654
    // Predicated region
    $region36: #{custom-call.36} parent=1 // pred_check
      _
    $region37: #{custom-call.36} parent=1 // pred_check_branch
      %658 = sbr.rel (0) target = $region39
    $region38: #{custom-call.36} parent=1 // pred_region
      // Predicated region
      $region40: #{custom-call.36} parent=38 // pred_check
        _
      $region41: #{custom-call.36} parent=38 // pred_check_branch
        %660 = sbr.rel (0) target = $region43
      $region42: #{custom-call.36} parent=38 // pred_region
        // Predicated region
        $region55: #{custom-call.36} parent=42 // pred_check
          _
        $region56: #{custom-call.36} parent=42 // pred_check_branch
          %681 = sbr.rel (0) target = $region58
        $region57: #{custom-call.36} parent=42 // pred_region
          loop: start=0, step=1, limit=1
          $region59: #{custom-call.36} parent=57 // loop_pre_header
            _
          $region60: #{custom-call.36} parent=57 // loop_header
            %s683 = sphi 0, %s687
            %p684 = scmp.ge.s32.totalorder %s683, 1
            %s688 = sphi [#allocation1], [#allocation1]
            %s689 = sphi %s1, %s1
          $region61: #{custom-call.36} parent=57 // loop_header_branch
            %686 = sbr.rel (%p684) target = $region65
          $region62: #{custom-call.36} parent=57 // loop_body
            %v690 = vld [vmem:[%s688] sm:$0xff]
            %691 = vst [vmem:[%s689] sm:$0xff] %v690
            %v692 = vld [vmem:[%s688 + $0x8] sm:$0xff]
            %693 = vst [vmem:[%s689 + $0x8] sm:$0xff] %v692
            %v694 = vld [vmem:[%s688 + $0x10] sm:$0xff]
            %695 = vst [vmem:[%s689 + $0x10] sm:$0xff] %v694
            %v696 = vld [vmem:[%s688 + $0x18] sm:$0xff]
            %697 = vst [vmem:[%s689 + $0x18] sm:$0xff] %v696
          $region63: #{custom-call.36} parent=57 // loop_footer
            %s687 = sadd.s32 1, %s683
          $region64: #{custom-call.36} parent=57 // loop_footer_branch
            %682 = sbr.rel target = $region60
          $region65: #{custom-call.36} parent=57 // loop_exit
            _
        $region58: #{custom-call.36} parent=42 // pred_fallthru
          _
        // Predicated region
        $region66: #{custom-call.36} parent=42 // pred_check
          _
        $region67: #{custom-call.36} parent=42 // pred_check_branch
          %699 = sbr.rel target = $region69
        $region68: #{custom-call.36} parent=42 // pred_region
          _
        $region69: #{custom-call.36} parent=42 // pred_fallthru
          _
      $region43: #{custom-call.36} parent=38 // pred_fallthru
        _
      // Predicated region
      $region44: #{custom-call.36} parent=38 // pred_check
        _
      $region45: #{custom-call.36} parent=38 // pred_check_branch
        %662 = sbr.rel target = $region47
      $region46: #{custom-call.36} parent=38 // pred_region
        loop: start=0, step=1, limit=1
        $region48: #{custom-call.36} parent=46 // loop_pre_header
          _
        $region49: #{custom-call.36} parent=46 // loop_header
          %s665 = sphi 0, %s669
          %p666 = scmp.ge.s32.totalorder %s665, 1
          %s670 = sphi [#allocation1], [#allocation1]
          %s671 = sphi %s1, %s1
        $region50: #{custom-call.36} parent=46 // loop_header_branch
          %668 = sbr.rel (%p666) target = $region54
        $region51: #{custom-call.36} parent=46 // loop_body
          %v672 = vld [vmem:[%s670] sm:$0xff]
          %673 = vst [vmem:[%s671] sm:$0xff] %v672
          %v674 = vld [vmem:[%s670 + $0x8] sm:$0xff]
          %675 = vst [vmem:[%s671 + $0x8] sm:$0xff] %v674
          %v676 = vld [vmem:[%s670 + $0x10] sm:$0xff]
          %677 = vst [vmem:[%s671 + $0x10] sm:$0xff] %v676
          %v678 = vld [vmem:[%s670 + $0x18] sm:$0xff]
          %679 = vst [vmem:[%s671 + $0x18] sm:$0xff] %v678
        $region52: #{custom-call.36} parent=46 // loop_footer
          %s669 = sadd.s32 1, %s665
        $region53: #{custom-call.36} parent=46 // loop_footer_branch
          %664 = sbr.rel target = $region49
        $region54: #{custom-call.36} parent=46 // loop_exit
          _
      $region47: #{custom-call.36} parent=38 // pred_fallthru
        _
    $region39: #{custom-call.36} parent=1 // pred_fallthru
      _
    %700 = vnop

// kernel: custom-call.37
$region0: #{custom-call.37}
  %s0 = inlined_call_operand.vmem [shape: f32[1,31,31], index: 0, kind: input, shape index: {}]
  %s1 = inlined_call_operand.vmem [shape: f32[1,31,31], index: 1, kind: output, shape index: {}]
  $region1: #{custom-call.37} parent=0
    #allocation0 [shape = 'u8[16384]{0}', space=vmem, size = 0x4000, scoped, tag = 'operand span for operand 0']
    #allocation1 [shape = 'u8[16384]{0}', space=vmem, size = 0x4000, scoped, tag = 'operand span for operand 1']
    #allocation2 [shape = 'f32[31,31]{1,0}', space=vmem, size = 0x4000, scoped, tag = 'rescaled input a']
    // Predicated region
    $region2: #{custom-call.37} parent=1 // pred_check
      _
    $region3: #{custom-call.37} parent=1 // pred_check_branch
      %3 = sbr.rel (0) target = $region5
    $region4: #{custom-call.37} parent=1 // pred_region
      // Predicated region
      $region6: #{custom-call.37} parent=4 // pred_check
        _
      $region7: #{custom-call.37} parent=4 // pred_check_branch
        %5 = sbr.rel (0) target = $region9
      $region8: #{custom-call.37} parent=4 // pred_region
        // Predicated region
        $region21: #{custom-call.37} parent=8 // pred_check
          _
        $region22: #{custom-call.37} parent=8 // pred_check_branch
          %26 = sbr.rel (0) target = $region24
        $region23: #{custom-call.37} parent=8 // pred_region
          loop: start=0, step=1, limit=1
          $region25: #{custom-call.37} parent=23 // loop_pre_header
            _
          $region26: #{custom-call.37} parent=23 // loop_header
            %s28 = sphi 0, %s32
            %p29 = scmp.ge.s32.totalorder %s28, 1
            %s33 = sphi %s0, %s0
            %s34 = sphi [#allocation0], [#allocation0]
          $region27: #{custom-call.37} parent=23 // loop_header_branch
            %31 = sbr.rel (%p29) target = $region31
          $region28: #{custom-call.37} parent=23 // loop_body
            %v35 = vld [vmem:[%s33] sm:$0xff]
            %36 = vst [vmem:[%s34] sm:$0xff] %v35
            %v37 = vld [vmem:[%s33 + $0x8] sm:$0xff]
            %38 = vst [vmem:[%s34 + $0x8] sm:$0xff] %v37
            %v39 = vld [vmem:[%s33 + $0x10] sm:$0xff]
            %40 = vst [vmem:[%s34 + $0x10] sm:$0xff] %v39
            %v41 = vld [vmem:[%s33 + $0x18] sm:$0xff]
            %42 = vst [vmem:[%s34 + $0x18] sm:$0xff] %v41
          $region29: #{custom-call.37} parent=23 // loop_footer
            %s32 = sadd.s32 1, %s28
          $region30: #{custom-call.37} parent=23 // loop_footer_branch
            %27 = sbr.rel target = $region26
          $region31: #{custom-call.37} parent=23 // loop_exit
            _
        $region24: #{custom-call.37} parent=8 // pred_fallthru
          _
        // Predicated region
        $region32: #{custom-call.37} parent=8 // pred_check
          _
        $region33: #{custom-call.37} parent=8 // pred_check_branch
          %44 = sbr.rel target = $region35
        $region34: #{custom-call.37} parent=8 // pred_region
          _
        $region35: #{custom-call.37} parent=8 // pred_fallthru
          _
      $region9: #{custom-call.37} parent=4 // pred_fallthru
        _
      // Predicated region
      $region10: #{custom-call.37} parent=4 // pred_check
        _
      $region11: #{custom-call.37} parent=4 // pred_check_branch
        %7 = sbr.rel target = $region13
      $region12: #{custom-call.37} parent=4 // pred_region
        loop: start=0, step=1, limit=1
        $region14: #{custom-call.37} parent=12 // loop_pre_header
          _
        $region15: #{custom-call.37} parent=12 // loop_header
          %s10 = sphi 0, %s14
          %p11 = scmp.ge.s32.totalorder %s10, 1
          %s15 = sphi %s0, %s0
          %s16 = sphi [#allocation0], [#allocation0]
        $region16: #{custom-call.37} parent=12 // loop_header_branch
          %13 = sbr.rel (%p11) target = $region20
        $region17: #{custom-call.37} parent=12 // loop_body
          %v17 = vld [vmem:[%s15] sm:$0xff]
          %18 = vst [vmem:[%s16] sm:$0xff] %v17
          %v19 = vld [vmem:[%s15 + $0x8] sm:$0xff]
          %20 = vst [vmem:[%s16 + $0x8] sm:$0xff] %v19
          %v21 = vld [vmem:[%s15 + $0x10] sm:$0xff]
          %22 = vst [vmem:[%s16 + $0x10] sm:$0xff] %v21
          %v23 = vld [vmem:[%s15 + $0x18] sm:$0xff]
          %24 = vst [vmem:[%s16 + $0x18] sm:$0xff] %v23
        $region18: #{custom-call.37} parent=12 // loop_footer
          %s14 = sadd.s32 1, %s10
        $region19: #{custom-call.37} parent=12 // loop_footer_branch
          %9 = sbr.rel target = $region15
        $region20: #{custom-call.37} parent=12 // loop_exit
          _
      $region13: #{custom-call.37} parent=4 // pred_fallthru
        _
    $region5: #{custom-call.37} parent=1 // pred_fallthru
      _
    %45 = vnop
    %v46 = vlaneseq
    %v47 = vand.u32 %v46, 127
    %vm48 = vcmp.lt.s32.totalorder %v47, 31
    %v49 = vlaneseq
    %v50 = vshrl.u32 %v49, 7
    %vm52 = vcmp.eq.s32.totalorder %v50, %v47
    %v53 = vld [vmem:[#allocation0] sm:$0xff]
    %v54 = vsel %vm52, %v53, 0.0
    %55 = vadd.xlane.f32.xlu0 %v54
    %v56 = vpop.xlane.xlu0 %55
    %vm57 = vcmp.ge.s32.totalorder %v50, %v47
    %vm58 = vmand %vm57, %vm48
    %v59 = vsel %vm58, %v53, 0.0
    %v60 = vrcp.pop %v56
    %v61 = vmul.f32 %v59, %v60
    %62 = vst [vmem:[#allocation2] sm:$0xff] %v61
    %s63 = scalar_lea.vmem [#allocation0], 8
    %s64 = scalar_lea.vmem [#allocation2], 8
    %v65 = vlaneseq
    %v66 = vshrl.u32 %v65, 7
    %v67 = vadd.s32 %v66, 8
    %vm68 = vcmp.eq.s32.totalorder %v67, %v47
    %v69 = vld [vmem:[%s63] sm:$0xff]
    %v70 = vsel %vm68, %v69, 0.0
    %71 = vadd.xlane.f32.xlu0 %v70
    %v72 = vpop.xlane.xlu0 %71
    %vm73 = vcmp.ge.s32.totalorder %v67, %v47
    %vm74 = vmand %vm73, %vm48
    %v75 = vsel %vm74, %v69, 0.0
    %v76 = vrcp.pop %v72
    %v77 = vmul.f32 %v75, %v76
    %78 = vst [vmem:[%s64] sm:$0xff] %v77
    %s79 = scalar_lea.vmem [#allocation0], 16
    %s80 = scalar_lea.vmem [#allocation2], 16
    %v81 = vlaneseq
    %v82 = vshrl.u32 %v81, 7
    %v83 = vadd.s32 %v82, 16
    %vm84 = vcmp.eq.s32.totalorder %v83, %v47
    %v85 = vld [vmem:[%s79] sm:$0xff]
    %v86 = vsel %vm84, %v85, 0.0
    %87 = vadd.xlane.f32.xlu0 %v86
    %v88 = vpop.xlane.xlu0 %87
    %vm89 = vcmp.ge.s32.totalorder %v83, %v47
    %vm90 = vmand %vm89, %vm48
    %v91 = vsel %vm90, %v85, 0.0
    %v92 = vrcp.pop %v88
    %v93 = vmul.f32 %v91, %v92
    %94 = vst [vmem:[%s80] sm:$0xff] %v93
    %s95 = scalar_lea.vmem [#allocation0], 24
    %s96 = scalar_lea.vmem [#allocation2], 24
    %v97 = vlaneseq
    %v98 = vshrl.u32 %v97, 7
    %v99 = vadd.s32 %v98, 24
    %vm100 = vcmp.eq.s32.totalorder %v99, %v47
    %v101 = vld [vmem:[%s95] sm:$0xff]
    %v102 = vsel %vm100, %v101, 0.0
    %103 = vadd.xlane.f32.xlu0 %v102
    %v104 = vpop.xlane.xlu0 %103
    %vm105 = vcmp.ge.s32.totalorder %v99, %v47
    %vm106 = vmand %vm105, %vm48
    %v107 = vsel %vm106, %v101, 0.0
    %v108 = vrcp.pop %v104
    %v109 = vmul.f32 %v107, %v108
    %110 = vst [vmem:[%s96] sm:$0xff] %v109
    %v111 = vlaneseq
    %v112 = vand.u32 %v111, 127
    %v113 = vlaneseq
    %v114 = vshrl.u32 %v113, 7
    %vm116 = vcmp.eq.s32.totalorder %v112, %v114
    %v117 = vlaneseq
    %v118 = vand.u32 %v117, 127
    %vm119 = vcmp.eq.s32.totalorder %v118, 0
    %v120 = vsel %vm119, 1.0, -1.0
    %v121 = vsel %vm116, %v120, 0.0
    %v122 = vlaneseq
    %v123 = vand.u32 %v122, 127
    %v124 = vlaneseq
    %v125 = vshrl.u32 %v124, 7
    %v126 = vadd.s32 %v125, 8
    %vm127 = vcmp.eq.s32.totalorder %v123, %v126
    %v128 = vsel %vm127, -1.0, 0.0
    %v129 = vlaneseq
    %v130 = vand.u32 %v129, 127
    %v131 = vlaneseq
    %v132 = vshrl.u32 %v131, 7
    %v133 = vadd.s32 %v132, 16
    %vm134 = vcmp.eq.s32.totalorder %v130, %v133
    %v135 = vsel %vm134, -1.0, 0.0
    %v136 = vlaneseq
    %v137 = vand.u32 %v136, 127
    %v138 = vlaneseq
    %v139 = vshrl.u32 %v138, 7
    %v140 = vadd.s32 %v139, 24
    %vm141 = vcmp.eq.s32.totalorder %v137, %v140
    %v142 = vsel %vm141, -1.0, 0.0
    %s143 = scalar_lea.vmem [#allocation2], 1
    %v144 = vld [vmem:[%s143] ss:$0 sm:$0xff]
    %v145 = vxor.u32 %v144, 2147483648
    %v146 = vlaneseq
    %v147 = vand.u32 %v146, 127
    %vm148 = vcmp.eq.s32.totalorder %v147, 1
    %v149 = vmul.f32 %v145, %v121
    %150 = vadd.xlane.f32.xlu0 %v149
    %v151 = vpop.xlane.xlu0 %150
    %v152 = vsel %vm148, %v151, %v121
    %s153 = scalar_lea.vmem [#allocation2], 2
    %v154 = vld [vmem:[%s153] ss:$0 sm:$0xff]
    %v155 = vxor.u32 %v154, 2147483648
    %v156 = vlaneseq
    %v157 = vand.u32 %v156, 127
    %vm158 = vcmp.eq.s32.totalorder %v157, 2
    %v159 = vmul.f32 %v155, %v152
    %160 = vadd.xlane.f32.xlu0 %v159
    %v161 = vpop.xlane.xlu0 %160
    %v162 = vsel %vm158, %v161, %v152
    %s163 = scalar_lea.vmem [#allocation2], 3
    %v164 = vld [vmem:[%s163] ss:$0 sm:$0xff]
    %v165 = vxor.u32 %v164, 2147483648
    %v166 = vlaneseq
    %v167 = vand.u32 %v166, 127
    %vm168 = vcmp.eq.s32.totalorder %v167, 3
    %v169 = vmul.f32 %v165, %v162
    %170 = vadd.xlane.f32.xlu0 %v169
    %v171 = vpop.xlane.xlu0 %170
    %v172 = vsel %vm168, %v171, %v162
    %s173 = scalar_lea.vmem [#allocation2], 4
    %v174 = vld [vmem:[%s173] ss:$0 sm:$0xff]
    %v175 = vxor.u32 %v174, 2147483648
    %v176 = vlaneseq
    %v177 = vand.u32 %v176, 127
    %vm178 = vcmp.eq.s32.totalorder %v177, 4
    %v179 = vmul.f32 %v175, %v172
    %180 = vadd.xlane.f32.xlu0 %v179
    %v181 = vpop.xlane.xlu0 %180
    %v182 = vsel %vm178, %v181, %v172
    %s183 = scalar_lea.vmem [#allocation2], 5
    %v184 = vld [vmem:[%s183] ss:$0 sm:$0xff]
    %v185 = vxor.u32 %v184, 2147483648
    %v186 = vlaneseq
    %v187 = vand.u32 %v186, 127
    %vm188 = vcmp.eq.s32.totalorder %v187, 5
    %v189 = vmul.f32 %v185, %v182
    %190 = vadd.xlane.f32.xlu0 %v189
    %v191 = vpop.xlane.xlu0 %190
    %v192 = vsel %vm188, %v191, %v182
    %s193 = scalar_lea.vmem [#allocation2], 6
    %v194 = vld [vmem:[%s193] ss:$0 sm:$0xff]
    %v195 = vxor.u32 %v194, 2147483648
    %v196 = vlaneseq
    %v197 = vand.u32 %v196, 127
    %vm198 = vcmp.eq.s32.totalorder %v197, 6
    %v199 = vmul.f32 %v195, %v192
    %200 = vadd.xlane.f32.xlu0 %v199
    %v201 = vpop.xlane.xlu0 %200
    %v202 = vsel %vm198, %v201, %v192
    %s203 = scalar_lea.vmem [#allocation2], 7
    %v204 = vld [vmem:[%s203] ss:$0 sm:$0xff]
    %v205 = vxor.u32 %v204, 2147483648
    %v206 = vlaneseq
    %v207 = vand.u32 %v206, 127
    %vm208 = vcmp.eq.s32.totalorder %v207, 7
    %v209 = vmul.f32 %v205, %v202
    %210 = vadd.xlane.f32.xlu0 %v209
    %v211 = vpop.xlane.xlu0 %210
    %v212 = vsel %vm208, %v211, %v202
    %s213 = scalar_lea.vmem [#allocation2], 8
    %v214 = vld [vmem:[%s213] ss:$0 sm:$0xff]
    %v215 = vxor.u32 %v214, 2147483648
    %v216 = vlaneseq
    %v217 = vand.u32 %v216, 127
    %vm218 = vcmp.eq.s32.totalorder %v217, 8
    %v219 = vmul.f32 %v215, %v212
    %220 = vadd.xlane.f32.xlu0 %v219
    %v221 = vpop.xlane.xlu0 %220
    %v222 = vsel %vm218, %v221, %v212
    %v223 = vmul.f32 %v215, %v128
    %224 = vadd.xlane.f32.xlu0 %v223
    %v225 = vpop.xlane.xlu0 %224
    %v226 = vsel %vm218, %v225, %v128
    %s227 = scalar_lea.vmem [#allocation2], 9
    %v228 = vld [vmem:[%s227] ss:$0 sm:$0xff]
    %v229 = vxor.u32 %v228, 2147483648
    %v230 = vlaneseq
    %v231 = vand.u32 %v230, 127
    %vm232 = vcmp.eq.s32.totalorder %v231, 9
    %v233 = vmul.f32 %v229, %v222
    %234 = vadd.xlane.f32.xlu0 %v233
    %v235 = vpop.xlane.xlu0 %234
    %v236 = vsel %vm232, %v235, %v222
    %v237 = vmul.f32 %v229, %v226
    %238 = vadd.xlane.f32.xlu0 %v237
    %v239 = vpop.xlane.xlu0 %238
    %v240 = vsel %vm232, %v239, %v226
    %s241 = scalar_lea.vmem [#allocation2], 10
    %v242 = vld [vmem:[%s241] ss:$0 sm:$0xff]
    %v243 = vxor.u32 %v242, 2147483648
    %v244 = vlaneseq
    %v245 = vand.u32 %v244, 127
    %vm246 = vcmp.eq.s32.totalorder %v245, 10
    %v247 = vmul.f32 %v243, %v236
    %248 = vadd.xlane.f32.xlu0 %v247
    %v249 = vpop.xlane.xlu0 %248
    %v250 = vsel %vm246, %v249, %v236
    %v251 = vmul.f32 %v243, %v240
    %252 = vadd.xlane.f32.xlu0 %v251
    %v253 = vpop.xlane.xlu0 %252
    %v254 = vsel %vm246, %v253, %v240
    %s255 = scalar_lea.vmem [#allocation2], 11
    %v256 = vld [vmem:[%s255] ss:$0 sm:$0xff]
    %v257 = vxor.u32 %v256, 2147483648
    %v258 = vlaneseq
    %v259 = vand.u32 %v258, 127
    %vm260 = vcmp.eq.s32.totalorder %v259, 11
    %v261 = vmul.f32 %v257, %v250
    %262 = vadd.xlane.f32.xlu0 %v261
    %v263 = vpop.xlane.xlu0 %262
    %v264 = vsel %vm260, %v263, %v250
    %v265 = vmul.f32 %v257, %v254
    %266 = vadd.xlane.f32.xlu0 %v265
    %v267 = vpop.xlane.xlu0 %266
    %v268 = vsel %vm260, %v267, %v254
    %s269 = scalar_lea.vmem [#allocation2], 12
    %v270 = vld [vmem:[%s269] ss:$0 sm:$0xff]
    %v271 = vxor.u32 %v270, 2147483648
    %v272 = vlaneseq
    %v273 = vand.u32 %v272, 127
    %vm274 = vcmp.eq.s32.totalorder %v273, 12
    %v275 = vmul.f32 %v271, %v264
    %276 = vadd.xlane.f32.xlu0 %v275
    %v277 = vpop.xlane.xlu0 %276
    %v278 = vsel %vm274, %v277, %v264
    %v279 = vmul.f32 %v271, %v268
    %280 = vadd.xlane.f32.xlu0 %v279
    %v281 = vpop.xlane.xlu0 %280
    %v282 = vsel %vm274, %v281, %v268
    %s283 = scalar_lea.vmem [#allocation2], 13
    %v284 = vld [vmem:[%s283] ss:$0 sm:$0xff]
    %v285 = vxor.u32 %v284, 2147483648
    %v286 = vlaneseq
    %v287 = vand.u32 %v286, 127
    %vm288 = vcmp.eq.s32.totalorder %v287, 13
    %v289 = vmul.f32 %v285, %v278
    %290 = vadd.xlane.f32.xlu0 %v289
    %v291 = vpop.xlane.xlu0 %290
    %v292 = vsel %vm288, %v291, %v278
    %v293 = vmul.f32 %v285, %v282
    %294 = vadd.xlane.f32.xlu0 %v293
    %v295 = vpop.xlane.xlu0 %294
    %v296 = vsel %vm288, %v295, %v282
    %s297 = scalar_lea.vmem [#allocation2], 14
    %v298 = vld [vmem:[%s297] ss:$0 sm:$0xff]
    %v299 = vxor.u32 %v298, 2147483648
    %v300 = vlaneseq
    %v301 = vand.u32 %v300, 127
    %vm302 = vcmp.eq.s32.totalorder %v301, 14
    %v303 = vmul.f32 %v299, %v292
    %304 = vadd.xlane.f32.xlu0 %v303
    %v305 = vpop.xlane.xlu0 %304
    %v306 = vsel %vm302, %v305, %v292
    %v307 = vmul.f32 %v299, %v296
    %308 = vadd.xlane.f32.xlu0 %v307
    %v309 = vpop.xlane.xlu0 %308
    %v310 = vsel %vm302, %v309, %v296
    %s311 = scalar_lea.vmem [#allocation2], 15
    %v312 = vld [vmem:[%s311] ss:$0 sm:$0xff]
    %v313 = vxor.u32 %v312, 2147483648
    %v314 = vlaneseq
    %v315 = vand.u32 %v314, 127
    %vm316 = vcmp.eq.s32.totalorder %v315, 15
    %v317 = vmul.f32 %v313, %v306
    %318 = vadd.xlane.f32.xlu0 %v317
    %v319 = vpop.xlane.xlu0 %318
    %v320 = vsel %vm316, %v319, %v306
    %v321 = vmul.f32 %v313, %v310
    %322 = vadd.xlane.f32.xlu0 %v321
    %v323 = vpop.xlane.xlu0 %322
    %v324 = vsel %vm316, %v323, %v310
    %s325 = scalar_lea.vmem [#allocation2], 16
    %v326 = vld [vmem:[%s325] ss:$0 sm:$0xff]
    %v327 = vxor.u32 %v326, 2147483648
    %v328 = vlaneseq
    %v329 = vand.u32 %v328, 127
    %vm330 = vcmp.eq.s32.totalorder %v329, 16
    %v331 = vmul.f32 %v327, %v320
    %332 = vadd.xlane.f32.xlu0 %v331
    %v333 = vpop.xlane.xlu0 %332
    %v334 = vsel %vm330, %v333, %v320
    %v335 = vmul.f32 %v327, %v324
    %336 = vadd.xlane.f32.xlu0 %v335
    %v337 = vpop.xlane.xlu0 %336
    %v338 = vsel %vm330, %v337, %v324
    %v339 = vmul.f32 %v327, %v135
    %340 = vadd.xlane.f32.xlu0 %v339
    %v341 = vpop.xlane.xlu0 %340
    %v342 = vsel %vm330, %v341, %v135
    %s343 = scalar_lea.vmem [#allocation2], 17
    %v344 = vld [vmem:[%s343] ss:$0 sm:$0xff]
    %v345 = vxor.u32 %v344, 2147483648
    %v346 = vlaneseq
    %v347 = vand.u32 %v346, 127
    %vm348 = vcmp.eq.s32.totalorder %v347, 17
    %v349 = vmul.f32 %v345, %v334
    %350 = vadd.xlane.f32.xlu0 %v349
    %v351 = vpop.xlane.xlu0 %350
    %v352 = vsel %vm348, %v351, %v334
    %v353 = vmul.f32 %v345, %v338
    %354 = vadd.xlane.f32.xlu0 %v353
    %v355 = vpop.xlane.xlu0 %354
    %v356 = vsel %vm348, %v355, %v338
    %v357 = vmul.f32 %v345, %v342
    %358 = vadd.xlane.f32.xlu0 %v357
    %v359 = vpop.xlane.xlu0 %358
    %v360 = vsel %vm348, %v359, %v342
    %s361 = scalar_lea.vmem [#allocation2], 18
    %v362 = vld [vmem:[%s361] ss:$0 sm:$0xff]
    %v363 = vxor.u32 %v362, 2147483648
    %v364 = vlaneseq
    %v365 = vand.u32 %v364, 127
    %vm366 = vcmp.eq.s32.totalorder %v365, 18
    %v367 = vmul.f32 %v363, %v352
    %368 = vadd.xlane.f32.xlu0 %v367
    %v369 = vpop.xlane.xlu0 %368
    %v370 = vsel %vm366, %v369, %v352
    %v371 = vmul.f32 %v363, %v356
    %372 = vadd.xlane.f32.xlu0 %v371
    %v373 = vpop.xlane.xlu0 %372
    %v374 = vsel %vm366, %v373, %v356
    %v375 = vmul.f32 %v363, %v360
    %376 = vadd.xlane.f32.xlu0 %v375
    %v377 = vpop.xlane.xlu0 %376
    %v378 = vsel %vm366, %v377, %v360
    %s379 = scalar_lea.vmem [#allocation2], 19
    %v380 = vld [vmem:[%s379] ss:$0 sm:$0xff]
    %v381 = vxor.u32 %v380, 2147483648
    %v382 = vlaneseq
    %v383 = vand.u32 %v382, 127
    %vm384 = vcmp.eq.s32.totalorder %v383, 19
    %v385 = vmul.f32 %v381, %v370
    %386 = vadd.xlane.f32.xlu0 %v385
    %v387 = vpop.xlane.xlu0 %386
    %v388 = vsel %vm384, %v387, %v370
    %v389 = vmul.f32 %v381, %v374
    %390 = vadd.xlane.f32.xlu0 %v389
    %v391 = vpop.xlane.xlu0 %390
    %v392 = vsel %vm384, %v391, %v374
    %v393 = vmul.f32 %v381, %v378
    %394 = vadd.xlane.f32.xlu0 %v393
    %v395 = vpop.xlane.xlu0 %394
    %v396 = vsel %vm384, %v395, %v378
    %s397 = scalar_lea.vmem [#allocation2], 20
    %v398 = vld [vmem:[%s397] ss:$0 sm:$0xff]
    %v399 = vxor.u32 %v398, 2147483648
    %v400 = vlaneseq
    %v401 = vand.u32 %v400, 127
    %vm402 = vcmp.eq.s32.totalorder %v401, 20
    %v403 = vmul.f32 %v399, %v388
    %404 = vadd.xlane.f32.xlu0 %v403
    %v405 = vpop.xlane.xlu0 %404
    %v406 = vsel %vm402, %v405, %v388
    %v407 = vmul.f32 %v399, %v392
    %408 = vadd.xlane.f32.xlu0 %v407
    %v409 = vpop.xlane.xlu0 %408
    %v410 = vsel %vm402, %v409, %v392
    %v411 = vmul.f32 %v399, %v396
    %412 = vadd.xlane.f32.xlu0 %v411
    %v413 = vpop.xlane.xlu0 %412
    %v414 = vsel %vm402, %v413, %v396
    %s415 = scalar_lea.vmem [#allocation2], 21
    %v416 = vld [vmem:[%s415] ss:$0 sm:$0xff]
    %v417 = vxor.u32 %v416, 2147483648
    %v418 = vlaneseq
    %v419 = vand.u32 %v418, 127
    %vm420 = vcmp.eq.s32.totalorder %v419, 21
    %v421 = vmul.f32 %v417, %v406
    %422 = vadd.xlane.f32.xlu0 %v421
    %v423 = vpop.xlane.xlu0 %422
    %v424 = vsel %vm420, %v423, %v406
    %v425 = vmul.f32 %v417, %v410
    %426 = vadd.xlane.f32.xlu0 %v425
    %v427 = vpop.xlane.xlu0 %426
    %v428 = vsel %vm420, %v427, %v410
    %v429 = vmul.f32 %v417, %v414
    %430 = vadd.xlane.f32.xlu0 %v429
    %v431 = vpop.xlane.xlu0 %430
    %v432 = vsel %vm420, %v431, %v414
    %s433 = scalar_lea.vmem [#allocation2], 22
    %v434 = vld [vmem:[%s433] ss:$0 sm:$0xff]
    %v435 = vxor.u32 %v434, 2147483648
    %v436 = vlaneseq
    %v437 = vand.u32 %v436, 127
    %vm438 = vcmp.eq.s32.totalorder %v437, 22
    %v439 = vmul.f32 %v435, %v424
    %440 = vadd.xlane.f32.xlu0 %v439
    %v441 = vpop.xlane.xlu0 %440
    %v442 = vsel %vm438, %v441, %v424
    %v443 = vmul.f32 %v435, %v428
    %444 = vadd.xlane.f32.xlu0 %v443
    %v445 = vpop.xlane.xlu0 %444
    %v446 = vsel %vm438, %v445, %v428
    %v447 = vmul.f32 %v435, %v432
    %448 = vadd.xlane.f32.xlu0 %v447
    %v449 = vpop.xlane.xlu0 %448
    %v450 = vsel %vm438, %v449, %v432
    %s451 = scalar_lea.vmem [#allocation2], 23
    %v452 = vld [vmem:[%s451] ss:$0 sm:$0xff]
    %v453 = vxor.u32 %v452, 2147483648
    %v454 = vlaneseq
    %v455 = vand.u32 %v454, 127
    %vm456 = vcmp.eq.s32.totalorder %v455, 23
    %v457 = vmul.f32 %v453, %v442
    %458 = vadd.xlane.f32.xlu0 %v457
    %v459 = vpop.xlane.xlu0 %458
    %v460 = vsel %vm456, %v459, %v442
    %v461 = vmul.f32 %v453, %v446
    %462 = vadd.xlane.f32.xlu0 %v461
    %v463 = vpop.xlane.xlu0 %462
    %v464 = vsel %vm456, %v463, %v446
    %v465 = vmul.f32 %v453, %v450
    %466 = vadd.xlane.f32.xlu0 %v465
    %v467 = vpop.xlane.xlu0 %466
    %v468 = vsel %vm456, %v467, %v450
    %s469 = scalar_lea.vmem [#allocation2], 24
    %v470 = vld [vmem:[%s469] ss:$0 sm:$0xff]
    %v471 = vxor.u32 %v470, 2147483648
    %v472 = vlaneseq
    %v473 = vand.u32 %v472, 127
    %vm474 = vcmp.eq.s32.totalorder %v473, 24
    %v475 = vmul.f32 %v471, %v460
    %476 = vadd.xlane.f32.xlu0 %v475
    %v477 = vpop.xlane.xlu0 %476
    %v478 = vsel %vm474, %v477, %v460
    %v479 = vmul.f32 %v471, %v464
    %480 = vadd.xlane.f32.xlu0 %v479
    %v481 = vpop.xlane.xlu0 %480
    %v482 = vsel %vm474, %v481, %v464
    %v483 = vmul.f32 %v471, %v468
    %484 = vadd.xlane.f32.xlu0 %v483
    %v485 = vpop.xlane.xlu0 %484
    %v486 = vsel %vm474, %v485, %v468
    %v487 = vmul.f32 %v471, %v142
    %488 = vadd.xlane.f32.xlu0 %v487
    %v489 = vpop.xlane.xlu0 %488
    %v490 = vsel %vm474, %v489, %v142
    %s491 = scalar_lea.vmem [#allocation2], 25
    %v492 = vld [vmem:[%s491] ss:$0 sm:$0xff]
    %v493 = vxor.u32 %v492, 2147483648
    %v494 = vlaneseq
    %v495 = vand.u32 %v494, 127
    %vm496 = vcmp.eq.s32.totalorder %v495, 25
    %v497 = vmul.f32 %v493, %v478
    %498 = vadd.xlane.f32.xlu0 %v497
    %v499 = vpop.xlane.xlu0 %498
    %v500 = vsel %vm496, %v499, %v478
    %v501 = vmul.f32 %v493, %v482
    %502 = vadd.xlane.f32.xlu0 %v501
    %v503 = vpop.xlane.xlu0 %502
    %v504 = vsel %vm496, %v503, %v482
    %v505 = vmul.f32 %v493, %v486
    %506 = vadd.xlane.f32.xlu0 %v505
    %v507 = vpop.xlane.xlu0 %506
    %v508 = vsel %vm496, %v507, %v486
    %v509 = vmul.f32 %v493, %v490
    %510 = vadd.xlane.f32.xlu0 %v509
    %v511 = vpop.xlane.xlu0 %510
    %v512 = vsel %vm496, %v511, %v490
    %s513 = scalar_lea.vmem [#allocation2], 26
    %v514 = vld [vmem:[%s513] ss:$0 sm:$0xff]
    %v515 = vxor.u32 %v514, 2147483648
    %v516 = vlaneseq
    %v517 = vand.u32 %v516, 127
    %vm518 = vcmp.eq.s32.totalorder %v517, 26
    %v519 = vmul.f32 %v515, %v500
    %520 = vadd.xlane.f32.xlu0 %v519
    %v521 = vpop.xlane.xlu0 %520
    %v522 = vsel %vm518, %v521, %v500
    %v523 = vmul.f32 %v515, %v504
    %524 = vadd.xlane.f32.xlu0 %v523
    %v525 = vpop.xlane.xlu0 %524
    %v526 = vsel %vm518, %v525, %v504
    %v527 = vmul.f32 %v515, %v508
    %528 = vadd.xlane.f32.xlu0 %v527
    %v529 = vpop.xlane.xlu0 %528
    %v530 = vsel %vm518, %v529, %v508
    %v531 = vmul.f32 %v515, %v512
    %532 = vadd.xlane.f32.xlu0 %v531
    %v533 = vpop.xlane.xlu0 %532
    %v534 = vsel %vm518, %v533, %v512
    %s535 = scalar_lea.vmem [#allocation2], 27
    %v536 = vld [vmem:[%s535] ss:$0 sm:$0xff]
    %v537 = vxor.u32 %v536, 2147483648
    %v538 = vlaneseq
    %v539 = vand.u32 %v538, 127
    %vm540 = vcmp.eq.s32.totalorder %v539, 27
    %v541 = vmul.f32 %v537, %v522
    %542 = vadd.xlane.f32.xlu0 %v541
    %v543 = vpop.xlane.xlu0 %542
    %v544 = vsel %vm540, %v543, %v522
    %v545 = vmul.f32 %v537, %v526
    %546 = vadd.xlane.f32.xlu0 %v545
    %v547 = vpop.xlane.xlu0 %546
    %v548 = vsel %vm540, %v547, %v526
    %v549 = vmul.f32 %v537, %v530
    %550 = vadd.xlane.f32.xlu0 %v549
    %v551 = vpop.xlane.xlu0 %550
    %v552 = vsel %vm540, %v551, %v530
    %v553 = vmul.f32 %v537, %v534
    %554 = vadd.xlane.f32.xlu0 %v553
    %v555 = vpop.xlane.xlu0 %554
    %v556 = vsel %vm540, %v555, %v534
    %s557 = scalar_lea.vmem [#allocation2], 28
    %v558 = vld [vmem:[%s557] ss:$0 sm:$0xff]
    %v559 = vxor.u32 %v558, 2147483648
    %v560 = vlaneseq
    %v561 = vand.u32 %v560, 127
    %vm562 = vcmp.eq.s32.totalorder %v561, 28
    %v563 = vmul.f32 %v559, %v544
    %564 = vadd.xlane.f32.xlu0 %v563
    %v565 = vpop.xlane.xlu0 %564
    %v566 = vsel %vm562, %v565, %v544
    %v567 = vmul.f32 %v559, %v548
    %568 = vadd.xlane.f32.xlu0 %v567
    %v569 = vpop.xlane.xlu0 %568
    %v570 = vsel %vm562, %v569, %v548
    %v571 = vmul.f32 %v559, %v552
    %572 = vadd.xlane.f32.xlu0 %v571
    %v573 = vpop.xlane.xlu0 %572
    %v574 = vsel %vm562, %v573, %v552
    %v575 = vmul.f32 %v559, %v556
    %576 = vadd.xlane.f32.xlu0 %v575
    %v577 = vpop.xlane.xlu0 %576
    %v578 = vsel %vm562, %v577, %v556
    %s579 = scalar_lea.vmem [#allocation2], 29
    %v580 = vld [vmem:[%s579] ss:$0 sm:$0xff]
    %v581 = vxor.u32 %v580, 2147483648
    %v582 = vlaneseq
    %v583 = vand.u32 %v582, 127
    %vm584 = vcmp.eq.s32.totalorder %v583, 29
    %v585 = vmul.f32 %v581, %v566
    %586 = vadd.xlane.f32.xlu0 %v585
    %v587 = vpop.xlane.xlu0 %586
    %v588 = vsel %vm584, %v587, %v566
    %v589 = vmul.f32 %v581, %v570
    %590 = vadd.xlane.f32.xlu0 %v589
    %v591 = vpop.xlane.xlu0 %590
    %v592 = vsel %vm584, %v591, %v570
    %v593 = vmul.f32 %v581, %v574
    %594 = vadd.xlane.f32.xlu0 %v593
    %v595 = vpop.xlane.xlu0 %594
    %v596 = vsel %vm584, %v595, %v574
    %v597 = vmul.f32 %v581, %v578
    %598 = vadd.xlane.f32.xlu0 %v597
    %v599 = vpop.xlane.xlu0 %598
    %v600 = vsel %vm584, %v599, %v578
    %s601 = scalar_lea.vmem [#allocation2], 30
    %v602 = vld [vmem:[%s601] ss:$0 sm:$0xff]
    %v603 = vxor.u32 %v602, 2147483648
    %v604 = vlaneseq
    %v605 = vand.u32 %v604, 127
    %vm606 = vcmp.eq.s32.totalorder %v605, 30
    %v607 = vmul.f32 %v603, %v588
    %608 = vadd.xlane.f32.xlu0 %v607
    %v609 = vpop.xlane.xlu0 %608
    %v610 = vsel %vm606, %v609, %v588
    %v611 = vmul.f32 %v603, %v592
    %612 = vadd.xlane.f32.xlu0 %v611
    %v613 = vpop.xlane.xlu0 %612
    %v614 = vsel %vm606, %v613, %v592
    %v615 = vmul.f32 %v603, %v596
    %616 = vadd.xlane.f32.xlu0 %v615
    %v617 = vpop.xlane.xlu0 %616
    %v618 = vsel %vm606, %v617, %v596
    %v619 = vmul.f32 %v603, %v600
    %620 = vadd.xlane.f32.xlu0 %v619
    %v621 = vpop.xlane.xlu0 %620
    %v622 = vsel %vm606, %v621, %v600
    %v623 = vrcp.pop %v56
    %v624 = vmul.f32 %v610, %v623
    %vm625 = vweird.f32 %v56
    %v626 = vsel %vm625, %v610, %v624
    %627 = vst [vmem:[#allocation1] sm:$0xff] %v626
    %v628 = vrcp.pop %v72
    %v629 = vmul.f32 %v614, %v628
    %vm630 = vweird.f32 %v72
    %v631 = vsel %vm630, %v614, %v629
    %s632 = scalar_lea.vmem [#allocation1], 8
    %633 = vst [vmem:[%s632] sm:$0xff] %v631
    %v634 = vrcp.pop %v88
    %v635 = vmul.f32 %v618, %v634
    %vm636 = vweird.f32 %v88
    %v637 = vsel %vm636, %v618, %v635
    %s638 = scalar_lea.vmem [#allocation1], 16
    %639 = vst [vmem:[%s638] sm:$0xff] %v637
    %v640 = vrcp.pop %v104
    %v641 = vmul.f32 %v622, %v640
    %vm642 = vweird.f32 %v104
    %v643 = vsel %vm642, %v622, %v641
    %s644 = scalar_lea.vmem [#allocation1], 24
    %645 = vst [vmem:[%s644] sm:$0xff] %v643
    // Predicated region
    $region36: #{custom-call.37} parent=1 // pred_check
      _
    $region37: #{custom-call.37} parent=1 // pred_check_branch
      %647 = sbr.rel (0) target = $region39
    $region38: #{custom-call.37} parent=1 // pred_region
      // Predicated region
      $region40: #{custom-call.37} parent=38 // pred_check
        _
      $region41: #{custom-call.37} parent=38 // pred_check_branch
        %649 = sbr.rel (0) target = $region43
      $region42: #{custom-call.37} parent=38 // pred_region
        // Predicated region
        $region55: #{custom-call.37} parent=42 // pred_check
          _
        $region56: #{custom-call.37} parent=42 // pred_check_branch
          %670 = sbr.rel (0) target = $region58
        $region57: #{custom-call.37} parent=42 // pred_region
          loop: start=0, step=1, limit=1
          $region59: #{custom-call.37} parent=57 // loop_pre_header
            _
          $region60: #{custom-call.37} parent=57 // loop_header
            %s672 = sphi 0, %s676
            %p673 = scmp.ge.s32.totalorder %s672, 1
            %s677 = sphi [#allocation1], [#allocation1]
            %s678 = sphi %s1, %s1
          $region61: #{custom-call.37} parent=57 // loop_header_branch
            %675 = sbr.rel (%p673) target = $region65
          $region62: #{custom-call.37} parent=57 // loop_body
            %v679 = vld [vmem:[%s677] sm:$0xff]
            %680 = vst [vmem:[%s678] sm:$0xff] %v679
            %v681 = vld [vmem:[%s677 + $0x8] sm:$0xff]
            %682 = vst [vmem:[%s678 + $0x8] sm:$0xff] %v681
            %v683 = vld [vmem:[%s677 + $0x10] sm:$0xff]
            %684 = vst [vmem:[%s678 + $0x10] sm:$0xff] %v683
            %v685 = vld [vmem:[%s677 + $0x18] sm:$0xff]
            %686 = vst [vmem:[%s678 + $0x18] sm:$0xff] %v685
          $region63: #{custom-call.37} parent=57 // loop_footer
            %s676 = sadd.s32 1, %s672
          $region64: #{custom-call.37} parent=57 // loop_footer_branch
            %671 = sbr.rel target = $region60
          $region65: #{custom-call.37} parent=57 // loop_exit
            _
        $region58: #{custom-call.37} parent=42 // pred_fallthru
          _
        // Predicated region
        $region66: #{custom-call.37} parent=42 // pred_check
          _
        $region67: #{custom-call.37} parent=42 // pred_check_branch
          %688 = sbr.rel target = $region69
        $region68: #{custom-call.37} parent=42 // pred_region
          _
        $region69: #{custom-call.37} parent=42 // pred_fallthru
          _
      $region43: #{custom-call.37} parent=38 // pred_fallthru
        _
      // Predicated region
      $region44: #{custom-call.37} parent=38 // pred_check
        _
      $region45: #{custom-call.37} parent=38 // pred_check_branch
        %651 = sbr.rel target = $region47
      $region46: #{custom-call.37} parent=38 // pred_region
        loop: start=0, step=1, limit=1
        $region48: #{custom-call.37} parent=46 // loop_pre_header
          _
        $region49: #{custom-call.37} parent=46 // loop_header
          %s654 = sphi 0, %s658
          %p655 = scmp.ge.s32.totalorder %s654, 1
          %s659 = sphi [#allocation1], [#allocation1]
          %s660 = sphi %s1, %s1
        $region50: #{custom-call.37} parent=46 // loop_header_branch
          %657 = sbr.rel (%p655) target = $region54
        $region51: #{custom-call.37} parent=46 // loop_body
          %v661 = vld [vmem:[%s659] sm:$0xff]
          %662 = vst [vmem:[%s660] sm:$0xff] %v661
          %v663 = vld [vmem:[%s659 + $0x8] sm:$0xff]
          %664 = vst [vmem:[%s660 + $0x8] sm:$0xff] %v663
          %v665 = vld [vmem:[%s659 + $0x10] sm:$0xff]
          %666 = vst [vmem:[%s660 + $0x10] sm:$0xff] %v665
          %v667 = vld [vmem:[%s659 + $0x18] sm:$0xff]
          %668 = vst [vmem:[%s660 + $0x18] sm:$0xff] %v667
        $region52: #{custom-call.37} parent=46 // loop_footer
          %s658 = sadd.s32 1, %s654
        $region53: #{custom-call.37} parent=46 // loop_footer_branch
          %653 = sbr.rel target = $region49
        $region54: #{custom-call.37} parent=46 // loop_exit
          _
      $region47: #{custom-call.37} parent=38 // pred_fallthru
        _
    $region39: #{custom-call.37} parent=1 // pred_fallthru
      _
    %689 = vnop

// kernel: ladmm_forward.1
$region0: #{ladmm_forward.1}
  #allocation0 [shape = 'u32[]', space=smem, size = 0x4, offset = 0x4, fixed_abs, tag = 'smem constant byte address 0x4 - core index']
  #allocation1 [shape = 'u32[144,128]{1,0:T(1,128)}', space=vmem, size = 0x12000, scoped, tag = 'internal scratch']
  #allocation2 [shape = 'f32[96,1024]{1,0:T(8,128)}', space=vmem, size = 0x60000, scoped, tag = 'scratch operand']
  #allocation3 [shape = 's32[1]{0}', space=sflag, size = 0x4, scoped, tag = 'scoped memory for ladmm_forward.1']
  #allocation4 [shape = 'u8[4096]{0}', space=smem, size = 0x1000, scoped, tag = 'prefetched SMEM operand 0']
  %s0 = inlined_call_operand.vmem [shape: f32[5,5], index: 0, kind: input, shape index: {}]
  %s1 = inlined_call_operand.vmem [shape: f32[10,2048], index: 1, kind: input, shape index: {}]
  %s2 = inlined_call_operand.vmem [shape: f32[160,10], index: 2, kind: input, shape index: {}]
  %s3 = inlined_call_operand.vmem [shape: f32[4,64,96], index: 3, kind: input, shape index: {}]
  %s4 = inlined_call_operand.vmem [shape: f32[32,2048], index: 4, kind: output, shape index: {}]
  %s5 = sld [smem:[#allocation0]]
  $region87: #{ladmm_forward.1} parent=0
    _
  %s7 = ssub.s32 1, %s5
  %s8 = scalar_select 0, %s7, %s5
  %s9 = sshll.u32 %s0, 4
  %s10 = int_to_ptr.vmem [resolvable:$true] %s9
  %12 = dma.vmem_to_smem %s10, 128, [#allocation4], [#allocation3]
  %13 = dma.done [#allocation3], 128
  %14 = sfence
  $region1: #{ladmm_forward.1} parent=0
    #allocation5 [shape = 'u8[131072]{0}', space=vmem, size = 0x20000, scoped, tag = 'input window, operand 1']
    #allocation6 [shape = 'u8[262144]{0}', space=vmem, size = 0x40000, scoped, tag = 'output window, operand 0']
    loop: start=0, step=1, limit=4
    $region2: #{ladmm_forward.1} parent=1 // loop_pre_header
      _
    $region3: #{ladmm_forward.1} parent=1 // loop_header
      %s16 = sphi 0, %s20
      %p17 = scmp.ge.s32.totalorder %s16, 4
      %s26 = sphi 0, %s28
      %s29 = sphi 0, %s26
      %s30 = sphi 0, %s29
      %s46 = sphi 0, %s30
      %s50 = sphi 0, %s50
      %s52 = sphi 0, %s50
      %s53 = sphi 0, %s52
      %s67 = sphi 0, %s53
      %s71 = sphi 0, %s71
      %s73 = sphi 0, %s71
      %s74 = sphi 0, %s73
      %s88 = sphi 0, %s74
      %s94 = sphi 0, %s96
      %s97 = sphi 0, %s94
      %s98 = sphi 0, %s97
      %s114 = sphi 0, %s98
    $region4: #{ladmm_forward.1} parent=1 // loop_header_branch
      %19 = sbr.rel (%p17) target = $region8
    $region5: #{ladmm_forward.1} parent=1 // loop_body
      %s21 = ssub.s32 %s16, 1
      %s22 = ssub.s32 %s16, 2
      %s23 = sadd.s32 %s16, 1
      %s24 = ssub.s32 %s16, %s23
      %p25 = scmp.eq.s32.totalorder %s24, 0
      %s27 = sadd.s32 %s26, 1
      %s28 = scalar_select %p25, %s26, %s27
      %p31 = pneg %p25
      %p32 = scmp.eq.s32.totalorder %s16, 1
      %p33 = por %p31, %p32
      %p34 = scmp.ne.s32.totalorder %s26, %s29
      %p35 = scmp.eq.s32.totalorder %s16, 0
      %p36 = por %p34, %p35
      %p37 = scmp.ne.s32.totalorder %s26, %s29
      %p38 = scmp.eq.s32.totalorder %s21, 1
      %p39 = por %p37, %p38
      %p40 = scmp.ne.s32.totalorder %s29, %s30
      %p41 = scmp.eq.s32.totalorder %s21, 0
      %p42 = por %p40, %p41
      %p43 = scmp.ne.s32.totalorder %s29, %s30
      %p44 = scmp.eq.s32.totalorder %s22, 1
      %p45 = por %p43, %p44
      %p47 = scmp.ne.s32.totalorder %s30, %s46
      %p48 = scmp.eq.s32.totalorder %s22, 0
      %p49 = por %p47, %p48
      %s51 = sadd.s32 %s50, 1
      %p54 = scmp.eq.s32.totalorder %s16, 1
      %p55 = scmp.ne.s32.totalorder %s50, %s52
      %p56 = scmp.eq.s32.totalorder %s16, 0
      %p57 = por %p55, %p56
      %p58 = scmp.ne.s32.totalorder %s50, %s52
      %p59 = scmp.eq.s32.totalorder %s21, 1
      %p60 = por %p58, %p59
      %p61 = scmp.ne.s32.totalorder %s52, %s53
      %p62 = scmp.eq.s32.totalorder %s21, 0
      %p63 = por %p61, %p62
      %p64 = scmp.ne.s32.totalorder %s52, %s53
      %p65 = scmp.eq.s32.totalorder %s22, 1
      %p66 = por %p64, %p65
      %p68 = scmp.ne.s32.totalorder %s53, %s67
      %p69 = scmp.eq.s32.totalorder %s22, 0
      %p70 = por %p68, %p69
      %s72 = sadd.s32 %s71, 1
      %p75 = scmp.eq.s32.totalorder %s16, 1
      %p76 = scmp.ne.s32.totalorder %s71, %s73
      %p77 = scmp.eq.s32.totalorder %s16, 0
      %p78 = por %p76, %p77
      %p79 = scmp.ne.s32.totalorder %s71, %s73
      %p80 = scmp.eq.s32.totalorder %s21, 1
      %p81 = por %p79, %p80
      %p82 = scmp.ne.s32.totalorder %s73, %s74
      %p83 = scmp.eq.s32.totalorder %s21, 0
      %p84 = por %p82, %p83
      %p85 = scmp.ne.s32.totalorder %s73, %s74
      %p86 = scmp.eq.s32.totalorder %s22, 1
      %p87 = por %p85, %p86
      %p89 = scmp.ne.s32.totalorder %s74, %s88
      %p90 = scmp.eq.s32.totalorder %s22, 0
      %p91 = por %p89, %p90
      %s92 = ssub.s32 %s16, %s23
      %p93 = scmp.eq.s32.totalorder %s92, 0
      %s95 = sadd.s32 %s94, 1
      %s96 = scalar_select %p93, %s94, %s95
      %p99 = pneg %p93
      %p100 = scmp.eq.s32.totalorder %s16, 1
      %p101 = por %p99, %p100
      %p102 = scmp.ne.s32.totalorder %s94, %s97
      %p103 = scmp.eq.s32.totalorder %s16, 0
      %p104 = por %p102, %p103
      %p105 = scmp.ne.s32.totalorder %s94, %s97
      %p106 = scmp.eq.s32.totalorder %s21, 1
      %p107 = por %p105, %p106
      %p108 = scmp.ne.s32.totalorder %s97, %s98
      %p109 = scmp.eq.s32.totalorder %s21, 0
      %p110 = por %p108, %p109
      %p111 = scmp.ne.s32.totalorder %s97, %s98
      %p112 = scmp.eq.s32.totalorder %s22, 1
      %p113 = por %p111, %p112
      %p115 = scmp.ne.s32.totalorder %s98, %s114
      %p116 = scmp.eq.s32.totalorder %s22, 0
      %p117 = por %p115, %p116
      %p118 = scmp.le.s32.totalorder 1, %s16
      %p119 = scmp.lt.s32.totalorder %s16, 3
      %p120 = pnand %p118, %p119
      %p121 = pneg %p120
      // Predicated region
      $region9: #{ladmm_forward.1} parent=5 // pred_check
        _
      $region10: #{ladmm_forward.1} parent=5 // pred_check_branch
        %123 = sbr.rel (%p120) target = $region12
      $region11: #{ladmm_forward.1} parent=5 // pred_region
        %s124 = ssub.s32 %s16, 1
        // Predicated region
        $region13: #{ladmm_forward.1} parent=11 // pred_check
          %p125 = pneg %p63
        $region14: #{ladmm_forward.1} parent=11 // pred_check_branch
          %127 = sbr.rel (%p125) target = $region16
        $region15: #{ladmm_forward.1} parent=11 // pred_region
          _
        $region16: #{ladmm_forward.1} parent=11 // pred_fallthru
          _
        // Predicated region
        $region17: #{ladmm_forward.1} parent=11 // pred_check
          %p128 = pneg %p84
        $region18: #{ladmm_forward.1} parent=11 // pred_check_branch
          %130 = sbr.rel (%p128) target = $region20
        $region19: #{ladmm_forward.1} parent=11 // pred_region
          _
        $region20: #{ladmm_forward.1} parent=11 // pred_fallthru
          _
      $region12: #{ladmm_forward.1} parent=5 // pred_fallthru
        _
      %p131 = scmp.lt.s32.totalorder %s16, 2
      // Predicated region
      $region21: #{ladmm_forward.1} parent=5 // pred_check
        %p132 = pneg %p131
      $region22: #{ladmm_forward.1} parent=5 // pred_check_branch
        %134 = sbr.rel (%p132) target = $region24
      $region23: #{ladmm_forward.1} parent=5 // pred_region
        // Predicated region
        $region25: #{ladmm_forward.1} parent=23 // pred_check
          %p135 = pneg %p36
        $region26: #{ladmm_forward.1} parent=23 // pred_check_branch
          %137 = sbr.rel (%p135) target = $region28
        $region27: #{ladmm_forward.1} parent=23 // pred_region
          %s138 = sand.u32 %s26, 1
          %s139 = sand.u32 %s26, 1
          %s140 = smul.addr %s139, 128
          %s141 = scalar_lea.vmem [#allocation5], %s140
          %s142 = smul.u32 8, %s16
          %s143 = smul.addr %s142, 8
          %s144 = scalar_lea.vmem %s1, %s143
          // Predicated region
          $region29: #{ladmm_forward.1} parent=27 // pred_check
            _
          $region30: #{ladmm_forward.1} parent=27 // pred_check_branch
            %146 = sbr.rel (0) target = $region32
          $region31: #{ladmm_forward.1} parent=27 // pred_region
            // Predicated region
            $region33: #{ladmm_forward.1} parent=31 // pred_check
              _
            $region34: #{ladmm_forward.1} parent=31 // pred_check_branch
              %148 = sbr.rel (0) target = $region36
            $region35: #{ladmm_forward.1} parent=31 // pred_region
              loop: start=0, step=1, limit=1
              $region37: #{ladmm_forward.1} parent=35 // loop_pre_header
                _
              $region38: #{ladmm_forward.1} parent=35 // loop_header
                %s150 = sphi 0, %s154
                %p151 = scmp.ge.s32.totalorder %s150, 1
                %s155 = sphi %s144, %s144
                %s156 = sphi %s141, %s141
              $region39: #{ladmm_forward.1} parent=35 // loop_header_branch
                %153 = sbr.rel (%p151) target = $region43
              $region40: #{ladmm_forward.1} parent=35 // loop_body
                %v157 = vld [vmem:[%s155] sm:$0xff]
                %158 = vst [vmem:[%s156] sm:$0xff] %v157
                %v159 = vld [vmem:[%s155 + $0x8] sm:$0xff]
                %160 = vst [vmem:[%s156 + $0x8] sm:$0xff] %v159
                %v161 = vld [vmem:[%s155 + $0x10] sm:$0xff]
                %162 = vst [vmem:[%s156 + $0x10] sm:$0xff] %v161
                %v163 = vld [vmem:[%s155 + $0x18] sm:$0xff]
                %164 = vst [vmem:[%s156 + $0x18] sm:$0xff] %v163
                %v165 = vld [vmem:[%s155 + $0x20] sm:$0xff]
                %166 = vst [vmem:[%s156 + $0x20] sm:$0xff] %v165
                %v167 = vld [vmem:[%s155 + $0x28] sm:$0xff]
                %168 = vst [vmem:[%s156 + $0x28] sm:$0xff] %v167
                %v169 = vld [vmem:[%s155 + $0x30] sm:$0xff]
                %170 = vst [vmem:[%s156 + $0x30] sm:$0xff] %v169
                %v171 = vld [vmem:[%s155 + $0x38] sm:$0xff]
                %172 = vst [vmem:[%s156 + $0x38] sm:$0xff] %v171
                %v173 = vld [vmem:[%s155 + $0x80] sm:$0xff]
                %174 = vst [vmem:[%s156 + $0x40] sm:$0xff] %v173
                %v175 = vld [vmem:[%s155 + $0x88] sm:$0xff]
                %176 = vst [vmem:[%s156 + $0x48] sm:$0xff] %v175
                %v177 = vld [vmem:[%s155 + $0x90] sm:$0xff]
                %178 = vst [vmem:[%s156 + $0x50] sm:$0xff] %v177
                %v179 = vld [vmem:[%s155 + $0x98] sm:$0xff]
                %180 = vst [vmem:[%s156 + $0x58] sm:$0xff] %v179
                %v181 = vld [vmem:[%s155 + $0xa0] sm:$0xff]
                %182 = vst [vmem:[%s156 + $0x60] sm:$0xff] %v181
                %v183 = vld [vmem:[%s155 + $0xa8] sm:$0xff]
                %184 = vst [vmem:[%s156 + $0x68] sm:$0xff] %v183
                %v185 = vld [vmem:[%s155 + $0xb0] sm:$0xff]
                %186 = vst [vmem:[%s156 + $0x70] sm:$0xff] %v185
                %v187 = vld [vmem:[%s155 + $0xb8] sm:$0xff]
                %188 = vst [vmem:[%s156 + $0x78] sm:$0xff] %v187
              $region41: #{ladmm_forward.1} parent=35 // loop_footer
                %s154 = sadd.s32 1, %s150
              $region42: #{ladmm_forward.1} parent=35 // loop_footer_branch
                %149 = sbr.rel target = $region38
              $region43: #{ladmm_forward.1} parent=35 // loop_exit
                _
            $region36: #{ladmm_forward.1} parent=31 // pred_fallthru
              _
            // Predicated region
            $region44: #{ladmm_forward.1} parent=31 // pred_check
              _
            $region45: #{ladmm_forward.1} parent=31 // pred_check_branch
              %190 = sbr.rel target = $region47
            $region46: #{ladmm_forward.1} parent=31 // pred_region
              _
            $region47: #{ladmm_forward.1} parent=31 // pred_fallthru
              _
          $region32: #{ladmm_forward.1} parent=27 // pred_fallthru
            _
          %191 = vnop
        $region28: #{ladmm_forward.1} parent=23 // pred_fallthru
          _
      $region24: #{ladmm_forward.1} parent=5 // pred_fallthru
        _
      %p192 = scmp.le.s32.totalorder 1, %s16
      %p193 = scmp.lt.s32.totalorder %s16, 3
      %p194 = pnand %p192, %p193
      %p195 = pneg %p194
      // Predicated region
      $region48: #{ladmm_forward.1} parent=5 // pred_check
        _
      $region49: #{ladmm_forward.1} parent=5 // pred_check_branch
        %197 = sbr.rel (%p194) target = $region51
      $region50: #{ladmm_forward.1} parent=5 // pred_region
        %s198 = ssub.s32 %s16, 1
        %s199 = sand.u32 %s29, 1
        %s200 = sand.u32 %s29, 1
        %s201 = smul.addr %s200, 128
        %s202 = scalar_lea.vmem [#allocation5], %s201
        // Predicated region
        $region52: #{ladmm_forward.1} parent=50 // pred_check
          %p203 = pneg %p42
        $region53: #{ladmm_forward.1} parent=50 // pred_check_branch
          %205 = sbr.rel (%p203) target = $region55
        $region54: #{ladmm_forward.1} parent=50 // pred_region
          _
        $region55: #{ladmm_forward.1} parent=50 // pred_fallthru
          _
        %s206 = sand.u32 %s29, 1
        %s207 = sand.u32 %s29, 1
        %s208 = smul.addr %s207, 128
        %s209 = scalar_lea.vmem [#allocation5], %s208
        %p210 = pneg %p42
        %p211 = pneg %p39
        %p212 = pneg %p63
        %p213 = pneg %p60
        %p214 = pneg %p84
        %p215 = pneg %p81
        %p216 = pneg %p110
        %p217 = pneg %p107
        %s218 = sand.u32 %s97, 1
        %s219 = sand.u32 %s97, 1
        %s220 = smul.addr %s219, 256
        %s221 = scalar_lea.vmem [#allocation6], %s220
        %s222 = smul.u32 8, %s21
        %s223 = smul.u32 8, %s21
        %v224 = vld [vmem:[%s2] sm:$0xff]
        %v225 = vld [vmem:[%s2 + $0x8] sm:$0xff]
        %v226 = vld [vmem:[%s2 + $0x10] sm:$0xff]
        %v227 = vld [vmem:[%s2 + $0x18] sm:$0xff]
        %v228 = vld [vmem:[%s2 + $0x20] sm:$0xff]
        %v229 = vld [vmem:[%s2 + $0x28] sm:$0xff]
        %v230 = vld [vmem:[%s2 + $0x30] sm:$0xff]
        %v231 = vld [vmem:[%s2 + $0x38] sm:$0xff]
        %v232 = vld [vmem:[%s2 + $0x40] sm:$0xff]
        %v233 = vld [vmem:[%s2 + $0x48] sm:$0xff]
        %v234 = vld [vmem:[%s2 + $0x50] sm:$0xff]
        %v235 = vld [vmem:[%s2 + $0x58] sm:$0xff]
        %v236 = vld [vmem:[%s2 + $0x60] sm:$0xff]
        %v237 = vld [vmem:[%s2 + $0x68] sm:$0xff]
        %v238 = vld [vmem:[%s2 + $0x70] sm:$0xff]
        %v239 = vld [vmem:[%s2 + $0x78] sm:$0xff]
        %v240 = vld [vmem:[%s2 + $0x80] sm:$0xff]
        %v241 = vld [vmem:[%s2 + $0x88] sm:$0xff]
        %v242 = vld [vmem:[%s2 + $0x90] sm:$0xff]
        %v243 = vld [vmem:[%s2 + $0x98] sm:$0xff]
        %v244 = vld [vmem:[%s202] sm:$0xff]
        %v245 = vld [vmem:[%s202 + $0x8] sm:$0xff]
        %v246 = vld [vmem:[%s202 + $0x10] sm:$0xff]
        %v247 = vld [vmem:[%s202 + $0x18] sm:$0xff]
        %v248 = vld [vmem:[%s202 + $0x20] sm:$0xff]
        %v249 = vld [vmem:[%s202 + $0x28] sm:$0xff]
        %v250 = vld [vmem:[%s202 + $0x30] sm:$0xff]
        %v251 = vld [vmem:[%s202 + $0x38] sm:$0xff]
        %v252 = vld [vmem:[%s202 + $0x40] sm:$0x3]
        %v253 = vld [vmem:[%s202 + $0x48] sm:$0x3]
        %v254 = vld [vmem:[%s202 + $0x50] sm:$0x3]
        %v255 = vld [vmem:[%s202 + $0x58] sm:$0x3]
        %v256 = vld [vmem:[%s202 + $0x60] sm:$0x3]
        %v257 = vld [vmem:[%s202 + $0x68] sm:$0x3]
        %v258 = vld [vmem:[%s202 + $0x70] sm:$0x3]
        %v259 = vld [vmem:[%s202 + $0x78] sm:$0x3]
        %vm260 = vcmask 80896
        %v262 = vsel %vm260, %v224, 0
        %v265 = vsel %vm260, %v225, 0
        %v268 = vsel %vm260, %v226, 0
        %v271 = vsel %vm260, %v227, 0
        %v274 = vsel %vm260, %v228, 0
        %v277 = vsel %vm260, %v229, 0
        %v280 = vsel %vm260, %v230, 0
        %v283 = vsel %vm260, %v231, 0
        %v286 = vsel %vm260, %v232, 0
        %v289 = vsel %vm260, %v233, 0
        %v292 = vsel %vm260, %v234, 0
        %v295 = vsel %vm260, %v235, 0
        %v298 = vsel %vm260, %v236, 0
        %v301 = vsel %vm260, %v237, 0
        %v304 = vsel %vm260, %v238, 0
        %v307 = vsel %vm260, %v239, 0
        %v310 = vsel %vm260, %v240, 0
        %v313 = vsel %vm260, %v241, 0
        %v316 = vsel %vm260, %v242, 0
        %v319 = vsel %vm260, %v243, 0
        %vm321 = vcmask 1041408
        %v323 = vsel %vm321, %v252, 0
        %v326 = vsel %vm321, %v253, 0
        %v329 = vsel %vm321, %v254, 0
        %v332 = vsel %vm321, %v255, 0
        %v335 = vsel %vm321, %v256, 0
        %v338 = vsel %vm321, %v257, 0
        %v341 = vsel %vm321, %v258, 0
        %v344 = vsel %vm321, %v259, 0
        %346 = vmatprep.subr.mxu0 %v245
        %347 = vmatpush1.msra.mxu0 %v244
        %348 = vmatprep.subr.mxu0 %v326
        %349 = vmatpush1.msra.mxu0 %v323
        %350 = vmatprep.subr.mxu0 0.0
        %351 = vmatpush1.msra.mxu0 0.0
        %352 = vmatprep.subr.mxu0 0.0
        %353 = vmatpush1.msra.mxu0 0.0
        %354 = vmatprep.subr.mxu0 0.0
        %355 = vmatpush1.msra.mxu0 0.0
        %356 = vmatprep.subr.mxu0 0.0
        %357 = vmatpush1.msra.mxu0 0.0
        %358 = vmatprep.subr.mxu0 0.0
        %359 = vmatpush1.msra.mxu0 0.0
        %360 = vmatprep.subr.mxu0 0.0
        %361 = vmatpush1.msra.mxu0 0.0
        %362 = vmatprep.subr.mxu0 0.0
        %363 = vmatpush1.msra.mxu0 0.0
        %364 = vmatprep.subr.mxu0 0.0
        %365 = vmatpush1.msra.mxu0 0.0
        %366 = vmatprep.subr.mxu0 0.0
        %367 = vmatpush1.msra.mxu0 0.0
        %368 = vmatprep.subr.mxu0 0.0
        %369 = vmatpush1.msra.mxu0 0.0
        %370 = vmatprep.subr.mxu0 0.0
        %371 = vmatpush1.msra.mxu0 0.0
        %372 = vmatprep.subr.mxu0 0.0
        %373 = vmatpush1.msra.mxu0 0.0
        %374 = vmatprep.subr.mxu0 0.0
        %375 = vmatpush1.msra.mxu0 0.0
        %376 = vmatprep.subr.mxu0 0.0
        %377 = vmatpush1.msra.mxu0 0.0
        %378 = vmatprep.subr.mxu0 0.0
        %379 = vmatpush1.msra.mxu0 0.0
        %380 = vmatprep.subr.mxu0 0.0
        %381 = vmatpush1.msra.mxu0 0.0
        %382 = vmatprep.subr.mxu0 0.0
        %383 = vmatpush1.msra.mxu0 0.0
        %384 = vmatprep.subr.mxu0 0.0
        %385 = vmatpush1.msra.mxu0 0.0
        %386 = vmatprep.subr.mxu0 0.0
        %387 = vmatpush1.msra.mxu0 0.0
        %388 = vmatprep.subr.mxu0 0.0
        %389 = vmatpush1.msra.mxu0 0.0
        %390 = vmatprep.subr.mxu0 0.0
        %391 = vmatpush1.msra.mxu0 0.0
        %392 = vmatprep.subr.mxu0 0.0
        %393 = vmatpush1.msra.mxu0 0.0
        %394 = vmatprep.subr.mxu0 0.0
        %395 = vmatpush1.msra.mxu0 0.0
        %396 = vmatprep.subr.mxu0 0.0
        %397 = vmatpush1.msra.mxu0 0.0
        %398 = vmatprep.subr.mxu0 0.0
        %399 = vmatpush1.msra.mxu0 0.0
        %400 = vmatprep.subr.mxu0 0.0
        %401 = vmatpush1.msra.mxu0 0.0
        %402 = vmatprep.subr.mxu0 0.0
        %403 = vmatpush1.msra.mxu0 0.0
        %404 = vmatprep.subr.mxu0 0.0
        %405 = vmatpush1.msra.mxu0 0.0
        %406 = vmatprep.subr.mxu0 0.0
        %407 = vmatpush1.msra.mxu0 0.0
        %408 = vmatprep.subr.mxu0 0.0
        %409 = vmatpush1.msra.mxu0 0.0
        %410 = vmatprep.mubr.f32.mxu0 0.0
        %411 = vmatmul.mubr.f32.gmra.mrb[0].mxu0 %v262
        %v412 = vpop.f32.mrb[0].mxu0
        %v413 = vadd.f32 0.0, %v412
        %v414 = vpop.f32.mrb[0].mxu0
        %v415 = vadd.f32 0.0, %v414
        %416 = vmatprep.mubr.f32.mxu0 0.0
        %417 = vmatmul.mubr.f32.gmra.mrb[0].mxu0 %v265
        %v418 = vpop.f32.mrb[0].mxu0
        %v419 = vadd.f32 0.0, %v418
        %v420 = vpop.f32.mrb[0].mxu0
        %v421 = vadd.f32 0.0, %v420
        %422 = vmatprep.mubr.f32.mxu0 0.0
        %423 = vmatmul.mubr.f32.gmra.mrb[0].mxu0 %v268
        %v424 = vpop.f32.mrb[0].mxu0
        %v425 = vadd.f32 0.0, %v424
        %v426 = vpop.f32.mrb[0].mxu0
        %v427 = vadd.f32 0.0, %v426
        %428 = vmatprep.mubr.f32.mxu0 0.0
        %429 = vmatmul.mubr.f32.gmra.mrb[0].mxu0 %v271
        %v430 = vpop.f32.mrb[0].mxu0
        %v431 = vadd.f32 0.0, %v430
        %v432 = vpop.f32.mrb[0].mxu0
        %v433 = vadd.f32 0.0, %v432
        %434 = vmatprep.mubr.f32.mxu0 0.0
        %435 = vmatmul.mubr.f32.gmra.mrb[0].mxu0 %v274
        %v436 = vpop.f32.mrb[0].mxu0
        %v437 = vadd.f32 0.0, %v436
        %v438 = vpop.f32.mrb[0].mxu0
        %v439 = vadd.f32 0.0, %v438
        %440 = vmatprep.mubr.f32.mxu0 0.0
        %441 = vmatmul.mubr.f32.gmra.mrb[0].mxu0 %v277
        %v442 = vpop.f32.mrb[0].mxu0
        %v443 = vadd.f32 0.0, %v442
        %v444 = vpop.f32.mrb[0].mxu0
        %v445 = vadd.f32 0.0, %v444
        %446 = vmatprep.mubr.f32.mxu0 0.0
        %447 = vmatmul.mubr.f32.gmra.mrb[0].mxu0 %v280
        %v448 = vpop.f32.mrb[0].mxu0
        %v449 = vadd.f32 0.0, %v448
        %v450 = vpop.f32.mrb[0].mxu0
        %v451 = vadd.f32 0.0, %v450
        %452 = vmatprep.mubr.f32.mxu0 0.0
        %453 = vmatmul.mubr.f32.gmra.mrb[0].mxu0 %v283
        %v454 = vpop.f32.mrb[0].mxu0
        %v455 = vadd.f32 0.0, %v454
        %v456 = vpop.f32.mrb[0].mxu0
        %v457 = vadd.f32 0.0, %v456
        %458 = vmatprep.mubr.f32.mxu0 0.0
        %459 = vmatmul.mubr.f32.gmra.mrb[0].mxu0 %v286
        %v460 = vpop.f32.mrb[0].mxu0
        %v461 = vadd.f32 0.0, %v460
        %v462 = vpop.f32.mrb[0].mxu0
        %v463 = vadd.f32 0.0, %v462
        %464 = vmatprep.mubr.f32.mxu0 0.0
        %465 = vmatmul.mubr.f32.gmra.mrb[0].mxu0 %v289
        %v466 = vpop.f32.mrb[0].mxu0
        %v467 = vadd.f32 0.0, %v466
        %v468 = vpop.f32.mrb[0].mxu0
        %v469 = vadd.f32 0.0, %v468
        %470 = vmatprep.mubr.f32.mxu0 0.0
        %471 = vmatmul.mubr.f32.gmra.mrb[0].mxu0 %v292
        %v472 = vpop.f32.mrb[0].mxu0
        %v473 = vadd.f32 0.0, %v472
        %v474 = vpop.f32.mrb[0].mxu0
        %v475 = vadd.f32 0.0, %v474
        %476 = vmatprep.mubr.f32.mxu0 0.0
        %477 = vmatmul.mubr.f32.gmra.mrb[0].mxu0 %v295
        %v478 = vpop.f32.mrb[0].mxu0
        %v479 = vadd.f32 0.0, %v478
        %v480 = vpop.f32.mrb[0].mxu0
        %v481 = vadd.f32 0.0, %v480
        %482 = vmatprep.mubr.f32.mxu0 0.0
        %483 = vmatmul.mubr.f32.gmra.mrb[0].mxu0 %v298
        %v484 = vpop.f32.mrb[0].mxu0
        %v485 = vadd.f32 0.0, %v484
        %v486 = vpop.f32.mrb[0].mxu0
        %v487 = vadd.f32 0.0, %v486
        %488 = vmatprep.mubr.f32.mxu0 0.0
        %489 = vmatmul.mubr.f32.gmra.mrb[0].mxu0 %v301
        %v490 = vpop.f32.mrb[0].mxu0
        %v491 = vadd.f32 0.0, %v490
        %v492 = vpop.f32.mrb[0].mxu0
        %v493 = vadd.f32 0.0, %v492
        %494 = vmatprep.mubr.f32.mxu0 0.0
        %495 = vmatmul.mubr.f32.gmra.mrb[0].mxu0 %v304
        %v496 = vpop.f32.mrb[0].mxu0
        %v497 = vadd.f32 0.0, %v496
        %v498 = vpop.f32.mrb[0].mxu0
        %v499 = vadd.f32 0.0, %v498
        %500 = vmatprep.mubr.f32.mxu0 0.0
        %501 = vmatmul.mubr.f32.gmra.mrb[0].mxu0 %v307
        %v502 = vpop.f32.mrb[0].mxu0
        %v503 = vadd.f32 0.0, %v502
        %v504 = vpop.f32.mrb[0].mxu0
        %v505 = vadd.f32 0.0, %v504
        %506 = vmatprep.mubr.f32.mxu0 0.0
        %507 = vmatmul.mubr.f32.gmra.mrb[0].mxu0 %v310
        %v508 = vpop.f32.mrb[0].mxu0
        %v509 = vadd.f32 0.0, %v508
        %v510 = vpop.f32.mrb[0].mxu0
        %v511 = vadd.f32 0.0, %v510
        %512 = vmatprep.mubr.f32.mxu0 0.0
        %513 = vmatmul.mubr.f32.gmra.mrb[0].mxu0 %v313
        %v514 = vpop.f32.mrb[0].mxu0
        %v515 = vadd.f32 0.0, %v514
        %v516 = vpop.f32.mrb[0].mxu0
        %v517 = vadd.f32 0.0, %v516
        %518 = vmatprep.mubr.f32.mxu0 0.0
        %519 = vmatmul.mubr.f32.gmra.mrb[0].mxu0 %v316
        %v520 = vpop.f32.mrb[0].mxu0
        %v521 = vadd.f32 0.0, %v520
        %v522 = vpop.f32.mrb[0].mxu0
        %v523 = vadd.f32 0.0, %v522
        %524 = vmatprep.mubr.f32.mxu0 0.0
        %525 = vmatmul.mubr.f32.gmra.mrb[0].mxu0 %v319
        %v526 = vpop.f32.mrb[0].mxu0
        %v527 = vadd.f32 0.0, %v526
        %v528 = vpop.f32.mrb[0].mxu0
        %v529 = vadd.f32 0.0, %v528
        %530 = vdwg.mxu0
        %531 = vmatprep.subr.mxu0 %v247
        %532 = vmatpush1.msra.mxu0 %v246
        %533 = vmatprep.subr.mxu0 %v332
        %534 = vmatpush1.msra.mxu0 %v329
        %535 = vmatprep.subr.mxu0 0.0
        %536 = vmatpush1.msra.mxu0 0.0
        %537 = vmatprep.subr.mxu0 0.0
        %538 = vmatpush1.msra.mxu0 0.0
        %539 = vmatprep.subr.mxu0 0.0
        %540 = vmatpush1.msra.mxu0 0.0
        %541 = vmatprep.subr.mxu0 0.0
        %542 = vmatpush1.msra.mxu0 0.0
        %543 = vmatprep.subr.mxu0 0.0
        %544 = vmatpush1.msra.mxu0 0.0
        %545 = vmatprep.subr.mxu0 0.0
        %546 = vmatpush1.msra.mxu0 0.0
        %547 = vmatprep.subr.mxu0 0.0
        %548 = vmatpush1.msra.mxu0 0.0
        %549 = vmatprep.subr.mxu0 0.0
        %550 = vmatpush1.msra.mxu0 0.0
        %551 = vmatprep.subr.mxu0 0.0
        %552 = vmatpush1.msra.mxu0 0.0
        %553 = vmatprep.subr.mxu0 0.0
        %554 = vmatpush1.msra.mxu0 0.0
        %555 = vmatprep.subr.mxu0 0.0
        %556 = vmatpush1.msra.mxu0 0.0
        %557 = vmatprep.subr.mxu0 0.0
        %558 = vmatpush1.msra.mxu0 0.0
        %559 = vmatprep.subr.mxu0 0.0
        %560 = vmatpush1.msra.mxu0 0.0
        %561 = vmatprep.subr.mxu0 0.0
        %562 = vmatpush1.msra.mxu0 0.0
        %563 = vmatprep.subr.mxu0 0.0
        %564 = vmatpush1.msra.mxu0 0.0
        %565 = vmatprep.subr.mxu0 0.0
        %566 = vmatpush1.msra.mxu0 0.0
        %567 = vmatprep.subr.mxu0 0.0
        %568 = vmatpush1.msra.mxu0 0.0
        %569 = vmatprep.subr.mxu0 0.0
        %570 = vmatpush1.msra.mxu0 0.0
        %571 = vmatprep.subr.mxu0 0.0
        %572 = vmatpush1.msra.mxu0 0.0
        %573 = vmatprep.subr.mxu0 0.0
        %574 = vmatpush1.msra.mxu0 0.0
        %575 = vmatprep.subr.mxu0 0.0
        %576 = vmatpush1.msra.mxu0 0.0
        %577 = vmatprep.subr.mxu0 0.0
        %578 = vmatpush1.msra.mxu0 0.0
        %579 = vmatprep.subr.mxu0 0.0
        %580 = vmatpush1.msra.mxu0 0.0
        %581 = vmatprep.subr.mxu0 0.0
        %582 = vmatpush1.msra.mxu0 0.0
        %583 = vmatprep.subr.mxu0 0.0
        %584 = vmatpush1.msra.mxu0 0.0
        %585 = vmatprep.subr.mxu0 0.0
        %586 = vmatpush1.msra.mxu0 0.0
        %587 = vmatprep.subr.mxu0 0.0
        %588 = vmatpush1.msra.mxu0 0.0
        %589 = vmatprep.subr.mxu0 0.0
        %590 = vmatpush1.msra.mxu0 0.0
        %591 = vmatprep.subr.mxu0 0.0
        %592 = vmatpush1.msra.mxu0 0.0
        %593 = vmatprep.subr.mxu0 0.0
        %594 = vmatpush1.msra.mxu0 0.0
        %595 = vmatprep.mubr.f32.mxu0 0.0
        %596 = vmatmul.mubr.f32.gmra.mrb[0].mxu0 %v262
        %v597 = vpop.f32.mrb[0].mxu0
        %v598 = vadd.f32 0.0, %v597
        %v599 = vpop.f32.mrb[0].mxu0
        %v600 = vadd.f32 0.0, %v599
        %601 = vmatprep.mubr.f32.mxu0 0.0
        %602 = vmatmul.mubr.f32.gmra.mrb[0].mxu0 %v265
        %v603 = vpop.f32.mrb[0].mxu0
        %v604 = vadd.f32 0.0, %v603
        %v605 = vpop.f32.mrb[0].mxu0
        %v606 = vadd.f32 0.0, %v605
        %607 = vmatprep.mubr.f32.mxu0 0.0
        %608 = vmatmul.mubr.f32.gmra.mrb[0].mxu0 %v268
        %v609 = vpop.f32.mrb[0].mxu0
        %v610 = vadd.f32 0.0, %v609
        %v611 = vpop.f32.mrb[0].mxu0
        %v612 = vadd.f32 0.0, %v611
        %613 = vmatprep.mubr.f32.mxu0 0.0
        %614 = vmatmul.mubr.f32.gmra.mrb[0].mxu0 %v271
        %v615 = vpop.f32.mrb[0].mxu0
        %v616 = vadd.f32 0.0, %v615
        %v617 = vpop.f32.mrb[0].mxu0
        %v618 = vadd.f32 0.0, %v617
        %619 = vmatprep.mubr.f32.mxu0 0.0
        %620 = vmatmul.mubr.f32.gmra.mrb[0].mxu0 %v274
        %v621 = vpop.f32.mrb[0].mxu0
        %v622 = vadd.f32 0.0, %v621
        %v623 = vpop.f32.mrb[0].mxu0
        %v624 = vadd.f32 0.0, %v623
        %625 = vmatprep.mubr.f32.mxu0 0.0
        %626 = vmatmul.mubr.f32.gmra.mrb[0].mxu0 %v277
        %v627 = vpop.f32.mrb[0].mxu0
        %v628 = vadd.f32 0.0, %v627
        %v629 = vpop.f32.mrb[0].mxu0
        %v630 = vadd.f32 0.0, %v629
        %631 = vmatprep.mubr.f32.mxu0 0.0
        %632 = vmatmul.mubr.f32.gmra.mrb[0].mxu0 %v280
        %v633 = vpop.f32.mrb[0].mxu0
        %v634 = vadd.f32 0.0, %v633
        %v635 = vpop.f32.mrb[0].mxu0
        %v636 = vadd.f32 0.0, %v635
        %637 = vmatprep.mubr.f32.mxu0 0.0
        %638 = vmatmul.mubr.f32.gmra.mrb[0].mxu0 %v283
        %v639 = vpop.f32.mrb[0].mxu0
        %v640 = vadd.f32 0.0, %v639
        %v641 = vpop.f32.mrb[0].mxu0
        %v642 = vadd.f32 0.0, %v641
        %643 = vmatprep.mubr.f32.mxu0 0.0
        %644 = vmatmul.mubr.f32.gmra.mrb[0].mxu0 %v286
        %v645 = vpop.f32.mrb[0].mxu0
        %v646 = vadd.f32 0.0, %v645
        %v647 = vpop.f32.mrb[0].mxu0
        %v648 = vadd.f32 0.0, %v647
        %649 = vmatprep.mubr.f32.mxu0 0.0
        %650 = vmatmul.mubr.f32.gmra.mrb[0].mxu0 %v289
        %v651 = vpop.f32.mrb[0].mxu0
        %v652 = vadd.f32 0.0, %v651
        %v653 = vpop.f32.mrb[0].mxu0
        %v654 = vadd.f32 0.0, %v653
        %655 = vmatprep.mubr.f32.mxu0 0.0
        %656 = vmatmul.mubr.f32.gmra.mrb[0].mxu0 %v292
        %v657 = vpop.f32.mrb[0].mxu0
        %v658 = vadd.f32 0.0, %v657
        %v659 = vpop.f32.mrb[0].mxu0
        %v660 = vadd.f32 0.0, %v659
        %661 = vmatprep.mubr.f32.mxu0 0.0
        %662 = vmatmul.mubr.f32.gmra.mrb[0].mxu0 %v295
        %v663 = vpop.f32.mrb[0].mxu0
        %v664 = vadd.f32 0.0, %v663
        %v665 = vpop.f32.mrb[0].mxu0
        %v666 = vadd.f32 0.0, %v665
        %667 = vmatprep.mubr.f32.mxu0 0.0
        %668 = vmatmul.mubr.f32.gmra.mrb[0].mxu0 %v298
        %v669 = vpop.f32.mrb[0].mxu0
        %v670 = vadd.f32 0.0, %v669
        %v671 = vpop.f32.mrb[0].mxu0
        %v672 = vadd.f32 0.0, %v671
        %673 = vmatprep.mubr.f32.mxu0 0.0
        %674 = vmatmul.mubr.f32.gmra.mrb[0].mxu0 %v301
        %v675 = vpop.f32.mrb[0].mxu0
        %v676 = vadd.f32 0.0, %v675
        %v677 = vpop.f32.mrb[0].mxu0
        %v678 = vadd.f32 0.0, %v677
        %679 = vmatprep.mubr.f32.mxu0 0.0
        %680 = vmatmul.mubr.f32.gmra.mrb[0].mxu0 %v304
        %v681 = vpop.f32.mrb[0].mxu0
        %v682 = vadd.f32 0.0, %v681
        %v683 = vpop.f32.mrb[0].mxu0
        %v684 = vadd.f32 0.0, %v683
        %685 = vmatprep.mubr.f32.mxu0 0.0
        %686 = vmatmul.mubr.f32.gmra.mrb[0].mxu0 %v307
        %v687 = vpop.f32.mrb[0].mxu0
        %v688 = vadd.f32 0.0, %v687
        %v689 = vpop.f32.mrb[0].mxu0
        %v690 = vadd.f32 0.0, %v689
        %691 = vmatprep.mubr.f32.mxu0 0.0
        %692 = vmatmul.mubr.f32.gmra.mrb[0].mxu0 %v310
        %v693 = vpop.f32.mrb[0].mxu0
        %v694 = vadd.f32 0.0, %v693
        %v695 = vpop.f32.mrb[0].mxu0
        %v696 = vadd.f32 0.0, %v695
        %697 = vmatprep.mubr.f32.mxu0 0.0
        %698 = vmatmul.mubr.f32.gmra.mrb[0].mxu0 %v313
        %v699 = vpop.f32.mrb[0].mxu0
        %v700 = vadd.f32 0.0, %v699
        %v701 = vpop.f32.mrb[0].mxu0
        %v702 = vadd.f32 0.0, %v701
        %703 = vmatprep.mubr.f32.mxu0 0.0
        %704 = vmatmul.mubr.f32.gmra.mrb[0].mxu0 %v316
        %v705 = vpop.f32.mrb[0].mxu0
        %v706 = vadd.f32 0.0, %v705
        %v707 = vpop.f32.mrb[0].mxu0
        %v708 = vadd.f32 0.0, %v707
        %709 = vmatprep.mubr.f32.mxu0 0.0
        %710 = vmatmul.mubr.f32.gmra.mrb[0].mxu0 %v319
        %v711 = vpop.f32.mrb[0].mxu0
        %v712 = vadd.f32 0.0, %v711
        %v713 = vpop.f32.mrb[0].mxu0
        %v714 = vadd.f32 0.0, %v713
        %715 = vdwg.mxu0
        %716 = vmatprep.subr.mxu0 %v249
        %717 = vmatpush1.msra.mxu0 %v248
        %718 = vmatprep.subr.mxu0 %v338
        %719 = vmatpush1.msra.mxu0 %v335
        %720 = vmatprep.subr.mxu0 0.0
        %721 = vmatpush1.msra.mxu0 0.0
        %722 = vmatprep.subr.mxu0 0.0
        %723 = vmatpush1.msra.mxu0 0.0
        %724 = vmatprep.subr.mxu0 0.0
        %725 = vmatpush1.msra.mxu0 0.0
        %726 = vmatprep.subr.mxu0 0.0
        %727 = vmatpush1.msra.mxu0 0.0
        %728 = vmatprep.subr.mxu0 0.0
        %729 = vmatpush1.msra.mxu0 0.0
        %730 = vmatprep.subr.mxu0 0.0
        %731 = vmatpush1.msra.mxu0 0.0
        %732 = vmatprep.subr.mxu0 0.0
        %733 = vmatpush1.msra.mxu0 0.0
        %734 = vmatprep.subr.mxu0 0.0
        %735 = vmatpush1.msra.mxu0 0.0
        %736 = vmatprep.subr.mxu0 0.0
        %737 = vmatpush1.msra.mxu0 0.0
        %738 = vmatprep.subr.mxu0 0.0
        %739 = vmatpush1.msra.mxu0 0.0
        %740 = vmatprep.subr.mxu0 0.0
        %741 = vmatpush1.msra.mxu0 0.0
        %742 = vmatprep.subr.mxu0 0.0
        %743 = vmatpush1.msra.mxu0 0.0
        %744 = vmatprep.subr.mxu0 0.0
        %745 = vmatpush1.msra.mxu0 0.0
        %746 = vmatprep.subr.mxu0 0.0
        %747 = vmatpush1.msra.mxu0 0.0
        %748 = vmatprep.subr.mxu0 0.0
        %749 = vmatpush1.msra.mxu0 0.0
        %750 = vmatprep.subr.mxu0 0.0
        %751 = vmatpush1.msra.mxu0 0.0
        %752 = vmatprep.subr.mxu0 0.0
        %753 = vmatpush1.msra.mxu0 0.0
        %754 = vmatprep.subr.mxu0 0.0
        %755 = vmatpush1.msra.mxu0 0.0
        %756 = vmatprep.subr.mxu0 0.0
        %757 = vmatpush1.msra.mxu0 0.0
        %758 = vmatprep.subr.mxu0 0.0
        %759 = vmatpush1.msra.mxu0 0.0
        %760 = vmatprep.subr.mxu0 0.0
        %761 = vmatpush1.msra.mxu0 0.0
        %762 = vmatprep.subr.mxu0 0.0
        %763 = vmatpush1.msra.mxu0 0.0
        %764 = vmatprep.subr.mxu0 0.0
        %765 = vmatpush1.msra.mxu0 0.0
        %766 = vmatprep.subr.mxu0 0.0
        %767 = vmatpush1.msra.mxu0 0.0
        %768 = vmatprep.subr.mxu0 0.0
        %769 = vmatpush1.msra.mxu0 0.0
        %770 = vmatprep.subr.mxu0 0.0
        %771 = vmatpush1.msra.mxu0 0.0
        %772 = vmatprep.subr.mxu0 0.0
        %773 = vmatpush1.msra.mxu0 0.0
        %774 = vmatprep.subr.mxu0 0.0
        %775 = vmatpush1.msra.mxu0 0.0
        %776 = vmatprep.subr.mxu0 0.0
        %777 = vmatpush1.msra.mxu0 0.0
        %778 = vmatprep.subr.mxu0 0.0
        %779 = vmatpush1.msra.mxu0 0.0
        %780 = vmatprep.mubr.f32.mxu0 0.0
        %781 = vmatmul.mubr.f32.gmra.mrb[0].mxu0 %v262
        %v782 = vpop.f32.mrb[0].mxu0
        %v783 = vadd.f32 0.0, %v782
        %v784 = vpop.f32.mrb[0].mxu0
        %v785 = vadd.f32 0.0, %v784
        %786 = vmatprep.mubr.f32.mxu0 0.0
        %787 = vmatmul.mubr.f32.gmra.mrb[0].mxu0 %v265
        %v788 = vpop.f32.mrb[0].mxu0
        %v789 = vadd.f32 0.0, %v788
        %v790 = vpop.f32.mrb[0].mxu0
        %v791 = vadd.f32 0.0, %v790
        %792 = vmatprep.mubr.f32.mxu0 0.0
        %793 = vmatmul.mubr.f32.gmra.mrb[0].mxu0 %v268
        %v794 = vpop.f32.mrb[0].mxu0
        %v795 = vadd.f32 0.0, %v794
        %v796 = vpop.f32.mrb[0].mxu0
        %v797 = vadd.f32 0.0, %v796
        %798 = vmatprep.mubr.f32.mxu0 0.0
        %799 = vmatmul.mubr.f32.gmra.mrb[0].mxu0 %v271
        %v800 = vpop.f32.mrb[0].mxu0
        %v801 = vadd.f32 0.0, %v800
        %v802 = vpop.f32.mrb[0].mxu0
        %v803 = vadd.f32 0.0, %v802
        %804 = vmatprep.mubr.f32.mxu0 0.0
        %805 = vmatmul.mubr.f32.gmra.mrb[0].mxu0 %v274
        %v806 = vpop.f32.mrb[0].mxu0
        %v807 = vadd.f32 0.0, %v806
        %v808 = vpop.f32.mrb[0].mxu0
        %v809 = vadd.f32 0.0, %v808
        %810 = vmatprep.mubr.f32.mxu0 0.0
        %811 = vmatmul.mubr.f32.gmra.mrb[0].mxu0 %v277
        %v812 = vpop.f32.mrb[0].mxu0
        %v813 = vadd.f32 0.0, %v812
        %v814 = vpop.f32.mrb[0].mxu0
        %v815 = vadd.f32 0.0, %v814
        %816 = vmatprep.mubr.f32.mxu0 0.0
        %817 = vmatmul.mubr.f32.gmra.mrb[0].mxu0 %v280
        %v818 = vpop.f32.mrb[0].mxu0
        %v819 = vadd.f32 0.0, %v818
        %v820 = vpop.f32.mrb[0].mxu0
        %v821 = vadd.f32 0.0, %v820
        %822 = vmatprep.mubr.f32.mxu0 0.0
        %823 = vmatmul.mubr.f32.gmra.mrb[0].mxu0 %v283
        %v824 = vpop.f32.mrb[0].mxu0
        %v825 = vadd.f32 0.0, %v824
        %v826 = vpop.f32.mrb[0].mxu0
        %v827 = vadd.f32 0.0, %v826
        %828 = vmatprep.mubr.f32.mxu0 0.0
        %829 = vmatmul.mubr.f32.gmra.mrb[0].mxu0 %v286
        %v830 = vpop.f32.mrb[0].mxu0
        %v831 = vadd.f32 0.0, %v830
        %v832 = vpop.f32.mrb[0].mxu0
        %v833 = vadd.f32 0.0, %v832
        %834 = vmatprep.mubr.f32.mxu0 0.0
        %835 = vmatmul.mubr.f32.gmra.mrb[0].mxu0 %v289
        %v836 = vpop.f32.mrb[0].mxu0
        %v837 = vadd.f32 0.0, %v836
        %v838 = vpop.f32.mrb[0].mxu0
        %v839 = vadd.f32 0.0, %v838
        %840 = vmatprep.mubr.f32.mxu0 0.0
        %841 = vmatmul.mubr.f32.gmra.mrb[0].mxu0 %v292
        %v842 = vpop.f32.mrb[0].mxu0
        %v843 = vadd.f32 0.0, %v842
        %v844 = vpop.f32.mrb[0].mxu0
        %v845 = vadd.f32 0.0, %v844
        %846 = vmatprep.mubr.f32.mxu0 0.0
        %847 = vmatmul.mubr.f32.gmra.mrb[0].mxu0 %v295
        %v848 = vpop.f32.mrb[0].mxu0
        %v849 = vadd.f32 0.0, %v848
        %v850 = vpop.f32.mrb[0].mxu0
        %v851 = vadd.f32 0.0, %v850
        %852 = vmatprep.mubr.f32.mxu0 0.0
        %853 = vmatmul.mubr.f32.gmra.mrb[0].mxu0 %v298
        %v854 = vpop.f32.mrb[0].mxu0
        %v855 = vadd.f32 0.0, %v854
        %v856 = vpop.f32.mrb[0].mxu0
        %v857 = vadd.f32 0.0, %v856
        %858 = vmatprep.mubr.f32.mxu0 0.0
        %859 = vmatmul.mubr.f32.gmra.mrb[0].mxu0 %v301
        %v860 = vpop.f32.mrb[0].mxu0
        %v861 = vadd.f32 0.0, %v860
        %v862 = vpop.f32.mrb[0].mxu0
        %v863 = vadd.f32 0.0, %v862
        %864 = vmatprep.mubr.f32.mxu0 0.0
        %865 = vmatmul.mubr.f32.gmra.mrb[0].mxu0 %v304
        %v866 = vpop.f32.mrb[0].mxu0
        %v867 = vadd.f32 0.0, %v866
        %v868 = vpop.f32.mrb[0].mxu0
        %v869 = vadd.f32 0.0, %v868
        %870 = vmatprep.mubr.f32.mxu0 0.0
        %871 = vmatmul.mubr.f32.gmra.mrb[0].mxu0 %v307
        %v872 = vpop.f32.mrb[0].mxu0
        %v873 = vadd.f32 0.0, %v872
        %v874 = vpop.f32.mrb[0].mxu0
        %v875 = vadd.f32 0.0, %v874
        %876 = vmatprep.mubr.f32.mxu0 0.0
        %877 = vmatmul.mubr.f32.gmra.mrb[0].mxu0 %v310
        %v878 = vpop.f32.mrb[0].mxu0
        %v879 = vadd.f32 0.0, %v878
        %v880 = vpop.f32.mrb[0].mxu0
        %v881 = vadd.f32 0.0, %v880
        %882 = vmatprep.mubr.f32.mxu0 0.0
        %883 = vmatmul.mubr.f32.gmra.mrb[0].mxu0 %v313
        %v884 = vpop.f32.mrb[0].mxu0
        %v885 = vadd.f32 0.0, %v884
        %v886 = vpop.f32.mrb[0].mxu0
        %v887 = vadd.f32 0.0, %v886
        %888 = vmatprep.mubr.f32.mxu0 0.0
        %889 = vmatmul.mubr.f32.gmra.mrb[0].mxu0 %v316
        %v890 = vpop.f32.mrb[0].mxu0
        %v891 = vadd.f32 0.0, %v890
        %v892 = vpop.f32.mrb[0].mxu0
        %v893 = vadd.f32 0.0, %v892
        %894 = vmatprep.mubr.f32.mxu0 0.0
        %895 = vmatmul.mubr.f32.gmra.mrb[0].mxu0 %v319
        %v896 = vpop.f32.mrb[0].mxu0
        %v897 = vadd.f32 0.0, %v896
        %v898 = vpop.f32.mrb[0].mxu0
        %v899 = vadd.f32 0.0, %v898
        %900 = vdwg.mxu0
        %901 = vmatprep.subr.mxu0 %v251
        %902 = vmatpush1.msra.mxu0 %v250
        %903 = vmatprep.subr.mxu0 %v344
        %904 = vmatpush1.msra.mxu0 %v341
        %905 = vmatprep.subr.mxu0 0.0
        %906 = vmatpush1.msra.mxu0 0.0
        %907 = vmatprep.subr.mxu0 0.0
        %908 = vmatpush1.msra.mxu0 0.0
        %909 = vmatprep.subr.mxu0 0.0
        %910 = vmatpush1.msra.mxu0 0.0
        %911 = vmatprep.subr.mxu0 0.0
        %912 = vmatpush1.msra.mxu0 0.0
        %913 = vmatprep.subr.mxu0 0.0
        %914 = vmatpush1.msra.mxu0 0.0
        %915 = vmatprep.subr.mxu0 0.0
        %916 = vmatpush1.msra.mxu0 0.0
        %917 = vmatprep.subr.mxu0 0.0
        %918 = vmatpush1.msra.mxu0 0.0
        %919 = vmatprep.subr.mxu0 0.0
        %920 = vmatpush1.msra.mxu0 0.0
        %921 = vmatprep.subr.mxu0 0.0
        %922 = vmatpush1.msra.mxu0 0.0
        %923 = vmatprep.subr.mxu0 0.0
        %924 = vmatpush1.msra.mxu0 0.0
        %925 = vmatprep.subr.mxu0 0.0
        %926 = vmatpush1.msra.mxu0 0.0
        %927 = vmatprep.subr.mxu0 0.0
        %928 = vmatpush1.msra.mxu0 0.0
        %929 = vmatprep.subr.mxu0 0.0
        %930 = vmatpush1.msra.mxu0 0.0
        %931 = vmatprep.subr.mxu0 0.0
        %932 = vmatpush1.msra.mxu0 0.0
        %933 = vmatprep.subr.mxu0 0.0
        %934 = vmatpush1.msra.mxu0 0.0
        %935 = vmatprep.subr.mxu0 0.0
        %936 = vmatpush1.msra.mxu0 0.0
        %937 = vmatprep.subr.mxu0 0.0
        %938 = vmatpush1.msra.mxu0 0.0
        %939 = vmatprep.subr.mxu0 0.0
        %940 = vmatpush1.msra.mxu0 0.0
        %941 = vmatprep.subr.mxu0 0.0
        %942 = vmatpush1.msra.mxu0 0.0
        %943 = vmatprep.subr.mxu0 0.0
        %944 = vmatpush1.msra.mxu0 0.0
        %945 = vmatprep.subr.mxu0 0.0
        %946 = vmatpush1.msra.mxu0 0.0
        %947 = vmatprep.subr.mxu0 0.0
        %948 = vmatpush1.msra.mxu0 0.0
        %949 = vmatprep.subr.mxu0 0.0
        %950 = vmatpush1.msra.mxu0 0.0
        %951 = vmatprep.subr.mxu0 0.0
        %952 = vmatpush1.msra.mxu0 0.0
        %953 = vmatprep.subr.mxu0 0.0
        %954 = vmatpush1.msra.mxu0 0.0
        %955 = vmatprep.subr.mxu0 0.0
        %956 = vmatpush1.msra.mxu0 0.0
        %957 = vmatprep.subr.mxu0 0.0
        %958 = vmatpush1.msra.mxu0 0.0
        %959 = vmatprep.subr.mxu0 0.0
        %960 = vmatpush1.msra.mxu0 0.0
        %961 = vmatprep.subr.mxu0 0.0
        %962 = vmatpush1.msra.mxu0 0.0
        %963 = vmatprep.subr.mxu0 0.0
        %964 = vmatpush1.msra.mxu0 0.0
        %965 = vmatprep.mubr.f32.mxu0 0.0
        %966 = vmatmul.mubr.f32.gmra.mrb[0].mxu0 %v262
        %v967 = vpop.f32.mrb[0].mxu0
        %v968 = vadd.f32 0.0, %v967
        %v969 = vpop.f32.mrb[0].mxu0
        %v970 = vadd.f32 0.0, %v969
        %971 = vmatprep.mubr.f32.mxu0 0.0
        %972 = vmatmul.mubr.f32.gmra.mrb[0].mxu0 %v265
        %v973 = vpop.f32.mrb[0].mxu0
        %v974 = vadd.f32 0.0, %v973
        %v975 = vpop.f32.mrb[0].mxu0
        %v976 = vadd.f32 0.0, %v975
        %977 = vmatprep.mubr.f32.mxu0 0.0
        %978 = vmatmul.mubr.f32.gmra.mrb[0].mxu0 %v268
        %v979 = vpop.f32.mrb[0].mxu0
        %v980 = vadd.f32 0.0, %v979
        %v981 = vpop.f32.mrb[0].mxu0
        %v982 = vadd.f32 0.0, %v981
        %983 = vmatprep.mubr.f32.mxu0 0.0
        %984 = vmatmul.mubr.f32.gmra.mrb[0].mxu0 %v271
        %v985 = vpop.f32.mrb[0].mxu0
        %v986 = vadd.f32 0.0, %v985
        %v987 = vpop.f32.mrb[0].mxu0
        %v988 = vadd.f32 0.0, %v987
        %989 = vmatprep.mubr.f32.mxu0 0.0
        %990 = vmatmul.mubr.f32.gmra.mrb[0].mxu0 %v274
        %v991 = vpop.f32.mrb[0].mxu0
        %v992 = vadd.f32 0.0, %v991
        %v993 = vpop.f32.mrb[0].mxu0
        %v994 = vadd.f32 0.0, %v993
        %995 = vmatprep.mubr.f32.mxu0 0.0
        %996 = vmatmul.mubr.f32.gmra.mrb[0].mxu0 %v277
        %v997 = vpop.f32.mrb[0].mxu0
        %v998 = vadd.f32 0.0, %v997
        %v999 = vpop.f32.mrb[0].mxu0
        %v1000 = vadd.f32 0.0, %v999
        %1001 = vmatprep.mubr.f32.mxu0 0.0
        %1002 = vmatmul.mubr.f32.gmra.mrb[0].mxu0 %v280
        %v1003 = vpop.f32.mrb[0].mxu0
        %v1004 = vadd.f32 0.0, %v1003
        %v1005 = vpop.f32.mrb[0].mxu0
        %v1006 = vadd.f32 0.0, %v1005
        %1007 = vmatprep.mubr.f32.mxu0 0.0
        %1008 = vmatmul.mubr.f32.gmra.mrb[0].mxu0 %v283
        %v1009 = vpop.f32.mrb[0].mxu0
        %v1010 = vadd.f32 0.0, %v1009
        %v1011 = vpop.f32.mrb[0].mxu0
        %v1012 = vadd.f32 0.0, %v1011
        %1013 = vmatprep.mubr.f32.mxu0 0.0
        %1014 = vmatmul.mubr.f32.gmra.mrb[0].mxu0 %v286
        %v1015 = vpop.f32.mrb[0].mxu0
        %v1016 = vadd.f32 0.0, %v1015
        %v1017 = vpop.f32.mrb[0].mxu0
        %v1018 = vadd.f32 0.0, %v1017
        %1019 = vmatprep.mubr.f32.mxu0 0.0
        %1020 = vmatmul.mubr.f32.gmra.mrb[0].mxu0 %v289
        %v1021 = vpop.f32.mrb[0].mxu0
        %v1022 = vadd.f32 0.0, %v1021
        %v1023 = vpop.f32.mrb[0].mxu0
        %v1024 = vadd.f32 0.0, %v1023
        %1025 = vmatprep.mubr.f32.mxu0 0.0
        %1026 = vmatmul.mubr.f32.gmra.mrb[0].mxu0 %v292
        %v1027 = vpop.f32.mrb[0].mxu0
        %v1028 = vadd.f32 0.0, %v1027
        %v1029 = vpop.f32.mrb[0].mxu0
        %v1030 = vadd.f32 0.0, %v1029
        %1031 = vmatprep.mubr.f32.mxu0 0.0
        %1032 = vmatmul.mubr.f32.gmra.mrb[0].mxu0 %v295
        %v1033 = vpop.f32.mrb[0].mxu0
        %v1034 = vadd.f32 0.0, %v1033
        %v1035 = vpop.f32.mrb[0].mxu0
        %v1036 = vadd.f32 0.0, %v1035
        %1037 = vmatprep.mubr.f32.mxu0 0.0
        %1038 = vmatmul.mubr.f32.gmra.mrb[0].mxu0 %v298
        %v1039 = vpop.f32.mrb[0].mxu0
        %v1040 = vadd.f32 0.0, %v1039
        %v1041 = vpop.f32.mrb[0].mxu0
        %v1042 = vadd.f32 0.0, %v1041
        %1043 = vmatprep.mubr.f32.mxu0 0.0
        %1044 = vmatmul.mubr.f32.gmra.mrb[0].mxu0 %v301
        %v1045 = vpop.f32.mrb[0].mxu0
        %v1046 = vadd.f32 0.0, %v1045
        %v1047 = vpop.f32.mrb[0].mxu0
        %v1048 = vadd.f32 0.0, %v1047
        %1049 = vmatprep.mubr.f32.mxu0 0.0
        %1050 = vmatmul.mubr.f32.gmra.mrb[0].mxu0 %v304
        %v1051 = vpop.f32.mrb[0].mxu0
        %v1052 = vadd.f32 0.0, %v1051
        %v1053 = vpop.f32.mrb[0].mxu0
        %v1054 = vadd.f32 0.0, %v1053
        %1055 = vmatprep.mubr.f32.mxu0 0.0
        %1056 = vmatmul.mubr.f32.gmra.mrb[0].mxu0 %v307
        %v1057 = vpop.f32.mrb[0].mxu0
        %v1058 = vadd.f32 0.0, %v1057
        %v1059 = vpop.f32.mrb[0].mxu0
        %v1060 = vadd.f32 0.0, %v1059
        %1061 = vmatprep.mubr.f32.mxu0 0.0
        %1062 = vmatmul.mubr.f32.gmra.mrb[0].mxu0 %v310
        %v1063 = vpop.f32.mrb[0].mxu0
        %v1064 = vadd.f32 0.0, %v1063
        %v1065 = vpop.f32.mrb[0].mxu0
        %v1066 = vadd.f32 0.0, %v1065
        %1067 = vmatprep.mubr.f32.mxu0 0.0
        %1068 = vmatmul.mubr.f32.gmra.mrb[0].mxu0 %v313
        %v1069 = vpop.f32.mrb[0].mxu0
        %v1070 = vadd.f32 0.0, %v1069
        %v1071 = vpop.f32.mrb[0].mxu0
        %v1072 = vadd.f32 0.0, %v1071
        %1073 = vmatprep.mubr.f32.mxu0 0.0
        %1074 = vmatmul.mubr.f32.gmra.mrb[0].mxu0 %v316
        %v1075 = vpop.f32.mrb[0].mxu0
        %v1076 = vadd.f32 0.0, %v1075
        %v1077 = vpop.f32.mrb[0].mxu0
        %v1078 = vadd.f32 0.0, %v1077
        %1079 = vmatprep.mubr.f32.mxu0 0.0
        %1080 = vmatmul.mubr.f32.gmra.mrb[0].mxu0 %v319
        %v1081 = vpop.f32.mrb[0].mxu0
        %v1082 = vadd.f32 0.0, %v1081
        %v1083 = vpop.f32.mrb[0].mxu0
        %v1084 = vadd.f32 0.0, %v1083
        %1085 = vdwg.mxu0
        %1086 = vst [vmem:[#allocation2 + $0x200] sm:$0xff] %v509
        %1087 = vst [vmem:[#allocation2 + $0x208] sm:$0xff] %v511
        %1088 = vst [vmem:[#allocation2 + $0x210] sm:$0xff] %v694
        %1089 = vst [vmem:[#allocation2 + $0x218] sm:$0xff] %v696
        %1090 = vst [vmem:[#allocation2 + $0x220] sm:$0xff] %v879
        %1091 = vst [vmem:[#allocation2 + $0x228] sm:$0xff] %v881
        %1092 = vst [vmem:[#allocation2 + $0x230] sm:$0xff] %v1064
        %1093 = vst [vmem:[#allocation2 + $0x238] sm:$0xff] %v1066
        %1094 = vst [vmem:[#allocation2 + $0x240] sm:$0xff] %v515
        %1095 = vst [vmem:[#allocation2 + $0x248] sm:$0xff] %v517
        %1096 = vst [vmem:[#allocation2 + $0x250] sm:$0xff] %v700
        %1097 = vst [vmem:[#allocation2 + $0x258] sm:$0xff] %v702
        %1098 = vst [vmem:[#allocation2 + $0x260] sm:$0xff] %v885
        %1099 = vst [vmem:[#allocation2 + $0x268] sm:$0xff] %v887
        %1100 = vst [vmem:[#allocation2 + $0x270] sm:$0xff] %v1070
        %1101 = vst [vmem:[#allocation2 + $0x278] sm:$0xff] %v1072
        %1102 = vst [vmem:[#allocation2 + $0x280] sm:$0xff] %v521
        %1103 = vst [vmem:[#allocation2 + $0x288] sm:$0xff] %v523
        %1104 = vst [vmem:[#allocation2 + $0x290] sm:$0xff] %v706
        %1105 = vst [vmem:[#allocation2 + $0x298] sm:$0xff] %v708
        %1106 = vst [vmem:[#allocation2 + $0x2a0] sm:$0xff] %v891
        %1107 = vst [vmem:[#allocation2 + $0x2a8] sm:$0xff] %v893
        %1108 = vst [vmem:[#allocation2 + $0x2b0] sm:$0xff] %v1076
        %1109 = vst [vmem:[#allocation2 + $0x2b8] sm:$0xff] %v1078
        %1110 = vst [vmem:[#allocation2 + $0x2c0] sm:$0xff] %v527
        %1111 = vst [vmem:[#allocation2 + $0x2c8] sm:$0xff] %v529
        %1112 = vst [vmem:[#allocation2 + $0x2d0] sm:$0xff] %v712
        %1113 = vst [vmem:[#allocation2 + $0x2d8] sm:$0xff] %v714
        %1114 = vst [vmem:[#allocation2 + $0x2e0] sm:$0xff] %v897
        %1115 = vst [vmem:[#allocation2 + $0x2e8] sm:$0xff] %v899
        %1116 = vst [vmem:[#allocation2 + $0x2f0] sm:$0xff] %v1082
        %1117 = vst [vmem:[#allocation2 + $0x2f8] sm:$0xff] %v1084
        %s1118 = sld [smem:[#allocation4 + $0x1]]
        %s1119 = sld [smem:[#allocation4 + $0x81]]
        %s1120 = sld [smem:[#allocation4 + $0x101]]
        %s1121 = sld [smem:[#allocation4 + $0x181]]
        %s1122 = sld [smem:[#allocation4 + $0x201]]
        %v1123 = vld [vmem:[#allocation2 + $0x200] sm:$0xff]
        %v1124 = vld [vmem:[#allocation2 + $0x208] sm:$0xff]
        %v1125 = vld [vmem:[#allocation2 + $0x210] sm:$0xff]
        %v1126 = vld [vmem:[#allocation2 + $0x218] sm:$0xff]
        %v1127 = vld [vmem:[#allocation2 + $0x220] sm:$0xff]
        %v1128 = vld [vmem:[#allocation2 + $0x228] sm:$0xff]
        %v1129 = vld [vmem:[#allocation2 + $0x230] sm:$0xff]
        %v1130 = vld [vmem:[#allocation2 + $0x238] sm:$0xff]
        %v1131 = vld [vmem:[#allocation2 + $0x240] sm:$0xff]
        %v1132 = vld [vmem:[#allocation2 + $0x248] sm:$0xff]
        %v1133 = vld [vmem:[#allocation2 + $0x250] sm:$0xff]
        %v1134 = vld [vmem:[#allocation2 + $0x258] sm:$0xff]
        %v1135 = vld [vmem:[#allocation2 + $0x260] sm:$0xff]
        %v1136 = vld [vmem:[#allocation2 + $0x268] sm:$0xff]
        %v1137 = vld [vmem:[#allocation2 + $0x270] sm:$0xff]
        %v1138 = vld [vmem:[#allocation2 + $0x278] sm:$0xff]
        %v1139 = vld [vmem:[#allocation2 + $0x280] sm:$0xff]
        %v1140 = vld [vmem:[#allocation2 + $0x288] sm:$0xff]
        %v1141 = vld [vmem:[#allocation2 + $0x290] sm:$0xff]
        %v1142 = vld [vmem:[#allocation2 + $0x298] sm:$0xff]
        %v1143 = vld [vmem:[#allocation2 + $0x2a0] sm:$0xff]
        %v1144 = vld [vmem:[#allocation2 + $0x2a8] sm:$0xff]
        %v1145 = vld [vmem:[#allocation2 + $0x2b0] sm:$0xff]
        %v1146 = vld [vmem:[#allocation2 + $0x2b8] sm:$0xff]
        %v1147 = vld [vmem:[#allocation2 + $0x2c0] sm:$0xff]
        %v1148 = vld [vmem:[#allocation2 + $0x2c8] sm:$0xff]
        %v1149 = vld [vmem:[#allocation2 + $0x2d0] sm:$0xff]
        %v1150 = vld [vmem:[#allocation2 + $0x2d8] sm:$0xff]
        %v1151 = vld [vmem:[#allocation2 + $0x2e0] sm:$0xff]
        %v1152 = vld [vmem:[#allocation2 + $0x2e8] sm:$0xff]
        %v1153 = vld [vmem:[#allocation2 + $0x2f0] sm:$0xff]
        %v1154 = vld [vmem:[#allocation2 + $0x2f8] sm:$0xff]
        %v1155 = vstv %s1120
        %v1156 = vmul.f32 %v1123, %v1155
        %v1157 = vmul.f32 %v1124, %v1155
        %v1158 = vmul.f32 %v1125, %v1155
        %v1159 = vmul.f32 %v1126, %v1155
        %v1160 = vmul.f32 %v1127, %v1155
        %v1161 = vmul.f32 %v1128, %v1155
        %v1162 = vmul.f32 %v1129, %v1155
        %v1163 = vmul.f32 %v1130, %v1155
        %v1164 = vmul.f32 %v1131, %v1155
        %v1165 = vmul.f32 %v1132, %v1155
        %v1166 = vmul.f32 %v1133, %v1155
        %v1167 = vmul.f32 %v1134, %v1155
        %v1168 = vmul.f32 %v1135, %v1155
        %v1169 = vmul.f32 %v1136, %v1155
        %v1170 = vmul.f32 %v1137, %v1155
        %v1171 = vmul.f32 %v1138, %v1155
        %v1172 = vmul.f32 %v1139, %v1155
        %v1173 = vmul.f32 %v1140, %v1155
        %v1174 = vmul.f32 %v1141, %v1155
        %v1175 = vmul.f32 %v1142, %v1155
        %v1176 = vmul.f32 %v1143, %v1155
        %v1177 = vmul.f32 %v1144, %v1155
        %v1178 = vmul.f32 %v1145, %v1155
        %v1179 = vmul.f32 %v1146, %v1155
        %v1180 = vmul.f32 %v1147, %v1155
        %v1181 = vmul.f32 %v1148, %v1155
        %v1182 = vmul.f32 %v1149, %v1155
        %v1183 = vmul.f32 %v1150, %v1155
        %v1184 = vmul.f32 %v1151, %v1155
        %v1185 = vmul.f32 %v1152, %v1155
        %v1186 = vmul.f32 %v1153, %v1155
        %v1187 = vmul.f32 %v1154, %v1155
        %v1188 = vadd.f32 %v461, %v1156
        %v1189 = vadd.f32 %v463, %v1157
        %v1190 = vadd.f32 %v646, %v1158
        %v1191 = vadd.f32 %v648, %v1159
        %v1192 = vadd.f32 %v831, %v1160
        %v1193 = vadd.f32 %v833, %v1161
        %v1194 = vadd.f32 %v1016, %v1162
        %v1195 = vadd.f32 %v1018, %v1163
        %v1196 = vadd.f32 %v467, %v1164
        %v1197 = vadd.f32 %v469, %v1165
        %v1198 = vadd.f32 %v652, %v1166
        %v1199 = vadd.f32 %v654, %v1167
        %v1200 = vadd.f32 %v837, %v1168
        %v1201 = vadd.f32 %v839, %v1169
        %v1202 = vadd.f32 %v1022, %v1170
        %v1203 = vadd.f32 %v1024, %v1171
        %v1204 = vadd.f32 %v473, %v1172
        %v1205 = vadd.f32 %v475, %v1173
        %v1206 = vadd.f32 %v658, %v1174
        %v1207 = vadd.f32 %v660, %v1175
        %v1208 = vadd.f32 %v843, %v1176
        %v1209 = vadd.f32 %v845, %v1177
        %v1210 = vadd.f32 %v1028, %v1178
        %v1211 = vadd.f32 %v1030, %v1179
        %v1212 = vadd.f32 %v479, %v1180
        %v1213 = vadd.f32 %v481, %v1181
        %v1214 = vadd.f32 %v664, %v1182
        %v1215 = vadd.f32 %v666, %v1183
        %v1216 = vadd.f32 %v849, %v1184
        %v1217 = vadd.f32 %v851, %v1185
        %v1218 = vadd.f32 %v1034, %v1186
        %v1219 = vadd.f32 %v1036, %v1187
        %s1220 = ssub.f32 0.0, %s1122
        %v1221 = vstv %s1220
        %v1222 = vmax.f32 %v1221, %v1188
        %v1223 = vmax.f32 %v1221, %v1189
        %v1224 = vmax.f32 %v1221, %v1190
        %v1225 = vmax.f32 %v1221, %v1191
        %v1226 = vmax.f32 %v1221, %v1192
        %v1227 = vmax.f32 %v1221, %v1193
        %v1228 = vmax.f32 %v1221, %v1194
        %v1229 = vmax.f32 %v1221, %v1195
        %v1230 = vmax.f32 %v1221, %v1196
        %v1231 = vmax.f32 %v1221, %v1197
        %v1232 = vmax.f32 %v1221, %v1198
        %v1233 = vmax.f32 %v1221, %v1199
        %v1234 = vmax.f32 %v1221, %v1200
        %v1235 = vmax.f32 %v1221, %v1201
        %v1236 = vmax.f32 %v1221, %v1202
        %v1237 = vmax.f32 %v1221, %v1203
        %v1238 = vmax.f32 %v1221, %v1204
        %v1239 = vmax.f32 %v1221, %v1205
        %v1240 = vmax.f32 %v1221, %v1206
        %v1241 = vmax.f32 %v1221, %v1207
        %v1242 = vmax.f32 %v1221, %v1208
        %v1243 = vmax.f32 %v1221, %v1209
        %v1244 = vmax.f32 %v1221, %v1210
        %v1245 = vmax.f32 %v1221, %v1211
        %v1246 = vmax.f32 %v1221, %v1212
        %v1247 = vmax.f32 %v1221, %v1213
        %v1248 = vmax.f32 %v1221, %v1214
        %v1249 = vmax.f32 %v1221, %v1215
        %v1250 = vmax.f32 %v1221, %v1216
        %v1251 = vmax.f32 %v1221, %v1217
        %v1252 = vmax.f32 %v1221, %v1218
        %v1253 = vmax.f32 %v1221, %v1219
        %v1254 = vstv %s1122
        %v1255 = vmin.f32 %v1254, %v1222
        %v1256 = vmin.f32 %v1254, %v1223
        %v1257 = vmin.f32 %v1254, %v1224
        %v1258 = vmin.f32 %v1254, %v1225
        %v1259 = vmin.f32 %v1254, %v1226
        %v1260 = vmin.f32 %v1254, %v1227
        %v1261 = vmin.f32 %v1254, %v1228
        %v1262 = vmin.f32 %v1254, %v1229
        %v1263 = vmin.f32 %v1254, %v1230
        %v1264 = vmin.f32 %v1254, %v1231
        %v1265 = vmin.f32 %v1254, %v1232
        %v1266 = vmin.f32 %v1254, %v1233
        %v1267 = vmin.f32 %v1254, %v1234
        %v1268 = vmin.f32 %v1254, %v1235
        %v1269 = vmin.f32 %v1254, %v1236
        %v1270 = vmin.f32 %v1254, %v1237
        %v1271 = vmin.f32 %v1254, %v1238
        %v1272 = vmin.f32 %v1254, %v1239
        %v1273 = vmin.f32 %v1254, %v1240
        %v1274 = vmin.f32 %v1254, %v1241
        %v1275 = vmin.f32 %v1254, %v1242
        %v1276 = vmin.f32 %v1254, %v1243
        %v1277 = vmin.f32 %v1254, %v1244
        %v1278 = vmin.f32 %v1254, %v1245
        %v1279 = vmin.f32 %v1254, %v1246
        %v1280 = vmin.f32 %v1254, %v1247
        %v1281 = vmin.f32 %v1254, %v1248
        %v1282 = vmin.f32 %v1254, %v1249
        %v1283 = vmin.f32 %v1254, %v1250
        %v1284 = vmin.f32 %v1254, %v1251
        %v1285 = vmin.f32 %v1254, %v1252
        %v1286 = vmin.f32 %v1254, %v1253
        %v1287 = vsub.f32 %v1188, %v1255
        %v1288 = vsub.f32 %v1189, %v1256
        %v1289 = vsub.f32 %v1190, %v1257
        %v1290 = vsub.f32 %v1191, %v1258
        %v1291 = vsub.f32 %v1192, %v1259
        %v1292 = vsub.f32 %v1193, %v1260
        %v1293 = vsub.f32 %v1194, %v1261
        %v1294 = vsub.f32 %v1195, %v1262
        %v1295 = vsub.f32 %v1196, %v1263
        %v1296 = vsub.f32 %v1197, %v1264
        %v1297 = vsub.f32 %v1198, %v1265
        %v1298 = vsub.f32 %v1199, %v1266
        %v1299 = vsub.f32 %v1200, %v1267
        %v1300 = vsub.f32 %v1201, %v1268
        %v1301 = vsub.f32 %v1202, %v1269
        %v1302 = vsub.f32 %v1203, %v1270
        %v1303 = vsub.f32 %v1204, %v1271
        %v1304 = vsub.f32 %v1205, %v1272
        %v1305 = vsub.f32 %v1206, %v1273
        %v1306 = vsub.f32 %v1207, %v1274
        %v1307 = vsub.f32 %v1208, %v1275
        %v1308 = vsub.f32 %v1209, %v1276
        %v1309 = vsub.f32 %v1210, %v1277
        %v1310 = vsub.f32 %v1211, %v1278
        %v1311 = vsub.f32 %v1212, %v1279
        %v1312 = vsub.f32 %v1213, %v1280
        %v1313 = vsub.f32 %v1214, %v1281
        %v1314 = vsub.f32 %v1215, %v1282
        %v1315 = vsub.f32 %v1216, %v1283
        %v1316 = vsub.f32 %v1217, %v1284
        %v1317 = vsub.f32 %v1218, %v1285
        %v1318 = vsub.f32 %v1219, %v1286
        %1319 = vst [vmem:[#allocation2 + $0x100] sm:$0xff] %v1287
        %1320 = vst [vmem:[#allocation2 + $0x108] sm:$0xff] %v1288
        %1321 = vst [vmem:[#allocation2 + $0x110] sm:$0xff] %v1289
        %1322 = vst [vmem:[#allocation2 + $0x118] sm:$0xff] %v1290
        %1323 = vst [vmem:[#allocation2 + $0x120] sm:$0xff] %v1291
        %1324 = vst [vmem:[#allocation2 + $0x128] sm:$0xff] %v1292
        %1325 = vst [vmem:[#allocation2 + $0x130] sm:$0xff] %v1293
        %1326 = vst [vmem:[#allocation2 + $0x138] sm:$0xff] %v1294
        %1327 = vst [vmem:[#allocation2 + $0x140] sm:$0xff] %v1295
        %1328 = vst [vmem:[#allocation2 + $0x148] sm:$0xff] %v1296
        %1329 = vst [vmem:[#allocation2 + $0x150] sm:$0xff] %v1297
        %1330 = vst [vmem:[#allocation2 + $0x158] sm:$0xff] %v1298
        %1331 = vst [vmem:[#allocation2 + $0x160] sm:$0xff] %v1299
        %1332 = vst [vmem:[#allocation2 + $0x168] sm:$0xff] %v1300
        %1333 = vst [vmem:[#allocation2 + $0x170] sm:$0xff] %v1301
        %1334 = vst [vmem:[#allocation2 + $0x178] sm:$0xff] %v1302
        %1335 = vst [vmem:[#allocation2 + $0x180] sm:$0xff] %v1303
        %1336 = vst [vmem:[#allocation2 + $0x188] sm:$0xff] %v1304
        %1337 = vst [vmem:[#allocation2 + $0x190] sm:$0xff] %v1305
        %1338 = vst [vmem:[#allocation2 + $0x198] sm:$0xff] %v1306
        %1339 = vst [vmem:[#allocation2 + $0x1a0] sm:$0xff] %v1307
        %1340 = vst [vmem:[#allocation2 + $0x1a8] sm:$0xff] %v1308
        %1341 = vst [vmem:[#allocation2 + $0x1b0] sm:$0xff] %v1309
        %1342 = vst [vmem:[#allocation2 + $0x1b8] sm:$0xff] %v1310
        %1343 = vst [vmem:[#allocation2 + $0x1c0] sm:$0xff] %v1311
        %1344 = vst [vmem:[#allocation2 + $0x1c8] sm:$0xff] %v1312
        %1345 = vst [vmem:[#allocation2 + $0x1d0] sm:$0xff] %v1313
        %1346 = vst [vmem:[#allocation2 + $0x1d8] sm:$0xff] %v1314
        %1347 = vst [vmem:[#allocation2 + $0x1e0] sm:$0xff] %v1315
        %1348 = vst [vmem:[#allocation2 + $0x1e8] sm:$0xff] %v1316
        %1349 = vst [vmem:[#allocation2 + $0x1f0] sm:$0xff] %v1317
        %1350 = vst [vmem:[#allocation2 + $0x1f8] sm:$0xff] %v1318
        %v1351 = vstv %s1121
        %v1352 = vmul.f32 %v485, %v1351
        %v1353 = vmul.f32 %v487, %v1351
        %v1354 = vmul.f32 %v670, %v1351
        %v1355 = vmul.f32 %v672, %v1351
        %v1356 = vmul.f32 %v855, %v1351
        %v1357 = vmul.f32 %v857, %v1351
        %v1358 = vmul.f32 %v1040, %v1351
        %v1359 = vmul.f32 %v1042, %v1351
        %v1360 = vmul.f32 %v491, %v1351
        %v1361 = vmul.f32 %v493, %v1351
        %v1362 = vmul.f32 %v676, %v1351
        %v1363 = vmul.f32 %v678, %v1351
        %v1364 = vmul.f32 %v861, %v1351
        %v1365 = vmul.f32 %v863, %v1351
        %v1366 = vmul.f32 %v1046, %v1351
        %v1367 = vmul.f32 %v1048, %v1351
        %v1368 = vmul.f32 %v497, %v1351
        %v1369 = vmul.f32 %v499, %v1351
        %v1370 = vmul.f32 %v682, %v1351
        %v1371 = vmul.f32 %v684, %v1351
        %v1372 = vmul.f32 %v867, %v1351
        %v1373 = vmul.f32 %v869, %v1351
        %v1374 = vmul.f32 %v1052, %v1351
        %v1375 = vmul.f32 %v1054, %v1351
        %v1376 = vmul.f32 %v503, %v1351
        %v1377 = vmul.f32 %v505, %v1351
        %v1378 = vmul.f32 %v688, %v1351
        %v1379 = vmul.f32 %v690, %v1351
        %v1380 = vmul.f32 %v873, %v1351
        %v1381 = vmul.f32 %v875, %v1351
        %v1382 = vmul.f32 %v1058, %v1351
        %v1383 = vmul.f32 %v1060, %v1351
        %v1384 = vadd.f32 %v437, %v1352
        %v1385 = vadd.f32 %v439, %v1353
        %v1386 = vadd.f32 %v622, %v1354
        %v1387 = vadd.f32 %v624, %v1355
        %v1388 = vadd.f32 %v807, %v1356
        %v1389 = vadd.f32 %v809, %v1357
        %v1390 = vadd.f32 %v992, %v1358
        %v1391 = vadd.f32 %v994, %v1359
        %v1392 = vadd.f32 %v443, %v1360
        %v1393 = vadd.f32 %v445, %v1361
        %v1394 = vadd.f32 %v628, %v1362
        %v1395 = vadd.f32 %v630, %v1363
        %v1396 = vadd.f32 %v813, %v1364
        %v1397 = vadd.f32 %v815, %v1365
        %v1398 = vadd.f32 %v998, %v1366
        %v1399 = vadd.f32 %v1000, %v1367
        %v1400 = vadd.f32 %v449, %v1368
        %v1401 = vadd.f32 %v451, %v1369
        %v1402 = vadd.f32 %v634, %v1370
        %v1403 = vadd.f32 %v636, %v1371
        %v1404 = vadd.f32 %v819, %v1372
        %v1405 = vadd.f32 %v821, %v1373
        %v1406 = vadd.f32 %v1004, %v1374
        %v1407 = vadd.f32 %v1006, %v1375
        %v1408 = vadd.f32 %v455, %v1376
        %v1409 = vadd.f32 %v457, %v1377
        %v1410 = vadd.f32 %v640, %v1378
        %v1411 = vadd.f32 %v642, %v1379
        %v1412 = vadd.f32 %v825, %v1380
        %v1413 = vadd.f32 %v827, %v1381
        %v1414 = vadd.f32 %v1010, %v1382
        %v1415 = vadd.f32 %v1012, %v1383
        %v1416 = vmax.f32 %v1384, 0.0
        %v1417 = vmax.f32 %v1385, 0.0
        %v1418 = vmax.f32 %v1386, 0.0
        %v1419 = vmax.f32 %v1387, 0.0
        %v1420 = vmax.f32 %v1388, 0.0
        %v1421 = vmax.f32 %v1389, 0.0
        %v1422 = vmax.f32 %v1390, 0.0
        %v1423 = vmax.f32 %v1391, 0.0
        %v1424 = vmax.f32 %v1392, 0.0
        %v1425 = vmax.f32 %v1393, 0.0
        %v1426 = vmax.f32 %v1394, 0.0
        %v1427 = vmax.f32 %v1395, 0.0
        %v1428 = vmax.f32 %v1396, 0.0
        %v1429 = vmax.f32 %v1397, 0.0
        %v1430 = vmax.f32 %v1398, 0.0
        %v1431 = vmax.f32 %v1399, 0.0
        %v1432 = vmax.f32 %v1400, 0.0
        %v1433 = vmax.f32 %v1401, 0.0
        %v1434 = vmax.f32 %v1402, 0.0
        %v1435 = vmax.f32 %v1403, 0.0
        %v1436 = vmax.f32 %v1404, 0.0
        %v1437 = vmax.f32 %v1405, 0.0
        %v1438 = vmax.f32 %v1406, 0.0
        %v1439 = vmax.f32 %v1407, 0.0
        %v1440 = vmax.f32 %v1408, 0.0
        %v1441 = vmax.f32 %v1409, 0.0
        %v1442 = vmax.f32 %v1410, 0.0
        %v1443 = vmax.f32 %v1411, 0.0
        %v1444 = vmax.f32 %v1412, 0.0
        %v1445 = vmax.f32 %v1413, 0.0
        %v1446 = vmax.f32 %v1414, 0.0
        %v1447 = vmax.f32 %v1415, 0.0
        %v1448 = vstv %s1119
        %v1449 = vmul.f32 %v1448, %v1416
        %v1450 = vmul.f32 %v1448, %v1417
        %v1451 = vmul.f32 %v1448, %v1418
        %v1452 = vmul.f32 %v1448, %v1419
        %v1453 = vmul.f32 %v1448, %v1420
        %v1454 = vmul.f32 %v1448, %v1421
        %v1455 = vmul.f32 %v1448, %v1422
        %v1456 = vmul.f32 %v1448, %v1423
        %v1457 = vmul.f32 %v1448, %v1424
        %v1458 = vmul.f32 %v1448, %v1425
        %v1459 = vmul.f32 %v1448, %v1426
        %v1460 = vmul.f32 %v1448, %v1427
        %v1461 = vmul.f32 %v1448, %v1428
        %v1462 = vmul.f32 %v1448, %v1429
        %v1463 = vmul.f32 %v1448, %v1430
        %v1464 = vmul.f32 %v1448, %v1431
        %v1465 = vmul.f32 %v1448, %v1432
        %v1466 = vmul.f32 %v1448, %v1433
        %v1467 = vmul.f32 %v1448, %v1434
        %v1468 = vmul.f32 %v1448, %v1435
        %v1469 = vmul.f32 %v1448, %v1436
        %v1470 = vmul.f32 %v1448, %v1437
        %v1471 = vmul.f32 %v1448, %v1438
        %v1472 = vmul.f32 %v1448, %v1439
        %v1473 = vmul.f32 %v1448, %v1440
        %v1474 = vmul.f32 %v1448, %v1441
        %v1475 = vmul.f32 %v1448, %v1442
        %v1476 = vmul.f32 %v1448, %v1443
        %v1477 = vmul.f32 %v1448, %v1444
        %v1478 = vmul.f32 %v1448, %v1445
        %v1479 = vmul.f32 %v1448, %v1446
        %v1480 = vmul.f32 %v1448, %v1447
        %v1481 = vadd.f32 %v413, %v1449
        %v1482 = vadd.f32 %v415, %v1450
        %v1483 = vadd.f32 %v598, %v1451
        %v1484 = vadd.f32 %v600, %v1452
        %v1485 = vadd.f32 %v783, %v1453
        %v1486 = vadd.f32 %v785, %v1454
        %v1487 = vadd.f32 %v968, %v1455
        %v1488 = vadd.f32 %v970, %v1456
        %v1489 = vadd.f32 %v419, %v1457
        %v1490 = vadd.f32 %v421, %v1458
        %v1491 = vadd.f32 %v604, %v1459
        %v1492 = vadd.f32 %v606, %v1460
        %v1493 = vadd.f32 %v789, %v1461
        %v1494 = vadd.f32 %v791, %v1462
        %v1495 = vadd.f32 %v974, %v1463
        %v1496 = vadd.f32 %v976, %v1464
        %v1497 = vadd.f32 %v425, %v1465
        %v1498 = vadd.f32 %v427, %v1466
        %v1499 = vadd.f32 %v610, %v1467
        %v1500 = vadd.f32 %v612, %v1468
        %v1501 = vadd.f32 %v795, %v1469
        %v1502 = vadd.f32 %v797, %v1470
        %v1503 = vadd.f32 %v980, %v1471
        %v1504 = vadd.f32 %v982, %v1472
        %v1505 = vadd.f32 %v431, %v1473
        %v1506 = vadd.f32 %v433, %v1474
        %v1507 = vadd.f32 %v616, %v1475
        %v1508 = vadd.f32 %v618, %v1476
        %v1509 = vadd.f32 %v801, %v1477
        %v1510 = vadd.f32 %v803, %v1478
        %v1511 = vadd.f32 %v986, %v1479
        %v1512 = vadd.f32 %v988, %v1480
        %v1513 = vsub.f32 %v1481, %v485
        %v1514 = vsub.f32 %v1482, %v487
        %v1515 = vsub.f32 %v1483, %v670
        %v1516 = vsub.f32 %v1484, %v672
        %v1517 = vsub.f32 %v1485, %v855
        %v1518 = vsub.f32 %v1486, %v857
        %v1519 = vsub.f32 %v1487, %v1040
        %v1520 = vsub.f32 %v1488, %v1042
        %v1521 = vsub.f32 %v1489, %v491
        %v1522 = vsub.f32 %v1490, %v493
        %v1523 = vsub.f32 %v1491, %v676
        %v1524 = vsub.f32 %v1492, %v678
        %v1525 = vsub.f32 %v1493, %v861
        %v1526 = vsub.f32 %v1494, %v863
        %v1527 = vsub.f32 %v1495, %v1046
        %v1528 = vsub.f32 %v1496, %v1048
        %v1529 = vsub.f32 %v1497, %v497
        %v1530 = vsub.f32 %v1498, %v499
        %v1531 = vsub.f32 %v1499, %v682
        %v1532 = vsub.f32 %v1500, %v684
        %v1533 = vsub.f32 %v1501, %v867
        %v1534 = vsub.f32 %v1502, %v869
        %v1535 = vsub.f32 %v1503, %v1052
        %v1536 = vsub.f32 %v1504, %v1054
        %v1537 = vsub.f32 %v1505, %v503
        %v1538 = vsub.f32 %v1506, %v505
        %v1539 = vsub.f32 %v1507, %v688
        %v1540 = vsub.f32 %v1508, %v690
        %v1541 = vsub.f32 %v1509, %v873
        %v1542 = vsub.f32 %v1510, %v875
        %v1543 = vsub.f32 %v1511, %v1058
        %v1544 = vsub.f32 %v1512, %v1060
        %1545 = vst [vmem:[#allocation2] sm:$0xff] %v1513
        %1546 = vst [vmem:[#allocation2 + $0x8] sm:$0xff] %v1514
        %1547 = vst [vmem:[#allocation2 + $0x10] sm:$0xff] %v1515
        %1548 = vst [vmem:[#allocation2 + $0x18] sm:$0xff] %v1516
        %1549 = vst [vmem:[#allocation2 + $0x20] sm:$0xff] %v1517
        %1550 = vst [vmem:[#allocation2 + $0x28] sm:$0xff] %v1518
        %1551 = vst [vmem:[#allocation2 + $0x30] sm:$0xff] %v1519
        %1552 = vst [vmem:[#allocation2 + $0x38] sm:$0xff] %v1520
        %1553 = vst [vmem:[#allocation2 + $0x40] sm:$0xff] %v1521
        %1554 = vst [vmem:[#allocation2 + $0x48] sm:$0xff] %v1522
        %1555 = vst [vmem:[#allocation2 + $0x50] sm:$0xff] %v1523
        %1556 = vst [vmem:[#allocation2 + $0x58] sm:$0xff] %v1524
        %1557 = vst [vmem:[#allocation2 + $0x60] sm:$0xff] %v1525
        %1558 = vst [vmem:[#allocation2 + $0x68] sm:$0xff] %v1526
        %1559 = vst [vmem:[#allocation2 + $0x70] sm:$0xff] %v1527
        %1560 = vst [vmem:[#allocation2 + $0x78] sm:$0xff] %v1528
        %1561 = vst [vmem:[#allocation2 + $0x80] sm:$0xff] %v1529
        %1562 = vst [vmem:[#allocation2 + $0x88] sm:$0xff] %v1530
        %1563 = vst [vmem:[#allocation2 + $0x90] sm:$0xff] %v1531
        %1564 = vst [vmem:[#allocation2 + $0x98] sm:$0xff] %v1532
        %1565 = vst [vmem:[#allocation2 + $0xa0] sm:$0xff] %v1533
        %1566 = vst [vmem:[#allocation2 + $0xa8] sm:$0xff] %v1534
        %1567 = vst [vmem:[#allocation2 + $0xb0] sm:$0xff] %v1535
        %1568 = vst [vmem:[#allocation2 + $0xb8] sm:$0xff] %v1536
        %1569 = vst [vmem:[#allocation2 + $0xc0] sm:$0xff] %v1537
        %1570 = vst [vmem:[#allocation2 + $0xc8] sm:$0xff] %v1538
        %1571 = vst [vmem:[#allocation2 + $0xd0] sm:$0xff] %v1539
        %1572 = vst [vmem:[#allocation2 + $0xd8] sm:$0xff] %v1540
        %1573 = vst [vmem:[#allocation2 + $0xe0] sm:$0xff] %v1541
        %1574 = vst [vmem:[#allocation2 + $0xe8] sm:$0xff] %v1542
        %1575 = vst [vmem:[#allocation2 + $0xf0] sm:$0xff] %v1543
        %1576 = vst [vmem:[#allocation2 + $0xf8] sm:$0xff] %v1544
        %v1577 = vld [vmem:[%s3] sm:$0xff]
        %v1578 = vld [vmem:[%s3 + $0x8] sm:$0xff]
        %v1579 = vld [vmem:[%s3 + $0x10] sm:$0xff]
        %v1580 = vld [vmem:[%s3 + $0x18] sm:$0xff]
        %v1581 = vld [vmem:[%s3 + $0x20] sm:$0xff]
        %v1582 = vld [vmem:[%s3 + $0x28] sm:$0xff]
        %v1583 = vld [vmem:[%s3 + $0x30] sm:$0xff]
        %v1584 = vld [vmem:[%s3 + $0x38] sm:$0xff]
        %v1585 = vld [vmem:[#allocation2] sm:$0xff]
        %v1586 = vld [vmem:[#allocation2 + $0x8] sm:$0xff]
        %v1587 = vld [vmem:[#allocation2 + $0x10] sm:$0xff]
        %v1588 = vld [vmem:[#allocation2 + $0x18] sm:$0xff]
        %v1589 = vld [vmem:[#allocation2 + $0x20] sm:$0xff]
        %v1590 = vld [vmem:[#allocation2 + $0x28] sm:$0xff]
        %v1591 = vld [vmem:[#allocation2 + $0x30] sm:$0xff]
        %v1592 = vld [vmem:[#allocation2 + $0x38] sm:$0xff]
        %v1593 = vld [vmem:[#allocation2 + $0x40] sm:$0xff]
        %v1594 = vld [vmem:[#allocation2 + $0x48] sm:$0xff]
        %v1595 = vld [vmem:[#allocation2 + $0x50] sm:$0xff]
        %v1596 = vld [vmem:[#allocation2 + $0x58] sm:$0xff]
        %v1597 = vld [vmem:[#allocation2 + $0x60] sm:$0xff]
        %v1598 = vld [vmem:[#allocation2 + $0x68] sm:$0xff]
        %v1599 = vld [vmem:[#allocation2 + $0x70] sm:$0xff]
        %v1600 = vld [vmem:[#allocation2 + $0x78] sm:$0xff]
        %v1601 = vld [vmem:[#allocation2 + $0x80] sm:$0xff]
        %v1602 = vld [vmem:[#allocation2 + $0x88] sm:$0xff]
        %v1603 = vld [vmem:[#allocation2 + $0x90] sm:$0xff]
        %v1604 = vld [vmem:[#allocation2 + $0x98] sm:$0xff]
        %v1605 = vld [vmem:[#allocation2 + $0xa0] sm:$0xff]
        %v1606 = vld [vmem:[#allocation2 + $0xa8] sm:$0xff]
        %v1607 = vld [vmem:[#allocation2 + $0xb0] sm:$0xff]
        %v1608 = vld [vmem:[#allocation2 + $0xb8] sm:$0xff]
        %v1609 = vld [vmem:[#allocation2 + $0xc0] sm:$0xff]
        %v1610 = vld [vmem:[#allocation2 + $0xc8] sm:$0xff]
        %v1611 = vld [vmem:[#allocation2 + $0xd0] sm:$0xff]
        %v1612 = vld [vmem:[#allocation2 + $0xd8] sm:$0xff]
        %v1613 = vld [vmem:[#allocation2 + $0xe0] sm:$0xff]
        %v1614 = vld [vmem:[#allocation2 + $0xe8] sm:$0xff]
        %v1615 = vld [vmem:[#allocation2 + $0xf0] sm:$0xff]
        %v1616 = vld [vmem:[#allocation2 + $0xf8] sm:$0xff]
        %v1617 = vld [vmem:[#allocation2 + $0x100] sm:$0xff]
        %v1618 = vld [vmem:[#allocation2 + $0x108] sm:$0xff]
        %v1619 = vld [vmem:[#allocation2 + $0x110] sm:$0xff]
        %v1620 = vld [vmem:[#allocation2 + $0x118] sm:$0xff]
        %v1621 = vld [vmem:[#allocation2 + $0x120] sm:$0xff]
        %v1622 = vld [vmem:[#allocation2 + $0x128] sm:$0xff]
        %v1623 = vld [vmem:[#allocation2 + $0x130] sm:$0xff]
        %v1624 = vld [vmem:[#allocation2 + $0x138] sm:$0xff]
        %v1625 = vld [vmem:[#allocation2 + $0x140] sm:$0xff]
        %v1626 = vld [vmem:[#allocation2 + $0x148] sm:$0xff]
        %v1627 = vld [vmem:[#allocation2 + $0x150] sm:$0xff]
        %v1628 = vld [vmem:[#allocation2 + $0x158] sm:$0xff]
        %v1629 = vld [vmem:[#allocation2 + $0x160] sm:$0xff]
        %v1630 = vld [vmem:[#allocation2 + $0x168] sm:$0xff]
        %v1631 = vld [vmem:[#allocation2 + $0x170] sm:$0xff]
        %v1632 = vld [vmem:[#allocation2 + $0x178] sm:$0xff]
        %v1633 = vld [vmem:[#allocation2 + $0x180] sm:$0xff]
        %v1634 = vld [vmem:[#allocation2 + $0x188] sm:$0xff]
        %v1635 = vld [vmem:[#allocation2 + $0x190] sm:$0xff]
        %v1636 = vld [vmem:[#allocation2 + $0x198] sm:$0xff]
        %v1637 = vld [vmem:[#allocation2 + $0x1a0] sm:$0xff]
        %v1638 = vld [vmem:[#allocation2 + $0x1a8] sm:$0xff]
        %v1639 = vld [vmem:[#allocation2 + $0x1b0] sm:$0xff]
        %v1640 = vld [vmem:[#allocation2 + $0x1b8] sm:$0xff]
        %v1641 = vld [vmem:[#allocation2 + $0x1c0] sm:$0xff]
        %v1642 = vld [vmem:[#allocation2 + $0x1c8] sm:$0xff]
        %v1643 = vld [vmem:[#allocation2 + $0x1d0] sm:$0xff]
        %v1644 = vld [vmem:[#allocation2 + $0x1d8] sm:$0xff]
        %v1645 = vld [vmem:[#allocation2 + $0x1e0] sm:$0xff]
        %v1646 = vld [vmem:[#allocation2 + $0x1e8] sm:$0xff]
        %v1647 = vld [vmem:[#allocation2 + $0x1f0] sm:$0xff]
        %v1648 = vld [vmem:[#allocation2 + $0x1f8] sm:$0xff]
        %v1649 = vld [vmem:[#allocation2 + $0x200] sm:$0xff]
        %v1650 = vld [vmem:[#allocation2 + $0x208] sm:$0xff]
        %v1651 = vld [vmem:[#allocation2 + $0x210] sm:$0xff]
        %v1652 = vld [vmem:[#allocation2 + $0x218] sm:$0xff]
        %v1653 = vld [vmem:[#allocation2 + $0x220] sm:$0xff]
        %v1654 = vld [vmem:[#allocation2 + $0x228] sm:$0xff]
        %v1655 = vld [vmem:[#allocation2 + $0x230] sm:$0xff]
        %v1656 = vld [vmem:[#allocation2 + $0x238] sm:$0xff]
        %v1657 = vld [vmem:[#allocation2 + $0x240] sm:$0xff]
        %v1658 = vld [vmem:[#allocation2 + $0x248] sm:$0xff]
        %v1659 = vld [vmem:[#allocation2 + $0x250] sm:$0xff]
        %v1660 = vld [vmem:[#allocation2 + $0x258] sm:$0xff]
        %v1661 = vld [vmem:[#allocation2 + $0x260] sm:$0xff]
        %v1662 = vld [vmem:[#allocation2 + $0x268] sm:$0xff]
        %v1663 = vld [vmem:[#allocation2 + $0x270] sm:$0xff]
        %v1664 = vld [vmem:[#allocation2 + $0x278] sm:$0xff]
        %v1665 = vld [vmem:[#allocation2 + $0x280] sm:$0xff]
        %v1666 = vld [vmem:[#allocation2 + $0x288] sm:$0xff]
        %v1667 = vld [vmem:[#allocation2 + $0x290] sm:$0xff]
        %v1668 = vld [vmem:[#allocation2 + $0x298] sm:$0xff]
        %v1669 = vld [vmem:[#allocation2 + $0x2a0] sm:$0xff]
        %v1670 = vld [vmem:[#allocation2 + $0x2a8] sm:$0xff]
        %v1671 = vld [vmem:[#allocation2 + $0x2b0] sm:$0xff]
        %v1672 = vld [vmem:[#allocation2 + $0x2b8] sm:$0xff]
        %v1673 = vld [vmem:[#allocation2 + $0x2c0] sm:$0xff]
        %v1674 = vld [vmem:[#allocation2 + $0x2c8] sm:$0xff]
        %v1675 = vld [vmem:[#allocation2 + $0x2d0] sm:$0xff]
        %v1676 = vld [vmem:[#allocation2 + $0x2d8] sm:$0xff]
        %v1677 = vld [vmem:[#allocation2 + $0x2e0] sm:$0xff]
        %v1678 = vld [vmem:[#allocation2 + $0x2e8] sm:$0xff]
        %v1679 = vld [vmem:[#allocation2 + $0x2f0] sm:$0xff]
        %v1680 = vld [vmem:[#allocation2 + $0x2f8] sm:$0xff]
        %vm1681 = vcmask 785408
        %v1683 = vsel %vm1681, %v1577, 0
        %v1686 = vsel %vm1681, %v1578, 0
        %v1689 = vsel %vm1681, %v1579, 0
        %v1692 = vsel %vm1681, %v1580, 0
        %v1695 = vsel %vm1681, %v1581, 0
        %v1698 = vsel %vm1681, %v1582, 0
        %v1701 = vsel %vm1681, %v1583, 0
        %v1704 = vsel %vm1681, %v1584, 0
        %1706 = vmatprep.subr.mxu0 %v1586
        %1707 = vmatpush1.msra.mxu0 %v1585
        %1708 = vmatprep.subr.mxu0 %v1594
        %1709 = vmatpush1.msra.mxu0 %v1593
        %1710 = vmatprep.subr.mxu0 %v1602
        %1711 = vmatpush1.msra.mxu0 %v1601
        %1712 = vmatprep.subr.mxu0 %v1610
        %1713 = vmatpush1.msra.mxu0 %v1609
        %1714 = vmatprep.subr.mxu0 %v1618
        %1715 = vmatpush1.msra.mxu0 %v1617
        %1716 = vmatprep.subr.mxu0 %v1626
        %1717 = vmatpush1.msra.mxu0 %v1625
        %1718 = vmatprep.subr.mxu0 %v1634
        %1719 = vmatpush1.msra.mxu0 %v1633
        %1720 = vmatprep.subr.mxu0 %v1642
        %1721 = vmatpush1.msra.mxu0 %v1641
        %1722 = vmatprep.subr.mxu0 %v1650
        %1723 = vmatpush1.msra.mxu0 %v1649
        %1724 = vmatprep.subr.mxu0 %v1658
        %1725 = vmatpush1.msra.mxu0 %v1657
        %1726 = vmatprep.subr.mxu0 %v1666
        %1727 = vmatpush1.msra.mxu0 %v1665
        %1728 = vmatprep.subr.mxu0 %v1674
        %1729 = vmatpush1.msra.mxu0 %v1673
        %1730 = vmatprep.subr.mxu0 0.0
        %1731 = vmatpush1.msra.mxu0 0.0
        %1732 = vmatprep.subr.mxu0 0.0
        %1733 = vmatpush1.msra.mxu0 0.0
        %1734 = vmatprep.subr.mxu0 0.0
        %1735 = vmatpush1.msra.mxu0 0.0
        %1736 = vmatprep.subr.mxu0 0.0
        %1737 = vmatpush1.msra.mxu0 0.0
        %1738 = vmatprep.subr.mxu0 0.0
        %1739 = vmatpush1.msra.mxu0 0.0
        %1740 = vmatprep.subr.mxu0 0.0
        %1741 = vmatpush1.msra.mxu0 0.0
        %1742 = vmatprep.subr.mxu0 0.0
        %1743 = vmatpush1.msra.mxu0 0.0
        %1744 = vmatprep.subr.mxu0 0.0
        %1745 = vmatpush1.msra.mxu0 0.0
        %1746 = vmatprep.subr.mxu0 0.0
        %1747 = vmatpush1.msra.mxu0 0.0
        %1748 = vmatprep.subr.mxu0 0.0
        %1749 = vmatpush1.msra.mxu0 0.0
        %1750 = vmatprep.subr.mxu0 0.0
        %1751 = vmatpush1.msra.mxu0 0.0
        %1752 = vmatprep.subr.mxu0 0.0
        %1753 = vmatpush1.msra.mxu0 0.0
        %1754 = vmatprep.subr.mxu0 0.0
        %1755 = vmatpush1.msra.mxu0 0.0
        %1756 = vmatprep.subr.mxu0 0.0
        %1757 = vmatpush1.msra.mxu0 0.0
        %1758 = vmatprep.subr.mxu0 0.0
        %1759 = vmatpush1.msra.mxu0 0.0
        %1760 = vmatprep.subr.mxu0 0.0
        %1761 = vmatpush1.msra.mxu0 0.0
        %1762 = vmatprep.subr.mxu0 0.0
        %1763 = vmatpush1.msra.mxu0 0.0
        %1764 = vmatprep.subr.mxu0 0.0
        %1765 = vmatpush1.msra.mxu0 0.0
        %1766 = vmatprep.subr.mxu0 0.0
        %1767 = vmatpush1.msra.mxu0 0.0
        %1768 = vmatprep.subr.mxu0 0.0
        %1769 = vmatpush1.msra.mxu0 0.0
        %1770 = vmatprep.mubr.f32.mxu0 0.0
        %1771 = vmatmul.mubr.f32.gmra.mrb[0].mxu0 %v1683
        %v1772 = vpop.f32.mrb[0].mxu0
        %v1773 = vadd.f32 0.0, %v1772
        %v1774 = vpop.f32.mrb[0].mxu0
        %v1775 = vadd.f32 0.0, %v1774
        %1776 = vmatprep.mubr.f32.mxu0 0.0
        %1777 = vmatmul.mubr.f32.gmra.mrb[0].mxu0 %v1686
        %v1778 = vpop.f32.mrb[0].mxu0
        %v1779 = vadd.f32 0.0, %v1778
        %v1780 = vpop.f32.mrb[0].mxu0
        %v1781 = vadd.f32 0.0, %v1780
        %1782 = vmatprep.mubr.f32.mxu0 0.0
        %1783 = vmatmul.mubr.f32.gmra.mrb[0].mxu0 %v1689
        %v1784 = vpop.f32.mrb[0].mxu0
        %v1785 = vadd.f32 0.0, %v1784
        %v1786 = vpop.f32.mrb[0].mxu0
        %v1787 = vadd.f32 0.0, %v1786
        %1788 = vmatprep.mubr.f32.mxu0 0.0
        %1789 = vmatmul.mubr.f32.gmra.mrb[0].mxu0 %v1692
        %v1790 = vpop.f32.mrb[0].mxu0
        %v1791 = vadd.f32 0.0, %v1790
        %v1792 = vpop.f32.mrb[0].mxu0
        %v1793 = vadd.f32 0.0, %v1792
        %1794 = vmatprep.mubr.f32.mxu0 0.0
        %1795 = vmatmul.mubr.f32.gmra.mrb[0].mxu0 %v1695
        %v1796 = vpop.f32.mrb[0].mxu0
        %v1797 = vadd.f32 0.0, %v1796
        %v1798 = vpop.f32.mrb[0].mxu0
        %v1799 = vadd.f32 0.0, %v1798
        %1800 = vmatprep.mubr.f32.mxu0 0.0
        %1801 = vmatmul.mubr.f32.gmra.mrb[0].mxu0 %v1698
        %v1802 = vpop.f32.mrb[0].mxu0
        %v1803 = vadd.f32 0.0, %v1802
        %v1804 = vpop.f32.mrb[0].mxu0
        %v1805 = vadd.f32 0.0, %v1804
        %1806 = vmatprep.mubr.f32.mxu0 0.0
        %1807 = vmatmul.mubr.f32.gmra.mrb[0].mxu0 %v1701
        %v1808 = vpop.f32.mrb[0].mxu0
        %v1809 = vadd.f32 0.0, %v1808
        %v1810 = vpop.f32.mrb[0].mxu0
        %v1811 = vadd.f32 0.0, %v1810
        %1812 = vmatprep.mubr.f32.mxu0 0.0
        %1813 = vmatmul.mubr.f32.gmra.mrb[0].mxu0 %v1704
        %v1814 = vpop.f32.mrb[0].mxu0
        %v1815 = vadd.f32 0.0, %v1814
        %v1816 = vpop.f32.mrb[0].mxu0
        %v1817 = vadd.f32 0.0, %v1816
        %1818 = vdwg.mxu0
        %1819 = vmatprep.subr.mxu0 %v1588
        %1820 = vmatpush1.msra.mxu0 %v1587
        %1821 = vmatprep.subr.mxu0 %v1596
        %1822 = vmatpush1.msra.mxu0 %v1595
        %1823 = vmatprep.subr.mxu0 %v1604
        %1824 = vmatpush1.msra.mxu0 %v1603
        %1825 = vmatprep.subr.mxu0 %v1612
        %1826 = vmatpush1.msra.mxu0 %v1611
        %1827 = vmatprep.subr.mxu0 %v1620
        %1828 = vmatpush1.msra.mxu0 %v1619
        %1829 = vmatprep.subr.mxu0 %v1628
        %1830 = vmatpush1.msra.mxu0 %v1627
        %1831 = vmatprep.subr.mxu0 %v1636
        %1832 = vmatpush1.msra.mxu0 %v1635
        %1833 = vmatprep.subr.mxu0 %v1644
        %1834 = vmatpush1.msra.mxu0 %v1643
        %1835 = vmatprep.subr.mxu0 %v1652
        %1836 = vmatpush1.msra.mxu0 %v1651
        %1837 = vmatprep.subr.mxu0 %v1660
        %1838 = vmatpush1.msra.mxu0 %v1659
        %1839 = vmatprep.subr.mxu0 %v1668
        %1840 = vmatpush1.msra.mxu0 %v1667
        %1841 = vmatprep.subr.mxu0 %v1676
        %1842 = vmatpush1.msra.mxu0 %v1675
        %1843 = vmatprep.subr.mxu0 0.0
        %1844 = vmatpush1.msra.mxu0 0.0
        %1845 = vmatprep.subr.mxu0 0.0
        %1846 = vmatpush1.msra.mxu0 0.0
        %1847 = vmatprep.subr.mxu0 0.0
        %1848 = vmatpush1.msra.mxu0 0.0
        %1849 = vmatprep.subr.mxu0 0.0
        %1850 = vmatpush1.msra.mxu0 0.0
        %1851 = vmatprep.subr.mxu0 0.0
        %1852 = vmatpush1.msra.mxu0 0.0
        %1853 = vmatprep.subr.mxu0 0.0
        %1854 = vmatpush1.msra.mxu0 0.0
        %1855 = vmatprep.subr.mxu0 0.0
        %1856 = vmatpush1.msra.mxu0 0.0
        %1857 = vmatprep.subr.mxu0 0.0
        %1858 = vmatpush1.msra.mxu0 0.0
        %1859 = vmatprep.subr.mxu0 0.0
        %1860 = vmatpush1.msra.mxu0 0.0
        %1861 = vmatprep.subr.mxu0 0.0
        %1862 = vmatpush1.msra.mxu0 0.0
        %1863 = vmatprep.subr.mxu0 0.0
        %1864 = vmatpush1.msra.mxu0 0.0
        %1865 = vmatprep.subr.mxu0 0.0
        %1866 = vmatpush1.msra.mxu0 0.0
        %1867 = vmatprep.subr.mxu0 0.0
        %1868 = vmatpush1.msra.mxu0 0.0
        %1869 = vmatprep.subr.mxu0 0.0
        %1870 = vmatpush1.msra.mxu0 0.0
        %1871 = vmatprep.subr.mxu0 0.0
        %1872 = vmatpush1.msra.mxu0 0.0
        %1873 = vmatprep.subr.mxu0 0.0
        %1874 = vmatpush1.msra.mxu0 0.0
        %1875 = vmatprep.subr.mxu0 0.0
        %1876 = vmatpush1.msra.mxu0 0.0
        %1877 = vmatprep.subr.mxu0 0.0
        %1878 = vmatpush1.msra.mxu0 0.0
        %1879 = vmatprep.subr.mxu0 0.0
        %1880 = vmatpush1.msra.mxu0 0.0
        %1881 = vmatprep.subr.mxu0 0.0
        %1882 = vmatpush1.msra.mxu0 0.0
        %1883 = vmatprep.mubr.f32.mxu0 0.0
        %1884 = vmatmul.mubr.f32.gmra.mrb[0].mxu0 %v1683
        %v1885 = vpop.f32.mrb[0].mxu0
        %v1886 = vadd.f32 0.0, %v1885
        %v1887 = vpop.f32.mrb[0].mxu0
        %v1888 = vadd.f32 0.0, %v1887
        %1889 = vmatprep.mubr.f32.mxu0 0.0
        %1890 = vmatmul.mubr.f32.gmra.mrb[0].mxu0 %v1686
        %v1891 = vpop.f32.mrb[0].mxu0
        %v1892 = vadd.f32 0.0, %v1891
        %v1893 = vpop.f32.mrb[0].mxu0
        %v1894 = vadd.f32 0.0, %v1893
        %1895 = vmatprep.mubr.f32.mxu0 0.0
        %1896 = vmatmul.mubr.f32.gmra.mrb[0].mxu0 %v1689
        %v1897 = vpop.f32.mrb[0].mxu0
        %v1898 = vadd.f32 0.0, %v1897
        %v1899 = vpop.f32.mrb[0].mxu0
        %v1900 = vadd.f32 0.0, %v1899
        %1901 = vmatprep.mubr.f32.mxu0 0.0
        %1902 = vmatmul.mubr.f32.gmra.mrb[0].mxu0 %v1692
        %v1903 = vpop.f32.mrb[0].mxu0
        %v1904 = vadd.f32 0.0, %v1903
        %v1905 = vpop.f32.mrb[0].mxu0
        %v1906 = vadd.f32 0.0, %v1905
        %1907 = vmatprep.mubr.f32.mxu0 0.0
        %1908 = vmatmul.mubr.f32.gmra.mrb[0].mxu0 %v1695
        %v1909 = vpop.f32.mrb[0].mxu0
        %v1910 = vadd.f32 0.0, %v1909
        %v1911 = vpop.f32.mrb[0].mxu0
        %v1912 = vadd.f32 0.0, %v1911
        %1913 = vmatprep.mubr.f32.mxu0 0.0
        %1914 = vmatmul.mubr.f32.gmra.mrb[0].mxu0 %v1698
        %v1915 = vpop.f32.mrb[0].mxu0
        %v1916 = vadd.f32 0.0, %v1915
        %v1917 = vpop.f32.mrb[0].mxu0
        %v1918 = vadd.f32 0.0, %v1917
        %1919 = vmatprep.mubr.f32.mxu0 0.0
        %1920 = vmatmul.mubr.f32.gmra.mrb[0].mxu0 %v1701
        %v1921 = vpop.f32.mrb[0].mxu0
        %v1922 = vadd.f32 0.0, %v1921
        %v1923 = vpop.f32.mrb[0].mxu0
        %v1924 = vadd.f32 0.0, %v1923
        %1925 = vmatprep.mubr.f32.mxu0 0.0
        %1926 = vmatmul.mubr.f32.gmra.mrb[0].mxu0 %v1704
        %v1927 = vpop.f32.mrb[0].mxu0
        %v1928 = vadd.f32 0.0, %v1927
        %v1929 = vpop.f32.mrb[0].mxu0
        %v1930 = vadd.f32 0.0, %v1929
        %1931 = vdwg.mxu0
        %1932 = vmatprep.subr.mxu0 %v1590
        %1933 = vmatpush1.msra.mxu0 %v1589
        %1934 = vmatprep.subr.mxu0 %v1598
        %1935 = vmatpush1.msra.mxu0 %v1597
        %1936 = vmatprep.subr.mxu0 %v1606
        %1937 = vmatpush1.msra.mxu0 %v1605
        %1938 = vmatprep.subr.mxu0 %v1614
        %1939 = vmatpush1.msra.mxu0 %v1613
        %1940 = vmatprep.subr.mxu0 %v1622
        %1941 = vmatpush1.msra.mxu0 %v1621
        %1942 = vmatprep.subr.mxu0 %v1630
        %1943 = vmatpush1.msra.mxu0 %v1629
        %1944 = vmatprep.subr.mxu0 %v1638
        %1945 = vmatpush1.msra.mxu0 %v1637
        %1946 = vmatprep.subr.mxu0 %v1646
        %1947 = vmatpush1.msra.mxu0 %v1645
        %1948 = vmatprep.subr.mxu0 %v1654
        %1949 = vmatpush1.msra.mxu0 %v1653
        %1950 = vmatprep.subr.mxu0 %v1662
        %1951 = vmatpush1.msra.mxu0 %v1661
        %1952 = vmatprep.subr.mxu0 %v1670
        %1953 = vmatpush1.msra.mxu0 %v1669
        %1954 = vmatprep.subr.mxu0 %v1678
        %1955 = vmatpush1.msra.mxu0 %v1677
        %1956 = vmatprep.subr.mxu0 0.0
        %1957 = vmatpush1.msra.mxu0 0.0
        %1958 = vmatprep.subr.mxu0 0.0
        %1959 = vmatpush1.msra.mxu0 0.0
        %1960 = vmatprep.subr.mxu0 0.0
        %1961 = vmatpush1.msra.mxu0 0.0
        %1962 = vmatprep.subr.mxu0 0.0
        %1963 = vmatpush1.msra.mxu0 0.0
        %1964 = vmatprep.subr.mxu0 0.0
        %1965 = vmatpush1.msra.mxu0 0.0
        %1966 = vmatprep.subr.mxu0 0.0
        %1967 = vmatpush1.msra.mxu0 0.0
        %1968 = vmatprep.subr.mxu0 0.0
        %1969 = vmatpush1.msra.mxu0 0.0
        %1970 = vmatprep.subr.mxu0 0.0
        %1971 = vmatpush1.msra.mxu0 0.0
        %1972 = vmatprep.subr.mxu0 0.0
        %1973 = vmatpush1.msra.mxu0 0.0
        %1974 = vmatprep.subr.mxu0 0.0
        %1975 = vmatpush1.msra.mxu0 0.0
        %1976 = vmatprep.subr.mxu0 0.0
        %1977 = vmatpush1.msra.mxu0 0.0
        %1978 = vmatprep.subr.mxu0 0.0
        %1979 = vmatpush1.msra.mxu0 0.0
        %1980 = vmatprep.subr.mxu0 0.0
        %1981 = vmatpush1.msra.mxu0 0.0
        %1982 = vmatprep.subr.mxu0 0.0
        %1983 = vmatpush1.msra.mxu0 0.0
        %1984 = vmatprep.subr.mxu0 0.0
        %1985 = vmatpush1.msra.mxu0 0.0
        %1986 = vmatprep.subr.mxu0 0.0
        %1987 = vmatpush1.msra.mxu0 0.0
        %1988 = vmatprep.subr.mxu0 0.0
        %1989 = vmatpush1.msra.mxu0 0.0
        %1990 = vmatprep.subr.mxu0 0.0
        %1991 = vmatpush1.msra.mxu0 0.0
        %1992 = vmatprep.subr.mxu0 0.0
        %1993 = vmatpush1.msra.mxu0 0.0
        %1994 = vmatprep.subr.mxu0 0.0
        %1995 = vmatpush1.msra.mxu0 0.0
        %1996 = vmatprep.mubr.f32.mxu0 0.0
        %1997 = vmatmul.mubr.f32.gmra.mrb[0].mxu0 %v1683
        %v1998 = vpop.f32.mrb[0].mxu0
        %v1999 = vadd.f32 0.0, %v1998
        %v2000 = vpop.f32.mrb[0].mxu0
        %v2001 = vadd.f32 0.0, %v2000
        %2002 = vmatprep.mubr.f32.mxu0 0.0
        %2003 = vmatmul.mubr.f32.gmra.mrb[0].mxu0 %v1686
        %v2004 = vpop.f32.mrb[0].mxu0
        %v2005 = vadd.f32 0.0, %v2004
        %v2006 = vpop.f32.mrb[0].mxu0
        %v2007 = vadd.f32 0.0, %v2006
        %2008 = vmatprep.mubr.f32.mxu0 0.0
        %2009 = vmatmul.mubr.f32.gmra.mrb[0].mxu0 %v1689
        %v2010 = vpop.f32.mrb[0].mxu0
        %v2011 = vadd.f32 0.0, %v2010
        %v2012 = vpop.f32.mrb[0].mxu0
        %v2013 = vadd.f32 0.0, %v2012
        %2014 = vmatprep.mubr.f32.mxu0 0.0
        %2015 = vmatmul.mubr.f32.gmra.mrb[0].mxu0 %v1692
        %v2016 = vpop.f32.mrb[0].mxu0
        %v2017 = vadd.f32 0.0, %v2016
        %v2018 = vpop.f32.mrb[0].mxu0
        %v2019 = vadd.f32 0.0, %v2018
        %2020 = vmatprep.mubr.f32.mxu0 0.0
        %2021 = vmatmul.mubr.f32.gmra.mrb[0].mxu0 %v1695
        %v2022 = vpop.f32.mrb[0].mxu0
        %v2023 = vadd.f32 0.0, %v2022
        %v2024 = vpop.f32.mrb[0].mxu0
        %v2025 = vadd.f32 0.0, %v2024
        %2026 = vmatprep.mubr.f32.mxu0 0.0
        %2027 = vmatmul.mubr.f32.gmra.mrb[0].mxu0 %v1698
        %v2028 = vpop.f32.mrb[0].mxu0
        %v2029 = vadd.f32 0.0, %v2028
        %v2030 = vpop.f32.mrb[0].mxu0
        %v2031 = vadd.f32 0.0, %v2030
        %2032 = vmatprep.mubr.f32.mxu0 0.0
        %2033 = vmatmul.mubr.f32.gmra.mrb[0].mxu0 %v1701
        %v2034 = vpop.f32.mrb[0].mxu0
        %v2035 = vadd.f32 0.0, %v2034
        %v2036 = vpop.f32.mrb[0].mxu0
        %v2037 = vadd.f32 0.0, %v2036
        %2038 = vmatprep.mubr.f32.mxu0 0.0
        %2039 = vmatmul.mubr.f32.gmra.mrb[0].mxu0 %v1704
        %v2040 = vpop.f32.mrb[0].mxu0
        %v2041 = vadd.f32 0.0, %v2040
        %v2042 = vpop.f32.mrb[0].mxu0
        %v2043 = vadd.f32 0.0, %v2042
        %2044 = vdwg.mxu0
        %2045 = vmatprep.subr.mxu0 %v1592
        %2046 = vmatpush1.msra.mxu0 %v1591
        %2047 = vmatprep.subr.mxu0 %v1600
        %2048 = vmatpush1.msra.mxu0 %v1599
        %2049 = vmatprep.subr.mxu0 %v1608
        %2050 = vmatpush1.msra.mxu0 %v1607
        %2051 = vmatprep.subr.mxu0 %v1616
        %2052 = vmatpush1.msra.mxu0 %v1615
        %2053 = vmatprep.subr.mxu0 %v1624
        %2054 = vmatpush1.msra.mxu0 %v1623
        %2055 = vmatprep.subr.mxu0 %v1632
        %2056 = vmatpush1.msra.mxu0 %v1631
        %2057 = vmatprep.subr.mxu0 %v1640
        %2058 = vmatpush1.msra.mxu0 %v1639
        %2059 = vmatprep.subr.mxu0 %v1648
        %2060 = vmatpush1.msra.mxu0 %v1647
        %2061 = vmatprep.subr.mxu0 %v1656
        %2062 = vmatpush1.msra.mxu0 %v1655
        %2063 = vmatprep.subr.mxu0 %v1664
        %2064 = vmatpush1.msra.mxu0 %v1663
        %2065 = vmatprep.subr.mxu0 %v1672
        %2066 = vmatpush1.msra.mxu0 %v1671
        %2067 = vmatprep.subr.mxu0 %v1680
        %2068 = vmatpush1.msra.mxu0 %v1679
        %2069 = vmatprep.subr.mxu0 0.0
        %2070 = vmatpush1.msra.mxu0 0.0
        %2071 = vmatprep.subr.mxu0 0.0
        %2072 = vmatpush1.msra.mxu0 0.0
        %2073 = vmatprep.subr.mxu0 0.0
        %2074 = vmatpush1.msra.mxu0 0.0
        %2075 = vmatprep.subr.mxu0 0.0
        %2076 = vmatpush1.msra.mxu0 0.0
        %2077 = vmatprep.subr.mxu0 0.0
        %2078 = vmatpush1.msra.mxu0 0.0
        %2079 = vmatprep.subr.mxu0 0.0
        %2080 = vmatpush1.msra.mxu0 0.0
        %2081 = vmatprep.subr.mxu0 0.0
        %2082 = vmatpush1.msra.mxu0 0.0
        %2083 = vmatprep.subr.mxu0 0.0
        %2084 = vmatpush1.msra.mxu0 0.0
        %2085 = vmatprep.subr.mxu0 0.0
        %2086 = vmatpush1.msra.mxu0 0.0
        %2087 = vmatprep.subr.mxu0 0.0
        %2088 = vmatpush1.msra.mxu0 0.0
        %2089 = vmatprep.subr.mxu0 0.0
        %2090 = vmatpush1.msra.mxu0 0.0
        %2091 = vmatprep.subr.mxu0 0.0
        %2092 = vmatpush1.msra.mxu0 0.0
        %2093 = vmatprep.subr.mxu0 0.0
        %2094 = vmatpush1.msra.mxu0 0.0
        %2095 = vmatprep.subr.mxu0 0.0
        %2096 = vmatpush1.msra.mxu0 0.0
        %2097 = vmatprep.subr.mxu0 0.0
        %2098 = vmatpush1.msra.mxu0 0.0
        %2099 = vmatprep.subr.mxu0 0.0
        %2100 = vmatpush1.msra.mxu0 0.0
        %2101 = vmatprep.subr.mxu0 0.0
        %2102 = vmatpush1.msra.mxu0 0.0
        %2103 = vmatprep.subr.mxu0 0.0
        %2104 = vmatpush1.msra.mxu0 0.0
        %2105 = vmatprep.subr.mxu0 0.0
        %2106 = vmatpush1.msra.mxu0 0.0
        %2107 = vmatprep.subr.mxu0 0.0
        %2108 = vmatpush1.msra.mxu0 0.0
        %2109 = vmatprep.mubr.f32.mxu0 0.0
        %2110 = vmatmul.mubr.f32.gmra.mrb[0].mxu0 %v1683
        %v2111 = vpop.f32.mrb[0].mxu0
        %v2112 = vadd.f32 0.0, %v2111
        %v2113 = vpop.f32.mrb[0].mxu0
        %v2114 = vadd.f32 0.0, %v2113
        %2115 = vmatprep.mubr.f32.mxu0 0.0
        %2116 = vmatmul.mubr.f32.gmra.mrb[0].mxu0 %v1686
        %v2117 = vpop.f32.mrb[0].mxu0
        %v2118 = vadd.f32 0.0, %v2117
        %v2119 = vpop.f32.mrb[0].mxu0
        %v2120 = vadd.f32 0.0, %v2119
        %2121 = vmatprep.mubr.f32.mxu0 0.0
        %2122 = vmatmul.mubr.f32.gmra.mrb[0].mxu0 %v1689
        %v2123 = vpop.f32.mrb[0].mxu0
        %v2124 = vadd.f32 0.0, %v2123
        %v2125 = vpop.f32.mrb[0].mxu0
        %v2126 = vadd.f32 0.0, %v2125
        %2127 = vmatprep.mubr.f32.mxu0 0.0
        %2128 = vmatmul.mubr.f32.gmra.mrb[0].mxu0 %v1692
        %v2129 = vpop.f32.mrb[0].mxu0
        %v2130 = vadd.f32 0.0, %v2129
        %v2131 = vpop.f32.mrb[0].mxu0
        %v2132 = vadd.f32 0.0, %v2131
        %2133 = vmatprep.mubr.f32.mxu0 0.0
        %2134 = vmatmul.mubr.f32.gmra.mrb[0].mxu0 %v1695
        %v2135 = vpop.f32.mrb[0].mxu0
        %v2136 = vadd.f32 0.0, %v2135
        %v2137 = vpop.f32.mrb[0].mxu0
        %v2138 = vadd.f32 0.0, %v2137
        %2139 = vmatprep.mubr.f32.mxu0 0.0
        %2140 = vmatmul.mubr.f32.gmra.mrb[0].mxu0 %v1698
        %v2141 = vpop.f32.mrb[0].mxu0
        %v2142 = vadd.f32 0.0, %v2141
        %v2143 = vpop.f32.mrb[0].mxu0
        %v2144 = vadd.f32 0.0, %v2143
        %2145 = vmatprep.mubr.f32.mxu0 0.0
        %2146 = vmatmul.mubr.f32.gmra.mrb[0].mxu0 %v1701
        %v2147 = vpop.f32.mrb[0].mxu0
        %v2148 = vadd.f32 0.0, %v2147
        %v2149 = vpop.f32.mrb[0].mxu0
        %v2150 = vadd.f32 0.0, %v2149
        %2151 = vmatprep.mubr.f32.mxu0 0.0
        %2152 = vmatmul.mubr.f32.gmra.mrb[0].mxu0 %v1704
        %v2153 = vpop.f32.mrb[0].mxu0
        %v2154 = vadd.f32 0.0, %v2153
        %v2155 = vpop.f32.mrb[0].mxu0
        %v2156 = vadd.f32 0.0, %v2155
        %2157 = vdwg.mxu0
        %v2158 = vsub.f32 %v1797, %v1287
        %v2159 = vsub.f32 %v1799, %v1288
        %v2160 = vsub.f32 %v1910, %v1289
        %v2161 = vsub.f32 %v1912, %v1290
        %v2162 = vsub.f32 %v2023, %v1291
        %v2163 = vsub.f32 %v2025, %v1292
        %v2164 = vsub.f32 %v2136, %v1293
        %v2165 = vsub.f32 %v2138, %v1294
        %v2166 = vsub.f32 %v1803, %v1295
        %v2167 = vsub.f32 %v1805, %v1296
        %v2168 = vsub.f32 %v1916, %v1297
        %v2169 = vsub.f32 %v1918, %v1298
        %v2170 = vsub.f32 %v2029, %v1299
        %v2171 = vsub.f32 %v2031, %v1300
        %v2172 = vsub.f32 %v2142, %v1301
        %v2173 = vsub.f32 %v2144, %v1302
        %v2174 = vsub.f32 %v1809, %v1303
        %v2175 = vsub.f32 %v1811, %v1304
        %v2176 = vsub.f32 %v1922, %v1305
        %v2177 = vsub.f32 %v1924, %v1306
        %v2178 = vsub.f32 %v2035, %v1307
        %v2179 = vsub.f32 %v2037, %v1308
        %v2180 = vsub.f32 %v2148, %v1309
        %v2181 = vsub.f32 %v2150, %v1310
        %v2182 = vsub.f32 %v1815, %v1311
        %v2183 = vsub.f32 %v1817, %v1312
        %v2184 = vsub.f32 %v1928, %v1313
        %v2185 = vsub.f32 %v1930, %v1314
        %v2186 = vsub.f32 %v2041, %v1315
        %v2187 = vsub.f32 %v2043, %v1316
        %v2188 = vsub.f32 %v2154, %v1317
        %v2189 = vsub.f32 %v2156, %v1318
        %v2190 = vstv %s1118
        %v2191 = vmul.f32 %v2190, %v2158
        %v2192 = vmul.f32 %v2190, %v2159
        %v2193 = vmul.f32 %v2190, %v2160
        %v2194 = vmul.f32 %v2190, %v2161
        %v2195 = vmul.f32 %v2190, %v2162
        %v2196 = vmul.f32 %v2190, %v2163
        %v2197 = vmul.f32 %v2190, %v2164
        %v2198 = vmul.f32 %v2190, %v2165
        %v2199 = vmul.f32 %v2190, %v2166
        %v2200 = vmul.f32 %v2190, %v2167
        %v2201 = vmul.f32 %v2190, %v2168
        %v2202 = vmul.f32 %v2190, %v2169
        %v2203 = vmul.f32 %v2190, %v2170
        %v2204 = vmul.f32 %v2190, %v2171
        %v2205 = vmul.f32 %v2190, %v2172
        %v2206 = vmul.f32 %v2190, %v2173
        %v2207 = vmul.f32 %v2190, %v2174
        %v2208 = vmul.f32 %v2190, %v2175
        %v2209 = vmul.f32 %v2190, %v2176
        %v2210 = vmul.f32 %v2190, %v2177
        %v2211 = vmul.f32 %v2190, %v2178
        %v2212 = vmul.f32 %v2190, %v2179
        %v2213 = vmul.f32 %v2190, %v2180
        %v2214 = vmul.f32 %v2190, %v2181
        %v2215 = vmul.f32 %v2190, %v2182
        %v2216 = vmul.f32 %v2190, %v2183
        %v2217 = vmul.f32 %v2190, %v2184
        %v2218 = vmul.f32 %v2190, %v2185
        %v2219 = vmul.f32 %v2190, %v2186
        %v2220 = vmul.f32 %v2190, %v2187
        %v2221 = vmul.f32 %v2190, %v2188
        %v2222 = vmul.f32 %v2190, %v2189
        %v2223 = vadd.f32 %v1123, %v2191
        %v2224 = vadd.f32 %v1124, %v2192
        %v2225 = vadd.f32 %v1125, %v2193
        %v2226 = vadd.f32 %v1126, %v2194
        %v2227 = vadd.f32 %v1127, %v2195
        %v2228 = vadd.f32 %v1128, %v2196
        %v2229 = vadd.f32 %v1129, %v2197
        %v2230 = vadd.f32 %v1130, %v2198
        %v2231 = vadd.f32 %v1131, %v2199
        %v2232 = vadd.f32 %v1132, %v2200
        %v2233 = vadd.f32 %v1133, %v2201
        %v2234 = vadd.f32 %v1134, %v2202
        %v2235 = vadd.f32 %v1135, %v2203
        %v2236 = vadd.f32 %v1136, %v2204
        %v2237 = vadd.f32 %v1137, %v2205
        %v2238 = vadd.f32 %v1138, %v2206
        %v2239 = vadd.f32 %v1139, %v2207
        %v2240 = vadd.f32 %v1140, %v2208
        %v2241 = vadd.f32 %v1141, %v2209
        %v2242 = vadd.f32 %v1142, %v2210
        %v2243 = vadd.f32 %v1143, %v2211
        %v2244 = vadd.f32 %v1144, %v2212
        %v2245 = vadd.f32 %v1145, %v2213
        %v2246 = vadd.f32 %v1146, %v2214
        %v2247 = vadd.f32 %v1147, %v2215
        %v2248 = vadd.f32 %v1148, %v2216
        %v2249 = vadd.f32 %v1149, %v2217
        %v2250 = vadd.f32 %v1150, %v2218
        %v2251 = vadd.f32 %v1151, %v2219
        %v2252 = vadd.f32 %v1152, %v2220
        %v2253 = vadd.f32 %v1153, %v2221
        %v2254 = vadd.f32 %v1154, %v2222
        %2255 = vst [vmem:[#allocation2 + $0x200] sm:$0xff] %v2223
        %2256 = vst [vmem:[#allocation2 + $0x208] sm:$0xff] %v2224
        %2257 = vst [vmem:[#allocation2 + $0x210] sm:$0xff] %v2225
        %2258 = vst [vmem:[#allocation2 + $0x218] sm:$0xff] %v2226
        %2259 = vst [vmem:[#allocation2 + $0x220] sm:$0xff] %v2227
        %2260 = vst [vmem:[#allocation2 + $0x228] sm:$0xff] %v2228
        %2261 = vst [vmem:[#allocation2 + $0x230] sm:$0xff] %v2229
        %2262 = vst [vmem:[#allocation2 + $0x238] sm:$0xff] %v2230
        %2263 = vst [vmem:[#allocation2 + $0x240] sm:$0xff] %v2231
        %2264 = vst [vmem:[#allocation2 + $0x248] sm:$0xff] %v2232
        %2265 = vst [vmem:[#allocation2 + $0x250] sm:$0xff] %v2233
        %2266 = vst [vmem:[#allocation2 + $0x258] sm:$0xff] %v2234
        %2267 = vst [vmem:[#allocation2 + $0x260] sm:$0xff] %v2235
        %2268 = vst [vmem:[#allocation2 + $0x268] sm:$0xff] %v2236
        %2269 = vst [vmem:[#allocation2 + $0x270] sm:$0xff] %v2237
        %2270 = vst [vmem:[#allocation2 + $0x278] sm:$0xff] %v2238
        %2271 = vst [vmem:[#allocation2 + $0x280] sm:$0xff] %v2239
        %2272 = vst [vmem:[#allocation2 + $0x288] sm:$0xff] %v2240
        %2273 = vst [vmem:[#allocation2 + $0x290] sm:$0xff] %v2241
        %2274 = vst [vmem:[#allocation2 + $0x298] sm:$0xff] %v2242
        %2275 = vst [vmem:[#allocation2 + $0x2a0] sm:$0xff] %v2243
        %2276 = vst [vmem:[#allocation2 + $0x2a8] sm:$0xff] %v2244
        %2277 = vst [vmem:[#allocation2 + $0x2b0] sm:$0xff] %v2245
        %2278 = vst [vmem:[#allocation2 + $0x2b8] sm:$0xff] %v2246
        %2279 = vst [vmem:[#allocation2 + $0x2c0] sm:$0xff] %v2247
        %2280 = vst [vmem:[#allocation2 + $0x2c8] sm:$0xff] %v2248
        %2281 = vst [vmem:[#allocation2 + $0x2d0] sm:$0xff] %v2249
        %2282 = vst [vmem:[#allocation2 + $0x2d8] sm:$0xff] %v2250
        %2283 = vst [vmem:[#allocation2 + $0x2e0] sm:$0xff] %v2251
        %2284 = vst [vmem:[#allocation2 + $0x2e8] sm:$0xff] %v2252
        %2285 = vst [vmem:[#allocation2 + $0x2f0] sm:$0xff] %v2253
        %2286 = vst [vmem:[#allocation2 + $0x2f8] sm:$0xff] %v2254
        %v2287 = vsub.f32 %v1773, %v1416
        %v2288 = vsub.f32 %v1775, %v1417
        %v2289 = vsub.f32 %v1886, %v1418
        %v2290 = vsub.f32 %v1888, %v1419
        %v2291 = vsub.f32 %v1999, %v1420
        %v2292 = vsub.f32 %v2001, %v1421
        %v2293 = vsub.f32 %v2112, %v1422
        %v2294 = vsub.f32 %v2114, %v1423
        %v2295 = vsub.f32 %v1779, %v1424
        %v2296 = vsub.f32 %v1781, %v1425
        %v2297 = vsub.f32 %v1892, %v1426
        %v2298 = vsub.f32 %v1894, %v1427
        %v2299 = vsub.f32 %v2005, %v1428
        %v2300 = vsub.f32 %v2007, %v1429
        %v2301 = vsub.f32 %v2118, %v1430
        %v2302 = vsub.f32 %v2120, %v1431
        %v2303 = vsub.f32 %v1785, %v1432
        %v2304 = vsub.f32 %v1787, %v1433
        %v2305 = vsub.f32 %v1898, %v1434
        %v2306 = vsub.f32 %v1900, %v1435
        %v2307 = vsub.f32 %v2011, %v1436
        %v2308 = vsub.f32 %v2013, %v1437
        %v2309 = vsub.f32 %v2124, %v1438
        %v2310 = vsub.f32 %v2126, %v1439
        %v2311 = vsub.f32 %v1791, %v1440
        %v2312 = vsub.f32 %v1793, %v1441
        %v2313 = vsub.f32 %v1904, %v1442
        %v2314 = vsub.f32 %v1906, %v1443
        %v2315 = vsub.f32 %v2017, %v1444
        %v2316 = vsub.f32 %v2019, %v1445
        %v2317 = vsub.f32 %v2130, %v1446
        %v2318 = vsub.f32 %v2132, %v1447
        %v2319 = vmul.f32 %v1448, %v2287
        %v2320 = vmul.f32 %v1448, %v2288
        %v2321 = vmul.f32 %v1448, %v2289
        %v2322 = vmul.f32 %v1448, %v2290
        %v2323 = vmul.f32 %v1448, %v2291
        %v2324 = vmul.f32 %v1448, %v2292
        %v2325 = vmul.f32 %v1448, %v2293
        %v2326 = vmul.f32 %v1448, %v2294
        %v2327 = vmul.f32 %v1448, %v2295
        %v2328 = vmul.f32 %v1448, %v2296
        %v2329 = vmul.f32 %v1448, %v2297
        %v2330 = vmul.f32 %v1448, %v2298
        %v2331 = vmul.f32 %v1448, %v2299
        %v2332 = vmul.f32 %v1448, %v2300
        %v2333 = vmul.f32 %v1448, %v2301
        %v2334 = vmul.f32 %v1448, %v2302
        %v2335 = vmul.f32 %v1448, %v2303
        %v2336 = vmul.f32 %v1448, %v2304
        %v2337 = vmul.f32 %v1448, %v2305
        %v2338 = vmul.f32 %v1448, %v2306
        %v2339 = vmul.f32 %v1448, %v2307
        %v2340 = vmul.f32 %v1448, %v2308
        %v2341 = vmul.f32 %v1448, %v2309
        %v2342 = vmul.f32 %v1448, %v2310
        %v2343 = vmul.f32 %v1448, %v2311
        %v2344 = vmul.f32 %v1448, %v2312
        %v2345 = vmul.f32 %v1448, %v2313
        %v2346 = vmul.f32 %v1448, %v2314
        %v2347 = vmul.f32 %v1448, %v2315
        %v2348 = vmul.f32 %v1448, %v2316
        %v2349 = vmul.f32 %v1448, %v2317
        %v2350 = vmul.f32 %v1448, %v2318
        %v2351 = vadd.f32 %v485, %v2319
        %v2352 = vadd.f32 %v487, %v2320
        %v2353 = vadd.f32 %v670, %v2321
        %v2354 = vadd.f32 %v672, %v2322
        %v2355 = vadd.f32 %v855, %v2323
        %v2356 = vadd.f32 %v857, %v2324
        %v2357 = vadd.f32 %v1040, %v2325
        %v2358 = vadd.f32 %v1042, %v2326
        %v2359 = vadd.f32 %v491, %v2327
        %v2360 = vadd.f32 %v493, %v2328
        %v2361 = vadd.f32 %v676, %v2329
        %v2362 = vadd.f32 %v678, %v2330
        %v2363 = vadd.f32 %v861, %v2331
        %v2364 = vadd.f32 %v863, %v2332
        %v2365 = vadd.f32 %v1046, %v2333
        %v2366 = vadd.f32 %v1048, %v2334
        %v2367 = vadd.f32 %v497, %v2335
        %v2368 = vadd.f32 %v499, %v2336
        %v2369 = vadd.f32 %v682, %v2337
        %v2370 = vadd.f32 %v684, %v2338
        %v2371 = vadd.f32 %v867, %v2339
        %v2372 = vadd.f32 %v869, %v2340
        %v2373 = vadd.f32 %v1052, %v2341
        %v2374 = vadd.f32 %v1054, %v2342
        %v2375 = vadd.f32 %v503, %v2343
        %v2376 = vadd.f32 %v505, %v2344
        %v2377 = vadd.f32 %v688, %v2345
        %v2378 = vadd.f32 %v690, %v2346
        %v2379 = vadd.f32 %v873, %v2347
        %v2380 = vadd.f32 %v875, %v2348
        %v2381 = vadd.f32 %v1058, %v2349
        %v2382 = vadd.f32 %v1060, %v2350
        %s2383 = sld [smem:[#allocation4 + $0x2]]
        %s2384 = sld [smem:[#allocation4 + $0x82]]
        %s2385 = sld [smem:[#allocation4 + $0x102]]
        %s2386 = sld [smem:[#allocation4 + $0x182]]
        %s2387 = sld [smem:[#allocation4 + $0x202]]
        %v2388 = vld [vmem:[#allocation2 + $0x200] sm:$0xff]
        %v2389 = vld [vmem:[#allocation2 + $0x208] sm:$0xff]
        %v2390 = vld [vmem:[#allocation2 + $0x210] sm:$0xff]
        %v2391 = vld [vmem:[#allocation2 + $0x218] sm:$0xff]
        %v2392 = vld [vmem:[#allocation2 + $0x220] sm:$0xff]
        %v2393 = vld [vmem:[#allocation2 + $0x228] sm:$0xff]
        %v2394 = vld [vmem:[#allocation2 + $0x230] sm:$0xff]
        %v2395 = vld [vmem:[#allocation2 + $0x238] sm:$0xff]
        %v2396 = vld [vmem:[#allocation2 + $0x240] sm:$0xff]
        %v2397 = vld [vmem:[#allocation2 + $0x248] sm:$0xff]
        %v2398 = vld [vmem:[#allocation2 + $0x250] sm:$0xff]
        %v2399 = vld [vmem:[#allocation2 + $0x258] sm:$0xff]
        %v2400 = vld [vmem:[#allocation2 + $0x260] sm:$0xff]
        %v2401 = vld [vmem:[#allocation2 + $0x268] sm:$0xff]
        %v2402 = vld [vmem:[#allocation2 + $0x270] sm:$0xff]
        %v2403 = vld [vmem:[#allocation2 + $0x278] sm:$0xff]
        %v2404 = vld [vmem:[#allocation2 + $0x280] sm:$0xff]
        %v2405 = vld [vmem:[#allocation2 + $0x288] sm:$0xff]
        %v2406 = vld [vmem:[#allocation2 + $0x290] sm:$0xff]
        %v2407 = vld [vmem:[#allocation2 + $0x298] sm:$0xff]
        %v2408 = vld [vmem:[#allocation2 + $0x2a0] sm:$0xff]
        %v2409 = vld [vmem:[#allocation2 + $0x2a8] sm:$0xff]
        %v2410 = vld [vmem:[#allocation2 + $0x2b0] sm:$0xff]
        %v2411 = vld [vmem:[#allocation2 + $0x2b8] sm:$0xff]
        %v2412 = vld [vmem:[#allocation2 + $0x2c0] sm:$0xff]
        %v2413 = vld [vmem:[#allocation2 + $0x2c8] sm:$0xff]
        %v2414 = vld [vmem:[#allocation2 + $0x2d0] sm:$0xff]
        %v2415 = vld [vmem:[#allocation2 + $0x2d8] sm:$0xff]
        %v2416 = vld [vmem:[#allocation2 + $0x2e0] sm:$0xff]
        %v2417 = vld [vmem:[#allocation2 + $0x2e8] sm:$0xff]
        %v2418 = vld [vmem:[#allocation2 + $0x2f0] sm:$0xff]
        %v2419 = vld [vmem:[#allocation2 + $0x2f8] sm:$0xff]
        %v2420 = vstv %s2385
        %v2421 = vmul.f32 %v2388, %v2420
        %v2422 = vmul.f32 %v2389, %v2420
        %v2423 = vmul.f32 %v2390, %v2420
        %v2424 = vmul.f32 %v2391, %v2420
        %v2425 = vmul.f32 %v2392, %v2420
        %v2426 = vmul.f32 %v2393, %v2420
        %v2427 = vmul.f32 %v2394, %v2420
        %v2428 = vmul.f32 %v2395, %v2420
        %v2429 = vmul.f32 %v2396, %v2420
        %v2430 = vmul.f32 %v2397, %v2420
        %v2431 = vmul.f32 %v2398, %v2420
        %v2432 = vmul.f32 %v2399, %v2420
        %v2433 = vmul.f32 %v2400, %v2420
        %v2434 = vmul.f32 %v2401, %v2420
        %v2435 = vmul.f32 %v2402, %v2420
        %v2436 = vmul.f32 %v2403, %v2420
        %v2437 = vmul.f32 %v2404, %v2420
        %v2438 = vmul.f32 %v2405, %v2420
        %v2439 = vmul.f32 %v2406, %v2420
        %v2440 = vmul.f32 %v2407, %v2420
        %v2441 = vmul.f32 %v2408, %v2420
        %v2442 = vmul.f32 %v2409, %v2420
        %v2443 = vmul.f32 %v2410, %v2420
        %v2444 = vmul.f32 %v2411, %v2420
        %v2445 = vmul.f32 %v2412, %v2420
        %v2446 = vmul.f32 %v2413, %v2420
        %v2447 = vmul.f32 %v2414, %v2420
        %v2448 = vmul.f32 %v2415, %v2420
        %v2449 = vmul.f32 %v2416, %v2420
        %v2450 = vmul.f32 %v2417, %v2420
        %v2451 = vmul.f32 %v2418, %v2420
        %v2452 = vmul.f32 %v2419, %v2420
        %v2453 = vadd.f32 %v1797, %v2421
        %v2454 = vadd.f32 %v1799, %v2422
        %v2455 = vadd.f32 %v1910, %v2423
        %v2456 = vadd.f32 %v1912, %v2424
        %v2457 = vadd.f32 %v2023, %v2425
        %v2458 = vadd.f32 %v2025, %v2426
        %v2459 = vadd.f32 %v2136, %v2427
        %v2460 = vadd.f32 %v2138, %v2428
        %v2461 = vadd.f32 %v1803, %v2429
        %v2462 = vadd.f32 %v1805, %v2430
        %v2463 = vadd.f32 %v1916, %v2431
        %v2464 = vadd.f32 %v1918, %v2432
        %v2465 = vadd.f32 %v2029, %v2433
        %v2466 = vadd.f32 %v2031, %v2434
        %v2467 = vadd.f32 %v2142, %v2435
        %v2468 = vadd.f32 %v2144, %v2436
        %v2469 = vadd.f32 %v1809, %v2437
        %v2470 = vadd.f32 %v1811, %v2438
        %v2471 = vadd.f32 %v1922, %v2439
        %v2472 = vadd.f32 %v1924, %v2440
        %v2473 = vadd.f32 %v2035, %v2441
        %v2474 = vadd.f32 %v2037, %v2442
        %v2475 = vadd.f32 %v2148, %v2443
        %v2476 = vadd.f32 %v2150, %v2444
        %v2477 = vadd.f32 %v1815, %v2445
        %v2478 = vadd.f32 %v1817, %v2446
        %v2479 = vadd.f32 %v1928, %v2447
        %v2480 = vadd.f32 %v1930, %v2448
        %v2481 = vadd.f32 %v2041, %v2449
        %v2482 = vadd.f32 %v2043, %v2450
        %v2483 = vadd.f32 %v2154, %v2451
        %v2484 = vadd.f32 %v2156, %v2452
        %s2485 = ssub.f32 0.0, %s2387
        %v2486 = vstv %s2485
        %v2487 = vmax.f32 %v2486, %v2453
        %v2488 = vmax.f32 %v2486, %v2454
        %v2489 = vmax.f32 %v2486, %v2455
        %v2490 = vmax.f32 %v2486, %v2456
        %v2491 = vmax.f32 %v2486, %v2457
        %v2492 = vmax.f32 %v2486, %v2458
        %v2493 = vmax.f32 %v2486, %v2459
        %v2494 = vmax.f32 %v2486, %v2460
        %v2495 = vmax.f32 %v2486, %v2461
        %v2496 = vmax.f32 %v2486, %v2462
        %v2497 = vmax.f32 %v2486, %v2463
        %v2498 = vmax.f32 %v2486, %v2464
        %v2499 = vmax.f32 %v2486, %v2465
        %v2500 = vmax.f32 %v2486, %v2466
        %v2501 = vmax.f32 %v2486, %v2467
        %v2502 = vmax.f32 %v2486, %v2468
        %v2503 = vmax.f32 %v2486, %v2469
        %v2504 = vmax.f32 %v2486, %v2470
        %v2505 = vmax.f32 %v2486, %v2471
        %v2506 = vmax.f32 %v2486, %v2472
        %v2507 = vmax.f32 %v2486, %v2473
        %v2508 = vmax.f32 %v2486, %v2474
        %v2509 = vmax.f32 %v2486, %v2475
        %v2510 = vmax.f32 %v2486, %v2476
        %v2511 = vmax.f32 %v2486, %v2477
        %v2512 = vmax.f32 %v2486, %v2478
        %v2513 = vmax.f32 %v2486, %v2479
        %v2514 = vmax.f32 %v2486, %v2480
        %v2515 = vmax.f32 %v2486, %v2481
        %v2516 = vmax.f32 %v2486, %v2482
        %v2517 = vmax.f32 %v2486, %v2483
        %v2518 = vmax.f32 %v2486, %v2484
        %v2519 = vstv %s2387
        %v2520 = vmin.f32 %v2519, %v2487
        %v2521 = vmin.f32 %v2519, %v2488
        %v2522 = vmin.f32 %v2519, %v2489
        %v2523 = vmin.f32 %v2519, %v2490
        %v2524 = vmin.f32 %v2519, %v2491
        %v2525 = vmin.f32 %v2519, %v2492
        %v2526 = vmin.f32 %v2519, %v2493
        %v2527 = vmin.f32 %v2519, %v2494
        %v2528 = vmin.f32 %v2519, %v2495
        %v2529 = vmin.f32 %v2519, %v2496
        %v2530 = vmin.f32 %v2519, %v2497
        %v2531 = vmin.f32 %v2519, %v2498
        %v2532 = vmin.f32 %v2519, %v2499
        %v2533 = vmin.f32 %v2519, %v2500
        %v2534 = vmin.f32 %v2519, %v2501
        %v2535 = vmin.f32 %v2519, %v2502
        %v2536 = vmin.f32 %v2519, %v2503
        %v2537 = vmin.f32 %v2519, %v2504
        %v2538 = vmin.f32 %v2519, %v2505
        %v2539 = vmin.f32 %v2519, %v2506
        %v2540 = vmin.f32 %v2519, %v2507
        %v2541 = vmin.f32 %v2519, %v2508
        %v2542 = vmin.f32 %v2519, %v2509
        %v2543 = vmin.f32 %v2519, %v2510
        %v2544 = vmin.f32 %v2519, %v2511
        %v2545 = vmin.f32 %v2519, %v2512
        %v2546 = vmin.f32 %v2519, %v2513
        %v2547 = vmin.f32 %v2519, %v2514
        %v2548 = vmin.f32 %v2519, %v2515
        %v2549 = vmin.f32 %v2519, %v2516
        %v2550 = vmin.f32 %v2519, %v2517
        %v2551 = vmin.f32 %v2519, %v2518
        %v2552 = vsub.f32 %v2453, %v2520
        %v2553 = vsub.f32 %v2454, %v2521
        %v2554 = vsub.f32 %v2455, %v2522
        %v2555 = vsub.f32 %v2456, %v2523
        %v2556 = vsub.f32 %v2457, %v2524
        %v2557 = vsub.f32 %v2458, %v2525
        %v2558 = vsub.f32 %v2459, %v2526
        %v2559 = vsub.f32 %v2460, %v2527
        %v2560 = vsub.f32 %v2461, %v2528
        %v2561 = vsub.f32 %v2462, %v2529
        %v2562 = vsub.f32 %v2463, %v2530
        %v2563 = vsub.f32 %v2464, %v2531
        %v2564 = vsub.f32 %v2465, %v2532
        %v2565 = vsub.f32 %v2466, %v2533
        %v2566 = vsub.f32 %v2467, %v2534
        %v2567 = vsub.f32 %v2468, %v2535
        %v2568 = vsub.f32 %v2469, %v2536
        %v2569 = vsub.f32 %v2470, %v2537
        %v2570 = vsub.f32 %v2471, %v2538
        %v2571 = vsub.f32 %v2472, %v2539
        %v2572 = vsub.f32 %v2473, %v2540
        %v2573 = vsub.f32 %v2474, %v2541
        %v2574 = vsub.f32 %v2475, %v2542
        %v2575 = vsub.f32 %v2476, %v2543
        %v2576 = vsub.f32 %v2477, %v2544
        %v2577 = vsub.f32 %v2478, %v2545
        %v2578 = vsub.f32 %v2479, %v2546
        %v2579 = vsub.f32 %v2480, %v2547
        %v2580 = vsub.f32 %v2481, %v2548
        %v2581 = vsub.f32 %v2482, %v2549
        %v2582 = vsub.f32 %v2483, %v2550
        %v2583 = vsub.f32 %v2484, %v2551
        %2584 = vst [vmem:[#allocation2 + $0x100] sm:$0xff] %v2552
        %2585 = vst [vmem:[#allocation2 + $0x108] sm:$0xff] %v2553
        %2586 = vst [vmem:[#allocation2 + $0x110] sm:$0xff] %v2554
        %2587 = vst [vmem:[#allocation2 + $0x118] sm:$0xff] %v2555
        %2588 = vst [vmem:[#allocation2 + $0x120] sm:$0xff] %v2556
        %2589 = vst [vmem:[#allocation2 + $0x128] sm:$0xff] %v2557
        %2590 = vst [vmem:[#allocation2 + $0x130] sm:$0xff] %v2558
        %2591 = vst [vmem:[#allocation2 + $0x138] sm:$0xff] %v2559
        %2592 = vst [vmem:[#allocation2 + $0x140] sm:$0xff] %v2560
        %2593 = vst [vmem:[#allocation2 + $0x148] sm:$0xff] %v2561
        %2594 = vst [vmem:[#allocation2 + $0x150] sm:$0xff] %v2562
        %2595 = vst [vmem:[#allocation2 + $0x158] sm:$0xff] %v2563
        %2596 = vst [vmem:[#allocation2 + $0x160] sm:$0xff] %v2564
        %2597 = vst [vmem:[#allocation2 + $0x168] sm:$0xff] %v2565
        %2598 = vst [vmem:[#allocation2 + $0x170] sm:$0xff] %v2566
        %2599 = vst [vmem:[#allocation2 + $0x178] sm:$0xff] %v2567
        %2600 = vst [vmem:[#allocation2 + $0x180] sm:$0xff] %v2568
        %2601 = vst [vmem:[#allocation2 + $0x188] sm:$0xff] %v2569
        %2602 = vst [vmem:[#allocation2 + $0x190] sm:$0xff] %v2570
        %2603 = vst [vmem:[#allocation2 + $0x198] sm:$0xff] %v2571
        %2604 = vst [vmem:[#allocation2 + $0x1a0] sm:$0xff] %v2572
        %2605 = vst [vmem:[#allocation2 + $0x1a8] sm:$0xff] %v2573
        %2606 = vst [vmem:[#allocation2 + $0x1b0] sm:$0xff] %v2574
        %2607 = vst [vmem:[#allocation2 + $0x1b8] sm:$0xff] %v2575
        %2608 = vst [vmem:[#allocation2 + $0x1c0] sm:$0xff] %v2576
        %2609 = vst [vmem:[#allocation2 + $0x1c8] sm:$0xff] %v2577
        %2610 = vst [vmem:[#allocation2 + $0x1d0] sm:$0xff] %v2578
        %2611 = vst [vmem:[#allocation2 + $0x1d8] sm:$0xff] %v2579
        %2612 = vst [vmem:[#allocation2 + $0x1e0] sm:$0xff] %v2580
        %2613 = vst [vmem:[#allocation2 + $0x1e8] sm:$0xff] %v2581
        %2614 = vst [vmem:[#allocation2 + $0x1f0] sm:$0xff] %v2582
        %2615 = vst [vmem:[#allocation2 + $0x1f8] sm:$0xff] %v2583
        %v2616 = vstv %s2386
        %v2617 = vmul.f32 %v2351, %v2616
        %v2618 = vmul.f32 %v2352, %v2616
        %v2619 = vmul.f32 %v2353, %v2616
        %v2620 = vmul.f32 %v2354, %v2616
        %v2621 = vmul.f32 %v2355, %v2616
        %v2622 = vmul.f32 %v2356, %v2616
        %v2623 = vmul.f32 %v2357, %v2616
        %v2624 = vmul.f32 %v2358, %v2616
        %v2625 = vmul.f32 %v2359, %v2616
        %v2626 = vmul.f32 %v2360, %v2616
        %v2627 = vmul.f32 %v2361, %v2616
        %v2628 = vmul.f32 %v2362, %v2616
        %v2629 = vmul.f32 %v2363, %v2616
        %v2630 = vmul.f32 %v2364, %v2616
        %v2631 = vmul.f32 %v2365, %v2616
        %v2632 = vmul.f32 %v2366, %v2616
        %v2633 = vmul.f32 %v2367, %v2616
        %v2634 = vmul.f32 %v2368, %v2616
        %v2635 = vmul.f32 %v2369, %v2616
        %v2636 = vmul.f32 %v2370, %v2616
        %v2637 = vmul.f32 %v2371, %v2616
        %v2638 = vmul.f32 %v2372, %v2616
        %v2639 = vmul.f32 %v2373, %v2616
        %v2640 = vmul.f32 %v2374, %v2616
        %v2641 = vmul.f32 %v2375, %v2616
        %v2642 = vmul.f32 %v2376, %v2616
        %v2643 = vmul.f32 %v2377, %v2616
        %v2644 = vmul.f32 %v2378, %v2616
        %v2645 = vmul.f32 %v2379, %v2616
        %v2646 = vmul.f32 %v2380, %v2616
        %v2647 = vmul.f32 %v2381, %v2616
        %v2648 = vmul.f32 %v2382, %v2616
        %v2649 = vadd.f32 %v1773, %v2617
        %v2650 = vadd.f32 %v1775, %v2618
        %v2651 = vadd.f32 %v1886, %v2619
        %v2652 = vadd.f32 %v1888, %v2620
        %v2653 = vadd.f32 %v1999, %v2621
        %v2654 = vadd.f32 %v2001, %v2622
        %v2655 = vadd.f32 %v2112, %v2623
        %v2656 = vadd.f32 %v2114, %v2624
        %v2657 = vadd.f32 %v1779, %v2625
        %v2658 = vadd.f32 %v1781, %v2626
        %v2659 = vadd.f32 %v1892, %v2627
        %v2660 = vadd.f32 %v1894, %v2628
        %v2661 = vadd.f32 %v2005, %v2629
        %v2662 = vadd.f32 %v2007, %v2630
        %v2663 = vadd.f32 %v2118, %v2631
        %v2664 = vadd.f32 %v2120, %v2632
        %v2665 = vadd.f32 %v1785, %v2633
        %v2666 = vadd.f32 %v1787, %v2634
        %v2667 = vadd.f32 %v1898, %v2635
        %v2668 = vadd.f32 %v1900, %v2636
        %v2669 = vadd.f32 %v2011, %v2637
        %v2670 = vadd.f32 %v2013, %v2638
        %v2671 = vadd.f32 %v2124, %v2639
        %v2672 = vadd.f32 %v2126, %v2640
        %v2673 = vadd.f32 %v1791, %v2641
        %v2674 = vadd.f32 %v1793, %v2642
        %v2675 = vadd.f32 %v1904, %v2643
        %v2676 = vadd.f32 %v1906, %v2644
        %v2677 = vadd.f32 %v2017, %v2645
        %v2678 = vadd.f32 %v2019, %v2646
        %v2679 = vadd.f32 %v2130, %v2647
        %v2680 = vadd.f32 %v2132, %v2648
        %v2681 = vmax.f32 %v2649, 0.0
        %v2682 = vmax.f32 %v2650, 0.0
        %v2683 = vmax.f32 %v2651, 0.0
        %v2684 = vmax.f32 %v2652, 0.0
        %v2685 = vmax.f32 %v2653, 0.0
        %v2686 = vmax.f32 %v2654, 0.0
        %v2687 = vmax.f32 %v2655, 0.0
        %v2688 = vmax.f32 %v2656, 0.0
        %v2689 = vmax.f32 %v2657, 0.0
        %v2690 = vmax.f32 %v2658, 0.0
        %v2691 = vmax.f32 %v2659, 0.0
        %v2692 = vmax.f32 %v2660, 0.0
        %v2693 = vmax.f32 %v2661, 0.0
        %v2694 = vmax.f32 %v2662, 0.0
        %v2695 = vmax.f32 %v2663, 0.0
        %v2696 = vmax.f32 %v2664, 0.0
        %v2697 = vmax.f32 %v2665, 0.0
        %v2698 = vmax.f32 %v2666, 0.0
        %v2699 = vmax.f32 %v2667, 0.0
        %v2700 = vmax.f32 %v2668, 0.0
        %v2701 = vmax.f32 %v2669, 0.0
        %v2702 = vmax.f32 %v2670, 0.0
        %v2703 = vmax.f32 %v2671, 0.0
        %v2704 = vmax.f32 %v2672, 0.0
        %v2705 = vmax.f32 %v2673, 0.0
        %v2706 = vmax.f32 %v2674, 0.0
        %v2707 = vmax.f32 %v2675, 0.0
        %v2708 = vmax.f32 %v2676, 0.0
        %v2709 = vmax.f32 %v2677, 0.0
        %v2710 = vmax.f32 %v2678, 0.0
        %v2711 = vmax.f32 %v2679, 0.0
        %v2712 = vmax.f32 %v2680, 0.0
        %v2713 = vstv %s2384
        %v2714 = vmul.f32 %v2713, %v2681
        %v2715 = vmul.f32 %v2713, %v2682
        %v2716 = vmul.f32 %v2713, %v2683
        %v2717 = vmul.f32 %v2713, %v2684
        %v2718 = vmul.f32 %v2713, %v2685
        %v2719 = vmul.f32 %v2713, %v2686
        %v2720 = vmul.f32 %v2713, %v2687
        %v2721 = vmul.f32 %v2713, %v2688
        %v2722 = vmul.f32 %v2713, %v2689
        %v2723 = vmul.f32 %v2713, %v2690
        %v2724 = vmul.f32 %v2713, %v2691
        %v2725 = vmul.f32 %v2713, %v2692
        %v2726 = vmul.f32 %v2713, %v2693
        %v2727 = vmul.f32 %v2713, %v2694
        %v2728 = vmul.f32 %v2713, %v2695
        %v2729 = vmul.f32 %v2713, %v2696
        %v2730 = vmul.f32 %v2713, %v2697
        %v2731 = vmul.f32 %v2713, %v2698
        %v2732 = vmul.f32 %v2713, %v2699
        %v2733 = vmul.f32 %v2713, %v2700
        %v2734 = vmul.f32 %v2713, %v2701
        %v2735 = vmul.f32 %v2713, %v2702
        %v2736 = vmul.f32 %v2713, %v2703
        %v2737 = vmul.f32 %v2713, %v2704
        %v2738 = vmul.f32 %v2713, %v2705
        %v2739 = vmul.f32 %v2713, %v2706
        %v2740 = vmul.f32 %v2713, %v2707
        %v2741 = vmul.f32 %v2713, %v2708
        %v2742 = vmul.f32 %v2713, %v2709
        %v2743 = vmul.f32 %v2713, %v2710
        %v2744 = vmul.f32 %v2713, %v2711
        %v2745 = vmul.f32 %v2713, %v2712
        %v2746 = vadd.f32 %v413, %v2714
        %v2747 = vadd.f32 %v415, %v2715
        %v2748 = vadd.f32 %v598, %v2716
        %v2749 = vadd.f32 %v600, %v2717
        %v2750 = vadd.f32 %v783, %v2718
        %v2751 = vadd.f32 %v785, %v2719
        %v2752 = vadd.f32 %v968, %v2720
        %v2753 = vadd.f32 %v970, %v2721
        %v2754 = vadd.f32 %v419, %v2722
        %v2755 = vadd.f32 %v421, %v2723
        %v2756 = vadd.f32 %v604, %v2724
        %v2757 = vadd.f32 %v606, %v2725
        %v2758 = vadd.f32 %v789, %v2726
        %v2759 = vadd.f32 %v791, %v2727
        %v2760 = vadd.f32 %v974, %v2728
        %v2761 = vadd.f32 %v976, %v2729
        %v2762 = vadd.f32 %v425, %v2730
        %v2763 = vadd.f32 %v427, %v2731
        %v2764 = vadd.f32 %v610, %v2732
        %v2765 = vadd.f32 %v612, %v2733
        %v2766 = vadd.f32 %v795, %v2734
        %v2767 = vadd.f32 %v797, %v2735
        %v2768 = vadd.f32 %v980, %v2736
        %v2769 = vadd.f32 %v982, %v2737
        %v2770 = vadd.f32 %v431, %v2738
        %v2771 = vadd.f32 %v433, %v2739
        %v2772 = vadd.f32 %v616, %v2740
        %v2773 = vadd.f32 %v618, %v2741
        %v2774 = vadd.f32 %v801, %v2742
        %v2775 = vadd.f32 %v803, %v2743
        %v2776 = vadd.f32 %v986, %v2744
        %v2777 = vadd.f32 %v988, %v2745
        %v2778 = vsub.f32 %v2746, %v2351
        %v2779 = vsub.f32 %v2747, %v2352
        %v2780 = vsub.f32 %v2748, %v2353
        %v2781 = vsub.f32 %v2749, %v2354
        %v2782 = vsub.f32 %v2750, %v2355
        %v2783 = vsub.f32 %v2751, %v2356
        %v2784 = vsub.f32 %v2752, %v2357
        %v2785 = vsub.f32 %v2753, %v2358
        %v2786 = vsub.f32 %v2754, %v2359
        %v2787 = vsub.f32 %v2755, %v2360
        %v2788 = vsub.f32 %v2756, %v2361
        %v2789 = vsub.f32 %v2757, %v2362
        %v2790 = vsub.f32 %v2758, %v2363
        %v2791 = vsub.f32 %v2759, %v2364
        %v2792 = vsub.f32 %v2760, %v2365
        %v2793 = vsub.f32 %v2761, %v2366
        %v2794 = vsub.f32 %v2762, %v2367
        %v2795 = vsub.f32 %v2763, %v2368
        %v2796 = vsub.f32 %v2764, %v2369
        %v2797 = vsub.f32 %v2765, %v2370
        %v2798 = vsub.f32 %v2766, %v2371
        %v2799 = vsub.f32 %v2767, %v2372
        %v2800 = vsub.f32 %v2768, %v2373
        %v2801 = vsub.f32 %v2769, %v2374
        %v2802 = vsub.f32 %v2770, %v2375
        %v2803 = vsub.f32 %v2771, %v2376
        %v2804 = vsub.f32 %v2772, %v2377
        %v2805 = vsub.f32 %v2773, %v2378
        %v2806 = vsub.f32 %v2774, %v2379
        %v2807 = vsub.f32 %v2775, %v2380
        %v2808 = vsub.f32 %v2776, %v2381
        %v2809 = vsub.f32 %v2777, %v2382
        %2810 = vst [vmem:[#allocation2] sm:$0xff] %v2778
        %2811 = vst [vmem:[#allocation2 + $0x8] sm:$0xff] %v2779
        %2812 = vst [vmem:[#allocation2 + $0x10] sm:$0xff] %v2780
        %2813 = vst [vmem:[#allocation2 + $0x18] sm:$0xff] %v2781
        %2814 = vst [vmem:[#allocation2 + $0x20] sm:$0xff] %v2782
        %2815 = vst [vmem:[#allocation2 + $0x28] sm:$0xff] %v2783
        %2816 = vst [vmem:[#allocation2 + $0x30] sm:$0xff] %v2784
        %2817 = vst [vmem:[#allocation2 + $0x38] sm:$0xff] %v2785
        %2818 = vst [vmem:[#allocation2 + $0x40] sm:$0xff] %v2786
        %2819 = vst [vmem:[#allocation2 + $0x48] sm:$0xff] %v2787
        %2820 = vst [vmem:[#allocation2 + $0x50] sm:$0xff] %v2788
        %2821 = vst [vmem:[#allocation2 + $0x58] sm:$0xff] %v2789
        %2822 = vst [vmem:[#allocation2 + $0x60] sm:$0xff] %v2790
        %2823 = vst [vmem:[#allocation2 + $0x68] sm:$0xff] %v2791
        %2824 = vst [vmem:[#allocation2 + $0x70] sm:$0xff] %v2792
        %2825 = vst [vmem:[#allocation2 + $0x78] sm:$0xff] %v2793
        %2826 = vst [vmem:[#allocation2 + $0x80] sm:$0xff] %v2794
        %2827 = vst [vmem:[#allocation2 + $0x88] sm:$0xff] %v2795
        %2828 = vst [vmem:[#allocation2 + $0x90] sm:$0xff] %v2796
        %2829 = vst [vmem:[#allocation2 + $0x98] sm:$0xff] %v2797
        %2830 = vst [vmem:[#allocation2 + $0xa0] sm:$0xff] %v2798
        %2831 = vst [vmem:[#allocation2 + $0xa8] sm:$0xff] %v2799
        %2832 = vst [vmem:[#allocation2 + $0xb0] sm:$0xff] %v2800
        %2833 = vst [vmem:[#allocation2 + $0xb8] sm:$0xff] %v2801
        %2834 = vst [vmem:[#allocation2 + $0xc0] sm:$0xff] %v2802
        %2835 = vst [vmem:[#allocation2 + $0xc8] sm:$0xff] %v2803
        %2836 = vst [vmem:[#allocation2 + $0xd0] sm:$0xff] %v2804
        %2837 = vst [vmem:[#allocation2 + $0xd8] sm:$0xff] %v2805
        %2838 = vst [vmem:[#allocation2 + $0xe0] sm:$0xff] %v2806
        %2839 = vst [vmem:[#allocation2 + $0xe8] sm:$0xff] %v2807
        %2840 = vst [vmem:[#allocation2 + $0xf0] sm:$0xff] %v2808
        %2841 = vst [vmem:[#allocation2 + $0xf8] sm:$0xff] %v2809
        %s2842 = scalar_lea.vmem %s3, 64
        %v2843 = vld [vmem:[%s2842] sm:$0xff]
        %v2844 = vld [vmem:[%s2842 + $0x8] sm:$0xff]
        %v2845 = vld [vmem:[%s2842 + $0x10] sm:$0xff]
        %v2846 = vld [vmem:[%s2842 + $0x18] sm:$0xff]
        %v2847 = vld [vmem:[%s2842 + $0x20] sm:$0xff]
        %v2848 = vld [vmem:[%s2842 + $0x28] sm:$0xff]
        %v2849 = vld [vmem:[%s2842 + $0x30] sm:$0xff]
        %v2850 = vld [vmem:[%s2842 + $0x38] sm:$0xff]
        %v2851 = vld [vmem:[#allocation2] sm:$0xff]
        %v2852 = vld [vmem:[#allocation2 + $0x8] sm:$0xff]
        %v2853 = vld [vmem:[#allocation2 + $0x10] sm:$0xff]
        %v2854 = vld [vmem:[#allocation2 + $0x18] sm:$0xff]
        %v2855 = vld [vmem:[#allocation2 + $0x20] sm:$0xff]
        %v2856 = vld [vmem:[#allocation2 + $0x28] sm:$0xff]
        %v2857 = vld [vmem:[#allocation2 + $0x30] sm:$0xff]
        %v2858 = vld [vmem:[#allocation2 + $0x38] sm:$0xff]
        %v2859 = vld [vmem:[#allocation2 + $0x40] sm:$0xff]
        %v2860 = vld [vmem:[#allocation2 + $0x48] sm:$0xff]
        %v2861 = vld [vmem:[#allocation2 + $0x50] sm:$0xff]
        %v2862 = vld [vmem:[#allocation2 + $0x58] sm:$0xff]
        %v2863 = vld [vmem:[#allocation2 + $0x60] sm:$0xff]
        %v2864 = vld [vmem:[#allocation2 + $0x68] sm:$0xff]
        %v2865 = vld [vmem:[#allocation2 + $0x70] sm:$0xff]
        %v2866 = vld [vmem:[#allocation2 + $0x78] sm:$0xff]
        %v2867 = vld [vmem:[#allocation2 + $0x80] sm:$0xff]
        %v2868 = vld [vmem:[#allocation2 + $0x88] sm:$0xff]
        %v2869 = vld [vmem:[#allocation2 + $0x90] sm:$0xff]
        %v2870 = vld [vmem:[#allocation2 + $0x98] sm:$0xff]
        %v2871 = vld [vmem:[#allocation2 + $0xa0] sm:$0xff]
        %v2872 = vld [vmem:[#allocation2 + $0xa8] sm:$0xff]
        %v2873 = vld [vmem:[#allocation2 + $0xb0] sm:$0xff]
        %v2874 = vld [vmem:[#allocation2 + $0xb8] sm:$0xff]
        %v2875 = vld [vmem:[#allocation2 + $0xc0] sm:$0xff]
        %v2876 = vld [vmem:[#allocation2 + $0xc8] sm:$0xff]
        %v2877 = vld [vmem:[#allocation2 + $0xd0] sm:$0xff]
        %v2878 = vld [vmem:[#allocation2 + $0xd8] sm:$0xff]
        %v2879 = vld [vmem:[#allocation2 + $0xe0] sm:$0xff]
        %v2880 = vld [vmem:[#allocation2 + $0xe8] sm:$0xff]
        %v2881 = vld [vmem:[#allocation2 + $0xf0] sm:$0xff]
        %v2882 = vld [vmem:[#allocation2 + $0xf8] sm:$0xff]
        %v2883 = vld [vmem:[#allocation2 + $0x100] sm:$0xff]
        %v2884 = vld [vmem:[#allocation2 + $0x108] sm:$0xff]
        %v2885 = vld [vmem:[#allocation2 + $0x110] sm:$0xff]
        %v2886 = vld [vmem:[#allocation2 + $0x118] sm:$0xff]
        %v2887 = vld [vmem:[#allocation2 + $0x120] sm:$0xff]
        %v2888 = vld [vmem:[#allocation2 + $0x128] sm:$0xff]
        %v2889 = vld [vmem:[#allocation2 + $0x130] sm:$0xff]
        %v2890 = vld [vmem:[#allocation2 + $0x138] sm:$0xff]
        %v2891 = vld [vmem:[#allocation2 + $0x140] sm:$0xff]
        %v2892 = vld [vmem:[#allocation2 + $0x148] sm:$0xff]
        %v2893 = vld [vmem:[#allocation2 + $0x150] sm:$0xff]
        %v2894 = vld [vmem:[#allocation2 + $0x158] sm:$0xff]
        %v2895 = vld [vmem:[#allocation2 + $0x160] sm:$0xff]
        %v2896 = vld [vmem:[#allocation2 + $0x168] sm:$0xff]
        %v2897 = vld [vmem:[#allocation2 + $0x170] sm:$0xff]
        %v2898 = vld [vmem:[#allocation2 + $0x178] sm:$0xff]
        %v2899 = vld [vmem:[#allocation2 + $0x180] sm:$0xff]
        %v2900 = vld [vmem:[#allocation2 + $0x188] sm:$0xff]
        %v2901 = vld [vmem:[#allocation2 + $0x190] sm:$0xff]
        %v2902 = vld [vmem:[#allocation2 + $0x198] sm:$0xff]
        %v2903 = vld [vmem:[#allocation2 + $0x1a0] sm:$0xff]
        %v2904 = vld [vmem:[#allocation2 + $0x1a8] sm:$0xff]
        %v2905 = vld [vmem:[#allocation2 + $0x1b0] sm:$0xff]
        %v2906 = vld [vmem:[#allocation2 + $0x1b8] sm:$0xff]
        %v2907 = vld [vmem:[#allocation2 + $0x1c0] sm:$0xff]
        %v2908 = vld [vmem:[#allocation2 + $0x1c8] sm:$0xff]
        %v2909 = vld [vmem:[#allocation2 + $0x1d0] sm:$0xff]
        %v2910 = vld [vmem:[#allocation2 + $0x1d8] sm:$0xff]
        %v2911 = vld [vmem:[#allocation2 + $0x1e0] sm:$0xff]
        %v2912 = vld [vmem:[#allocation2 + $0x1e8] sm:$0xff]
        %v2913 = vld [vmem:[#allocation2 + $0x1f0] sm:$0xff]
        %v2914 = vld [vmem:[#allocation2 + $0x1f8] sm:$0xff]
        %v2915 = vld [vmem:[#allocation2 + $0x200] sm:$0xff]
        %v2916 = vld [vmem:[#allocation2 + $0x208] sm:$0xff]
        %v2917 = vld [vmem:[#allocation2 + $0x210] sm:$0xff]
        %v2918 = vld [vmem:[#allocation2 + $0x218] sm:$0xff]
        %v2919 = vld [vmem:[#allocation2 + $0x220] sm:$0xff]
        %v2920 = vld [vmem:[#allocation2 + $0x228] sm:$0xff]
        %v2921 = vld [vmem:[#allocation2 + $0x230] sm:$0xff]
        %v2922 = vld [vmem:[#allocation2 + $0x238] sm:$0xff]
        %v2923 = vld [vmem:[#allocation2 + $0x240] sm:$0xff]
        %v2924 = vld [vmem:[#allocation2 + $0x248] sm:$0xff]
        %v2925 = vld [vmem:[#allocation2 + $0x250] sm:$0xff]
        %v2926 = vld [vmem:[#allocation2 + $0x258] sm:$0xff]
        %v2927 = vld [vmem:[#allocation2 + $0x260] sm:$0xff]
        %v2928 = vld [vmem:[#allocation2 + $0x268] sm:$0xff]
        %v2929 = vld [vmem:[#allocation2 + $0x270] sm:$0xff]
        %v2930 = vld [vmem:[#allocation2 + $0x278] sm:$0xff]
        %v2931 = vld [vmem:[#allocation2 + $0x280] sm:$0xff]
        %v2932 = vld [vmem:[#allocation2 + $0x288] sm:$0xff]
        %v2933 = vld [vmem:[#allocation2 + $0x290] sm:$0xff]
        %v2934 = vld [vmem:[#allocation2 + $0x298] sm:$0xff]
        %v2935 = vld [vmem:[#allocation2 + $0x2a0] sm:$0xff]
        %v2936 = vld [vmem:[#allocation2 + $0x2a8] sm:$0xff]
        %v2937 = vld [vmem:[#allocation2 + $0x2b0] sm:$0xff]
        %v2938 = vld [vmem:[#allocation2 + $0x2b8] sm:$0xff]
        %v2939 = vld [vmem:[#allocation2 + $0x2c0] sm:$0xff]
        %v2940 = vld [vmem:[#allocation2 + $0x2c8] sm:$0xff]
        %v2941 = vld [vmem:[#allocation2 + $0x2d0] sm:$0xff]
        %v2942 = vld [vmem:[#allocation2 + $0x2d8] sm:$0xff]
        %v2943 = vld [vmem:[#allocation2 + $0x2e0] sm:$0xff]
        %v2944 = vld [vmem:[#allocation2 + $0x2e8] sm:$0xff]
        %v2945 = vld [vmem:[#allocation2 + $0x2f0] sm:$0xff]
        %v2946 = vld [vmem:[#allocation2 + $0x2f8] sm:$0xff]
        %v2948 = vsel %vm1681, %v2843, 0
        %v2951 = vsel %vm1681, %v2844, 0
        %v2954 = vsel %vm1681, %v2845, 0
        %v2957 = vsel %vm1681, %v2846, 0
        %v2960 = vsel %vm1681, %v2847, 0
        %v2963 = vsel %vm1681, %v2848, 0
        %v2966 = vsel %vm1681, %v2849, 0
        %v2969 = vsel %vm1681, %v2850, 0
        %2971 = vmatprep.subr.mxu0 %v2852
        %2972 = vmatpush1.msra.mxu0 %v2851
        %2973 = vmatprep.subr.mxu0 %v2860
        %2974 = vmatpush1.msra.mxu0 %v2859
        %2975 = vmatprep.subr.mxu0 %v2868
        %2976 = vmatpush1.msra.mxu0 %v2867
        %2977 = vmatprep.subr.mxu0 %v2876
        %2978 = vmatpush1.msra.mxu0 %v2875
        %2979 = vmatprep.subr.mxu0 %v2884
        %2980 = vmatpush1.msra.mxu0 %v2883
        %2981 = vmatprep.subr.mxu0 %v2892
        %2982 = vmatpush1.msra.mxu0 %v2891
        %2983 = vmatprep.subr.mxu0 %v2900
        %2984 = vmatpush1.msra.mxu0 %v2899
        %2985 = vmatprep.subr.mxu0 %v2908
        %2986 = vmatpush1.msra.mxu0 %v2907
        %2987 = vmatprep.subr.mxu0 %v2916
        %2988 = vmatpush1.msra.mxu0 %v2915
        %2989 = vmatprep.subr.mxu0 %v2924
        %2990 = vmatpush1.msra.mxu0 %v2923
        %2991 = vmatprep.subr.mxu0 %v2932
        %2992 = vmatpush1.msra.mxu0 %v2931
        %2993 = vmatprep.subr.mxu0 %v2940
        %2994 = vmatpush1.msra.mxu0 %v2939
        %2995 = vmatprep.subr.mxu0 0.0
        %2996 = vmatpush1.msra.mxu0 0.0
        %2997 = vmatprep.subr.mxu0 0.0
        %2998 = vmatpush1.msra.mxu0 0.0
        %2999 = vmatprep.subr.mxu0 0.0
        %3000 = vmatpush1.msra.mxu0 0.0
        %3001 = vmatprep.subr.mxu0 0.0
        %3002 = vmatpush1.msra.mxu0 0.0
        %3003 = vmatprep.subr.mxu0 0.0
        %3004 = vmatpush1.msra.mxu0 0.0
        %3005 = vmatprep.subr.mxu0 0.0
        %3006 = vmatpush1.msra.mxu0 0.0
        %3007 = vmatprep.subr.mxu0 0.0
        %3008 = vmatpush1.msra.mxu0 0.0
        %3009 = vmatprep.subr.mxu0 0.0
        %3010 = vmatpush1.msra.mxu0 0.0
        %3011 = vmatprep.subr.mxu0 0.0
        %3012 = vmatpush1.msra.mxu0 0.0
        %3013 = vmatprep.subr.mxu0 0.0
        %3014 = vmatpush1.msra.mxu0 0.0
        %3015 = vmatprep.subr.mxu0 0.0
        %3016 = vmatpush1.msra.mxu0 0.0
        %3017 = vmatprep.subr.mxu0 0.0
        %3018 = vmatpush1.msra.mxu0 0.0
        %3019 = vmatprep.subr.mxu0 0.0
        %3020 = vmatpush1.msra.mxu0 0.0
        %3021 = vmatprep.subr.mxu0 0.0
        %3022 = vmatpush1.msra.mxu0 0.0
        %3023 = vmatprep.subr.mxu0 0.0
        %3024 = vmatpush1.msra.mxu0 0.0
        %3025 = vmatprep.subr.mxu0 0.0
        %3026 = vmatpush1.msra.mxu0 0.0
        %3027 = vmatprep.subr.mxu0 0.0
        %3028 = vmatpush1.msra.mxu0 0.0
        %3029 = vmatprep.subr.mxu0 0.0
        %3030 = vmatpush1.msra.mxu0 0.0
        %3031 = vmatprep.subr.mxu0 0.0
        %3032 = vmatpush1.msra.mxu0 0.0
        %3033 = vmatprep.subr.mxu0 0.0
        %3034 = vmatpush1.msra.mxu0 0.0
        %3035 = vmatprep.mubr.f32.mxu0 0.0
        %3036 = vmatmul.mubr.f32.gmra.mrb[0].mxu0 %v2948
        %v3037 = vpop.f32.mrb[0].mxu0
        %v3038 = vadd.f32 0.0, %v3037
        %v3039 = vpop.f32.mrb[0].mxu0
        %v3040 = vadd.f32 0.0, %v3039
        %3041 = vmatprep.mubr.f32.mxu0 0.0
        %3042 = vmatmul.mubr.f32.gmra.mrb[0].mxu0 %v2951
        %v3043 = vpop.f32.mrb[0].mxu0
        %v3044 = vadd.f32 0.0, %v3043
        %v3045 = vpop.f32.mrb[0].mxu0
        %v3046 = vadd.f32 0.0, %v3045
        %3047 = vmatprep.mubr.f32.mxu0 0.0
        %3048 = vmatmul.mubr.f32.gmra.mrb[0].mxu0 %v2954
        %v3049 = vpop.f32.mrb[0].mxu0
        %v3050 = vadd.f32 0.0, %v3049
        %v3051 = vpop.f32.mrb[0].mxu0
        %v3052 = vadd.f32 0.0, %v3051
        %3053 = vmatprep.mubr.f32.mxu0 0.0
        %3054 = vmatmul.mubr.f32.gmra.mrb[0].mxu0 %v2957
        %v3055 = vpop.f32.mrb[0].mxu0
        %v3056 = vadd.f32 0.0, %v3055
        %v3057 = vpop.f32.mrb[0].mxu0
        %v3058 = vadd.f32 0.0, %v3057
        %3059 = vmatprep.mubr.f32.mxu0 0.0
        %3060 = vmatmul.mubr.f32.gmra.mrb[0].mxu0 %v2960
        %v3061 = vpop.f32.mrb[0].mxu0
        %v3062 = vadd.f32 0.0, %v3061
        %v3063 = vpop.f32.mrb[0].mxu0
        %v3064 = vadd.f32 0.0, %v3063
        %3065 = vmatprep.mubr.f32.mxu0 0.0
        %3066 = vmatmul.mubr.f32.gmra.mrb[0].mxu0 %v2963
        %v3067 = vpop.f32.mrb[0].mxu0
        %v3068 = vadd.f32 0.0, %v3067
        %v3069 = vpop.f32.mrb[0].mxu0
        %v3070 = vadd.f32 0.0, %v3069
        %3071 = vmatprep.mubr.f32.mxu0 0.0
        %3072 = vmatmul.mubr.f32.gmra.mrb[0].mxu0 %v2966
        %v3073 = vpop.f32.mrb[0].mxu0
        %v3074 = vadd.f32 0.0, %v3073
        %v3075 = vpop.f32.mrb[0].mxu0
        %v3076 = vadd.f32 0.0, %v3075
        %3077 = vmatprep.mubr.f32.mxu0 0.0
        %3078 = vmatmul.mubr.f32.gmra.mrb[0].mxu0 %v2969
        %v3079 = vpop.f32.mrb[0].mxu0
        %v3080 = vadd.f32 0.0, %v3079
        %v3081 = vpop.f32.mrb[0].mxu0
        %v3082 = vadd.f32 0.0, %v3081
        %3083 = vdwg.mxu0
        %3084 = vmatprep.subr.mxu0 %v2854
        %3085 = vmatpush1.msra.mxu0 %v2853
        %3086 = vmatprep.subr.mxu0 %v2862
        %3087 = vmatpush1.msra.mxu0 %v2861
        %3088 = vmatprep.subr.mxu0 %v2870
        %3089 = vmatpush1.msra.mxu0 %v2869
        %3090 = vmatprep.subr.mxu0 %v2878
        %3091 = vmatpush1.msra.mxu0 %v2877
        %3092 = vmatprep.subr.mxu0 %v2886
        %3093 = vmatpush1.msra.mxu0 %v2885
        %3094 = vmatprep.subr.mxu0 %v2894
        %3095 = vmatpush1.msra.mxu0 %v2893
        %3096 = vmatprep.subr.mxu0 %v2902
        %3097 = vmatpush1.msra.mxu0 %v2901
        %3098 = vmatprep.subr.mxu0 %v2910
        %3099 = vmatpush1.msra.mxu0 %v2909
        %3100 = vmatprep.subr.mxu0 %v2918
        %3101 = vmatpush1.msra.mxu0 %v2917
        %3102 = vmatprep.subr.mxu0 %v2926
        %3103 = vmatpush1.msra.mxu0 %v2925
        %3104 = vmatprep.subr.mxu0 %v2934
        %3105 = vmatpush1.msra.mxu0 %v2933
        %3106 = vmatprep.subr.mxu0 %v2942
        %3107 = vmatpush1.msra.mxu0 %v2941
        %3108 = vmatprep.subr.mxu0 0.0
        %3109 = vmatpush1.msra.mxu0 0.0
        %3110 = vmatprep.subr.mxu0 0.0
        %3111 = vmatpush1.msra.mxu0 0.0
        %3112 = vmatprep.subr.mxu0 0.0
        %3113 = vmatpush1.msra.mxu0 0.0
        %3114 = vmatprep.subr.mxu0 0.0
        %3115 = vmatpush1.msra.mxu0 0.0
        %3116 = vmatprep.subr.mxu0 0.0
        %3117 = vmatpush1.msra.mxu0 0.0
        %3118 = vmatprep.subr.mxu0 0.0
        %3119 = vmatpush1.msra.mxu0 0.0
        %3120 = vmatprep.subr.mxu0 0.0
        %3121 = vmatpush1.msra.mxu0 0.0
        %3122 = vmatprep.subr.mxu0 0.0
        %3123 = vmatpush1.msra.mxu0 0.0
        %3124 = vmatprep.subr.mxu0 0.0
        %3125 = vmatpush1.msra.mxu0 0.0
        %3126 = vmatprep.subr.mxu0 0.0
        %3127 = vmatpush1.msra.mxu0 0.0
        %3128 = vmatprep.subr.mxu0 0.0
        %3129 = vmatpush1.msra.mxu0 0.0
        %3130 = vmatprep.subr.mxu0 0.0
        %3131 = vmatpush1.msra.mxu0 0.0
        %3132 = vmatprep.subr.mxu0 0.0
        %3133 = vmatpush1.msra.mxu0 0.0
        %3134 = vmatprep.subr.mxu0 0.0
        %3135 = vmatpush1.msra.mxu0 0.0
        %3136 = vmatprep.subr.mxu0 0.0
        %3137 = vmatpush1.msra.mxu0 0.0
        %3138 = vmatprep.subr.mxu0 0.0
        %3139 = vmatpush1.msra.mxu0 0.0
        %3140 = vmatprep.subr.mxu0 0.0
        %3141 = vmatpush1.msra.mxu0 0.0
        %3142 = vmatprep.subr.mxu0 0.0
        %3143 = vmatpush1.msra.mxu0 0.0
        %3144 = vmatprep.subr.mxu0 0.0
        %3145 = vmatpush1.msra.mxu0 0.0
        %3146 = vmatprep.subr.mxu0 0.0
        %3147 = vmatpush1.msra.mxu0 0.0
        %3148 = vmatprep.mubr.f32.mxu0 0.0
        %3149 = vmatmul.mubr.f32.gmra.mrb[0].mxu0 %v2948
        %v3150 = vpop.f32.mrb[0].mxu0
        %v3151 = vadd.f32 0.0, %v3150
        %v3152 = vpop.f32.mrb[0].mxu0
        %v3153 = vadd.f32 0.0, %v3152
        %3154 = vmatprep.mubr.f32.mxu0 0.0
        %3155 = vmatmul.mubr.f32.gmra.mrb[0].mxu0 %v2951
        %v3156 = vpop.f32.mrb[0].mxu0
        %v3157 = vadd.f32 0.0, %v3156
        %v3158 = vpop.f32.mrb[0].mxu0
        %v3159 = vadd.f32 0.0, %v3158
        %3160 = vmatprep.mubr.f32.mxu0 0.0
        %3161 = vmatmul.mubr.f32.gmra.mrb[0].mxu0 %v2954
        %v3162 = vpop.f32.mrb[0].mxu0
        %v3163 = vadd.f32 0.0, %v3162
        %v3164 = vpop.f32.mrb[0].mxu0
        %v3165 = vadd.f32 0.0, %v3164
        %3166 = vmatprep.mubr.f32.mxu0 0.0
        %3167 = vmatmul.mubr.f32.gmra.mrb[0].mxu0 %v2957
        %v3168 = vpop.f32.mrb[0].mxu0
        %v3169 = vadd.f32 0.0, %v3168
        %v3170 = vpop.f32.mrb[0].mxu0
        %v3171 = vadd.f32 0.0, %v3170
        %3172 = vmatprep.mubr.f32.mxu0 0.0
        %3173 = vmatmul.mubr.f32.gmra.mrb[0].mxu0 %v2960
        %v3174 = vpop.f32.mrb[0].mxu0
        %v3175 = vadd.f32 0.0, %v3174
        %v3176 = vpop.f32.mrb[0].mxu0
        %v3177 = vadd.f32 0.0, %v3176
        %3178 = vmatprep.mubr.f32.mxu0 0.0
        %3179 = vmatmul.mubr.f32.gmra.mrb[0].mxu0 %v2963
        %v3180 = vpop.f32.mrb[0].mxu0
        %v3181 = vadd.f32 0.0, %v3180
        %v3182 = vpop.f32.mrb[0].mxu0
        %v3183 = vadd.f32 0.0, %v3182
        %3184 = vmatprep.mubr.f32.mxu0 0.0
        %3185 = vmatmul.mubr.f32.gmra.mrb[0].mxu0 %v2966
        %v3186 = vpop.f32.mrb[0].mxu0
        %v3187 = vadd.f32 0.0, %v3186
        %v3188 = vpop.f32.mrb[0].mxu0
        %v3189 = vadd.f32 0.0, %v3188
        %3190 = vmatprep.mubr.f32.mxu0 0.0
        %3191 = vmatmul.mubr.f32.gmra.mrb[0].mxu0 %v2969
        %v3192 = vpop.f32.mrb[0].mxu0
        %v3193 = vadd.f32 0.0, %v3192
        %v3194 = vpop.f32.mrb[0].mxu0
        %v3195 = vadd.f32 0.0, %v3194
        %3196 = vdwg.mxu0
        %3197 = vmatprep.subr.mxu0 %v2856
        %3198 = vmatpush1.msra.mxu0 %v2855
        %3199 = vmatprep.subr.mxu0 %v2864
        %3200 = vmatpush1.msra.mxu0 %v2863
        %3201 = vmatprep.subr.mxu0 %v2872
        %3202 = vmatpush1.msra.mxu0 %v2871
        %3203 = vmatprep.subr.mxu0 %v2880
        %3204 = vmatpush1.msra.mxu0 %v2879
        %3205 = vmatprep.subr.mxu0 %v2888
        %3206 = vmatpush1.msra.mxu0 %v2887
        %3207 = vmatprep.subr.mxu0 %v2896
        %3208 = vmatpush1.msra.mxu0 %v2895
        %3209 = vmatprep.subr.mxu0 %v2904
        %3210 = vmatpush1.msra.mxu0 %v2903
        %3211 = vmatprep.subr.mxu0 %v2912
        %3212 = vmatpush1.msra.mxu0 %v2911
        %3213 = vmatprep.subr.mxu0 %v2920
        %3214 = vmatpush1.msra.mxu0 %v2919
        %3215 = vmatprep.subr.mxu0 %v2928
        %3216 = vmatpush1.msra.mxu0 %v2927
        %3217 = vmatprep.subr.mxu0 %v2936
        %3218 = vmatpush1.msra.mxu0 %v2935
        %3219 = vmatprep.subr.mxu0 %v2944
        %3220 = vmatpush1.msra.mxu0 %v2943
        %3221 = vmatprep.subr.mxu0 0.0
        %3222 = vmatpush1.msra.mxu0 0.0
        %3223 = vmatprep.subr.mxu0 0.0
        %3224 = vmatpush1.msra.mxu0 0.0
        %3225 = vmatprep.subr.mxu0 0.0
        %3226 = vmatpush1.msra.mxu0 0.0
        %3227 = vmatprep.subr.mxu0 0.0
        %3228 = vmatpush1.msra.mxu0 0.0
        %3229 = vmatprep.subr.mxu0 0.0
        %3230 = vmatpush1.msra.mxu0 0.0
        %3231 = vmatprep.subr.mxu0 0.0
        %3232 = vmatpush1.msra.mxu0 0.0
        %3233 = vmatprep.subr.mxu0 0.0
        %3234 = vmatpush1.msra.mxu0 0.0
        %3235 = vmatprep.subr.mxu0 0.0
        %3236 = vmatpush1.msra.mxu0 0.0
        %3237 = vmatprep.subr.mxu0 0.0
        %3238 = vmatpush1.msra.mxu0 0.0
        %3239 = vmatprep.subr.mxu0 0.0
        %3240 = vmatpush1.msra.mxu0 0.0
        %3241 = vmatprep.subr.mxu0 0.0
        %3242 = vmatpush1.msra.mxu0 0.0
        %3243 = vmatprep.subr.mxu0 0.0
        %3244 = vmatpush1.msra.mxu0 0.0
        %3245 = vmatprep.subr.mxu0 0.0
        %3246 = vmatpush1.msra.mxu0 0.0
        %3247 = vmatprep.subr.mxu0 0.0
        %3248 = vmatpush1.msra.mxu0 0.0
        %3249 = vmatprep.subr.mxu0 0.0
        %3250 = vmatpush1.msra.mxu0 0.0
        %3251 = vmatprep.subr.mxu0 0.0
        %3252 = vmatpush1.msra.mxu0 0.0
        %3253 = vmatprep.subr.mxu0 0.0
        %3254 = vmatpush1.msra.mxu0 0.0
        %3255 = vmatprep.subr.mxu0 0.0
        %3256 = vmatpush1.msra.mxu0 0.0
        %3257 = vmatprep.subr.mxu0 0.0
        %3258 = vmatpush1.msra.mxu0 0.0
        %3259 = vmatprep.subr.mxu0 0.0
        %3260 = vmatpush1.msra.mxu0 0.0
        %3261 = vmatprep.mubr.f32.mxu0 0.0
        %3262 = vmatmul.mubr.f32.gmra.mrb[0].mxu0 %v2948
        %v3263 = vpop.f32.mrb[0].mxu0
        %v3264 = vadd.f32 0.0, %v3263
        %v3265 = vpop.f32.mrb[0].mxu0
        %v3266 = vadd.f32 0.0, %v3265
        %3267 = vmatprep.mubr.f32.mxu0 0.0
        %3268 = vmatmul.mubr.f32.gmra.mrb[0].mxu0 %v2951
        %v3269 = vpop.f32.mrb[0].mxu0
        %v3270 = vadd.f32 0.0, %v3269
        %v3271 = vpop.f32.mrb[0].mxu0
        %v3272 = vadd.f32 0.0, %v3271
        %3273 = vmatprep.mubr.f32.mxu0 0.0
        %3274 = vmatmul.mubr.f32.gmra.mrb[0].mxu0 %v2954
        %v3275 = vpop.f32.mrb[0].mxu0
        %v3276 = vadd.f32 0.0, %v3275
        %v3277 = vpop.f32.mrb[0].mxu0
        %v3278 = vadd.f32 0.0, %v3277
        %3279 = vmatprep.mubr.f32.mxu0 0.0
        %3280 = vmatmul.mubr.f32.gmra.mrb[0].mxu0 %v2957
        %v3281 = vpop.f32.mrb[0].mxu0
        %v3282 = vadd.f32 0.0, %v3281
        %v3283 = vpop.f32.mrb[0].mxu0
        %v3284 = vadd.f32 0.0, %v3283
        %3285 = vmatprep.mubr.f32.mxu0 0.0
        %3286 = vmatmul.mubr.f32.gmra.mrb[0].mxu0 %v2960
        %v3287 = vpop.f32.mrb[0].mxu0
        %v3288 = vadd.f32 0.0, %v3287
        %v3289 = vpop.f32.mrb[0].mxu0
        %v3290 = vadd.f32 0.0, %v3289
        %3291 = vmatprep.mubr.f32.mxu0 0.0
        %3292 = vmatmul.mubr.f32.gmra.mrb[0].mxu0 %v2963
        %v3293 = vpop.f32.mrb[0].mxu0
        %v3294 = vadd.f32 0.0, %v3293
        %v3295 = vpop.f32.mrb[0].mxu0
        %v3296 = vadd.f32 0.0, %v3295
        %3297 = vmatprep.mubr.f32.mxu0 0.0
        %3298 = vmatmul.mubr.f32.gmra.mrb[0].mxu0 %v2966
        %v3299 = vpop.f32.mrb[0].mxu0
        %v3300 = vadd.f32 0.0, %v3299
        %v3301 = vpop.f32.mrb[0].mxu0
        %v3302 = vadd.f32 0.0, %v3301
        %3303 = vmatprep.mubr.f32.mxu0 0.0
        %3304 = vmatmul.mubr.f32.gmra.mrb[0].mxu0 %v2969
        %v3305 = vpop.f32.mrb[0].mxu0
        %v3306 = vadd.f32 0.0, %v3305
        %v3307 = vpop.f32.mrb[0].mxu0
        %v3308 = vadd.f32 0.0, %v3307
        %3309 = vdwg.mxu0
        %3310 = vmatprep.subr.mxu0 %v2858
        %3311 = vmatpush1.msra.mxu0 %v2857
        %3312 = vmatprep.subr.mxu0 %v2866
        %3313 = vmatpush1.msra.mxu0 %v2865
        %3314 = vmatprep.subr.mxu0 %v2874
        %3315 = vmatpush1.msra.mxu0 %v2873
        %3316 = vmatprep.subr.mxu0 %v2882
        %3317 = vmatpush1.msra.mxu0 %v2881
        %3318 = vmatprep.subr.mxu0 %v2890
        %3319 = vmatpush1.msra.mxu0 %v2889
        %3320 = vmatprep.subr.mxu0 %v2898
        %3321 = vmatpush1.msra.mxu0 %v2897
        %3322 = vmatprep.subr.mxu0 %v2906
        %3323 = vmatpush1.msra.mxu0 %v2905
        %3324 = vmatprep.subr.mxu0 %v2914
        %3325 = vmatpush1.msra.mxu0 %v2913
        %3326 = vmatprep.subr.mxu0 %v2922
        %3327 = vmatpush1.msra.mxu0 %v2921
        %3328 = vmatprep.subr.mxu0 %v2930
        %3329 = vmatpush1.msra.mxu0 %v2929
        %3330 = vmatprep.subr.mxu0 %v2938
        %3331 = vmatpush1.msra.mxu0 %v2937
        %3332 = vmatprep.subr.mxu0 %v2946
        %3333 = vmatpush1.msra.mxu0 %v2945
        %3334 = vmatprep.subr.mxu0 0.0
        %3335 = vmatpush1.msra.mxu0 0.0
        %3336 = vmatprep.subr.mxu0 0.0
        %3337 = vmatpush1.msra.mxu0 0.0
        %3338 = vmatprep.subr.mxu0 0.0
        %3339 = vmatpush1.msra.mxu0 0.0
        %3340 = vmatprep.subr.mxu0 0.0
        %3341 = vmatpush1.msra.mxu0 0.0
        %3342 = vmatprep.subr.mxu0 0.0
        %3343 = vmatpush1.msra.mxu0 0.0
        %3344 = vmatprep.subr.mxu0 0.0
        %3345 = vmatpush1.msra.mxu0 0.0
        %3346 = vmatprep.subr.mxu0 0.0
        %3347 = vmatpush1.msra.mxu0 0.0
        %3348 = vmatprep.subr.mxu0 0.0
        %3349 = vmatpush1.msra.mxu0 0.0
        %3350 = vmatprep.subr.mxu0 0.0
        %3351 = vmatpush1.msra.mxu0 0.0
        %3352 = vmatprep.subr.mxu0 0.0
        %3353 = vmatpush1.msra.mxu0 0.0
        %3354 = vmatprep.subr.mxu0 0.0
        %3355 = vmatpush1.msra.mxu0 0.0
        %3356 = vmatprep.subr.mxu0 0.0
        %3357 = vmatpush1.msra.mxu0 0.0
        %3358 = vmatprep.subr.mxu0 0.0
        %3359 = vmatpush1.msra.mxu0 0.0
        %3360 = vmatprep.subr.mxu0 0.0
        %3361 = vmatpush1.msra.mxu0 0.0
        %3362 = vmatprep.subr.mxu0 0.0
        %3363 = vmatpush1.msra.mxu0 0.0
        %3364 = vmatprep.subr.mxu0 0.0
        %3365 = vmatpush1.msra.mxu0 0.0
        %3366 = vmatprep.subr.mxu0 0.0
        %3367 = vmatpush1.msra.mxu0 0.0
        %3368 = vmatprep.subr.mxu0 0.0
        %3369 = vmatpush1.msra.mxu0 0.0
        %3370 = vmatprep.subr.mxu0 0.0
        %3371 = vmatpush1.msra.mxu0 0.0
        %3372 = vmatprep.subr.mxu0 0.0
        %3373 = vmatpush1.msra.mxu0 0.0
        %3374 = vmatprep.mubr.f32.mxu0 0.0
        %3375 = vmatmul.mubr.f32.gmra.mrb[0].mxu0 %v2948
        %v3376 = vpop.f32.mrb[0].mxu0
        %v3377 = vadd.f32 0.0, %v3376
        %v3378 = vpop.f32.mrb[0].mxu0
        %v3379 = vadd.f32 0.0, %v3378
        %3380 = vmatprep.mubr.f32.mxu0 0.0
        %3381 = vmatmul.mubr.f32.gmra.mrb[0].mxu0 %v2951
        %v3382 = vpop.f32.mrb[0].mxu0
        %v3383 = vadd.f32 0.0, %v3382
        %v3384 = vpop.f32.mrb[0].mxu0
        %v3385 = vadd.f32 0.0, %v3384
        %3386 = vmatprep.mubr.f32.mxu0 0.0
        %3387 = vmatmul.mubr.f32.gmra.mrb[0].mxu0 %v2954
        %v3388 = vpop.f32.mrb[0].mxu0
        %v3389 = vadd.f32 0.0, %v3388
        %v3390 = vpop.f32.mrb[0].mxu0
        %v3391 = vadd.f32 0.0, %v3390
        %3392 = vmatprep.mubr.f32.mxu0 0.0
        %3393 = vmatmul.mubr.f32.gmra.mrb[0].mxu0 %v2957
        %v3394 = vpop.f32.mrb[0].mxu0
        %v3395 = vadd.f32 0.0, %v3394
        %v3396 = vpop.f32.mrb[0].mxu0
        %v3397 = vadd.f32 0.0, %v3396
        %3398 = vmatprep.mubr.f32.mxu0 0.0
        %3399 = vmatmul.mubr.f32.gmra.mrb[0].mxu0 %v2960
        %v3400 = vpop.f32.mrb[0].mxu0
        %v3401 = vadd.f32 0.0, %v3400
        %v3402 = vpop.f32.mrb[0].mxu0
        %v3403 = vadd.f32 0.0, %v3402
        %3404 = vmatprep.mubr.f32.mxu0 0.0
        %3405 = vmatmul.mubr.f32.gmra.mrb[0].mxu0 %v2963
        %v3406 = vpop.f32.mrb[0].mxu0
        %v3407 = vadd.f32 0.0, %v3406
        %v3408 = vpop.f32.mrb[0].mxu0
        %v3409 = vadd.f32 0.0, %v3408
        %3410 = vmatprep.mubr.f32.mxu0 0.0
        %3411 = vmatmul.mubr.f32.gmra.mrb[0].mxu0 %v2966
        %v3412 = vpop.f32.mrb[0].mxu0
        %v3413 = vadd.f32 0.0, %v3412
        %v3414 = vpop.f32.mrb[0].mxu0
        %v3415 = vadd.f32 0.0, %v3414
        %3416 = vmatprep.mubr.f32.mxu0 0.0
        %3417 = vmatmul.mubr.f32.gmra.mrb[0].mxu0 %v2969
        %v3418 = vpop.f32.mrb[0].mxu0
        %v3419 = vadd.f32 0.0, %v3418
        %v3420 = vpop.f32.mrb[0].mxu0
        %v3421 = vadd.f32 0.0, %v3420
        %3422 = vdwg.mxu0
        %v3423 = vsub.f32 %v3062, %v2552
        %v3424 = vsub.f32 %v3064, %v2553
        %v3425 = vsub.f32 %v3175, %v2554
        %v3426 = vsub.f32 %v3177, %v2555
        %v3427 = vsub.f32 %v3288, %v2556
        %v3428 = vsub.f32 %v3290, %v2557
        %v3429 = vsub.f32 %v3401, %v2558
        %v3430 = vsub.f32 %v3403, %v2559
        %v3431 = vsub.f32 %v3068, %v2560
        %v3432 = vsub.f32 %v3070, %v2561
        %v3433 = vsub.f32 %v3181, %v2562
        %v3434 = vsub.f32 %v3183, %v2563
        %v3435 = vsub.f32 %v3294, %v2564
        %v3436 = vsub.f32 %v3296, %v2565
        %v3437 = vsub.f32 %v3407, %v2566
        %v3438 = vsub.f32 %v3409, %v2567
        %v3439 = vsub.f32 %v3074, %v2568
        %v3440 = vsub.f32 %v3076, %v2569
        %v3441 = vsub.f32 %v3187, %v2570
        %v3442 = vsub.f32 %v3189, %v2571
        %v3443 = vsub.f32 %v3300, %v2572
        %v3444 = vsub.f32 %v3302, %v2573
        %v3445 = vsub.f32 %v3413, %v2574
        %v3446 = vsub.f32 %v3415, %v2575
        %v3447 = vsub.f32 %v3080, %v2576
        %v3448 = vsub.f32 %v3082, %v2577
        %v3449 = vsub.f32 %v3193, %v2578
        %v3450 = vsub.f32 %v3195, %v2579
        %v3451 = vsub.f32 %v3306, %v2580
        %v3452 = vsub.f32 %v3308, %v2581
        %v3453 = vsub.f32 %v3419, %v2582
        %v3454 = vsub.f32 %v3421, %v2583
        %v3455 = vstv %s2383
        %v3456 = vmul.f32 %v3455, %v3423
        %v3457 = vmul.f32 %v3455, %v3424
        %v3458 = vmul.f32 %v3455, %v3425
        %v3459 = vmul.f32 %v3455, %v3426
        %v3460 = vmul.f32 %v3455, %v3427
        %v3461 = vmul.f32 %v3455, %v3428
        %v3462 = vmul.f32 %v3455, %v3429
        %v3463 = vmul.f32 %v3455, %v3430
        %v3464 = vmul.f32 %v3455, %v3431
        %v3465 = vmul.f32 %v3455, %v3432
        %v3466 = vmul.f32 %v3455, %v3433
        %v3467 = vmul.f32 %v3455, %v3434
        %v3468 = vmul.f32 %v3455, %v3435
        %v3469 = vmul.f32 %v3455, %v3436
        %v3470 = vmul.f32 %v3455, %v3437
        %v3471 = vmul.f32 %v3455, %v3438
        %v3472 = vmul.f32 %v3455, %v3439
        %v3473 = vmul.f32 %v3455, %v3440
        %v3474 = vmul.f32 %v3455, %v3441
        %v3475 = vmul.f32 %v3455, %v3442
        %v3476 = vmul.f32 %v3455, %v3443
        %v3477 = vmul.f32 %v3455, %v3444
        %v3478 = vmul.f32 %v3455, %v3445
        %v3479 = vmul.f32 %v3455, %v3446
        %v3480 = vmul.f32 %v3455, %v3447
        %v3481 = vmul.f32 %v3455, %v3448
        %v3482 = vmul.f32 %v3455, %v3449
        %v3483 = vmul.f32 %v3455, %v3450
        %v3484 = vmul.f32 %v3455, %v3451
        %v3485 = vmul.f32 %v3455, %v3452
        %v3486 = vmul.f32 %v3455, %v3453
        %v3487 = vmul.f32 %v3455, %v3454
        %v3488 = vadd.f32 %v2388, %v3456
        %v3489 = vadd.f32 %v2389, %v3457
        %v3490 = vadd.f32 %v2390, %v3458
        %v3491 = vadd.f32 %v2391, %v3459
        %v3492 = vadd.f32 %v2392, %v3460
        %v3493 = vadd.f32 %v2393, %v3461
        %v3494 = vadd.f32 %v2394, %v3462
        %v3495 = vadd.f32 %v2395, %v3463
        %v3496 = vadd.f32 %v2396, %v3464
        %v3497 = vadd.f32 %v2397, %v3465
        %v3498 = vadd.f32 %v2398, %v3466
        %v3499 = vadd.f32 %v2399, %v3467
        %v3500 = vadd.f32 %v2400, %v3468
        %v3501 = vadd.f32 %v2401, %v3469
        %v3502 = vadd.f32 %v2402, %v3470
        %v3503 = vadd.f32 %v2403, %v3471
        %v3504 = vadd.f32 %v2404, %v3472
        %v3505 = vadd.f32 %v2405, %v3473
        %v3506 = vadd.f32 %v2406, %v3474
        %v3507 = vadd.f32 %v2407, %v3475
        %v3508 = vadd.f32 %v2408, %v3476
        %v3509 = vadd.f32 %v2409, %v3477
        %v3510 = vadd.f32 %v2410, %v3478
        %v3511 = vadd.f32 %v2411, %v3479
        %v3512 = vadd.f32 %v2412, %v3480
        %v3513 = vadd.f32 %v2413, %v3481
        %v3514 = vadd.f32 %v2414, %v3482
        %v3515 = vadd.f32 %v2415, %v3483
        %v3516 = vadd.f32 %v2416, %v3484
        %v3517 = vadd.f32 %v2417, %v3485
        %v3518 = vadd.f32 %v2418, %v3486
        %v3519 = vadd.f32 %v2419, %v3487
        %3520 = vst [vmem:[#allocation2 + $0x200] sm:$0xff] %v3488
        %3521 = vst [vmem:[#allocation2 + $0x208] sm:$0xff] %v3489
        %3522 = vst [vmem:[#allocation2 + $0x210] sm:$0xff] %v3490
        %3523 = vst [vmem:[#allocation2 + $0x218] sm:$0xff] %v3491
        %3524 = vst [vmem:[#allocation2 + $0x220] sm:$0xff] %v3492
        %3525 = vst [vmem:[#allocation2 + $0x228] sm:$0xff] %v3493
        %3526 = vst [vmem:[#allocation2 + $0x230] sm:$0xff] %v3494
        %3527 = vst [vmem:[#allocation2 + $0x238] sm:$0xff] %v3495
        %3528 = vst [vmem:[#allocation2 + $0x240] sm:$0xff] %v3496
        %3529 = vst [vmem:[#allocation2 + $0x248] sm:$0xff] %v3497
        %3530 = vst [vmem:[#allocation2 + $0x250] sm:$0xff] %v3498
        %3531 = vst [vmem:[#allocation2 + $0x258] sm:$0xff] %v3499
        %3532 = vst [vmem:[#allocation2 + $0x260] sm:$0xff] %v3500
        %3533 = vst [vmem:[#allocation2 + $0x268] sm:$0xff] %v3501
        %3534 = vst [vmem:[#allocation2 + $0x270] sm:$0xff] %v3502
        %3535 = vst [vmem:[#allocation2 + $0x278] sm:$0xff] %v3503
        %3536 = vst [vmem:[#allocation2 + $0x280] sm:$0xff] %v3504
        %3537 = vst [vmem:[#allocation2 + $0x288] sm:$0xff] %v3505
        %3538 = vst [vmem:[#allocation2 + $0x290] sm:$0xff] %v3506
        %3539 = vst [vmem:[#allocation2 + $0x298] sm:$0xff] %v3507
        %3540 = vst [vmem:[#allocation2 + $0x2a0] sm:$0xff] %v3508
        %3541 = vst [vmem:[#allocation2 + $0x2a8] sm:$0xff] %v3509
        %3542 = vst [vmem:[#allocation2 + $0x2b0] sm:$0xff] %v3510
        %3543 = vst [vmem:[#allocation2 + $0x2b8] sm:$0xff] %v3511
        %3544 = vst [vmem:[#allocation2 + $0x2c0] sm:$0xff] %v3512
        %3545 = vst [vmem:[#allocation2 + $0x2c8] sm:$0xff] %v3513
        %3546 = vst [vmem:[#allocation2 + $0x2d0] sm:$0xff] %v3514
        %3547 = vst [vmem:[#allocation2 + $0x2d8] sm:$0xff] %v3515
        %3548 = vst [vmem:[#allocation2 + $0x2e0] sm:$0xff] %v3516
        %3549 = vst [vmem:[#allocation2 + $0x2e8] sm:$0xff] %v3517
        %3550 = vst [vmem:[#allocation2 + $0x2f0] sm:$0xff] %v3518
        %3551 = vst [vmem:[#allocation2 + $0x2f8] sm:$0xff] %v3519
        %v3552 = vsub.f32 %v3038, %v2681
        %v3553 = vsub.f32 %v3040, %v2682
        %v3554 = vsub.f32 %v3151, %v2683
        %v3555 = vsub.f32 %v3153, %v2684
        %v3556 = vsub.f32 %v3264, %v2685
        %v3557 = vsub.f32 %v3266, %v2686
        %v3558 = vsub.f32 %v3377, %v2687
        %v3559 = vsub.f32 %v3379, %v2688
        %v3560 = vsub.f32 %v3044, %v2689
        %v3561 = vsub.f32 %v3046, %v2690
        %v3562 = vsub.f32 %v3157, %v2691
        %v3563 = vsub.f32 %v3159, %v2692
        %v3564 = vsub.f32 %v3270, %v2693
        %v3565 = vsub.f32 %v3272, %v2694
        %v3566 = vsub.f32 %v3383, %v2695
        %v3567 = vsub.f32 %v3385, %v2696
        %v3568 = vsub.f32 %v3050, %v2697
        %v3569 = vsub.f32 %v3052, %v2698
        %v3570 = vsub.f32 %v3163, %v2699
        %v3571 = vsub.f32 %v3165, %v2700
        %v3572 = vsub.f32 %v3276, %v2701
        %v3573 = vsub.f32 %v3278, %v2702
        %v3574 = vsub.f32 %v3389, %v2703
        %v3575 = vsub.f32 %v3391, %v2704
        %v3576 = vsub.f32 %v3056, %v2705
        %v3577 = vsub.f32 %v3058, %v2706
        %v3578 = vsub.f32 %v3169, %v2707
        %v3579 = vsub.f32 %v3171, %v2708
        %v3580 = vsub.f32 %v3282, %v2709
        %v3581 = vsub.f32 %v3284, %v2710
        %v3582 = vsub.f32 %v3395, %v2711
        %v3583 = vsub.f32 %v3397, %v2712
        %v3584 = vmul.f32 %v2713, %v3552
        %v3585 = vmul.f32 %v2713, %v3553
        %v3586 = vmul.f32 %v2713, %v3554
        %v3587 = vmul.f32 %v2713, %v3555
        %v3588 = vmul.f32 %v2713, %v3556
        %v3589 = vmul.f32 %v2713, %v3557
        %v3590 = vmul.f32 %v2713, %v3558
        %v3591 = vmul.f32 %v2713, %v3559
        %v3592 = vmul.f32 %v2713, %v3560
        %v3593 = vmul.f32 %v2713, %v3561
        %v3594 = vmul.f32 %v2713, %v3562
        %v3595 = vmul.f32 %v2713, %v3563
        %v3596 = vmul.f32 %v2713, %v3564
        %v3597 = vmul.f32 %v2713, %v3565
        %v3598 = vmul.f32 %v2713, %v3566
        %v3599 = vmul.f32 %v2713, %v3567
        %v3600 = vmul.f32 %v2713, %v3568
        %v3601 = vmul.f32 %v2713, %v3569
        %v3602 = vmul.f32 %v2713, %v3570
        %v3603 = vmul.f32 %v2713, %v3571
        %v3604 = vmul.f32 %v2713, %v3572
        %v3605 = vmul.f32 %v2713, %v3573
        %v3606 = vmul.f32 %v2713, %v3574
        %v3607 = vmul.f32 %v2713, %v3575
        %v3608 = vmul.f32 %v2713, %v3576
        %v3609 = vmul.f32 %v2713, %v3577
        %v3610 = vmul.f32 %v2713, %v3578
        %v3611 = vmul.f32 %v2713, %v3579
        %v3612 = vmul.f32 %v2713, %v3580
        %v3613 = vmul.f32 %v2713, %v3581
        %v3614 = vmul.f32 %v2713, %v3582
        %v3615 = vmul.f32 %v2713, %v3583
        %v3616 = vadd.f32 %v2351, %v3584
        %v3617 = vadd.f32 %v2352, %v3585
        %v3618 = vadd.f32 %v2353, %v3586
        %v3619 = vadd.f32 %v2354, %v3587
        %v3620 = vadd.f32 %v2355, %v3588
        %v3621 = vadd.f32 %v2356, %v3589
        %v3622 = vadd.f32 %v2357, %v3590
        %v3623 = vadd.f32 %v2358, %v3591
        %v3624 = vadd.f32 %v2359, %v3592
        %v3625 = vadd.f32 %v2360, %v3593
        %v3626 = vadd.f32 %v2361, %v3594
        %v3627 = vadd.f32 %v2362, %v3595
        %v3628 = vadd.f32 %v2363, %v3596
        %v3629 = vadd.f32 %v2364, %v3597
        %v3630 = vadd.f32 %v2365, %v3598
        %v3631 = vadd.f32 %v2366, %v3599
        %v3632 = vadd.f32 %v2367, %v3600
        %v3633 = vadd.f32 %v2368, %v3601
        %v3634 = vadd.f32 %v2369, %v3602
        %v3635 = vadd.f32 %v2370, %v3603
        %v3636 = vadd.f32 %v2371, %v3604
        %v3637 = vadd.f32 %v2372, %v3605
        %v3638 = vadd.f32 %v2373, %v3606
        %v3639 = vadd.f32 %v2374, %v3607
        %v3640 = vadd.f32 %v2375, %v3608
        %v3641 = vadd.f32 %v2376, %v3609
        %v3642 = vadd.f32 %v2377, %v3610
        %v3643 = vadd.f32 %v2378, %v3611
        %v3644 = vadd.f32 %v2379, %v3612
        %v3645 = vadd.f32 %v2380, %v3613
        %v3646 = vadd.f32 %v2381, %v3614
        %v3647 = vadd.f32 %v2382, %v3615
        %s3648 = sld [smem:[#allocation4 + $0x3]]
        %s3649 = sld [smem:[#allocation4 + $0x83]]
        %s3650 = sld [smem:[#allocation4 + $0x103]]
        %s3651 = sld [smem:[#allocation4 + $0x183]]
        %s3652 = sld [smem:[#allocation4 + $0x203]]
        %v3653 = vld [vmem:[#allocation2 + $0x200] sm:$0xff]
        %v3654 = vld [vmem:[#allocation2 + $0x208] sm:$0xff]
        %v3655 = vld [vmem:[#allocation2 + $0x210] sm:$0xff]
        %v3656 = vld [vmem:[#allocation2 + $0x218] sm:$0xff]
        %v3657 = vld [vmem:[#allocation2 + $0x220] sm:$0xff]
        %v3658 = vld [vmem:[#allocation2 + $0x228] sm:$0xff]
        %v3659 = vld [vmem:[#allocation2 + $0x230] sm:$0xff]
        %v3660 = vld [vmem:[#allocation2 + $0x238] sm:$0xff]
        %v3661 = vld [vmem:[#allocation2 + $0x240] sm:$0xff]
        %v3662 = vld [vmem:[#allocation2 + $0x248] sm:$0xff]
        %v3663 = vld [vmem:[#allocation2 + $0x250] sm:$0xff]
        %v3664 = vld [vmem:[#allocation2 + $0x258] sm:$0xff]
        %v3665 = vld [vmem:[#allocation2 + $0x260] sm:$0xff]
        %v3666 = vld [vmem:[#allocation2 + $0x268] sm:$0xff]
        %v3667 = vld [vmem:[#allocation2 + $0x270] sm:$0xff]
        %v3668 = vld [vmem:[#allocation2 + $0x278] sm:$0xff]
        %v3669 = vld [vmem:[#allocation2 + $0x280] sm:$0xff]
        %v3670 = vld [vmem:[#allocation2 + $0x288] sm:$0xff]
        %v3671 = vld [vmem:[#allocation2 + $0x290] sm:$0xff]
        %v3672 = vld [vmem:[#allocation2 + $0x298] sm:$0xff]
        %v3673 = vld [vmem:[#allocation2 + $0x2a0] sm:$0xff]
        %v3674 = vld [vmem:[#allocation2 + $0x2a8] sm:$0xff]
        %v3675 = vld [vmem:[#allocation2 + $0x2b0] sm:$0xff]
        %v3676 = vld [vmem:[#allocation2 + $0x2b8] sm:$0xff]
        %v3677 = vld [vmem:[#allocation2 + $0x2c0] sm:$0xff]
        %v3678 = vld [vmem:[#allocation2 + $0x2c8] sm:$0xff]
        %v3679 = vld [vmem:[#allocation2 + $0x2d0] sm:$0xff]
        %v3680 = vld [vmem:[#allocation2 + $0x2d8] sm:$0xff]
        %v3681 = vld [vmem:[#allocation2 + $0x2e0] sm:$0xff]
        %v3682 = vld [vmem:[#allocation2 + $0x2e8] sm:$0xff]
        %v3683 = vld [vmem:[#allocation2 + $0x2f0] sm:$0xff]
        %v3684 = vld [vmem:[#allocation2 + $0x2f8] sm:$0xff]
        %v3685 = vstv %s3650
        %v3686 = vmul.f32 %v3653, %v3685
        %v3687 = vmul.f32 %v3654, %v3685
        %v3688 = vmul.f32 %v3655, %v3685
        %v3689 = vmul.f32 %v3656, %v3685
        %v3690 = vmul.f32 %v3657, %v3685
        %v3691 = vmul.f32 %v3658, %v3685
        %v3692 = vmul.f32 %v3659, %v3685
        %v3693 = vmul.f32 %v3660, %v3685
        %v3694 = vmul.f32 %v3661, %v3685
        %v3695 = vmul.f32 %v3662, %v3685
        %v3696 = vmul.f32 %v3663, %v3685
        %v3697 = vmul.f32 %v3664, %v3685
        %v3698 = vmul.f32 %v3665, %v3685
        %v3699 = vmul.f32 %v3666, %v3685
        %v3700 = vmul.f32 %v3667, %v3685
        %v3701 = vmul.f32 %v3668, %v3685
        %v3702 = vmul.f32 %v3669, %v3685
        %v3703 = vmul.f32 %v3670, %v3685
        %v3704 = vmul.f32 %v3671, %v3685
        %v3705 = vmul.f32 %v3672, %v3685
        %v3706 = vmul.f32 %v3673, %v3685
        %v3707 = vmul.f32 %v3674, %v3685
        %v3708 = vmul.f32 %v3675, %v3685
        %v3709 = vmul.f32 %v3676, %v3685
        %v3710 = vmul.f32 %v3677, %v3685
        %v3711 = vmul.f32 %v3678, %v3685
        %v3712 = vmul.f32 %v3679, %v3685
        %v3713 = vmul.f32 %v3680, %v3685
        %v3714 = vmul.f32 %v3681, %v3685
        %v3715 = vmul.f32 %v3682, %v3685
        %v3716 = vmul.f32 %v3683, %v3685
        %v3717 = vmul.f32 %v3684, %v3685
        %v3718 = vadd.f32 %v3062, %v3686
        %v3719 = vadd.f32 %v3064, %v3687
        %v3720 = vadd.f32 %v3175, %v3688
        %v3721 = vadd.f32 %v3177, %v3689
        %v3722 = vadd.f32 %v3288, %v3690
        %v3723 = vadd.f32 %v3290, %v3691
        %v3724 = vadd.f32 %v3401, %v3692
        %v3725 = vadd.f32 %v3403, %v3693
        %v3726 = vadd.f32 %v3068, %v3694
        %v3727 = vadd.f32 %v3070, %v3695
        %v3728 = vadd.f32 %v3181, %v3696
        %v3729 = vadd.f32 %v3183, %v3697
        %v3730 = vadd.f32 %v3294, %v3698
        %v3731 = vadd.f32 %v3296, %v3699
        %v3732 = vadd.f32 %v3407, %v3700
        %v3733 = vadd.f32 %v3409, %v3701
        %v3734 = vadd.f32 %v3074, %v3702
        %v3735 = vadd.f32 %v3076, %v3703
        %v3736 = vadd.f32 %v3187, %v3704
        %v3737 = vadd.f32 %v3189, %v3705
        %v3738 = vadd.f32 %v3300, %v3706
        %v3739 = vadd.f32 %v3302, %v3707
        %v3740 = vadd.f32 %v3413, %v3708
        %v3741 = vadd.f32 %v3415, %v3709
        %v3742 = vadd.f32 %v3080, %v3710
        %v3743 = vadd.f32 %v3082, %v3711
        %v3744 = vadd.f32 %v3193, %v3712
        %v3745 = vadd.f32 %v3195, %v3713
        %v3746 = vadd.f32 %v3306, %v3714
        %v3747 = vadd.f32 %v3308, %v3715
        %v3748 = vadd.f32 %v3419, %v3716
        %v3749 = vadd.f32 %v3421, %v3717
        %s3750 = ssub.f32 0.0, %s3652
        %v3751 = vstv %s3750
        %v3752 = vmax.f32 %v3751, %v3718
        %v3753 = vmax.f32 %v3751, %v3719
        %v3754 = vmax.f32 %v3751, %v3720
        %v3755 = vmax.f32 %v3751, %v3721
        %v3756 = vmax.f32 %v3751, %v3722
        %v3757 = vmax.f32 %v3751, %v3723
        %v3758 = vmax.f32 %v3751, %v3724
        %v3759 = vmax.f32 %v3751, %v3725
        %v3760 = vmax.f32 %v3751, %v3726
        %v3761 = vmax.f32 %v3751, %v3727
        %v3762 = vmax.f32 %v3751, %v3728
        %v3763 = vmax.f32 %v3751, %v3729
        %v3764 = vmax.f32 %v3751, %v3730
        %v3765 = vmax.f32 %v3751, %v3731
        %v3766 = vmax.f32 %v3751, %v3732
        %v3767 = vmax.f32 %v3751, %v3733
        %v3768 = vmax.f32 %v3751, %v3734
        %v3769 = vmax.f32 %v3751, %v3735
        %v3770 = vmax.f32 %v3751, %v3736
        %v3771 = vmax.f32 %v3751, %v3737
        %v3772 = vmax.f32 %v3751, %v3738
        %v3773 = vmax.f32 %v3751, %v3739
        %v3774 = vmax.f32 %v3751, %v3740
        %v3775 = vmax.f32 %v3751, %v3741
        %v3776 = vmax.f32 %v3751, %v3742
        %v3777 = vmax.f32 %v3751, %v3743
        %v3778 = vmax.f32 %v3751, %v3744
        %v3779 = vmax.f32 %v3751, %v3745
        %v3780 = vmax.f32 %v3751, %v3746
        %v3781 = vmax.f32 %v3751, %v3747
        %v3782 = vmax.f32 %v3751, %v3748
        %v3783 = vmax.f32 %v3751, %v3749
        %v3784 = vstv %s3652
        %v3785 = vmin.f32 %v3784, %v3752
        %v3786 = vmin.f32 %v3784, %v3753
        %v3787 = vmin.f32 %v3784, %v3754
        %v3788 = vmin.f32 %v3784, %v3755
        %v3789 = vmin.f32 %v3784, %v3756
        %v3790 = vmin.f32 %v3784, %v3757
        %v3791 = vmin.f32 %v3784, %v3758
        %v3792 = vmin.f32 %v3784, %v3759
        %v3793 = vmin.f32 %v3784, %v3760
        %v3794 = vmin.f32 %v3784, %v3761
        %v3795 = vmin.f32 %v3784, %v3762
        %v3796 = vmin.f32 %v3784, %v3763
        %v3797 = vmin.f32 %v3784, %v3764
        %v3798 = vmin.f32 %v3784, %v3765
        %v3799 = vmin.f32 %v3784, %v3766
        %v3800 = vmin.f32 %v3784, %v3767
        %v3801 = vmin.f32 %v3784, %v3768
        %v3802 = vmin.f32 %v3784, %v3769
        %v3803 = vmin.f32 %v3784, %v3770
        %v3804 = vmin.f32 %v3784, %v3771
        %v3805 = vmin.f32 %v3784, %v3772
        %v3806 = vmin.f32 %v3784, %v3773
        %v3807 = vmin.f32 %v3784, %v3774
        %v3808 = vmin.f32 %v3784, %v3775
        %v3809 = vmin.f32 %v3784, %v3776
        %v3810 = vmin.f32 %v3784, %v3777
        %v3811 = vmin.f32 %v3784, %v3778
        %v3812 = vmin.f32 %v3784, %v3779
        %v3813 = vmin.f32 %v3784, %v3780
        %v3814 = vmin.f32 %v3784, %v3781
        %v3815 = vmin.f32 %v3784, %v3782
        %v3816 = vmin.f32 %v3784, %v3783
        %v3817 = vsub.f32 %v3718, %v3785
        %v3818 = vsub.f32 %v3719, %v3786
        %v3819 = vsub.f32 %v3720, %v3787
        %v3820 = vsub.f32 %v3721, %v3788
        %v3821 = vsub.f32 %v3722, %v3789
        %v3822 = vsub.f32 %v3723, %v3790
        %v3823 = vsub.f32 %v3724, %v3791
        %v3824 = vsub.f32 %v3725, %v3792
        %v3825 = vsub.f32 %v3726, %v3793
        %v3826 = vsub.f32 %v3727, %v3794
        %v3827 = vsub.f32 %v3728, %v3795
        %v3828 = vsub.f32 %v3729, %v3796
        %v3829 = vsub.f32 %v3730, %v3797
        %v3830 = vsub.f32 %v3731, %v3798
        %v3831 = vsub.f32 %v3732, %v3799
        %v3832 = vsub.f32 %v3733, %v3800
        %v3833 = vsub.f32 %v3734, %v3801
        %v3834 = vsub.f32 %v3735, %v3802
        %v3835 = vsub.f32 %v3736, %v3803
        %v3836 = vsub.f32 %v3737, %v3804
        %v3837 = vsub.f32 %v3738, %v3805
        %v3838 = vsub.f32 %v3739, %v3806
        %v3839 = vsub.f32 %v3740, %v3807
        %v3840 = vsub.f32 %v3741, %v3808
        %v3841 = vsub.f32 %v3742, %v3809
        %v3842 = vsub.f32 %v3743, %v3810
        %v3843 = vsub.f32 %v3744, %v3811
        %v3844 = vsub.f32 %v3745, %v3812
        %v3845 = vsub.f32 %v3746, %v3813
        %v3846 = vsub.f32 %v3747, %v3814
        %v3847 = vsub.f32 %v3748, %v3815
        %v3848 = vsub.f32 %v3749, %v3816
        %3849 = vst [vmem:[#allocation2 + $0x100] sm:$0xff] %v3817
        %3850 = vst [vmem:[#allocation2 + $0x108] sm:$0xff] %v3818
        %3851 = vst [vmem:[#allocation2 + $0x110] sm:$0xff] %v3819
        %3852 = vst [vmem:[#allocation2 + $0x118] sm:$0xff] %v3820
        %3853 = vst [vmem:[#allocation2 + $0x120] sm:$0xff] %v3821
        %3854 = vst [vmem:[#allocation2 + $0x128] sm:$0xff] %v3822
        %3855 = vst [vmem:[#allocation2 + $0x130] sm:$0xff] %v3823
        %3856 = vst [vmem:[#allocation2 + $0x138] sm:$0xff] %v3824
        %3857 = vst [vmem:[#allocation2 + $0x140] sm:$0xff] %v3825
        %3858 = vst [vmem:[#allocation2 + $0x148] sm:$0xff] %v3826
        %3859 = vst [vmem:[#allocation2 + $0x150] sm:$0xff] %v3827
        %3860 = vst [vmem:[#allocation2 + $0x158] sm:$0xff] %v3828
        %3861 = vst [vmem:[#allocation2 + $0x160] sm:$0xff] %v3829
        %3862 = vst [vmem:[#allocation2 + $0x168] sm:$0xff] %v3830
        %3863 = vst [vmem:[#allocation2 + $0x170] sm:$0xff] %v3831
        %3864 = vst [vmem:[#allocation2 + $0x178] sm:$0xff] %v3832
        %3865 = vst [vmem:[#allocation2 + $0x180] sm:$0xff] %v3833
        %3866 = vst [vmem:[#allocation2 + $0x188] sm:$0xff] %v3834
        %3867 = vst [vmem:[#allocation2 + $0x190] sm:$0xff] %v3835
        %3868 = vst [vmem:[#allocation2 + $0x198] sm:$0xff] %v3836
        %3869 = vst [vmem:[#allocation2 + $0x1a0] sm:$0xff] %v3837
        %3870 = vst [vmem:[#allocation2 + $0x1a8] sm:$0xff] %v3838
        %3871 = vst [vmem:[#allocation2 + $0x1b0] sm:$0xff] %v3839
        %3872 = vst [vmem:[#allocation2 + $0x1b8] sm:$0xff] %v3840
        %3873 = vst [vmem:[#allocation2 + $0x1c0] sm:$0xff] %v3841
        %3874 = vst [vmem:[#allocation2 + $0x1c8] sm:$0xff] %v3842
        %3875 = vst [vmem:[#allocation2 + $0x1d0] sm:$0xff] %v3843
        %3876 = vst [vmem:[#allocation2 + $0x1d8] sm:$0xff] %v3844
        %3877 = vst [vmem:[#allocation2 + $0x1e0] sm:$0xff] %v3845
        %3878 = vst [vmem:[#allocation2 + $0x1e8] sm:$0xff] %v3846
        %3879 = vst [vmem:[#allocation2 + $0x1f0] sm:$0xff] %v3847
        %3880 = vst [vmem:[#allocation2 + $0x1f8] sm:$0xff] %v3848
        %v3881 = vstv %s3651
        %v3882 = vmul.f32 %v3616, %v3881
        %v3883 = vmul.f32 %v3617, %v3881
        %v3884 = vmul.f32 %v3618, %v3881
        %v3885 = vmul.f32 %v3619, %v3881
        %v3886 = vmul.f32 %v3620, %v3881
        %v3887 = vmul.f32 %v3621, %v3881
        %v3888 = vmul.f32 %v3622, %v3881
        %v3889 = vmul.f32 %v3623, %v3881
        %v3890 = vmul.f32 %v3624, %v3881
        %v3891 = vmul.f32 %v3625, %v3881
        %v3892 = vmul.f32 %v3626, %v3881
        %v3893 = vmul.f32 %v3627, %v3881
        %v3894 = vmul.f32 %v3628, %v3881
        %v3895 = vmul.f32 %v3629, %v3881
        %v3896 = vmul.f32 %v3630, %v3881
        %v3897 = vmul.f32 %v3631, %v3881
        %v3898 = vmul.f32 %v3632, %v3881
        %v3899 = vmul.f32 %v3633, %v3881
        %v3900 = vmul.f32 %v3634, %v3881
        %v3901 = vmul.f32 %v3635, %v3881
        %v3902 = vmul.f32 %v3636, %v3881
        %v3903 = vmul.f32 %v3637, %v3881
        %v3904 = vmul.f32 %v3638, %v3881
        %v3905 = vmul.f32 %v3639, %v3881
        %v3906 = vmul.f32 %v3640, %v3881
        %v3907 = vmul.f32 %v3641, %v3881
        %v3908 = vmul.f32 %v3642, %v3881
        %v3909 = vmul.f32 %v3643, %v3881
        %v3910 = vmul.f32 %v3644, %v3881
        %v3911 = vmul.f32 %v3645, %v3881
        %v3912 = vmul.f32 %v3646, %v3881
        %v3913 = vmul.f32 %v3647, %v3881
        %v3914 = vadd.f32 %v3038, %v3882
        %v3915 = vadd.f32 %v3040, %v3883
        %v3916 = vadd.f32 %v3151, %v3884
        %v3917 = vadd.f32 %v3153, %v3885
        %v3918 = vadd.f32 %v3264, %v3886
        %v3919 = vadd.f32 %v3266, %v3887
        %v3920 = vadd.f32 %v3377, %v3888
        %v3921 = vadd.f32 %v3379, %v3889
        %v3922 = vadd.f32 %v3044, %v3890
        %v3923 = vadd.f32 %v3046, %v3891
        %v3924 = vadd.f32 %v3157, %v3892
        %v3925 = vadd.f32 %v3159, %v3893
        %v3926 = vadd.f32 %v3270, %v3894
        %v3927 = vadd.f32 %v3272, %v3895
        %v3928 = vadd.f32 %v3383, %v3896
        %v3929 = vadd.f32 %v3385, %v3897
        %v3930 = vadd.f32 %v3050, %v3898
        %v3931 = vadd.f32 %v3052, %v3899
        %v3932 = vadd.f32 %v3163, %v3900
        %v3933 = vadd.f32 %v3165, %v3901
        %v3934 = vadd.f32 %v3276, %v3902
        %v3935 = vadd.f32 %v3278, %v3903
        %v3936 = vadd.f32 %v3389, %v3904
        %v3937 = vadd.f32 %v3391, %v3905
        %v3938 = vadd.f32 %v3056, %v3906
        %v3939 = vadd.f32 %v3058, %v3907
        %v3940 = vadd.f32 %v3169, %v3908
        %v3941 = vadd.f32 %v3171, %v3909
        %v3942 = vadd.f32 %v3282, %v3910
        %v3943 = vadd.f32 %v3284, %v3911
        %v3944 = vadd.f32 %v3395, %v3912
        %v3945 = vadd.f32 %v3397, %v3913
        %v3946 = vmax.f32 %v3914, 0.0
        %v3947 = vmax.f32 %v3915, 0.0
        %v3948 = vmax.f32 %v3916, 0.0
        %v3949 = vmax.f32 %v3917, 0.0
        %v3950 = vmax.f32 %v3918, 0.0
        %v3951 = vmax.f32 %v3919, 0.0
        %v3952 = vmax.f32 %v3920, 0.0
        %v3953 = vmax.f32 %v3921, 0.0
        %v3954 = vmax.f32 %v3922, 0.0
        %v3955 = vmax.f32 %v3923, 0.0
        %v3956 = vmax.f32 %v3924, 0.0
        %v3957 = vmax.f32 %v3925, 0.0
        %v3958 = vmax.f32 %v3926, 0.0
        %v3959 = vmax.f32 %v3927, 0.0
        %v3960 = vmax.f32 %v3928, 0.0
        %v3961 = vmax.f32 %v3929, 0.0
        %v3962 = vmax.f32 %v3930, 0.0
        %v3963 = vmax.f32 %v3931, 0.0
        %v3964 = vmax.f32 %v3932, 0.0
        %v3965 = vmax.f32 %v3933, 0.0
        %v3966 = vmax.f32 %v3934, 0.0
        %v3967 = vmax.f32 %v3935, 0.0
        %v3968 = vmax.f32 %v3936, 0.0
        %v3969 = vmax.f32 %v3937, 0.0
        %v3970 = vmax.f32 %v3938, 0.0
        %v3971 = vmax.f32 %v3939, 0.0
        %v3972 = vmax.f32 %v3940, 0.0
        %v3973 = vmax.f32 %v3941, 0.0
        %v3974 = vmax.f32 %v3942, 0.0
        %v3975 = vmax.f32 %v3943, 0.0
        %v3976 = vmax.f32 %v3944, 0.0
        %v3977 = vmax.f32 %v3945, 0.0
        %v3978 = vstv %s3649
        %v3979 = vmul.f32 %v3978, %v3946
        %v3980 = vmul.f32 %v3978, %v3947
        %v3981 = vmul.f32 %v3978, %v3948
        %v3982 = vmul.f32 %v3978, %v3949
        %v3983 = vmul.f32 %v3978, %v3950
        %v3984 = vmul.f32 %v3978, %v3951
        %v3985 = vmul.f32 %v3978, %v3952
        %v3986 = vmul.f32 %v3978, %v3953
        %v3987 = vmul.f32 %v3978, %v3954
        %v3988 = vmul.f32 %v3978, %v3955
        %v3989 = vmul.f32 %v3978, %v3956
        %v3990 = vmul.f32 %v3978, %v3957
        %v3991 = vmul.f32 %v3978, %v3958
        %v3992 = vmul.f32 %v3978, %v3959
        %v3993 = vmul.f32 %v3978, %v3960
        %v3994 = vmul.f32 %v3978, %v3961
        %v3995 = vmul.f32 %v3978, %v3962
        %v3996 = vmul.f32 %v3978, %v3963
        %v3997 = vmul.f32 %v3978, %v3964
        %v3998 = vmul.f32 %v3978, %v3965
        %v3999 = vmul.f32 %v3978, %v3966
        %v4000 = vmul.f32 %v3978, %v3967
        %v4001 = vmul.f32 %v3978, %v3968
        %v4002 = vmul.f32 %v3978, %v3969
        %v4003 = vmul.f32 %v3978, %v3970
        %v4004 = vmul.f32 %v3978, %v3971
        %v4005 = vmul.f32 %v3978, %v3972
        %v4006 = vmul.f32 %v3978, %v3973
        %v4007 = vmul.f32 %v3978, %v3974
        %v4008 = vmul.f32 %v3978, %v3975
        %v4009 = vmul.f32 %v3978, %v3976
        %v4010 = vmul.f32 %v3978, %v3977
        %v4011 = vadd.f32 %v413, %v3979
        %v4012 = vadd.f32 %v415, %v3980
        %v4013 = vadd.f32 %v598, %v3981
        %v4014 = vadd.f32 %v600, %v3982
        %v4015 = vadd.f32 %v783, %v3983
        %v4016 = vadd.f32 %v785, %v3984
        %v4017 = vadd.f32 %v968, %v3985
        %v4018 = vadd.f32 %v970, %v3986
        %v4019 = vadd.f32 %v419, %v3987
        %v4020 = vadd.f32 %v421, %v3988
        %v4021 = vadd.f32 %v604, %v3989
        %v4022 = vadd.f32 %v606, %v3990
        %v4023 = vadd.f32 %v789, %v3991
        %v4024 = vadd.f32 %v791, %v3992
        %v4025 = vadd.f32 %v974, %v3993
        %v4026 = vadd.f32 %v976, %v3994
        %v4027 = vadd.f32 %v425, %v3995
        %v4028 = vadd.f32 %v427, %v3996
        %v4029 = vadd.f32 %v610, %v3997
        %v4030 = vadd.f32 %v612, %v3998
        %v4031 = vadd.f32 %v795, %v3999
        %v4032 = vadd.f32 %v797, %v4000
        %v4033 = vadd.f32 %v980, %v4001
        %v4034 = vadd.f32 %v982, %v4002
        %v4035 = vadd.f32 %v431, %v4003
        %v4036 = vadd.f32 %v433, %v4004
        %v4037 = vadd.f32 %v616, %v4005
        %v4038 = vadd.f32 %v618, %v4006
        %v4039 = vadd.f32 %v801, %v4007
        %v4040 = vadd.f32 %v803, %v4008
        %v4041 = vadd.f32 %v986, %v4009
        %v4042 = vadd.f32 %v988, %v4010
        %v4043 = vsub.f32 %v4011, %v3616
        %v4044 = vsub.f32 %v4012, %v3617
        %v4045 = vsub.f32 %v4013, %v3618
        %v4046 = vsub.f32 %v4014, %v3619
        %v4047 = vsub.f32 %v4015, %v3620
        %v4048 = vsub.f32 %v4016, %v3621
        %v4049 = vsub.f32 %v4017, %v3622
        %v4050 = vsub.f32 %v4018, %v3623
        %v4051 = vsub.f32 %v4019, %v3624
        %v4052 = vsub.f32 %v4020, %v3625
        %v4053 = vsub.f32 %v4021, %v3626
        %v4054 = vsub.f32 %v4022, %v3627
        %v4055 = vsub.f32 %v4023, %v3628
        %v4056 = vsub.f32 %v4024, %v3629
        %v4057 = vsub.f32 %v4025, %v3630
        %v4058 = vsub.f32 %v4026, %v3631
        %v4059 = vsub.f32 %v4027, %v3632
        %v4060 = vsub.f32 %v4028, %v3633
        %v4061 = vsub.f32 %v4029, %v3634
        %v4062 = vsub.f32 %v4030, %v3635
        %v4063 = vsub.f32 %v4031, %v3636
        %v4064 = vsub.f32 %v4032, %v3637
        %v4065 = vsub.f32 %v4033, %v3638
        %v4066 = vsub.f32 %v4034, %v3639
        %v4067 = vsub.f32 %v4035, %v3640
        %v4068 = vsub.f32 %v4036, %v3641
        %v4069 = vsub.f32 %v4037, %v3642
        %v4070 = vsub.f32 %v4038, %v3643
        %v4071 = vsub.f32 %v4039, %v3644
        %v4072 = vsub.f32 %v4040, %v3645
        %v4073 = vsub.f32 %v4041, %v3646
        %v4074 = vsub.f32 %v4042, %v3647
        %4075 = vst [vmem:[#allocation2] sm:$0xff] %v4043
        %4076 = vst [vmem:[#allocation2 + $0x8] sm:$0xff] %v4044
        %4077 = vst [vmem:[#allocation2 + $0x10] sm:$0xff] %v4045
        %4078 = vst [vmem:[#allocation2 + $0x18] sm:$0xff] %v4046
        %4079 = vst [vmem:[#allocation2 + $0x20] sm:$0xff] %v4047
        %4080 = vst [vmem:[#allocation2 + $0x28] sm:$0xff] %v4048
        %4081 = vst [vmem:[#allocation2 + $0x30] sm:$0xff] %v4049
        %4082 = vst [vmem:[#allocation2 + $0x38] sm:$0xff] %v4050
        %4083 = vst [vmem:[#allocation2 + $0x40] sm:$0xff] %v4051
        %4084 = vst [vmem:[#allocation2 + $0x48] sm:$0xff] %v4052
        %4085 = vst [vmem:[#allocation2 + $0x50] sm:$0xff] %v4053
        %4086 = vst [vmem:[#allocation2 + $0x58] sm:$0xff] %v4054
        %4087 = vst [vmem:[#allocation2 + $0x60] sm:$0xff] %v4055
        %4088 = vst [vmem:[#allocation2 + $0x68] sm:$0xff] %v4056
        %4089 = vst [vmem:[#allocation2 + $0x70] sm:$0xff] %v4057
        %4090 = vst [vmem:[#allocation2 + $0x78] sm:$0xff] %v4058
        %4091 = vst [vmem:[#allocation2 + $0x80] sm:$0xff] %v4059
        %4092 = vst [vmem:[#allocation2 + $0x88] sm:$0xff] %v4060
        %4093 = vst [vmem:[#allocation2 + $0x90] sm:$0xff] %v4061
        %4094 = vst [vmem:[#allocation2 + $0x98] sm:$0xff] %v4062
        %4095 = vst [vmem:[#allocation2 + $0xa0] sm:$0xff] %v4063
        %4096 = vst [vmem:[#allocation2 + $0xa8] sm:$0xff] %v4064
        %4097 = vst [vmem:[#allocation2 + $0xb0] sm:$0xff] %v4065
        %4098 = vst [vmem:[#allocation2 + $0xb8] sm:$0xff] %v4066
        %4099 = vst [vmem:[#allocation2 + $0xc0] sm:$0xff] %v4067
        %4100 = vst [vmem:[#allocation2 + $0xc8] sm:$0xff] %v4068
        %4101 = vst [vmem:[#allocation2 + $0xd0] sm:$0xff] %v4069
        %4102 = vst [vmem:[#allocation2 + $0xd8] sm:$0xff] %v4070
        %4103 = vst [vmem:[#allocation2 + $0xe0] sm:$0xff] %v4071
        %4104 = vst [vmem:[#allocation2 + $0xe8] sm:$0xff] %v4072
        %4105 = vst [vmem:[#allocation2 + $0xf0] sm:$0xff] %v4073
        %4106 = vst [vmem:[#allocation2 + $0xf8] sm:$0xff] %v4074
        %s4107 = scalar_lea.vmem %s3, 128
        %v4108 = vld [vmem:[%s4107] sm:$0xff]
        %v4109 = vld [vmem:[%s4107 + $0x8] sm:$0xff]
        %v4110 = vld [vmem:[%s4107 + $0x10] sm:$0xff]
        %v4111 = vld [vmem:[%s4107 + $0x18] sm:$0xff]
        %v4112 = vld [vmem:[%s4107 + $0x20] sm:$0xff]
        %v4113 = vld [vmem:[%s4107 + $0x28] sm:$0xff]
        %v4114 = vld [vmem:[%s4107 + $0x30] sm:$0xff]
        %v4115 = vld [vmem:[%s4107 + $0x38] sm:$0xff]
        %v4116 = vld [vmem:[#allocation2] sm:$0xff]
        %v4117 = vld [vmem:[#allocation2 + $0x8] sm:$0xff]
        %v4118 = vld [vmem:[#allocation2 + $0x10] sm:$0xff]
        %v4119 = vld [vmem:[#allocation2 + $0x18] sm:$0xff]
        %v4120 = vld [vmem:[#allocation2 + $0x20] sm:$0xff]
        %v4121 = vld [vmem:[#allocation2 + $0x28] sm:$0xff]
        %v4122 = vld [vmem:[#allocation2 + $0x30] sm:$0xff]
        %v4123 = vld [vmem:[#allocation2 + $0x38] sm:$0xff]
        %v4124 = vld [vmem:[#allocation2 + $0x40] sm:$0xff]
        %v4125 = vld [vmem:[#allocation2 + $0x48] sm:$0xff]
        %v4126 = vld [vmem:[#allocation2 + $0x50] sm:$0xff]
        %v4127 = vld [vmem:[#allocation2 + $0x58] sm:$0xff]
        %v4128 = vld [vmem:[#allocation2 + $0x60] sm:$0xff]
        %v4129 = vld [vmem:[#allocation2 + $0x68] sm:$0xff]
        %v4130 = vld [vmem:[#allocation2 + $0x70] sm:$0xff]
        %v4131 = vld [vmem:[#allocation2 + $0x78] sm:$0xff]
        %v4132 = vld [vmem:[#allocation2 + $0x80] sm:$0xff]
        %v4133 = vld [vmem:[#allocation2 + $0x88] sm:$0xff]
        %v4134 = vld [vmem:[#allocation2 + $0x90] sm:$0xff]
        %v4135 = vld [vmem:[#allocation2 + $0x98] sm:$0xff]
        %v4136 = vld [vmem:[#allocation2 + $0xa0] sm:$0xff]
        %v4137 = vld [vmem:[#allocation2 + $0xa8] sm:$0xff]
        %v4138 = vld [vmem:[#allocation2 + $0xb0] sm:$0xff]
        %v4139 = vld [vmem:[#allocation2 + $0xb8] sm:$0xff]
        %v4140 = vld [vmem:[#allocation2 + $0xc0] sm:$0xff]
        %v4141 = vld [vmem:[#allocation2 + $0xc8] sm:$0xff]
        %v4142 = vld [vmem:[#allocation2 + $0xd0] sm:$0xff]
        %v4143 = vld [vmem:[#allocation2 + $0xd8] sm:$0xff]
        %v4144 = vld [vmem:[#allocation2 + $0xe0] sm:$0xff]
        %v4145 = vld [vmem:[#allocation2 + $0xe8] sm:$0xff]
        %v4146 = vld [vmem:[#allocation2 + $0xf0] sm:$0xff]
        %v4147 = vld [vmem:[#allocation2 + $0xf8] sm:$0xff]
        %v4148 = vld [vmem:[#allocation2 + $0x100] sm:$0xff]
        %v4149 = vld [vmem:[#allocation2 + $0x108] sm:$0xff]
        %v4150 = vld [vmem:[#allocation2 + $0x110] sm:$0xff]
        %v4151 = vld [vmem:[#allocation2 + $0x118] sm:$0xff]
        %v4152 = vld [vmem:[#allocation2 + $0x120] sm:$0xff]
        %v4153 = vld [vmem:[#allocation2 + $0x128] sm:$0xff]
        %v4154 = vld [vmem:[#allocation2 + $0x130] sm:$0xff]
        %v4155 = vld [vmem:[#allocation2 + $0x138] sm:$0xff]
        %v4156 = vld [vmem:[#allocation2 + $0x140] sm:$0xff]
        %v4157 = vld [vmem:[#allocation2 + $0x148] sm:$0xff]
        %v4158 = vld [vmem:[#allocation2 + $0x150] sm:$0xff]
        %v4159 = vld [vmem:[#allocation2 + $0x158] sm:$0xff]
        %v4160 = vld [vmem:[#allocation2 + $0x160] sm:$0xff]
        %v4161 = vld [vmem:[#allocation2 + $0x168] sm:$0xff]
        %v4162 = vld [vmem:[#allocation2 + $0x170] sm:$0xff]
        %v4163 = vld [vmem:[#allocation2 + $0x178] sm:$0xff]
        %v4164 = vld [vmem:[#allocation2 + $0x180] sm:$0xff]
        %v4165 = vld [vmem:[#allocation2 + $0x188] sm:$0xff]
        %v4166 = vld [vmem:[#allocation2 + $0x190] sm:$0xff]
        %v4167 = vld [vmem:[#allocation2 + $0x198] sm:$0xff]
        %v4168 = vld [vmem:[#allocation2 + $0x1a0] sm:$0xff]
        %v4169 = vld [vmem:[#allocation2 + $0x1a8] sm:$0xff]
        %v4170 = vld [vmem:[#allocation2 + $0x1b0] sm:$0xff]
        %v4171 = vld [vmem:[#allocation2 + $0x1b8] sm:$0xff]
        %v4172 = vld [vmem:[#allocation2 + $0x1c0] sm:$0xff]
        %v4173 = vld [vmem:[#allocation2 + $0x1c8] sm:$0xff]
        %v4174 = vld [vmem:[#allocation2 + $0x1d0] sm:$0xff]
        %v4175 = vld [vmem:[#allocation2 + $0x1d8] sm:$0xff]
        %v4176 = vld [vmem:[#allocation2 + $0x1e0] sm:$0xff]
        %v4177 = vld [vmem:[#allocation2 + $0x1e8] sm:$0xff]
        %v4178 = vld [vmem:[#allocation2 + $0x1f0] sm:$0xff]
        %v4179 = vld [vmem:[#allocation2 + $0x1f8] sm:$0xff]
        %v4180 = vld [vmem:[#allocation2 + $0x200] sm:$0xff]
        %v4181 = vld [vmem:[#allocation2 + $0x208] sm:$0xff]
        %v4182 = vld [vmem:[#allocation2 + $0x210] sm:$0xff]
        %v4183 = vld [vmem:[#allocation2 + $0x218] sm:$0xff]
        %v4184 = vld [vmem:[#allocation2 + $0x220] sm:$0xff]
        %v4185 = vld [vmem:[#allocation2 + $0x228] sm:$0xff]
        %v4186 = vld [vmem:[#allocation2 + $0x230] sm:$0xff]
        %v4187 = vld [vmem:[#allocation2 + $0x238] sm:$0xff]
        %v4188 = vld [vmem:[#allocation2 + $0x240] sm:$0xff]
        %v4189 = vld [vmem:[#allocation2 + $0x248] sm:$0xff]
        %v4190 = vld [vmem:[#allocation2 + $0x250] sm:$0xff]
        %v4191 = vld [vmem:[#allocation2 + $0x258] sm:$0xff]
        %v4192 = vld [vmem:[#allocation2 + $0x260] sm:$0xff]
        %v4193 = vld [vmem:[#allocation2 + $0x268] sm:$0xff]
        %v4194 = vld [vmem:[#allocation2 + $0x270] sm:$0xff]
        %v4195 = vld [vmem:[#allocation2 + $0x278] sm:$0xff]
        %v4196 = vld [vmem:[#allocation2 + $0x280] sm:$0xff]
        %v4197 = vld [vmem:[#allocation2 + $0x288] sm:$0xff]
        %v4198 = vld [vmem:[#allocation2 + $0x290] sm:$0xff]
        %v4199 = vld [vmem:[#allocation2 + $0x298] sm:$0xff]
        %v4200 = vld [vmem:[#allocation2 + $0x2a0] sm:$0xff]
        %v4201 = vld [vmem:[#allocation2 + $0x2a8] sm:$0xff]
        %v4202 = vld [vmem:[#allocation2 + $0x2b0] sm:$0xff]
        %v4203 = vld [vmem:[#allocation2 + $0x2b8] sm:$0xff]
        %v4204 = vld [vmem:[#allocation2 + $0x2c0] sm:$0xff]
        %v4205 = vld [vmem:[#allocation2 + $0x2c8] sm:$0xff]
        %v4206 = vld [vmem:[#allocation2 + $0x2d0] sm:$0xff]
        %v4207 = vld [vmem:[#allocation2 + $0x2d8] sm:$0xff]
        %v4208 = vld [vmem:[#allocation2 + $0x2e0] sm:$0xff]
        %v4209 = vld [vmem:[#allocation2 + $0x2e8] sm:$0xff]
        %v4210 = vld [vmem:[#allocation2 + $0x2f0] sm:$0xff]
        %v4211 = vld [vmem:[#allocation2 + $0x2f8] sm:$0xff]
        %v4213 = vsel %vm1681, %v4108, 0
        %v4216 = vsel %vm1681, %v4109, 0
        %v4219 = vsel %vm1681, %v4110, 0
        %v4222 = vsel %vm1681, %v4111, 0
        %v4225 = vsel %vm1681, %v4112, 0
        %v4228 = vsel %vm1681, %v4113, 0
        %v4231 = vsel %vm1681, %v4114, 0
        %v4234 = vsel %vm1681, %v4115, 0
        %4236 = vmatprep.subr.mxu0 %v4117
        %4237 = vmatpush1.msra.mxu0 %v4116
        %4238 = vmatprep.subr.mxu0 %v4125
        %4239 = vmatpush1.msra.mxu0 %v4124
        %4240 = vmatprep.subr.mxu0 %v4133
        %4241 = vmatpush1.msra.mxu0 %v4132
        %4242 = vmatprep.subr.mxu0 %v4141
        %4243 = vmatpush1.msra.mxu0 %v4140
        %4244 = vmatprep.subr.mxu0 %v4149
        %4245 = vmatpush1.msra.mxu0 %v4148
        %4246 = vmatprep.subr.mxu0 %v4157
        %4247 = vmatpush1.msra.mxu0 %v4156
        %4248 = vmatprep.subr.mxu0 %v4165
        %4249 = vmatpush1.msra.mxu0 %v4164
        %4250 = vmatprep.subr.mxu0 %v4173
        %4251 = vmatpush1.msra.mxu0 %v4172
        %4252 = vmatprep.subr.mxu0 %v4181
        %4253 = vmatpush1.msra.mxu0 %v4180
        %4254 = vmatprep.subr.mxu0 %v4189
        %4255 = vmatpush1.msra.mxu0 %v4188
        %4256 = vmatprep.subr.mxu0 %v4197
        %4257 = vmatpush1.msra.mxu0 %v4196
        %4258 = vmatprep.subr.mxu0 %v4205
        %4259 = vmatpush1.msra.mxu0 %v4204
        %4260 = vmatprep.subr.mxu0 0.0
        %4261 = vmatpush1.msra.mxu0 0.0
        %4262 = vmatprep.subr.mxu0 0.0
        %4263 = vmatpush1.msra.mxu0 0.0
        %4264 = vmatprep.subr.mxu0 0.0
        %4265 = vmatpush1.msra.mxu0 0.0
        %4266 = vmatprep.subr.mxu0 0.0
        %4267 = vmatpush1.msra.mxu0 0.0
        %4268 = vmatprep.subr.mxu0 0.0
        %4269 = vmatpush1.msra.mxu0 0.0
        %4270 = vmatprep.subr.mxu0 0.0
        %4271 = vmatpush1.msra.mxu0 0.0
        %4272 = vmatprep.subr.mxu0 0.0
        %4273 = vmatpush1.msra.mxu0 0.0
        %4274 = vmatprep.subr.mxu0 0.0
        %4275 = vmatpush1.msra.mxu0 0.0
        %4276 = vmatprep.subr.mxu0 0.0
        %4277 = vmatpush1.msra.mxu0 0.0
        %4278 = vmatprep.subr.mxu0 0.0
        %4279 = vmatpush1.msra.mxu0 0.0
        %4280 = vmatprep.subr.mxu0 0.0
        %4281 = vmatpush1.msra.mxu0 0.0
        %4282 = vmatprep.subr.mxu0 0.0
        %4283 = vmatpush1.msra.mxu0 0.0
        %4284 = vmatprep.subr.mxu0 0.0
        %4285 = vmatpush1.msra.mxu0 0.0
        %4286 = vmatprep.subr.mxu0 0.0
        %4287 = vmatpush1.msra.mxu0 0.0
        %4288 = vmatprep.subr.mxu0 0.0
        %4289 = vmatpush1.msra.mxu0 0.0
        %4290 = vmatprep.subr.mxu0 0.0
        %4291 = vmatpush1.msra.mxu0 0.0
        %4292 = vmatprep.subr.mxu0 0.0
        %4293 = vmatpush1.msra.mxu0 0.0
        %4294 = vmatprep.subr.mxu0 0.0
        %4295 = vmatpush1.msra.mxu0 0.0
        %4296 = vmatprep.subr.mxu0 0.0
        %4297 = vmatpush1.msra.mxu0 0.0
        %4298 = vmatprep.subr.mxu0 0.0
        %4299 = vmatpush1.msra.mxu0 0.0
        %4300 = vmatprep.mubr.f32.mxu0 0.0
        %4301 = vmatmul.mubr.f32.gmra.mrb[0].mxu0 %v4213
        %v4302 = vpop.f32.mrb[0].mxu0
        %v4303 = vadd.f32 0.0, %v4302
        %v4304 = vpop.f32.mrb[0].mxu0
        %v4305 = vadd.f32 0.0, %v4304
        %4306 = vmatprep.mubr.f32.mxu0 0.0
        %4307 = vmatmul.mubr.f32.gmra.mrb[0].mxu0 %v4216
        %v4308 = vpop.f32.mrb[0].mxu0
        %v4309 = vadd.f32 0.0, %v4308
        %v4310 = vpop.f32.mrb[0].mxu0
        %v4311 = vadd.f32 0.0, %v4310
        %4312 = vmatprep.mubr.f32.mxu0 0.0
        %4313 = vmatmul.mubr.f32.gmra.mrb[0].mxu0 %v4219
        %v4314 = vpop.f32.mrb[0].mxu0
        %v4315 = vadd.f32 0.0, %v4314
        %v4316 = vpop.f32.mrb[0].mxu0
        %v4317 = vadd.f32 0.0, %v4316
        %4318 = vmatprep.mubr.f32.mxu0 0.0
        %4319 = vmatmul.mubr.f32.gmra.mrb[0].mxu0 %v4222
        %v4320 = vpop.f32.mrb[0].mxu0
        %v4321 = vadd.f32 0.0, %v4320
        %v4322 = vpop.f32.mrb[0].mxu0
        %v4323 = vadd.f32 0.0, %v4322
        %4324 = vmatprep.mubr.f32.mxu0 0.0
        %4325 = vmatmul.mubr.f32.gmra.mrb[0].mxu0 %v4225
        %v4326 = vpop.f32.mrb[0].mxu0
        %v4327 = vadd.f32 0.0, %v4326
        %v4328 = vpop.f32.mrb[0].mxu0
        %v4329 = vadd.f32 0.0, %v4328
        %4330 = vmatprep.mubr.f32.mxu0 0.0
        %4331 = vmatmul.mubr.f32.gmra.mrb[0].mxu0 %v4228
        %v4332 = vpop.f32.mrb[0].mxu0
        %v4333 = vadd.f32 0.0, %v4332
        %v4334 = vpop.f32.mrb[0].mxu0
        %v4335 = vadd.f32 0.0, %v4334
        %4336 = vmatprep.mubr.f32.mxu0 0.0
        %4337 = vmatmul.mubr.f32.gmra.mrb[0].mxu0 %v4231
        %v4338 = vpop.f32.mrb[0].mxu0
        %v4339 = vadd.f32 0.0, %v4338
        %v4340 = vpop.f32.mrb[0].mxu0
        %v4341 = vadd.f32 0.0, %v4340
        %4342 = vmatprep.mubr.f32.mxu0 0.0
        %4343 = vmatmul.mubr.f32.gmra.mrb[0].mxu0 %v4234
        %v4344 = vpop.f32.mrb[0].mxu0
        %v4345 = vadd.f32 0.0, %v4344
        %v4346 = vpop.f32.mrb[0].mxu0
        %v4347 = vadd.f32 0.0, %v4346
        %4348 = vdwg.mxu0
        %4349 = vmatprep.subr.mxu0 %v4119
        %4350 = vmatpush1.msra.mxu0 %v4118
        %4351 = vmatprep.subr.mxu0 %v4127
        %4352 = vmatpush1.msra.mxu0 %v4126
        %4353 = vmatprep.subr.mxu0 %v4135
        %4354 = vmatpush1.msra.mxu0 %v4134
        %4355 = vmatprep.subr.mxu0 %v4143
        %4356 = vmatpush1.msra.mxu0 %v4142
        %4357 = vmatprep.subr.mxu0 %v4151
        %4358 = vmatpush1.msra.mxu0 %v4150
        %4359 = vmatprep.subr.mxu0 %v4159
        %4360 = vmatpush1.msra.mxu0 %v4158
        %4361 = vmatprep.subr.mxu0 %v4167
        %4362 = vmatpush1.msra.mxu0 %v4166
        %4363 = vmatprep.subr.mxu0 %v4175
        %4364 = vmatpush1.msra.mxu0 %v4174
        %4365 = vmatprep.subr.mxu0 %v4183
        %4366 = vmatpush1.msra.mxu0 %v4182
        %4367 = vmatprep.subr.mxu0 %v4191
        %4368 = vmatpush1.msra.mxu0 %v4190
        %4369 = vmatprep.subr.mxu0 %v4199
        %4370 = vmatpush1.msra.mxu0 %v4198
        %4371 = vmatprep.subr.mxu0 %v4207
        %4372 = vmatpush1.msra.mxu0 %v4206
        %4373 = vmatprep.subr.mxu0 0.0
        %4374 = vmatpush1.msra.mxu0 0.0
        %4375 = vmatprep.subr.mxu0 0.0
        %4376 = vmatpush1.msra.mxu0 0.0
        %4377 = vmatprep.subr.mxu0 0.0
        %4378 = vmatpush1.msra.mxu0 0.0
        %4379 = vmatprep.subr.mxu0 0.0
        %4380 = vmatpush1.msra.mxu0 0.0
        %4381 = vmatprep.subr.mxu0 0.0
        %4382 = vmatpush1.msra.mxu0 0.0
        %4383 = vmatprep.subr.mxu0 0.0
        %4384 = vmatpush1.msra.mxu0 0.0
        %4385 = vmatprep.subr.mxu0 0.0
        %4386 = vmatpush1.msra.mxu0 0.0
        %4387 = vmatprep.subr.mxu0 0.0
        %4388 = vmatpush1.msra.mxu0 0.0
        %4389 = vmatprep.subr.mxu0 0.0
        %4390 = vmatpush1.msra.mxu0 0.0
        %4391 = vmatprep.subr.mxu0 0.0
        %4392 = vmatpush1.msra.mxu0 0.0
        %4393 = vmatprep.subr.mxu0 0.0
        %4394 = vmatpush1.msra.mxu0 0.0
        %4395 = vmatprep.subr.mxu0 0.0
        %4396 = vmatpush1.msra.mxu0 0.0
        %4397 = vmatprep.subr.mxu0 0.0
        %4398 = vmatpush1.msra.mxu0 0.0
        %4399 = vmatprep.subr.mxu0 0.0
        %4400 = vmatpush1.msra.mxu0 0.0
        %4401 = vmatprep.subr.mxu0 0.0
        %4402 = vmatpush1.msra.mxu0 0.0
        %4403 = vmatprep.subr.mxu0 0.0
        %4404 = vmatpush1.msra.mxu0 0.0
        %4405 = vmatprep.subr.mxu0 0.0
        %4406 = vmatpush1.msra.mxu0 0.0
        %4407 = vmatprep.subr.mxu0 0.0
        %4408 = vmatpush1.msra.mxu0 0.0
        %4409 = vmatprep.subr.mxu0 0.0
        %4410 = vmatpush1.msra.mxu0 0.0
        %4411 = vmatprep.subr.mxu0 0.0
        %4412 = vmatpush1.msra.mxu0 0.0
        %4413 = vmatprep.mubr.f32.mxu0 0.0
        %4414 = vmatmul.mubr.f32.gmra.mrb[0].mxu0 %v4213
        %v4415 = vpop.f32.mrb[0].mxu0
        %v4416 = vadd.f32 0.0, %v4415
        %v4417 = vpop.f32.mrb[0].mxu0
        %v4418 = vadd.f32 0.0, %v4417
        %4419 = vmatprep.mubr.f32.mxu0 0.0
        %4420 = vmatmul.mubr.f32.gmra.mrb[0].mxu0 %v4216
        %v4421 = vpop.f32.mrb[0].mxu0
        %v4422 = vadd.f32 0.0, %v4421
        %v4423 = vpop.f32.mrb[0].mxu0
        %v4424 = vadd.f32 0.0, %v4423
        %4425 = vmatprep.mubr.f32.mxu0 0.0
        %4426 = vmatmul.mubr.f32.gmra.mrb[0].mxu0 %v4219
        %v4427 = vpop.f32.mrb[0].mxu0
        %v4428 = vadd.f32 0.0, %v4427
        %v4429 = vpop.f32.mrb[0].mxu0
        %v4430 = vadd.f32 0.0, %v4429
        %4431 = vmatprep.mubr.f32.mxu0 0.0
        %4432 = vmatmul.mubr.f32.gmra.mrb[0].mxu0 %v4222
        %v4433 = vpop.f32.mrb[0].mxu0
        %v4434 = vadd.f32 0.0, %v4433
        %v4435 = vpop.f32.mrb[0].mxu0
        %v4436 = vadd.f32 0.0, %v4435
        %4437 = vmatprep.mubr.f32.mxu0 0.0
        %4438 = vmatmul.mubr.f32.gmra.mrb[0].mxu0 %v4225
        %v4439 = vpop.f32.mrb[0].mxu0
        %v4440 = vadd.f32 0.0, %v4439
        %v4441 = vpop.f32.mrb[0].mxu0
        %v4442 = vadd.f32 0.0, %v4441
        %4443 = vmatprep.mubr.f32.mxu0 0.0
        %4444 = vmatmul.mubr.f32.gmra.mrb[0].mxu0 %v4228
        %v4445 = vpop.f32.mrb[0].mxu0
        %v4446 = vadd.f32 0.0, %v4445
        %v4447 = vpop.f32.mrb[0].mxu0
        %v4448 = vadd.f32 0.0, %v4447
        %4449 = vmatprep.mubr.f32.mxu0 0.0
        %4450 = vmatmul.mubr.f32.gmra.mrb[0].mxu0 %v4231
        %v4451 = vpop.f32.mrb[0].mxu0
        %v4452 = vadd.f32 0.0, %v4451
        %v4453 = vpop.f32.mrb[0].mxu0
        %v4454 = vadd.f32 0.0, %v4453
        %4455 = vmatprep.mubr.f32.mxu0 0.0
        %4456 = vmatmul.mubr.f32.gmra.mrb[0].mxu0 %v4234
        %v4457 = vpop.f32.mrb[0].mxu0
        %v4458 = vadd.f32 0.0, %v4457
        %v4459 = vpop.f32.mrb[0].mxu0
        %v4460 = vadd.f32 0.0, %v4459
        %4461 = vdwg.mxu0
        %4462 = vmatprep.subr.mxu0 %v4121
        %4463 = vmatpush1.msra.mxu0 %v4120
        %4464 = vmatprep.subr.mxu0 %v4129
        %4465 = vmatpush1.msra.mxu0 %v4128
        %4466 = vmatprep.subr.mxu0 %v4137
        %4467 = vmatpush1.msra.mxu0 %v4136
        %4468 = vmatprep.subr.mxu0 %v4145
        %4469 = vmatpush1.msra.mxu0 %v4144
        %4470 = vmatprep.subr.mxu0 %v4153
        %4471 = vmatpush1.msra.mxu0 %v4152
        %4472 = vmatprep.subr.mxu0 %v4161
        %4473 = vmatpush1.msra.mxu0 %v4160
        %4474 = vmatprep.subr.mxu0 %v4169
        %4475 = vmatpush1.msra.mxu0 %v4168
        %4476 = vmatprep.subr.mxu0 %v4177
        %4477 = vmatpush1.msra.mxu0 %v4176
        %4478 = vmatprep.subr.mxu0 %v4185
        %4479 = vmatpush1.msra.mxu0 %v4184
        %4480 = vmatprep.subr.mxu0 %v4193
        %4481 = vmatpush1.msra.mxu0 %v4192
        %4482 = vmatprep.subr.mxu0 %v4201
        %4483 = vmatpush1.msra.mxu0 %v4200
        %4484 = vmatprep.subr.mxu0 %v4209
        %4485 = vmatpush1.msra.mxu0 %v4208
        %4486 = vmatprep.subr.mxu0 0.0
        %4487 = vmatpush1.msra.mxu0 0.0
        %4488 = vmatprep.subr.mxu0 0.0
        %4489 = vmatpush1.msra.mxu0 0.0
        %4490 = vmatprep.subr.mxu0 0.0
        %4491 = vmatpush1.msra.mxu0 0.0
        %4492 = vmatprep.subr.mxu0 0.0
        %4493 = vmatpush1.msra.mxu0 0.0
        %4494 = vmatprep.subr.mxu0 0.0
        %4495 = vmatpush1.msra.mxu0 0.0
        %4496 = vmatprep.subr.mxu0 0.0
        %4497 = vmatpush1.msra.mxu0 0.0
        %4498 = vmatprep.subr.mxu0 0.0
        %4499 = vmatpush1.msra.mxu0 0.0
        %4500 = vmatprep.subr.mxu0 0.0
        %4501 = vmatpush1.msra.mxu0 0.0
        %4502 = vmatprep.subr.mxu0 0.0
        %4503 = vmatpush1.msra.mxu0 0.0
        %4504 = vmatprep.subr.mxu0 0.0
        %4505 = vmatpush1.msra.mxu0 0.0
        %4506 = vmatprep.subr.mxu0 0.0
        %4507 = vmatpush1.msra.mxu0 0.0
        %4508 = vmatprep.subr.mxu0 0.0
        %4509 = vmatpush1.msra.mxu0 0.0
        %4510 = vmatprep.subr.mxu0 0.0
        %4511 = vmatpush1.msra.mxu0 0.0
        %4512 = vmatprep.subr.mxu0 0.0
        %4513 = vmatpush1.msra.mxu0 0.0
        %4514 = vmatprep.subr.mxu0 0.0
        %4515 = vmatpush1.msra.mxu0 0.0
        %4516 = vmatprep.subr.mxu0 0.0
        %4517 = vmatpush1.msra.mxu0 0.0
        %4518 = vmatprep.subr.mxu0 0.0
        %4519 = vmatpush1.msra.mxu0 0.0
        %4520 = vmatprep.subr.mxu0 0.0
        %4521 = vmatpush1.msra.mxu0 0.0
        %4522 = vmatprep.subr.mxu0 0.0
        %4523 = vmatpush1.msra.mxu0 0.0
        %4524 = vmatprep.subr.mxu0 0.0
        %4525 = vmatpush1.msra.mxu0 0.0
        %4526 = vmatprep.mubr.f32.mxu0 0.0
        %4527 = vmatmul.mubr.f32.gmra.mrb[0].mxu0 %v4213
        %v4528 = vpop.f32.mrb[0].mxu0
        %v4529 = vadd.f32 0.0, %v4528
        %v4530 = vpop.f32.mrb[0].mxu0
        %v4531 = vadd.f32 0.0, %v4530
        %4532 = vmatprep.mubr.f32.mxu0 0.0
        %4533 = vmatmul.mubr.f32.gmra.mrb[0].mxu0 %v4216
        %v4534 = vpop.f32.mrb[0].mxu0
        %v4535 = vadd.f32 0.0, %v4534
        %v4536 = vpop.f32.mrb[0].mxu0
        %v4537 = vadd.f32 0.0, %v4536
        %4538 = vmatprep.mubr.f32.mxu0 0.0
        %4539 = vmatmul.mubr.f32.gmra.mrb[0].mxu0 %v4219
        %v4540 = vpop.f32.mrb[0].mxu0
        %v4541 = vadd.f32 0.0, %v4540
        %v4542 = vpop.f32.mrb[0].mxu0
        %v4543 = vadd.f32 0.0, %v4542
        %4544 = vmatprep.mubr.f32.mxu0 0.0
        %4545 = vmatmul.mubr.f32.gmra.mrb[0].mxu0 %v4222
        %v4546 = vpop.f32.mrb[0].mxu0
        %v4547 = vadd.f32 0.0, %v4546
        %v4548 = vpop.f32.mrb[0].mxu0
        %v4549 = vadd.f32 0.0, %v4548
        %4550 = vmatprep.mubr.f32.mxu0 0.0
        %4551 = vmatmul.mubr.f32.gmra.mrb[0].mxu0 %v4225
        %v4552 = vpop.f32.mrb[0].mxu0
        %v4553 = vadd.f32 0.0, %v4552
        %v4554 = vpop.f32.mrb[0].mxu0
        %v4555 = vadd.f32 0.0, %v4554
        %4556 = vmatprep.mubr.f32.mxu0 0.0
        %4557 = vmatmul.mubr.f32.gmra.mrb[0].mxu0 %v4228
        %v4558 = vpop.f32.mrb[0].mxu0
        %v4559 = vadd.f32 0.0, %v4558
        %v4560 = vpop.f32.mrb[0].mxu0
        %v4561 = vadd.f32 0.0, %v4560
        %4562 = vmatprep.mubr.f32.mxu0 0.0
        %4563 = vmatmul.mubr.f32.gmra.mrb[0].mxu0 %v4231
        %v4564 = vpop.f32.mrb[0].mxu0
        %v4565 = vadd.f32 0.0, %v4564
        %v4566 = vpop.f32.mrb[0].mxu0
        %v4567 = vadd.f32 0.0, %v4566
        %4568 = vmatprep.mubr.f32.mxu0 0.0
        %4569 = vmatmul.mubr.f32.gmra.mrb[0].mxu0 %v4234
        %v4570 = vpop.f32.mrb[0].mxu0
        %v4571 = vadd.f32 0.0, %v4570
        %v4572 = vpop.f32.mrb[0].mxu0
        %v4573 = vadd.f32 0.0, %v4572
        %4574 = vdwg.mxu0
        %4575 = vmatprep.subr.mxu0 %v4123
        %4576 = vmatpush1.msra.mxu0 %v4122
        %4577 = vmatprep.subr.mxu0 %v4131
        %4578 = vmatpush1.msra.mxu0 %v4130
        %4579 = vmatprep.subr.mxu0 %v4139
        %4580 = vmatpush1.msra.mxu0 %v4138
        %4581 = vmatprep.subr.mxu0 %v4147
        %4582 = vmatpush1.msra.mxu0 %v4146
        %4583 = vmatprep.subr.mxu0 %v4155
        %4584 = vmatpush1.msra.mxu0 %v4154
        %4585 = vmatprep.subr.mxu0 %v4163
        %4586 = vmatpush1.msra.mxu0 %v4162
        %4587 = vmatprep.subr.mxu0 %v4171
        %4588 = vmatpush1.msra.mxu0 %v4170
        %4589 = vmatprep.subr.mxu0 %v4179
        %4590 = vmatpush1.msra.mxu0 %v4178
        %4591 = vmatprep.subr.mxu0 %v4187
        %4592 = vmatpush1.msra.mxu0 %v4186
        %4593 = vmatprep.subr.mxu0 %v4195
        %4594 = vmatpush1.msra.mxu0 %v4194
        %4595 = vmatprep.subr.mxu0 %v4203
        %4596 = vmatpush1.msra.mxu0 %v4202
        %4597 = vmatprep.subr.mxu0 %v4211
        %4598 = vmatpush1.msra.mxu0 %v4210
        %4599 = vmatprep.subr.mxu0 0.0
        %4600 = vmatpush1.msra.mxu0 0.0
        %4601 = vmatprep.subr.mxu0 0.0
        %4602 = vmatpush1.msra.mxu0 0.0
        %4603 = vmatprep.subr.mxu0 0.0
        %4604 = vmatpush1.msra.mxu0 0.0
        %4605 = vmatprep.subr.mxu0 0.0
        %4606 = vmatpush1.msra.mxu0 0.0
        %4607 = vmatprep.subr.mxu0 0.0
        %4608 = vmatpush1.msra.mxu0 0.0
        %4609 = vmatprep.subr.mxu0 0.0
        %4610 = vmatpush1.msra.mxu0 0.0
        %4611 = vmatprep.subr.mxu0 0.0
        %4612 = vmatpush1.msra.mxu0 0.0
        %4613 = vmatprep.subr.mxu0 0.0
        %4614 = vmatpush1.msra.mxu0 0.0
        %4615 = vmatprep.subr.mxu0 0.0
        %4616 = vmatpush1.msra.mxu0 0.0
        %4617 = vmatprep.subr.mxu0 0.0
        %4618 = vmatpush1.msra.mxu0 0.0
        %4619 = vmatprep.subr.mxu0 0.0
        %4620 = vmatpush1.msra.mxu0 0.0
        %4621 = vmatprep.subr.mxu0 0.0
        %4622 = vmatpush1.msra.mxu0 0.0
        %4623 = vmatprep.subr.mxu0 0.0
        %4624 = vmatpush1.msra.mxu0 0.0
        %4625 = vmatprep.subr.mxu0 0.0
        %4626 = vmatpush1.msra.mxu0 0.0
        %4627 = vmatprep.subr.mxu0 0.0
        %4628 = vmatpush1.msra.mxu0 0.0
        %4629 = vmatprep.subr.mxu0 0.0
        %4630 = vmatpush1.msra.mxu0 0.0
        %4631 = vmatprep.subr.mxu0 0.0
        %4632 = vmatpush1.msra.mxu0 0.0
        %4633 = vmatprep.subr.mxu0 0.0
        %4634 = vmatpush1.msra.mxu0 0.0
        %4635 = vmatprep.subr.mxu0 0.0
        %4636 = vmatpush1.msra.mxu0 0.0
        %4637 = vmatprep.subr.mxu0 0.0
        %4638 = vmatpush1.msra.mxu0 0.0
        %4639 = vmatprep.mubr.f32.mxu0 0.0
        %4640 = vmatmul.mubr.f32.gmra.mrb[0].mxu0 %v4213
        %v4641 = vpop.f32.mrb[0].mxu0
        %v4642 = vadd.f32 0.0, %v4641
        %v4643 = vpop.f32.mrb[0].mxu0
        %v4644 = vadd.f32 0.0, %v4643
        %4645 = vmatprep.mubr.f32.mxu0 0.0
        %4646 = vmatmul.mubr.f32.gmra.mrb[0].mxu0 %v4216
        %v4647 = vpop.f32.mrb[0].mxu0
        %v4648 = vadd.f32 0.0, %v4647
        %v4649 = vpop.f32.mrb[0].mxu0
        %v4650 = vadd.f32 0.0, %v4649
        %4651 = vmatprep.mubr.f32.mxu0 0.0
        %4652 = vmatmul.mubr.f32.gmra.mrb[0].mxu0 %v4219
        %v4653 = vpop.f32.mrb[0].mxu0
        %v4654 = vadd.f32 0.0, %v4653
        %v4655 = vpop.f32.mrb[0].mxu0
        %v4656 = vadd.f32 0.0, %v4655
        %4657 = vmatprep.mubr.f32.mxu0 0.0
        %4658 = vmatmul.mubr.f32.gmra.mrb[0].mxu0 %v4222
        %v4659 = vpop.f32.mrb[0].mxu0
        %v4660 = vadd.f32 0.0, %v4659
        %v4661 = vpop.f32.mrb[0].mxu0
        %v4662 = vadd.f32 0.0, %v4661
        %4663 = vmatprep.mubr.f32.mxu0 0.0
        %4664 = vmatmul.mubr.f32.gmra.mrb[0].mxu0 %v4225
        %v4665 = vpop.f32.mrb[0].mxu0
        %v4666 = vadd.f32 0.0, %v4665
        %v4667 = vpop.f32.mrb[0].mxu0
        %v4668 = vadd.f32 0.0, %v4667
        %4669 = vmatprep.mubr.f32.mxu0 0.0
        %4670 = vmatmul.mubr.f32.gmra.mrb[0].mxu0 %v4228
        %v4671 = vpop.f32.mrb[0].mxu0
        %v4672 = vadd.f32 0.0, %v4671
        %v4673 = vpop.f32.mrb[0].mxu0
        %v4674 = vadd.f32 0.0, %v4673
        %4675 = vmatprep.mubr.f32.mxu0 0.0
        %4676 = vmatmul.mubr.f32.gmra.mrb[0].mxu0 %v4231
        %v4677 = vpop.f32.mrb[0].mxu0
        %v4678 = vadd.f32 0.0, %v4677
        %v4679 = vpop.f32.mrb[0].mxu0
        %v4680 = vadd.f32 0.0, %v4679
        %4681 = vmatprep.mubr.f32.mxu0 0.0
        %4682 = vmatmul.mubr.f32.gmra.mrb[0].mxu0 %v4234
        %v4683 = vpop.f32.mrb[0].mxu0
        %v4684 = vadd.f32 0.0, %v4683
        %v4685 = vpop.f32.mrb[0].mxu0
        %v4686 = vadd.f32 0.0, %v4685
        %4687 = vdwg.mxu0
        %v4688 = vsub.f32 %v4327, %v3817
        %v4689 = vsub.f32 %v4329, %v3818
        %v4690 = vsub.f32 %v4440, %v3819
        %v4691 = vsub.f32 %v4442, %v3820
        %v4692 = vsub.f32 %v4553, %v3821
        %v4693 = vsub.f32 %v4555, %v3822
        %v4694 = vsub.f32 %v4666, %v3823
        %v4695 = vsub.f32 %v4668, %v3824
        %v4696 = vsub.f32 %v4333, %v3825
        %v4697 = vsub.f32 %v4335, %v3826
        %v4698 = vsub.f32 %v4446, %v3827
        %v4699 = vsub.f32 %v4448, %v3828
        %v4700 = vsub.f32 %v4559, %v3829
        %v4701 = vsub.f32 %v4561, %v3830
        %v4702 = vsub.f32 %v4672, %v3831
        %v4703 = vsub.f32 %v4674, %v3832
        %v4704 = vsub.f32 %v4339, %v3833
        %v4705 = vsub.f32 %v4341, %v3834
        %v4706 = vsub.f32 %v4452, %v3835
        %v4707 = vsub.f32 %v4454, %v3836
        %v4708 = vsub.f32 %v4565, %v3837
        %v4709 = vsub.f32 %v4567, %v3838
        %v4710 = vsub.f32 %v4678, %v3839
        %v4711 = vsub.f32 %v4680, %v3840
        %v4712 = vsub.f32 %v4345, %v3841
        %v4713 = vsub.f32 %v4347, %v3842
        %v4714 = vsub.f32 %v4458, %v3843
        %v4715 = vsub.f32 %v4460, %v3844
        %v4716 = vsub.f32 %v4571, %v3845
        %v4717 = vsub.f32 %v4573, %v3846
        %v4718 = vsub.f32 %v4684, %v3847
        %v4719 = vsub.f32 %v4686, %v3848
        %v4720 = vstv %s3648
        %v4721 = vmul.f32 %v4720, %v4688
        %v4722 = vmul.f32 %v4720, %v4689
        %v4723 = vmul.f32 %v4720, %v4690
        %v4724 = vmul.f32 %v4720, %v4691
        %v4725 = vmul.f32 %v4720, %v4692
        %v4726 = vmul.f32 %v4720, %v4693
        %v4727 = vmul.f32 %v4720, %v4694
        %v4728 = vmul.f32 %v4720, %v4695
        %v4729 = vmul.f32 %v4720, %v4696
        %v4730 = vmul.f32 %v4720, %v4697
        %v4731 = vmul.f32 %v4720, %v4698
        %v4732 = vmul.f32 %v4720, %v4699
        %v4733 = vmul.f32 %v4720, %v4700
        %v4734 = vmul.f32 %v4720, %v4701
        %v4735 = vmul.f32 %v4720, %v4702
        %v4736 = vmul.f32 %v4720, %v4703
        %v4737 = vmul.f32 %v4720, %v4704
        %v4738 = vmul.f32 %v4720, %v4705
        %v4739 = vmul.f32 %v4720, %v4706
        %v4740 = vmul.f32 %v4720, %v4707
        %v4741 = vmul.f32 %v4720, %v4708
        %v4742 = vmul.f32 %v4720, %v4709
        %v4743 = vmul.f32 %v4720, %v4710
        %v4744 = vmul.f32 %v4720, %v4711
        %v4745 = vmul.f32 %v4720, %v4712
        %v4746 = vmul.f32 %v4720, %v4713
        %v4747 = vmul.f32 %v4720, %v4714
        %v4748 = vmul.f32 %v4720, %v4715
        %v4749 = vmul.f32 %v4720, %v4716
        %v4750 = vmul.f32 %v4720, %v4717
        %v4751 = vmul.f32 %v4720, %v4718
        %v4752 = vmul.f32 %v4720, %v4719
        %v4753 = vadd.f32 %v3653, %v4721
        %v4754 = vadd.f32 %v3654, %v4722
        %v4755 = vadd.f32 %v3655, %v4723
        %v4756 = vadd.f32 %v3656, %v4724
        %v4757 = vadd.f32 %v3657, %v4725
        %v4758 = vadd.f32 %v3658, %v4726
        %v4759 = vadd.f32 %v3659, %v4727
        %v4760 = vadd.f32 %v3660, %v4728
        %v4761 = vadd.f32 %v3661, %v4729
        %v4762 = vadd.f32 %v3662, %v4730
        %v4763 = vadd.f32 %v3663, %v4731
        %v4764 = vadd.f32 %v3664, %v4732
        %v4765 = vadd.f32 %v3665, %v4733
        %v4766 = vadd.f32 %v3666, %v4734
        %v4767 = vadd.f32 %v3667, %v4735
        %v4768 = vadd.f32 %v3668, %v4736
        %v4769 = vadd.f32 %v3669, %v4737
        %v4770 = vadd.f32 %v3670, %v4738
        %v4771 = vadd.f32 %v3671, %v4739
        %v4772 = vadd.f32 %v3672, %v4740
        %v4773 = vadd.f32 %v3673, %v4741
        %v4774 = vadd.f32 %v3674, %v4742
        %v4775 = vadd.f32 %v3675, %v4743
        %v4776 = vadd.f32 %v3676, %v4744
        %v4777 = vadd.f32 %v3677, %v4745
        %v4778 = vadd.f32 %v3678, %v4746
        %v4779 = vadd.f32 %v3679, %v4747
        %v4780 = vadd.f32 %v3680, %v4748
        %v4781 = vadd.f32 %v3681, %v4749
        %v4782 = vadd.f32 %v3682, %v4750
        %v4783 = vadd.f32 %v3683, %v4751
        %v4784 = vadd.f32 %v3684, %v4752
        %4785 = vst [vmem:[#allocation2 + $0x200] sm:$0xff] %v4753
        %4786 = vst [vmem:[#allocation2 + $0x208] sm:$0xff] %v4754
        %4787 = vst [vmem:[#allocation2 + $0x210] sm:$0xff] %v4755
        %4788 = vst [vmem:[#allocation2 + $0x218] sm:$0xff] %v4756
        %4789 = vst [vmem:[#allocation2 + $0x220] sm:$0xff] %v4757
        %4790 = vst [vmem:[#allocation2 + $0x228] sm:$0xff] %v4758
        %4791 = vst [vmem:[#allocation2 + $0x230] sm:$0xff] %v4759
        %4792 = vst [vmem:[#allocation2 + $0x238] sm:$0xff] %v4760
        %4793 = vst [vmem:[#allocation2 + $0x240] sm:$0xff] %v4761
        %4794 = vst [vmem:[#allocation2 + $0x248] sm:$0xff] %v4762
        %4795 = vst [vmem:[#allocation2 + $0x250] sm:$0xff] %v4763
        %4796 = vst [vmem:[#allocation2 + $0x258] sm:$0xff] %v4764
        %4797 = vst [vmem:[#allocation2 + $0x260] sm:$0xff] %v4765
        %4798 = vst [vmem:[#allocation2 + $0x268] sm:$0xff] %v4766
        %4799 = vst [vmem:[#allocation2 + $0x270] sm:$0xff] %v4767
        %4800 = vst [vmem:[#allocation2 + $0x278] sm:$0xff] %v4768
        %4801 = vst [vmem:[#allocation2 + $0x280] sm:$0xff] %v4769
        %4802 = vst [vmem:[#allocation2 + $0x288] sm:$0xff] %v4770
        %4803 = vst [vmem:[#allocation2 + $0x290] sm:$0xff] %v4771
        %4804 = vst [vmem:[#allocation2 + $0x298] sm:$0xff] %v4772
        %4805 = vst [vmem:[#allocation2 + $0x2a0] sm:$0xff] %v4773
        %4806 = vst [vmem:[#allocation2 + $0x2a8] sm:$0xff] %v4774
        %4807 = vst [vmem:[#allocation2 + $0x2b0] sm:$0xff] %v4775
        %4808 = vst [vmem:[#allocation2 + $0x2b8] sm:$0xff] %v4776
        %4809 = vst [vmem:[#allocation2 + $0x2c0] sm:$0xff] %v4777
        %4810 = vst [vmem:[#allocation2 + $0x2c8] sm:$0xff] %v4778
        %4811 = vst [vmem:[#allocation2 + $0x2d0] sm:$0xff] %v4779
        %4812 = vst [vmem:[#allocation2 + $0x2d8] sm:$0xff] %v4780
        %4813 = vst [vmem:[#allocation2 + $0x2e0] sm:$0xff] %v4781
        %4814 = vst [vmem:[#allocation2 + $0x2e8] sm:$0xff] %v4782
        %4815 = vst [vmem:[#allocation2 + $0x2f0] sm:$0xff] %v4783
        %4816 = vst [vmem:[#allocation2 + $0x2f8] sm:$0xff] %v4784
        %v4817 = vsub.f32 %v4303, %v3946
        %v4818 = vsub.f32 %v4305, %v3947
        %v4819 = vsub.f32 %v4416, %v3948
        %v4820 = vsub.f32 %v4418, %v3949
        %v4821 = vsub.f32 %v4529, %v3950
        %v4822 = vsub.f32 %v4531, %v3951
        %v4823 = vsub.f32 %v4642, %v3952
        %v4824 = vsub.f32 %v4644, %v3953
        %v4825 = vsub.f32 %v4309, %v3954
        %v4826 = vsub.f32 %v4311, %v3955
        %v4827 = vsub.f32 %v4422, %v3956
        %v4828 = vsub.f32 %v4424, %v3957
        %v4829 = vsub.f32 %v4535, %v3958
        %v4830 = vsub.f32 %v4537, %v3959
        %v4831 = vsub.f32 %v4648, %v3960
        %v4832 = vsub.f32 %v4650, %v3961
        %v4833 = vsub.f32 %v4315, %v3962
        %v4834 = vsub.f32 %v4317, %v3963
        %v4835 = vsub.f32 %v4428, %v3964
        %v4836 = vsub.f32 %v4430, %v3965
        %v4837 = vsub.f32 %v4541, %v3966
        %v4838 = vsub.f32 %v4543, %v3967
        %v4839 = vsub.f32 %v4654, %v3968
        %v4840 = vsub.f32 %v4656, %v3969
        %v4841 = vsub.f32 %v4321, %v3970
        %v4842 = vsub.f32 %v4323, %v3971
        %v4843 = vsub.f32 %v4434, %v3972
        %v4844 = vsub.f32 %v4436, %v3973
        %v4845 = vsub.f32 %v4547, %v3974
        %v4846 = vsub.f32 %v4549, %v3975
        %v4847 = vsub.f32 %v4660, %v3976
        %v4848 = vsub.f32 %v4662, %v3977
        %v4849 = vmul.f32 %v3978, %v4817
        %v4850 = vmul.f32 %v3978, %v4818
        %v4851 = vmul.f32 %v3978, %v4819
        %v4852 = vmul.f32 %v3978, %v4820
        %v4853 = vmul.f32 %v3978, %v4821
        %v4854 = vmul.f32 %v3978, %v4822
        %v4855 = vmul.f32 %v3978, %v4823
        %v4856 = vmul.f32 %v3978, %v4824
        %v4857 = vmul.f32 %v3978, %v4825
        %v4858 = vmul.f32 %v3978, %v4826
        %v4859 = vmul.f32 %v3978, %v4827
        %v4860 = vmul.f32 %v3978, %v4828
        %v4861 = vmul.f32 %v3978, %v4829
        %v4862 = vmul.f32 %v3978, %v4830
        %v4863 = vmul.f32 %v3978, %v4831
        %v4864 = vmul.f32 %v3978, %v4832
        %v4865 = vmul.f32 %v3978, %v4833
        %v4866 = vmul.f32 %v3978, %v4834
        %v4867 = vmul.f32 %v3978, %v4835
        %v4868 = vmul.f32 %v3978, %v4836
        %v4869 = vmul.f32 %v3978, %v4837
        %v4870 = vmul.f32 %v3978, %v4838
        %v4871 = vmul.f32 %v3978, %v4839
        %v4872 = vmul.f32 %v3978, %v4840
        %v4873 = vmul.f32 %v3978, %v4841
        %v4874 = vmul.f32 %v3978, %v4842
        %v4875 = vmul.f32 %v3978, %v4843
        %v4876 = vmul.f32 %v3978, %v4844
        %v4877 = vmul.f32 %v3978, %v4845
        %v4878 = vmul.f32 %v3978, %v4846
        %v4879 = vmul.f32 %v3978, %v4847
        %v4880 = vmul.f32 %v3978, %v4848
        %v4881 = vadd.f32 %v3616, %v4849
        %v4882 = vadd.f32 %v3617, %v4850
        %v4883 = vadd.f32 %v3618, %v4851
        %v4884 = vadd.f32 %v3619, %v4852
        %v4885 = vadd.f32 %v3620, %v4853
        %v4886 = vadd.f32 %v3621, %v4854
        %v4887 = vadd.f32 %v3622, %v4855
        %v4888 = vadd.f32 %v3623, %v4856
        %v4889 = vadd.f32 %v3624, %v4857
        %v4890 = vadd.f32 %v3625, %v4858
        %v4891 = vadd.f32 %v3626, %v4859
        %v4892 = vadd.f32 %v3627, %v4860
        %v4893 = vadd.f32 %v3628, %v4861
        %v4894 = vadd.f32 %v3629, %v4862
        %v4895 = vadd.f32 %v3630, %v4863
        %v4896 = vadd.f32 %v3631, %v4864
        %v4897 = vadd.f32 %v3632, %v4865
        %v4898 = vadd.f32 %v3633, %v4866
        %v4899 = vadd.f32 %v3634, %v4867
        %v4900 = vadd.f32 %v3635, %v4868
        %v4901 = vadd.f32 %v3636, %v4869
        %v4902 = vadd.f32 %v3637, %v4870
        %v4903 = vadd.f32 %v3638, %v4871
        %v4904 = vadd.f32 %v3639, %v4872
        %v4905 = vadd.f32 %v3640, %v4873
        %v4906 = vadd.f32 %v3641, %v4874
        %v4907 = vadd.f32 %v3642, %v4875
        %v4908 = vadd.f32 %v3643, %v4876
        %v4909 = vadd.f32 %v3644, %v4877
        %v4910 = vadd.f32 %v3645, %v4878
        %v4911 = vadd.f32 %v3646, %v4879
        %v4912 = vadd.f32 %v3647, %v4880
        %s4913 = sld [smem:[#allocation4 + $0x84]]
        %s4914 = sld [smem:[#allocation4 + $0x104]]
        %s4915 = sld [smem:[#allocation4 + $0x184]]
        %s4916 = sld [smem:[#allocation4 + $0x204]]
        %v4917 = vld [vmem:[#allocation2 + $0x200] sm:$0xff]
        %v4918 = vld [vmem:[#allocation2 + $0x208] sm:$0xff]
        %v4919 = vld [vmem:[#allocation2 + $0x210] sm:$0xff]
        %v4920 = vld [vmem:[#allocation2 + $0x218] sm:$0xff]
        %v4921 = vld [vmem:[#allocation2 + $0x220] sm:$0xff]
        %v4922 = vld [vmem:[#allocation2 + $0x228] sm:$0xff]
        %v4923 = vld [vmem:[#allocation2 + $0x230] sm:$0xff]
        %v4924 = vld [vmem:[#allocation2 + $0x238] sm:$0xff]
        %v4925 = vld [vmem:[#allocation2 + $0x240] sm:$0xff]
        %v4926 = vld [vmem:[#allocation2 + $0x248] sm:$0xff]
        %v4927 = vld [vmem:[#allocation2 + $0x250] sm:$0xff]
        %v4928 = vld [vmem:[#allocation2 + $0x258] sm:$0xff]
        %v4929 = vld [vmem:[#allocation2 + $0x260] sm:$0xff]
        %v4930 = vld [vmem:[#allocation2 + $0x268] sm:$0xff]
        %v4931 = vld [vmem:[#allocation2 + $0x270] sm:$0xff]
        %v4932 = vld [vmem:[#allocation2 + $0x278] sm:$0xff]
        %v4933 = vld [vmem:[#allocation2 + $0x280] sm:$0xff]
        %v4934 = vld [vmem:[#allocation2 + $0x288] sm:$0xff]
        %v4935 = vld [vmem:[#allocation2 + $0x290] sm:$0xff]
        %v4936 = vld [vmem:[#allocation2 + $0x298] sm:$0xff]
        %v4937 = vld [vmem:[#allocation2 + $0x2a0] sm:$0xff]
        %v4938 = vld [vmem:[#allocation2 + $0x2a8] sm:$0xff]
        %v4939 = vld [vmem:[#allocation2 + $0x2b0] sm:$0xff]
        %v4940 = vld [vmem:[#allocation2 + $0x2b8] sm:$0xff]
        %v4941 = vld [vmem:[#allocation2 + $0x2c0] sm:$0xff]
        %v4942 = vld [vmem:[#allocation2 + $0x2c8] sm:$0xff]
        %v4943 = vld [vmem:[#allocation2 + $0x2d0] sm:$0xff]
        %v4944 = vld [vmem:[#allocation2 + $0x2d8] sm:$0xff]
        %v4945 = vld [vmem:[#allocation2 + $0x2e0] sm:$0xff]
        %v4946 = vld [vmem:[#allocation2 + $0x2e8] sm:$0xff]
        %v4947 = vld [vmem:[#allocation2 + $0x2f0] sm:$0xff]
        %v4948 = vld [vmem:[#allocation2 + $0x2f8] sm:$0xff]
        %v4949 = vstv %s4914
        %v4950 = vmul.f32 %v4917, %v4949
        %v4951 = vmul.f32 %v4918, %v4949
        %v4952 = vmul.f32 %v4919, %v4949
        %v4953 = vmul.f32 %v4920, %v4949
        %v4954 = vmul.f32 %v4921, %v4949
        %v4955 = vmul.f32 %v4922, %v4949
        %v4956 = vmul.f32 %v4923, %v4949
        %v4957 = vmul.f32 %v4924, %v4949
        %v4958 = vmul.f32 %v4925, %v4949
        %v4959 = vmul.f32 %v4926, %v4949
        %v4960 = vmul.f32 %v4927, %v4949
        %v4961 = vmul.f32 %v4928, %v4949
        %v4962 = vmul.f32 %v4929, %v4949
        %v4963 = vmul.f32 %v4930, %v4949
        %v4964 = vmul.f32 %v4931, %v4949
        %v4965 = vmul.f32 %v4932, %v4949
        %v4966 = vmul.f32 %v4933, %v4949
        %v4967 = vmul.f32 %v4934, %v4949
        %v4968 = vmul.f32 %v4935, %v4949
        %v4969 = vmul.f32 %v4936, %v4949
        %v4970 = vmul.f32 %v4937, %v4949
        %v4971 = vmul.f32 %v4938, %v4949
        %v4972 = vmul.f32 %v4939, %v4949
        %v4973 = vmul.f32 %v4940, %v4949
        %v4974 = vmul.f32 %v4941, %v4949
        %v4975 = vmul.f32 %v4942, %v4949
        %v4976 = vmul.f32 %v4943, %v4949
        %v4977 = vmul.f32 %v4944, %v4949
        %v4978 = vmul.f32 %v4945, %v4949
        %v4979 = vmul.f32 %v4946, %v4949
        %v4980 = vmul.f32 %v4947, %v4949
        %v4981 = vmul.f32 %v4948, %v4949
        %v4982 = vadd.f32 %v4327, %v4950
        %v4983 = vadd.f32 %v4329, %v4951
        %v4984 = vadd.f32 %v4440, %v4952
        %v4985 = vadd.f32 %v4442, %v4953
        %v4986 = vadd.f32 %v4553, %v4954
        %v4987 = vadd.f32 %v4555, %v4955
        %v4988 = vadd.f32 %v4666, %v4956
        %v4989 = vadd.f32 %v4668, %v4957
        %v4990 = vadd.f32 %v4333, %v4958
        %v4991 = vadd.f32 %v4335, %v4959
        %v4992 = vadd.f32 %v4446, %v4960
        %v4993 = vadd.f32 %v4448, %v4961
        %v4994 = vadd.f32 %v4559, %v4962
        %v4995 = vadd.f32 %v4561, %v4963
        %v4996 = vadd.f32 %v4672, %v4964
        %v4997 = vadd.f32 %v4674, %v4965
        %v4998 = vadd.f32 %v4339, %v4966
        %v4999 = vadd.f32 %v4341, %v4967
        %v5000 = vadd.f32 %v4452, %v4968
        %v5001 = vadd.f32 %v4454, %v4969
        %v5002 = vadd.f32 %v4565, %v4970
        %v5003 = vadd.f32 %v4567, %v4971
        %v5004 = vadd.f32 %v4678, %v4972
        %v5005 = vadd.f32 %v4680, %v4973
        %v5006 = vadd.f32 %v4345, %v4974
        %v5007 = vadd.f32 %v4347, %v4975
        %v5008 = vadd.f32 %v4458, %v4976
        %v5009 = vadd.f32 %v4460, %v4977
        %v5010 = vadd.f32 %v4571, %v4978
        %v5011 = vadd.f32 %v4573, %v4979
        %v5012 = vadd.f32 %v4684, %v4980
        %v5013 = vadd.f32 %v4686, %v4981
        %s5014 = ssub.f32 0.0, %s4916
        %v5015 = vstv %s5014
        %v5016 = vmax.f32 %v5015, %v4982
        %v5017 = vmax.f32 %v5015, %v4983
        %v5018 = vmax.f32 %v5015, %v4984
        %v5019 = vmax.f32 %v5015, %v4985
        %v5020 = vmax.f32 %v5015, %v4986
        %v5021 = vmax.f32 %v5015, %v4987
        %v5022 = vmax.f32 %v5015, %v4988
        %v5023 = vmax.f32 %v5015, %v4989
        %v5024 = vmax.f32 %v5015, %v4990
        %v5025 = vmax.f32 %v5015, %v4991
        %v5026 = vmax.f32 %v5015, %v4992
        %v5027 = vmax.f32 %v5015, %v4993
        %v5028 = vmax.f32 %v5015, %v4994
        %v5029 = vmax.f32 %v5015, %v4995
        %v5030 = vmax.f32 %v5015, %v4996
        %v5031 = vmax.f32 %v5015, %v4997
        %v5032 = vmax.f32 %v5015, %v4998
        %v5033 = vmax.f32 %v5015, %v4999
        %v5034 = vmax.f32 %v5015, %v5000
        %v5035 = vmax.f32 %v5015, %v5001
        %v5036 = vmax.f32 %v5015, %v5002
        %v5037 = vmax.f32 %v5015, %v5003
        %v5038 = vmax.f32 %v5015, %v5004
        %v5039 = vmax.f32 %v5015, %v5005
        %v5040 = vmax.f32 %v5015, %v5006
        %v5041 = vmax.f32 %v5015, %v5007
        %v5042 = vmax.f32 %v5015, %v5008
        %v5043 = vmax.f32 %v5015, %v5009
        %v5044 = vmax.f32 %v5015, %v5010
        %v5045 = vmax.f32 %v5015, %v5011
        %v5046 = vmax.f32 %v5015, %v5012
        %v5047 = vmax.f32 %v5015, %v5013
        %v5048 = vstv %s4916
        %v5049 = vmin.f32 %v5048, %v5016
        %v5050 = vmin.f32 %v5048, %v5017
        %v5051 = vmin.f32 %v5048, %v5018
        %v5052 = vmin.f32 %v5048, %v5019
        %v5053 = vmin.f32 %v5048, %v5020
        %v5054 = vmin.f32 %v5048, %v5021
        %v5055 = vmin.f32 %v5048, %v5022
        %v5056 = vmin.f32 %v5048, %v5023
        %v5057 = vmin.f32 %v5048, %v5024
        %v5058 = vmin.f32 %v5048, %v5025
        %v5059 = vmin.f32 %v5048, %v5026
        %v5060 = vmin.f32 %v5048, %v5027
        %v5061 = vmin.f32 %v5048, %v5028
        %v5062 = vmin.f32 %v5048, %v5029
        %v5063 = vmin.f32 %v5048, %v5030
        %v5064 = vmin.f32 %v5048, %v5031
        %v5065 = vmin.f32 %v5048, %v5032
        %v5066 = vmin.f32 %v5048, %v5033
        %v5067 = vmin.f32 %v5048, %v5034
        %v5068 = vmin.f32 %v5048, %v5035
        %v5069 = vmin.f32 %v5048, %v5036
        %v5070 = vmin.f32 %v5048, %v5037
        %v5071 = vmin.f32 %v5048, %v5038
        %v5072 = vmin.f32 %v5048, %v5039
        %v5073 = vmin.f32 %v5048, %v5040
        %v5074 = vmin.f32 %v5048, %v5041
        %v5075 = vmin.f32 %v5048, %v5042
        %v5076 = vmin.f32 %v5048, %v5043
        %v5077 = vmin.f32 %v5048, %v5044
        %v5078 = vmin.f32 %v5048, %v5045
        %v5079 = vmin.f32 %v5048, %v5046
        %v5080 = vmin.f32 %v5048, %v5047
        %v5081 = vsub.f32 %v4982, %v5049
        %v5082 = vsub.f32 %v4983, %v5050
        %v5083 = vsub.f32 %v4984, %v5051
        %v5084 = vsub.f32 %v4985, %v5052
        %v5085 = vsub.f32 %v4986, %v5053
        %v5086 = vsub.f32 %v4987, %v5054
        %v5087 = vsub.f32 %v4988, %v5055
        %v5088 = vsub.f32 %v4989, %v5056
        %v5089 = vsub.f32 %v4990, %v5057
        %v5090 = vsub.f32 %v4991, %v5058
        %v5091 = vsub.f32 %v4992, %v5059
        %v5092 = vsub.f32 %v4993, %v5060
        %v5093 = vsub.f32 %v4994, %v5061
        %v5094 = vsub.f32 %v4995, %v5062
        %v5095 = vsub.f32 %v4996, %v5063
        %v5096 = vsub.f32 %v4997, %v5064
        %v5097 = vsub.f32 %v4998, %v5065
        %v5098 = vsub.f32 %v4999, %v5066
        %v5099 = vsub.f32 %v5000, %v5067
        %v5100 = vsub.f32 %v5001, %v5068
        %v5101 = vsub.f32 %v5002, %v5069
        %v5102 = vsub.f32 %v5003, %v5070
        %v5103 = vsub.f32 %v5004, %v5071
        %v5104 = vsub.f32 %v5005, %v5072
        %v5105 = vsub.f32 %v5006, %v5073
        %v5106 = vsub.f32 %v5007, %v5074
        %v5107 = vsub.f32 %v5008, %v5075
        %v5108 = vsub.f32 %v5009, %v5076
        %v5109 = vsub.f32 %v5010, %v5077
        %v5110 = vsub.f32 %v5011, %v5078
        %v5111 = vsub.f32 %v5012, %v5079
        %v5112 = vsub.f32 %v5013, %v5080
        %5113 = vst [vmem:[#allocation2 + $0x100] sm:$0xff] %v5081
        %5114 = vst [vmem:[#allocation2 + $0x108] sm:$0xff] %v5082
        %5115 = vst [vmem:[#allocation2 + $0x110] sm:$0xff] %v5083
        %5116 = vst [vmem:[#allocation2 + $0x118] sm:$0xff] %v5084
        %5117 = vst [vmem:[#allocation2 + $0x120] sm:$0xff] %v5085
        %5118 = vst [vmem:[#allocation2 + $0x128] sm:$0xff] %v5086
        %5119 = vst [vmem:[#allocation2 + $0x130] sm:$0xff] %v5087
        %5120 = vst [vmem:[#allocation2 + $0x138] sm:$0xff] %v5088
        %5121 = vst [vmem:[#allocation2 + $0x140] sm:$0xff] %v5089
        %5122 = vst [vmem:[#allocation2 + $0x148] sm:$0xff] %v5090
        %5123 = vst [vmem:[#allocation2 + $0x150] sm:$0xff] %v5091
        %5124 = vst [vmem:[#allocation2 + $0x158] sm:$0xff] %v5092
        %5125 = vst [vmem:[#allocation2 + $0x160] sm:$0xff] %v5093
        %5126 = vst [vmem:[#allocation2 + $0x168] sm:$0xff] %v5094
        %5127 = vst [vmem:[#allocation2 + $0x170] sm:$0xff] %v5095
        %5128 = vst [vmem:[#allocation2 + $0x178] sm:$0xff] %v5096
        %5129 = vst [vmem:[#allocation2 + $0x180] sm:$0xff] %v5097
        %5130 = vst [vmem:[#allocation2 + $0x188] sm:$0xff] %v5098
        %5131 = vst [vmem:[#allocation2 + $0x190] sm:$0xff] %v5099
        %5132 = vst [vmem:[#allocation2 + $0x198] sm:$0xff] %v5100
        %5133 = vst [vmem:[#allocation2 + $0x1a0] sm:$0xff] %v5101
        %5134 = vst [vmem:[#allocation2 + $0x1a8] sm:$0xff] %v5102
        %5135 = vst [vmem:[#allocation2 + $0x1b0] sm:$0xff] %v5103
        %5136 = vst [vmem:[#allocation2 + $0x1b8] sm:$0xff] %v5104
        %5137 = vst [vmem:[#allocation2 + $0x1c0] sm:$0xff] %v5105
        %5138 = vst [vmem:[#allocation2 + $0x1c8] sm:$0xff] %v5106
        %5139 = vst [vmem:[#allocation2 + $0x1d0] sm:$0xff] %v5107
        %5140 = vst [vmem:[#allocation2 + $0x1d8] sm:$0xff] %v5108
        %5141 = vst [vmem:[#allocation2 + $0x1e0] sm:$0xff] %v5109
        %5142 = vst [vmem:[#allocation2 + $0x1e8] sm:$0xff] %v5110
        %5143 = vst [vmem:[#allocation2 + $0x1f0] sm:$0xff] %v5111
        %5144 = vst [vmem:[#allocation2 + $0x1f8] sm:$0xff] %v5112
        %v5145 = vstv %s4915
        %v5146 = vmul.f32 %v4881, %v5145
        %v5147 = vmul.f32 %v4882, %v5145
        %v5148 = vmul.f32 %v4883, %v5145
        %v5149 = vmul.f32 %v4884, %v5145
        %v5150 = vmul.f32 %v4885, %v5145
        %v5151 = vmul.f32 %v4886, %v5145
        %v5152 = vmul.f32 %v4887, %v5145
        %v5153 = vmul.f32 %v4888, %v5145
        %v5154 = vmul.f32 %v4889, %v5145
        %v5155 = vmul.f32 %v4890, %v5145
        %v5156 = vmul.f32 %v4891, %v5145
        %v5157 = vmul.f32 %v4892, %v5145
        %v5158 = vmul.f32 %v4893, %v5145
        %v5159 = vmul.f32 %v4894, %v5145
        %v5160 = vmul.f32 %v4895, %v5145
        %v5161 = vmul.f32 %v4896, %v5145
        %v5162 = vmul.f32 %v4897, %v5145
        %v5163 = vmul.f32 %v4898, %v5145
        %v5164 = vmul.f32 %v4899, %v5145
        %v5165 = vmul.f32 %v4900, %v5145
        %v5166 = vmul.f32 %v4901, %v5145
        %v5167 = vmul.f32 %v4902, %v5145
        %v5168 = vmul.f32 %v4903, %v5145
        %v5169 = vmul.f32 %v4904, %v5145
        %v5170 = vmul.f32 %v4905, %v5145
        %v5171 = vmul.f32 %v4906, %v5145
        %v5172 = vmul.f32 %v4907, %v5145
        %v5173 = vmul.f32 %v4908, %v5145
        %v5174 = vmul.f32 %v4909, %v5145
        %v5175 = vmul.f32 %v4910, %v5145
        %v5176 = vmul.f32 %v4911, %v5145
        %v5177 = vmul.f32 %v4912, %v5145
        %v5178 = vadd.f32 %v4303, %v5146
        %v5179 = vadd.f32 %v4305, %v5147
        %v5180 = vadd.f32 %v4416, %v5148
        %v5181 = vadd.f32 %v4418, %v5149
        %v5182 = vadd.f32 %v4529, %v5150
        %v5183 = vadd.f32 %v4531, %v5151
        %v5184 = vadd.f32 %v4642, %v5152
        %v5185 = vadd.f32 %v4644, %v5153
        %v5186 = vadd.f32 %v4309, %v5154
        %v5187 = vadd.f32 %v4311, %v5155
        %v5188 = vadd.f32 %v4422, %v5156
        %v5189 = vadd.f32 %v4424, %v5157
        %v5190 = vadd.f32 %v4535, %v5158
        %v5191 = vadd.f32 %v4537, %v5159
        %v5192 = vadd.f32 %v4648, %v5160
        %v5193 = vadd.f32 %v4650, %v5161
        %v5194 = vadd.f32 %v4315, %v5162
        %v5195 = vadd.f32 %v4317, %v5163
        %v5196 = vadd.f32 %v4428, %v5164
        %v5197 = vadd.f32 %v4430, %v5165
        %v5198 = vadd.f32 %v4541, %v5166
        %v5199 = vadd.f32 %v4543, %v5167
        %v5200 = vadd.f32 %v4654, %v5168
        %v5201 = vadd.f32 %v4656, %v5169
        %v5202 = vadd.f32 %v4321, %v5170
        %v5203 = vadd.f32 %v4323, %v5171
        %v5204 = vadd.f32 %v4434, %v5172
        %v5205 = vadd.f32 %v4436, %v5173
        %v5206 = vadd.f32 %v4547, %v5174
        %v5207 = vadd.f32 %v4549, %v5175
        %v5208 = vadd.f32 %v4660, %v5176
        %v5209 = vadd.f32 %v4662, %v5177
        %v5210 = vmax.f32 %v5178, 0.0
        %v5211 = vmax.f32 %v5179, 0.0
        %v5212 = vmax.f32 %v5180, 0.0
        %v5213 = vmax.f32 %v5181, 0.0
        %v5214 = vmax.f32 %v5182, 0.0
        %v5215 = vmax.f32 %v5183, 0.0
        %v5216 = vmax.f32 %v5184, 0.0
        %v5217 = vmax.f32 %v5185, 0.0
        %v5218 = vmax.f32 %v5186, 0.0
        %v5219 = vmax.f32 %v5187, 0.0
        %v5220 = vmax.f32 %v5188, 0.0
        %v5221 = vmax.f32 %v5189, 0.0
        %v5222 = vmax.f32 %v5190, 0.0
        %v5223 = vmax.f32 %v5191, 0.0
        %v5224 = vmax.f32 %v5192, 0.0
        %v5225 = vmax.f32 %v5193, 0.0
        %v5226 = vmax.f32 %v5194, 0.0
        %v5227 = vmax.f32 %v5195, 0.0
        %v5228 = vmax.f32 %v5196, 0.0
        %v5229 = vmax.f32 %v5197, 0.0
        %v5230 = vmax.f32 %v5198, 0.0
        %v5231 = vmax.f32 %v5199, 0.0
        %v5232 = vmax.f32 %v5200, 0.0
        %v5233 = vmax.f32 %v5201, 0.0
        %v5234 = vmax.f32 %v5202, 0.0
        %v5235 = vmax.f32 %v5203, 0.0
        %v5236 = vmax.f32 %v5204, 0.0
        %v5237 = vmax.f32 %v5205, 0.0
        %v5238 = vmax.f32 %v5206, 0.0
        %v5239 = vmax.f32 %v5207, 0.0
        %v5240 = vmax.f32 %v5208, 0.0
        %v5241 = vmax.f32 %v5209, 0.0
        %v5242 = vstv %s4913
        %v5243 = vmul.f32 %v5242, %v5210
        %v5244 = vmul.f32 %v5242, %v5211
        %v5245 = vmul.f32 %v5242, %v5212
        %v5246 = vmul.f32 %v5242, %v5213
        %v5247 = vmul.f32 %v5242, %v5214
        %v5248 = vmul.f32 %v5242, %v5215
        %v5249 = vmul.f32 %v5242, %v5216
        %v5250 = vmul.f32 %v5242, %v5217
        %v5251 = vmul.f32 %v5242, %v5218
        %v5252 = vmul.f32 %v5242, %v5219
        %v5253 = vmul.f32 %v5242, %v5220
        %v5254 = vmul.f32 %v5242, %v5221
        %v5255 = vmul.f32 %v5242, %v5222
        %v5256 = vmul.f32 %v5242, %v5223
        %v5257 = vmul.f32 %v5242, %v5224
        %v5258 = vmul.f32 %v5242, %v5225
        %v5259 = vmul.f32 %v5242, %v5226
        %v5260 = vmul.f32 %v5242, %v5227
        %v5261 = vmul.f32 %v5242, %v5228
        %v5262 = vmul.f32 %v5242, %v5229
        %v5263 = vmul.f32 %v5242, %v5230
        %v5264 = vmul.f32 %v5242, %v5231
        %v5265 = vmul.f32 %v5242, %v5232
        %v5266 = vmul.f32 %v5242, %v5233
        %v5267 = vmul.f32 %v5242, %v5234
        %v5268 = vmul.f32 %v5242, %v5235
        %v5269 = vmul.f32 %v5242, %v5236
        %v5270 = vmul.f32 %v5242, %v5237
        %v5271 = vmul.f32 %v5242, %v5238
        %v5272 = vmul.f32 %v5242, %v5239
        %v5273 = vmul.f32 %v5242, %v5240
        %v5274 = vmul.f32 %v5242, %v5241
        %v5275 = vadd.f32 %v413, %v5243
        %v5276 = vadd.f32 %v415, %v5244
        %v5277 = vadd.f32 %v598, %v5245
        %v5278 = vadd.f32 %v600, %v5246
        %v5279 = vadd.f32 %v783, %v5247
        %v5280 = vadd.f32 %v785, %v5248
        %v5281 = vadd.f32 %v968, %v5249
        %v5282 = vadd.f32 %v970, %v5250
        %v5283 = vadd.f32 %v419, %v5251
        %v5284 = vadd.f32 %v421, %v5252
        %v5285 = vadd.f32 %v604, %v5253
        %v5286 = vadd.f32 %v606, %v5254
        %v5287 = vadd.f32 %v789, %v5255
        %v5288 = vadd.f32 %v791, %v5256
        %v5289 = vadd.f32 %v974, %v5257
        %v5290 = vadd.f32 %v976, %v5258
        %v5291 = vadd.f32 %v425, %v5259
        %v5292 = vadd.f32 %v427, %v5260
        %v5293 = vadd.f32 %v610, %v5261
        %v5294 = vadd.f32 %v612, %v5262
        %v5295 = vadd.f32 %v795, %v5263
        %v5296 = vadd.f32 %v797, %v5264
        %v5297 = vadd.f32 %v980, %v5265
        %v5298 = vadd.f32 %v982, %v5266
        %v5299 = vadd.f32 %v431, %v5267
        %v5300 = vadd.f32 %v433, %v5268
        %v5301 = vadd.f32 %v616, %v5269
        %v5302 = vadd.f32 %v618, %v5270
        %v5303 = vadd.f32 %v801, %v5271
        %v5304 = vadd.f32 %v803, %v5272
        %v5305 = vadd.f32 %v986, %v5273
        %v5306 = vadd.f32 %v988, %v5274
        %v5307 = vsub.f32 %v5275, %v4881
        %v5308 = vsub.f32 %v5276, %v4882
        %v5309 = vsub.f32 %v5277, %v4883
        %v5310 = vsub.f32 %v5278, %v4884
        %v5311 = vsub.f32 %v5279, %v4885
        %v5312 = vsub.f32 %v5280, %v4886
        %v5313 = vsub.f32 %v5281, %v4887
        %v5314 = vsub.f32 %v5282, %v4888
        %v5315 = vsub.f32 %v5283, %v4889
        %v5316 = vsub.f32 %v5284, %v4890
        %v5317 = vsub.f32 %v5285, %v4891
        %v5318 = vsub.f32 %v5286, %v4892
        %v5319 = vsub.f32 %v5287, %v4893
        %v5320 = vsub.f32 %v5288, %v4894
        %v5321 = vsub.f32 %v5289, %v4895
        %v5322 = vsub.f32 %v5290, %v4896
        %v5323 = vsub.f32 %v5291, %v4897
        %v5324 = vsub.f32 %v5292, %v4898
        %v5325 = vsub.f32 %v5293, %v4899
        %v5326 = vsub.f32 %v5294, %v4900
        %v5327 = vsub.f32 %v5295, %v4901
        %v5328 = vsub.f32 %v5296, %v4902
        %v5329 = vsub.f32 %v5297, %v4903
        %v5330 = vsub.f32 %v5298, %v4904
        %v5331 = vsub.f32 %v5299, %v4905
        %v5332 = vsub.f32 %v5300, %v4906
        %v5333 = vsub.f32 %v5301, %v4907
        %v5334 = vsub.f32 %v5302, %v4908
        %v5335 = vsub.f32 %v5303, %v4909
        %v5336 = vsub.f32 %v5304, %v4910
        %v5337 = vsub.f32 %v5305, %v4911
        %v5338 = vsub.f32 %v5306, %v4912
        %5339 = vst [vmem:[#allocation2] sm:$0xff] %v5307
        %5340 = vst [vmem:[#allocation2 + $0x8] sm:$0xff] %v5308
        %5341 = vst [vmem:[#allocation2 + $0x10] sm:$0xff] %v5309
        %5342 = vst [vmem:[#allocation2 + $0x18] sm:$0xff] %v5310
        %5343 = vst [vmem:[#allocation2 + $0x20] sm:$0xff] %v5311
        %5344 = vst [vmem:[#allocation2 + $0x28] sm:$0xff] %v5312
        %5345 = vst [vmem:[#allocation2 + $0x30] sm:$0xff] %v5313
        %5346 = vst [vmem:[#allocation2 + $0x38] sm:$0xff] %v5314
        %5347 = vst [vmem:[#allocation2 + $0x40] sm:$0xff] %v5315
        %5348 = vst [vmem:[#allocation2 + $0x48] sm:$0xff] %v5316
        %5349 = vst [vmem:[#allocation2 + $0x50] sm:$0xff] %v5317
        %5350 = vst [vmem:[#allocation2 + $0x58] sm:$0xff] %v5318
        %5351 = vst [vmem:[#allocation2 + $0x60] sm:$0xff] %v5319
        %5352 = vst [vmem:[#allocation2 + $0x68] sm:$0xff] %v5320
        %5353 = vst [vmem:[#allocation2 + $0x70] sm:$0xff] %v5321
        %5354 = vst [vmem:[#allocation2 + $0x78] sm:$0xff] %v5322
        %5355 = vst [vmem:[#allocation2 + $0x80] sm:$0xff] %v5323
        %5356 = vst [vmem:[#allocation2 + $0x88] sm:$0xff] %v5324
        %5357 = vst [vmem:[#allocation2 + $0x90] sm:$0xff] %v5325
        %5358 = vst [vmem:[#allocation2 + $0x98] sm:$0xff] %v5326
        %5359 = vst [vmem:[#allocation2 + $0xa0] sm:$0xff] %v5327
        %5360 = vst [vmem:[#allocation2 + $0xa8] sm:$0xff] %v5328
        %5361 = vst [vmem:[#allocation2 + $0xb0] sm:$0xff] %v5329
        %5362 = vst [vmem:[#allocation2 + $0xb8] sm:$0xff] %v5330
        %5363 = vst [vmem:[#allocation2 + $0xc0] sm:$0xff] %v5331
        %5364 = vst [vmem:[#allocation2 + $0xc8] sm:$0xff] %v5332
        %5365 = vst [vmem:[#allocation2 + $0xd0] sm:$0xff] %v5333
        %5366 = vst [vmem:[#allocation2 + $0xd8] sm:$0xff] %v5334
        %5367 = vst [vmem:[#allocation2 + $0xe0] sm:$0xff] %v5335
        %5368 = vst [vmem:[#allocation2 + $0xe8] sm:$0xff] %v5336
        %5369 = vst [vmem:[#allocation2 + $0xf0] sm:$0xff] %v5337
        %5370 = vst [vmem:[#allocation2 + $0xf8] sm:$0xff] %v5338
        %s5371 = scalar_lea.vmem %s3, 192
        %v5372 = vld [vmem:[%s5371] sm:$0xff]
        %v5373 = vld [vmem:[%s5371 + $0x8] sm:$0xff]
        %v5374 = vld [vmem:[%s5371 + $0x10] sm:$0xff]
        %v5375 = vld [vmem:[%s5371 + $0x18] sm:$0xff]
        %v5376 = vld [vmem:[#allocation2] sm:$0xff]
        %v5377 = vld [vmem:[#allocation2 + $0x8] sm:$0xff]
        %v5378 = vld [vmem:[#allocation2 + $0x10] sm:$0xff]
        %v5379 = vld [vmem:[#allocation2 + $0x18] sm:$0xff]
        %v5380 = vld [vmem:[#allocation2 + $0x20] sm:$0xff]
        %v5381 = vld [vmem:[#allocation2 + $0x28] sm:$0xff]
        %v5382 = vld [vmem:[#allocation2 + $0x30] sm:$0xff]
        %v5383 = vld [vmem:[#allocation2 + $0x38] sm:$0xff]
        %v5384 = vld [vmem:[#allocation2 + $0x40] sm:$0xff]
        %v5385 = vld [vmem:[#allocation2 + $0x48] sm:$0xff]
        %v5386 = vld [vmem:[#allocation2 + $0x50] sm:$0xff]
        %v5387 = vld [vmem:[#allocation2 + $0x58] sm:$0xff]
        %v5388 = vld [vmem:[#allocation2 + $0x60] sm:$0xff]
        %v5389 = vld [vmem:[#allocation2 + $0x68] sm:$0xff]
        %v5390 = vld [vmem:[#allocation2 + $0x70] sm:$0xff]
        %v5391 = vld [vmem:[#allocation2 + $0x78] sm:$0xff]
        %v5392 = vld [vmem:[#allocation2 + $0x80] sm:$0xff]
        %v5393 = vld [vmem:[#allocation2 + $0x88] sm:$0xff]
        %v5394 = vld [vmem:[#allocation2 + $0x90] sm:$0xff]
        %v5395 = vld [vmem:[#allocation2 + $0x98] sm:$0xff]
        %v5396 = vld [vmem:[#allocation2 + $0xa0] sm:$0xff]
        %v5397 = vld [vmem:[#allocation2 + $0xa8] sm:$0xff]
        %v5398 = vld [vmem:[#allocation2 + $0xb0] sm:$0xff]
        %v5399 = vld [vmem:[#allocation2 + $0xb8] sm:$0xff]
        %v5400 = vld [vmem:[#allocation2 + $0xc0] sm:$0xff]
        %v5401 = vld [vmem:[#allocation2 + $0xc8] sm:$0xff]
        %v5402 = vld [vmem:[#allocation2 + $0xd0] sm:$0xff]
        %v5403 = vld [vmem:[#allocation2 + $0xd8] sm:$0xff]
        %v5404 = vld [vmem:[#allocation2 + $0xe0] sm:$0xff]
        %v5405 = vld [vmem:[#allocation2 + $0xe8] sm:$0xff]
        %v5406 = vld [vmem:[#allocation2 + $0xf0] sm:$0xff]
        %v5407 = vld [vmem:[#allocation2 + $0xf8] sm:$0xff]
        %v5408 = vld [vmem:[#allocation2 + $0x100] sm:$0xff]
        %v5409 = vld [vmem:[#allocation2 + $0x108] sm:$0xff]
        %v5410 = vld [vmem:[#allocation2 + $0x110] sm:$0xff]
        %v5411 = vld [vmem:[#allocation2 + $0x118] sm:$0xff]
        %v5412 = vld [vmem:[#allocation2 + $0x120] sm:$0xff]
        %v5413 = vld [vmem:[#allocation2 + $0x128] sm:$0xff]
        %v5414 = vld [vmem:[#allocation2 + $0x130] sm:$0xff]
        %v5415 = vld [vmem:[#allocation2 + $0x138] sm:$0xff]
        %v5416 = vld [vmem:[#allocation2 + $0x140] sm:$0xff]
        %v5417 = vld [vmem:[#allocation2 + $0x148] sm:$0xff]
        %v5418 = vld [vmem:[#allocation2 + $0x150] sm:$0xff]
        %v5419 = vld [vmem:[#allocation2 + $0x158] sm:$0xff]
        %v5420 = vld [vmem:[#allocation2 + $0x160] sm:$0xff]
        %v5421 = vld [vmem:[#allocation2 + $0x168] sm:$0xff]
        %v5422 = vld [vmem:[#allocation2 + $0x170] sm:$0xff]
        %v5423 = vld [vmem:[#allocation2 + $0x178] sm:$0xff]
        %v5424 = vld [vmem:[#allocation2 + $0x180] sm:$0xff]
        %v5425 = vld [vmem:[#allocation2 + $0x188] sm:$0xff]
        %v5426 = vld [vmem:[#allocation2 + $0x190] sm:$0xff]
        %v5427 = vld [vmem:[#allocation2 + $0x198] sm:$0xff]
        %v5428 = vld [vmem:[#allocation2 + $0x1a0] sm:$0xff]
        %v5429 = vld [vmem:[#allocation2 + $0x1a8] sm:$0xff]
        %v5430 = vld [vmem:[#allocation2 + $0x1b0] sm:$0xff]
        %v5431 = vld [vmem:[#allocation2 + $0x1b8] sm:$0xff]
        %v5432 = vld [vmem:[#allocation2 + $0x1c0] sm:$0xff]
        %v5433 = vld [vmem:[#allocation2 + $0x1c8] sm:$0xff]
        %v5434 = vld [vmem:[#allocation2 + $0x1d0] sm:$0xff]
        %v5435 = vld [vmem:[#allocation2 + $0x1d8] sm:$0xff]
        %v5436 = vld [vmem:[#allocation2 + $0x1e0] sm:$0xff]
        %v5437 = vld [vmem:[#allocation2 + $0x1e8] sm:$0xff]
        %v5438 = vld [vmem:[#allocation2 + $0x1f0] sm:$0xff]
        %v5439 = vld [vmem:[#allocation2 + $0x1f8] sm:$0xff]
        %v5440 = vld [vmem:[#allocation2 + $0x200] sm:$0xff]
        %v5441 = vld [vmem:[#allocation2 + $0x208] sm:$0xff]
        %v5442 = vld [vmem:[#allocation2 + $0x210] sm:$0xff]
        %v5443 = vld [vmem:[#allocation2 + $0x218] sm:$0xff]
        %v5444 = vld [vmem:[#allocation2 + $0x220] sm:$0xff]
        %v5445 = vld [vmem:[#allocation2 + $0x228] sm:$0xff]
        %v5446 = vld [vmem:[#allocation2 + $0x230] sm:$0xff]
        %v5447 = vld [vmem:[#allocation2 + $0x238] sm:$0xff]
        %v5448 = vld [vmem:[#allocation2 + $0x240] sm:$0xff]
        %v5449 = vld [vmem:[#allocation2 + $0x248] sm:$0xff]
        %v5450 = vld [vmem:[#allocation2 + $0x250] sm:$0xff]
        %v5451 = vld [vmem:[#allocation2 + $0x258] sm:$0xff]
        %v5452 = vld [vmem:[#allocation2 + $0x260] sm:$0xff]
        %v5453 = vld [vmem:[#allocation2 + $0x268] sm:$0xff]
        %v5454 = vld [vmem:[#allocation2 + $0x270] sm:$0xff]
        %v5455 = vld [vmem:[#allocation2 + $0x278] sm:$0xff]
        %v5456 = vld [vmem:[#allocation2 + $0x280] sm:$0xff]
        %v5457 = vld [vmem:[#allocation2 + $0x288] sm:$0xff]
        %v5458 = vld [vmem:[#allocation2 + $0x290] sm:$0xff]
        %v5459 = vld [vmem:[#allocation2 + $0x298] sm:$0xff]
        %v5460 = vld [vmem:[#allocation2 + $0x2a0] sm:$0xff]
        %v5461 = vld [vmem:[#allocation2 + $0x2a8] sm:$0xff]
        %v5462 = vld [vmem:[#allocation2 + $0x2b0] sm:$0xff]
        %v5463 = vld [vmem:[#allocation2 + $0x2b8] sm:$0xff]
        %v5464 = vld [vmem:[#allocation2 + $0x2c0] sm:$0xff]
        %v5465 = vld [vmem:[#allocation2 + $0x2c8] sm:$0xff]
        %v5466 = vld [vmem:[#allocation2 + $0x2d0] sm:$0xff]
        %v5467 = vld [vmem:[#allocation2 + $0x2d8] sm:$0xff]
        %v5468 = vld [vmem:[#allocation2 + $0x2e0] sm:$0xff]
        %v5469 = vld [vmem:[#allocation2 + $0x2e8] sm:$0xff]
        %v5470 = vld [vmem:[#allocation2 + $0x2f0] sm:$0xff]
        %v5471 = vld [vmem:[#allocation2 + $0x2f8] sm:$0xff]
        %v5473 = vsel %vm1681, %v5372, 0
        %v5476 = vsel %vm1681, %v5373, 0
        %v5479 = vsel %vm1681, %v5374, 0
        %v5482 = vsel %vm1681, %v5375, 0
        %5484 = vmatprep.subr.mxu0 %v5377
        %5485 = vmatpush1.msra.mxu0 %v5376
        %5486 = vmatprep.subr.mxu0 %v5385
        %5487 = vmatpush1.msra.mxu0 %v5384
        %5488 = vmatprep.subr.mxu0 %v5393
        %5489 = vmatpush1.msra.mxu0 %v5392
        %5490 = vmatprep.subr.mxu0 %v5401
        %5491 = vmatpush1.msra.mxu0 %v5400
        %5492 = vmatprep.subr.mxu0 %v5409
        %5493 = vmatpush1.msra.mxu0 %v5408
        %5494 = vmatprep.subr.mxu0 %v5417
        %5495 = vmatpush1.msra.mxu0 %v5416
        %5496 = vmatprep.subr.mxu0 %v5425
        %5497 = vmatpush1.msra.mxu0 %v5424
        %5498 = vmatprep.subr.mxu0 %v5433
        %5499 = vmatpush1.msra.mxu0 %v5432
        %5500 = vmatprep.subr.mxu0 %v5441
        %5501 = vmatpush1.msra.mxu0 %v5440
        %5502 = vmatprep.subr.mxu0 %v5449
        %5503 = vmatpush1.msra.mxu0 %v5448
        %5504 = vmatprep.subr.mxu0 %v5457
        %5505 = vmatpush1.msra.mxu0 %v5456
        %5506 = vmatprep.subr.mxu0 %v5465
        %5507 = vmatpush1.msra.mxu0 %v5464
        %5508 = vmatprep.subr.mxu0 0.0
        %5509 = vmatpush1.msra.mxu0 0.0
        %5510 = vmatprep.subr.mxu0 0.0
        %5511 = vmatpush1.msra.mxu0 0.0
        %5512 = vmatprep.subr.mxu0 0.0
        %5513 = vmatpush1.msra.mxu0 0.0
        %5514 = vmatprep.subr.mxu0 0.0
        %5515 = vmatpush1.msra.mxu0 0.0
        %5516 = vmatprep.subr.mxu0 0.0
        %5517 = vmatpush1.msra.mxu0 0.0
        %5518 = vmatprep.subr.mxu0 0.0
        %5519 = vmatpush1.msra.mxu0 0.0
        %5520 = vmatprep.subr.mxu0 0.0
        %5521 = vmatpush1.msra.mxu0 0.0
        %5522 = vmatprep.subr.mxu0 0.0
        %5523 = vmatpush1.msra.mxu0 0.0
        %5524 = vmatprep.subr.mxu0 0.0
        %5525 = vmatpush1.msra.mxu0 0.0
        %5526 = vmatprep.subr.mxu0 0.0
        %5527 = vmatpush1.msra.mxu0 0.0
        %5528 = vmatprep.subr.mxu0 0.0
        %5529 = vmatpush1.msra.mxu0 0.0
        %5530 = vmatprep.subr.mxu0 0.0
        %5531 = vmatpush1.msra.mxu0 0.0
        %5532 = vmatprep.subr.mxu0 0.0
        %5533 = vmatpush1.msra.mxu0 0.0
        %5534 = vmatprep.subr.mxu0 0.0
        %5535 = vmatpush1.msra.mxu0 0.0
        %5536 = vmatprep.subr.mxu0 0.0
        %5537 = vmatpush1.msra.mxu0 0.0
        %5538 = vmatprep.subr.mxu0 0.0
        %5539 = vmatpush1.msra.mxu0 0.0
        %5540 = vmatprep.subr.mxu0 0.0
        %5541 = vmatpush1.msra.mxu0 0.0
        %5542 = vmatprep.subr.mxu0 0.0
        %5543 = vmatpush1.msra.mxu0 0.0
        %5544 = vmatprep.subr.mxu0 0.0
        %5545 = vmatpush1.msra.mxu0 0.0
        %5546 = vmatprep.subr.mxu0 0.0
        %5547 = vmatpush1.msra.mxu0 0.0
        %5548 = vmatprep.mubr.f32.mxu0 0.0
        %5549 = vmatmul.mubr.f32.gmra.mrb[0].mxu0 %v5473
        %v5550 = vpop.f32.mrb[0].mxu0
        %v5551 = vadd.f32 0.0, %v5550
        %v5552 = vpop.f32.mrb[0].mxu0
        %v5553 = vadd.f32 0.0, %v5552
        %5554 = vmatprep.mubr.f32.mxu0 0.0
        %5555 = vmatmul.mubr.f32.gmra.mrb[0].mxu0 %v5476
        %v5556 = vpop.f32.mrb[0].mxu0
        %v5557 = vadd.f32 0.0, %v5556
        %v5558 = vpop.f32.mrb[0].mxu0
        %v5559 = vadd.f32 0.0, %v5558
        %5560 = vmatprep.mubr.f32.mxu0 0.0
        %5561 = vmatmul.mubr.f32.gmra.mrb[0].mxu0 %v5479
        %v5562 = vpop.f32.mrb[0].mxu0
        %v5563 = vadd.f32 0.0, %v5562
        %v5564 = vpop.f32.mrb[0].mxu0
        %v5565 = vadd.f32 0.0, %v5564
        %5566 = vmatprep.mubr.f32.mxu0 0.0
        %5567 = vmatmul.mubr.f32.gmra.mrb[0].mxu0 %v5482
        %v5568 = vpop.f32.mrb[0].mxu0
        %v5569 = vadd.f32 0.0, %v5568
        %v5570 = vpop.f32.mrb[0].mxu0
        %v5571 = vadd.f32 0.0, %v5570
        %5572 = vdwg.mxu0
        %5573 = vmatprep.subr.mxu0 %v5379
        %5574 = vmatpush1.msra.mxu0 %v5378
        %5575 = vmatprep.subr.mxu0 %v5387
        %5576 = vmatpush1.msra.mxu0 %v5386
        %5577 = vmatprep.subr.mxu0 %v5395
        %5578 = vmatpush1.msra.mxu0 %v5394
        %5579 = vmatprep.subr.mxu0 %v5403
        %5580 = vmatpush1.msra.mxu0 %v5402
        %5581 = vmatprep.subr.mxu0 %v5411
        %5582 = vmatpush1.msra.mxu0 %v5410
        %5583 = vmatprep.subr.mxu0 %v5419
        %5584 = vmatpush1.msra.mxu0 %v5418
        %5585 = vmatprep.subr.mxu0 %v5427
        %5586 = vmatpush1.msra.mxu0 %v5426
        %5587 = vmatprep.subr.mxu0 %v5435
        %5588 = vmatpush1.msra.mxu0 %v5434
        %5589 = vmatprep.subr.mxu0 %v5443
        %5590 = vmatpush1.msra.mxu0 %v5442
        %5591 = vmatprep.subr.mxu0 %v5451
        %5592 = vmatpush1.msra.mxu0 %v5450
        %5593 = vmatprep.subr.mxu0 %v5459
        %5594 = vmatpush1.msra.mxu0 %v5458
        %5595 = vmatprep.subr.mxu0 %v5467
        %5596 = vmatpush1.msra.mxu0 %v5466
        %5597 = vmatprep.subr.mxu0 0.0
        %5598 = vmatpush1.msra.mxu0 0.0
        %5599 = vmatprep.subr.mxu0 0.0
        %5600 = vmatpush1.msra.mxu0 0.0
        %5601 = vmatprep.subr.mxu0 0.0
        %5602 = vmatpush1.msra.mxu0 0.0
        %5603 = vmatprep.subr.mxu0 0.0
        %5604 = vmatpush1.msra.mxu0 0.0
        %5605 = vmatprep.subr.mxu0 0.0
        %5606 = vmatpush1.msra.mxu0 0.0
        %5607 = vmatprep.subr.mxu0 0.0
        %5608 = vmatpush1.msra.mxu0 0.0
        %5609 = vmatprep.subr.mxu0 0.0
        %5610 = vmatpush1.msra.mxu0 0.0
        %5611 = vmatprep.subr.mxu0 0.0
        %5612 = vmatpush1.msra.mxu0 0.0
        %5613 = vmatprep.subr.mxu0 0.0
        %5614 = vmatpush1.msra.mxu0 0.0
        %5615 = vmatprep.subr.mxu0 0.0
        %5616 = vmatpush1.msra.mxu0 0.0
        %5617 = vmatprep.subr.mxu0 0.0
        %5618 = vmatpush1.msra.mxu0 0.0
        %5619 = vmatprep.subr.mxu0 0.0
        %5620 = vmatpush1.msra.mxu0 0.0
        %5621 = vmatprep.subr.mxu0 0.0
        %5622 = vmatpush1.msra.mxu0 0.0
        %5623 = vmatprep.subr.mxu0 0.0
        %5624 = vmatpush1.msra.mxu0 0.0
        %5625 = vmatprep.subr.mxu0 0.0
        %5626 = vmatpush1.msra.mxu0 0.0
        %5627 = vmatprep.subr.mxu0 0.0
        %5628 = vmatpush1.msra.mxu0 0.0
        %5629 = vmatprep.subr.mxu0 0.0
        %5630 = vmatpush1.msra.mxu0 0.0
        %5631 = vmatprep.subr.mxu0 0.0
        %5632 = vmatpush1.msra.mxu0 0.0
        %5633 = vmatprep.subr.mxu0 0.0
        %5634 = vmatpush1.msra.mxu0 0.0
        %5635 = vmatprep.subr.mxu0 0.0
        %5636 = vmatpush1.msra.mxu0 0.0
        %5637 = vmatprep.mubr.f32.mxu0 0.0
        %5638 = vmatmul.mubr.f32.gmra.mrb[0].mxu0 %v5473
        %v5639 = vpop.f32.mrb[0].mxu0
        %v5640 = vadd.f32 0.0, %v5639
        %v5641 = vpop.f32.mrb[0].mxu0
        %v5642 = vadd.f32 0.0, %v5641
        %5643 = vmatprep.mubr.f32.mxu0 0.0
        %5644 = vmatmul.mubr.f32.gmra.mrb[0].mxu0 %v5476
        %v5645 = vpop.f32.mrb[0].mxu0
        %v5646 = vadd.f32 0.0, %v5645
        %v5647 = vpop.f32.mrb[0].mxu0
        %v5648 = vadd.f32 0.0, %v5647
        %5649 = vmatprep.mubr.f32.mxu0 0.0
        %5650 = vmatmul.mubr.f32.gmra.mrb[0].mxu0 %v5479
        %v5651 = vpop.f32.mrb[0].mxu0
        %v5652 = vadd.f32 0.0, %v5651
        %v5653 = vpop.f32.mrb[0].mxu0
        %v5654 = vadd.f32 0.0, %v5653
        %5655 = vmatprep.mubr.f32.mxu0 0.0
        %5656 = vmatmul.mubr.f32.gmra.mrb[0].mxu0 %v5482
        %v5657 = vpop.f32.mrb[0].mxu0
        %v5658 = vadd.f32 0.0, %v5657
        %v5659 = vpop.f32.mrb[0].mxu0
        %v5660 = vadd.f32 0.0, %v5659
        %5661 = vdwg.mxu0
        %5662 = vmatprep.subr.mxu0 %v5381
        %5663 = vmatpush1.msra.mxu0 %v5380
        %5664 = vmatprep.subr.mxu0 %v5389
        %5665 = vmatpush1.msra.mxu0 %v5388
        %5666 = vmatprep.subr.mxu0 %v5397
        %5667 = vmatpush1.msra.mxu0 %v5396
        %5668 = vmatprep.subr.mxu0 %v5405
        %5669 = vmatpush1.msra.mxu0 %v5404
        %5670 = vmatprep.subr.mxu0 %v5413
        %5671 = vmatpush1.msra.mxu0 %v5412
        %5672 = vmatprep.subr.mxu0 %v5421
        %5673 = vmatpush1.msra.mxu0 %v5420
        %5674 = vmatprep.subr.mxu0 %v5429
        %5675 = vmatpush1.msra.mxu0 %v5428
        %5676 = vmatprep.subr.mxu0 %v5437
        %5677 = vmatpush1.msra.mxu0 %v5436
        %5678 = vmatprep.subr.mxu0 %v5445
        %5679 = vmatpush1.msra.mxu0 %v5444
        %5680 = vmatprep.subr.mxu0 %v5453
        %5681 = vmatpush1.msra.mxu0 %v5452
        %5682 = vmatprep.subr.mxu0 %v5461
        %5683 = vmatpush1.msra.mxu0 %v5460
        %5684 = vmatprep.subr.mxu0 %v5469
        %5685 = vmatpush1.msra.mxu0 %v5468
        %5686 = vmatprep.subr.mxu0 0.0
        %5687 = vmatpush1.msra.mxu0 0.0
        %5688 = vmatprep.subr.mxu0 0.0
        %5689 = vmatpush1.msra.mxu0 0.0
        %5690 = vmatprep.subr.mxu0 0.0
        %5691 = vmatpush1.msra.mxu0 0.0
        %5692 = vmatprep.subr.mxu0 0.0
        %5693 = vmatpush1.msra.mxu0 0.0
        %5694 = vmatprep.subr.mxu0 0.0
        %5695 = vmatpush1.msra.mxu0 0.0
        %5696 = vmatprep.subr.mxu0 0.0
        %5697 = vmatpush1.msra.mxu0 0.0
        %5698 = vmatprep.subr.mxu0 0.0
        %5699 = vmatpush1.msra.mxu0 0.0
        %5700 = vmatprep.subr.mxu0 0.0
        %5701 = vmatpush1.msra.mxu0 0.0
        %5702 = vmatprep.subr.mxu0 0.0
        %5703 = vmatpush1.msra.mxu0 0.0
        %5704 = vmatprep.subr.mxu0 0.0
        %5705 = vmatpush1.msra.mxu0 0.0
        %5706 = vmatprep.subr.mxu0 0.0
        %5707 = vmatpush1.msra.mxu0 0.0
        %5708 = vmatprep.subr.mxu0 0.0
        %5709 = vmatpush1.msra.mxu0 0.0
        %5710 = vmatprep.subr.mxu0 0.0
        %5711 = vmatpush1.msra.mxu0 0.0
        %5712 = vmatprep.subr.mxu0 0.0
        %5713 = vmatpush1.msra.mxu0 0.0
        %5714 = vmatprep.subr.mxu0 0.0
        %5715 = vmatpush1.msra.mxu0 0.0
        %5716 = vmatprep.subr.mxu0 0.0
        %5717 = vmatpush1.msra.mxu0 0.0
        %5718 = vmatprep.subr.mxu0 0.0
        %5719 = vmatpush1.msra.mxu0 0.0
        %5720 = vmatprep.subr.mxu0 0.0
        %5721 = vmatpush1.msra.mxu0 0.0
        %5722 = vmatprep.subr.mxu0 0.0
        %5723 = vmatpush1.msra.mxu0 0.0
        %5724 = vmatprep.subr.mxu0 0.0
        %5725 = vmatpush1.msra.mxu0 0.0
        %5726 = vmatprep.mubr.f32.mxu0 0.0
        %5727 = vmatmul.mubr.f32.gmra.mrb[0].mxu0 %v5473
        %v5728 = vpop.f32.mrb[0].mxu0
        %v5729 = vadd.f32 0.0, %v5728
        %v5730 = vpop.f32.mrb[0].mxu0
        %v5731 = vadd.f32 0.0, %v5730
        %5732 = vmatprep.mubr.f32.mxu0 0.0
        %5733 = vmatmul.mubr.f32.gmra.mrb[0].mxu0 %v5476
        %v5734 = vpop.f32.mrb[0].mxu0
        %v5735 = vadd.f32 0.0, %v5734
        %v5736 = vpop.f32.mrb[0].mxu0
        %v5737 = vadd.f32 0.0, %v5736
        %5738 = vmatprep.mubr.f32.mxu0 0.0
        %5739 = vmatmul.mubr.f32.gmra.mrb[0].mxu0 %v5479
        %v5740 = vpop.f32.mrb[0].mxu0
        %v5741 = vadd.f32 0.0, %v5740
        %v5742 = vpop.f32.mrb[0].mxu0
        %v5743 = vadd.f32 0.0, %v5742
        %5744 = vmatprep.mubr.f32.mxu0 0.0
        %5745 = vmatmul.mubr.f32.gmra.mrb[0].mxu0 %v5482
        %v5746 = vpop.f32.mrb[0].mxu0
        %v5747 = vadd.f32 0.0, %v5746
        %v5748 = vpop.f32.mrb[0].mxu0
        %v5749 = vadd.f32 0.0, %v5748
        %5750 = vdwg.mxu0
        %5751 = vmatprep.subr.mxu0 %v5383
        %5752 = vmatpush1.msra.mxu0 %v5382
        %5753 = vmatprep.subr.mxu0 %v5391
        %5754 = vmatpush1.msra.mxu0 %v5390
        %5755 = vmatprep.subr.mxu0 %v5399
        %5756 = vmatpush1.msra.mxu0 %v5398
        %5757 = vmatprep.subr.mxu0 %v5407
        %5758 = vmatpush1.msra.mxu0 %v5406
        %5759 = vmatprep.subr.mxu0 %v5415
        %5760 = vmatpush1.msra.mxu0 %v5414
        %5761 = vmatprep.subr.mxu0 %v5423
        %5762 = vmatpush1.msra.mxu0 %v5422
        %5763 = vmatprep.subr.mxu0 %v5431
        %5764 = vmatpush1.msra.mxu0 %v5430
        %5765 = vmatprep.subr.mxu0 %v5439
        %5766 = vmatpush1.msra.mxu0 %v5438
        %5767 = vmatprep.subr.mxu0 %v5447
        %5768 = vmatpush1.msra.mxu0 %v5446
        %5769 = vmatprep.subr.mxu0 %v5455
        %5770 = vmatpush1.msra.mxu0 %v5454
        %5771 = vmatprep.subr.mxu0 %v5463
        %5772 = vmatpush1.msra.mxu0 %v5462
        %5773 = vmatprep.subr.mxu0 %v5471
        %5774 = vmatpush1.msra.mxu0 %v5470
        %5775 = vmatprep.subr.mxu0 0.0
        %5776 = vmatpush1.msra.mxu0 0.0
        %5777 = vmatprep.subr.mxu0 0.0
        %5778 = vmatpush1.msra.mxu0 0.0
        %5779 = vmatprep.subr.mxu0 0.0
        %5780 = vmatpush1.msra.mxu0 0.0
        %5781 = vmatprep.subr.mxu0 0.0
        %5782 = vmatpush1.msra.mxu0 0.0
        %5783 = vmatprep.subr.mxu0 0.0
        %5784 = vmatpush1.msra.mxu0 0.0
        %5785 = vmatprep.subr.mxu0 0.0
        %5786 = vmatpush1.msra.mxu0 0.0
        %5787 = vmatprep.subr.mxu0 0.0
        %5788 = vmatpush1.msra.mxu0 0.0
        %5789 = vmatprep.subr.mxu0 0.0
        %5790 = vmatpush1.msra.mxu0 0.0
        %5791 = vmatprep.subr.mxu0 0.0
        %5792 = vmatpush1.msra.mxu0 0.0
        %5793 = vmatprep.subr.mxu0 0.0
        %5794 = vmatpush1.msra.mxu0 0.0
        %5795 = vmatprep.subr.mxu0 0.0
        %5796 = vmatpush1.msra.mxu0 0.0
        %5797 = vmatprep.subr.mxu0 0.0
        %5798 = vmatpush1.msra.mxu0 0.0
        %5799 = vmatprep.subr.mxu0 0.0
        %5800 = vmatpush1.msra.mxu0 0.0
        %5801 = vmatprep.subr.mxu0 0.0
        %5802 = vmatpush1.msra.mxu0 0.0
        %5803 = vmatprep.subr.mxu0 0.0
        %5804 = vmatpush1.msra.mxu0 0.0
        %5805 = vmatprep.subr.mxu0 0.0
        %5806 = vmatpush1.msra.mxu0 0.0
        %5807 = vmatprep.subr.mxu0 0.0
        %5808 = vmatpush1.msra.mxu0 0.0
        %5809 = vmatprep.subr.mxu0 0.0
        %5810 = vmatpush1.msra.mxu0 0.0
        %5811 = vmatprep.subr.mxu0 0.0
        %5812 = vmatpush1.msra.mxu0 0.0
        %5813 = vmatprep.subr.mxu0 0.0
        %5814 = vmatpush1.msra.mxu0 0.0
        %5815 = vmatprep.mubr.f32.mxu0 0.0
        %5816 = vmatmul.mubr.f32.gmra.mrb[0].mxu0 %v5473
        %v5817 = vpop.f32.mrb[0].mxu0
        %v5818 = vadd.f32 0.0, %v5817
        %v5819 = vpop.f32.mrb[0].mxu0
        %v5820 = vadd.f32 0.0, %v5819
        %5821 = vmatprep.mubr.f32.mxu0 0.0
        %5822 = vmatmul.mubr.f32.gmra.mrb[0].mxu0 %v5476
        %v5823 = vpop.f32.mrb[0].mxu0
        %v5824 = vadd.f32 0.0, %v5823
        %v5825 = vpop.f32.mrb[0].mxu0
        %v5826 = vadd.f32 0.0, %v5825
        %5827 = vmatprep.mubr.f32.mxu0 0.0
        %5828 = vmatmul.mubr.f32.gmra.mrb[0].mxu0 %v5479
        %v5829 = vpop.f32.mrb[0].mxu0
        %v5830 = vadd.f32 0.0, %v5829
        %v5831 = vpop.f32.mrb[0].mxu0
        %v5832 = vadd.f32 0.0, %v5831
        %5833 = vmatprep.mubr.f32.mxu0 0.0
        %5834 = vmatmul.mubr.f32.gmra.mrb[0].mxu0 %v5482
        %v5835 = vpop.f32.mrb[0].mxu0
        %v5836 = vadd.f32 0.0, %v5835
        %v5837 = vpop.f32.mrb[0].mxu0
        %v5838 = vadd.f32 0.0, %v5837
        %5839 = vdwg.mxu0
        %5840 = vst [vmem:[%s221] sm:$0xff] %v5551
        %5841 = vst [vmem:[%s221 + $0x8] sm:$0xff] %v5553
        %5842 = vst [vmem:[%s221 + $0x10] sm:$0xff] %v5640
        %5843 = vst [vmem:[%s221 + $0x18] sm:$0xff] %v5642
        %5844 = vst [vmem:[%s221 + $0x20] sm:$0xff] %v5729
        %5845 = vst [vmem:[%s221 + $0x28] sm:$0xff] %v5731
        %5846 = vst [vmem:[%s221 + $0x30] sm:$0xff] %v5818
        %5847 = vst [vmem:[%s221 + $0x38] sm:$0xff] %v5820
        %5848 = vst [vmem:[%s221 + $0x40] sm:$0xff] %v5557
        %5849 = vst [vmem:[%s221 + $0x48] sm:$0xff] %v5559
        %5850 = vst [vmem:[%s221 + $0x50] sm:$0xff] %v5646
        %5851 = vst [vmem:[%s221 + $0x58] sm:$0xff] %v5648
        %5852 = vst [vmem:[%s221 + $0x60] sm:$0xff] %v5735
        %5853 = vst [vmem:[%s221 + $0x68] sm:$0xff] %v5737
        %5854 = vst [vmem:[%s221 + $0x70] sm:$0xff] %v5824
        %5855 = vst [vmem:[%s221 + $0x78] sm:$0xff] %v5826
        %5856 = vst [vmem:[%s221 + $0x80] sm:$0xff] %v5563
        %5857 = vst [vmem:[%s221 + $0x88] sm:$0xff] %v5565
        %5858 = vst [vmem:[%s221 + $0x90] sm:$0xff] %v5652
        %5859 = vst [vmem:[%s221 + $0x98] sm:$0xff] %v5654
        %5860 = vst [vmem:[%s221 + $0xa0] sm:$0xff] %v5741
        %5861 = vst [vmem:[%s221 + $0xa8] sm:$0xff] %v5743
        %5862 = vst [vmem:[%s221 + $0xb0] sm:$0xff] %v5830
        %5863 = vst [vmem:[%s221 + $0xb8] sm:$0xff] %v5832
        %5864 = vst [vmem:[%s221 + $0xc0] sm:$0xff] %v5569
        %5865 = vst [vmem:[%s221 + $0xc8] sm:$0xff] %v5571
        %5866 = vst [vmem:[%s221 + $0xd0] sm:$0xff] %v5658
        %5867 = vst [vmem:[%s221 + $0xd8] sm:$0xff] %v5660
        %5868 = vst [vmem:[%s221 + $0xe0] sm:$0xff] %v5747
        %5869 = vst [vmem:[%s221 + $0xe8] sm:$0xff] %v5749
        %5870 = vst [vmem:[%s221 + $0xf0] sm:$0xff] %v5836
        %5871 = vst [vmem:[%s221 + $0xf8] sm:$0xff] %v5838
        %s5872 = sand.u32 %s97, 1
        %s5873 = sand.u32 %s97, 1
        %s5874 = smul.addr %s5873, 256
        %s5875 = scalar_lea.vmem [#allocation6], %s5874
        // Predicated region
        $region56: #{ladmm_forward.1} parent=50 // pred_check
          %p5876 = pneg %p107
        $region57: #{ladmm_forward.1} parent=50 // pred_check_branch
          %5878 = sbr.rel (%p5876) target = $region59
        $region58: #{ladmm_forward.1} parent=50 // pred_region
          %s5879 = smul.u32 8, %s21
          %s5880 = smul.addr %s5879, 8
          %s5881 = scalar_lea.vmem %s4, %s5880
          // Predicated region
          $region60: #{ladmm_forward.1} parent=58 // pred_check
            _
          $region61: #{ladmm_forward.1} parent=58 // pred_check_branch
            %5883 = sbr.rel (0) target = $region63
          $region62: #{ladmm_forward.1} parent=58 // pred_region
            // Predicated region
            $region64: #{ladmm_forward.1} parent=62 // pred_check
              _
            $region65: #{ladmm_forward.1} parent=62 // pred_check_branch
              %5885 = sbr.rel (0) target = $region67
            $region66: #{ladmm_forward.1} parent=62 // pred_region
              loop: start=0, step=1, limit=1
              $region68: #{ladmm_forward.1} parent=66 // loop_pre_header
                _
              $region69: #{ladmm_forward.1} parent=66 // loop_header
                %s5887 = sphi 0, %s5891
                %p5888 = scmp.ge.s32.totalorder %s5887, 1
                %s5892 = sphi %s5875, %s5875
                %s5893 = sphi %s5881, %s5881
              $region70: #{ladmm_forward.1} parent=66 // loop_header_branch
                %5890 = sbr.rel (%p5888) target = $region74
              $region71: #{ladmm_forward.1} parent=66 // loop_body
                %v5894 = vld [vmem:[%s5892] sm:$0xff]
                %5895 = vst [vmem:[%s5893] sm:$0xff] %v5894
                %v5896 = vld [vmem:[%s5892 + $0x8] sm:$0xff]
                %5897 = vst [vmem:[%s5893 + $0x8] sm:$0xff] %v5896
                %v5898 = vld [vmem:[%s5892 + $0x10] sm:$0xff]
                %5899 = vst [vmem:[%s5893 + $0x10] sm:$0xff] %v5898
                %v5900 = vld [vmem:[%s5892 + $0x18] sm:$0xff]
                %5901 = vst [vmem:[%s5893 + $0x18] sm:$0xff] %v5900
                %v5902 = vld [vmem:[%s5892 + $0x20] sm:$0xff]
                %5903 = vst [vmem:[%s5893 + $0x20] sm:$0xff] %v5902
                %v5904 = vld [vmem:[%s5892 + $0x28] sm:$0xff]
                %5905 = vst [vmem:[%s5893 + $0x28] sm:$0xff] %v5904
                %v5906 = vld [vmem:[%s5892 + $0x30] sm:$0xff]
                %5907 = vst [vmem:[%s5893 + $0x30] sm:$0xff] %v5906
                %v5908 = vld [vmem:[%s5892 + $0x38] sm:$0xff]
                %5909 = vst [vmem:[%s5893 + $0x38] sm:$0xff] %v5908
                %v5910 = vld [vmem:[%s5892 + $0x40] sm:$0xff]
                %5911 = vst [vmem:[%s5893 + $0x80] sm:$0xff] %v5910
                %v5912 = vld [vmem:[%s5892 + $0x48] sm:$0xff]
                %5913 = vst [vmem:[%s5893 + $0x88] sm:$0xff] %v5912
                %v5914 = vld [vmem:[%s5892 + $0x50] sm:$0xff]
                %5915 = vst [vmem:[%s5893 + $0x90] sm:$0xff] %v5914
                %v5916 = vld [vmem:[%s5892 + $0x58] sm:$0xff]
                %5917 = vst [vmem:[%s5893 + $0x98] sm:$0xff] %v5916
                %v5918 = vld [vmem:[%s5892 + $0x60] sm:$0xff]
                %5919 = vst [vmem:[%s5893 + $0xa0] sm:$0xff] %v5918
                %v5920 = vld [vmem:[%s5892 + $0x68] sm:$0xff]
                %5921 = vst [vmem:[%s5893 + $0xa8] sm:$0xff] %v5920
                %v5922 = vld [vmem:[%s5892 + $0x70] sm:$0xff]
                %5923 = vst [vmem:[%s5893 + $0xb0] sm:$0xff] %v5922
                %v5924 = vld [vmem:[%s5892 + $0x78] sm:$0xff]
                %5925 = vst [vmem:[%s5893 + $0xb8] sm:$0xff] %v5924
                %v5926 = vld [vmem:[%s5892 + $0x80] sm:$0xff]
                %5927 = vst [vmem:[%s5893 + $0x100] sm:$0xff] %v5926
                %v5928 = vld [vmem:[%s5892 + $0x88] sm:$0xff]
                %5929 = vst [vmem:[%s5893 + $0x108] sm:$0xff] %v5928
                %v5930 = vld [vmem:[%s5892 + $0x90] sm:$0xff]
                %5931 = vst [vmem:[%s5893 + $0x110] sm:$0xff] %v5930
                %v5932 = vld [vmem:[%s5892 + $0x98] sm:$0xff]
                %5933 = vst [vmem:[%s5893 + $0x118] sm:$0xff] %v5932
                %v5934 = vld [vmem:[%s5892 + $0xa0] sm:$0xff]
                %5935 = vst [vmem:[%s5893 + $0x120] sm:$0xff] %v5934
                %v5936 = vld [vmem:[%s5892 + $0xa8] sm:$0xff]
                %5937 = vst [vmem:[%s5893 + $0x128] sm:$0xff] %v5936
                %v5938 = vld [vmem:[%s5892 + $0xb0] sm:$0xff]
                %5939 = vst [vmem:[%s5893 + $0x130] sm:$0xff] %v5938
                %v5940 = vld [vmem:[%s5892 + $0xb8] sm:$0xff]
                %5941 = vst [vmem:[%s5893 + $0x138] sm:$0xff] %v5940
                %v5942 = vld [vmem:[%s5892 + $0xc0] sm:$0xff]
                %5943 = vst [vmem:[%s5893 + $0x180] sm:$0xff] %v5942
                %v5944 = vld [vmem:[%s5892 + $0xc8] sm:$0xff]
                %5945 = vst [vmem:[%s5893 + $0x188] sm:$0xff] %v5944
                %v5946 = vld [vmem:[%s5892 + $0xd0] sm:$0xff]
                %5947 = vst [vmem:[%s5893 + $0x190] sm:$0xff] %v5946
                %v5948 = vld [vmem:[%s5892 + $0xd8] sm:$0xff]
                %5949 = vst [vmem:[%s5893 + $0x198] sm:$0xff] %v5948
                %v5950 = vld [vmem:[%s5892 + $0xe0] sm:$0xff]
                %5951 = vst [vmem:[%s5893 + $0x1a0] sm:$0xff] %v5950
                %v5952 = vld [vmem:[%s5892 + $0xe8] sm:$0xff]
                %5953 = vst [vmem:[%s5893 + $0x1a8] sm:$0xff] %v5952
                %v5954 = vld [vmem:[%s5892 + $0xf0] sm:$0xff]
                %5955 = vst [vmem:[%s5893 + $0x1b0] sm:$0xff] %v5954
                %v5956 = vld [vmem:[%s5892 + $0xf8] sm:$0xff]
                %5957 = vst [vmem:[%s5893 + $0x1b8] sm:$0xff] %v5956
              $region72: #{ladmm_forward.1} parent=66 // loop_footer
                %s5891 = sadd.s32 1, %s5887
              $region73: #{ladmm_forward.1} parent=66 // loop_footer_branch
                %5886 = sbr.rel target = $region69
              $region74: #{ladmm_forward.1} parent=66 // loop_exit
                _
            $region67: #{ladmm_forward.1} parent=62 // pred_fallthru
              _
            // Predicated region
            $region75: #{ladmm_forward.1} parent=62 // pred_check
              _
            $region76: #{ladmm_forward.1} parent=62 // pred_check_branch
              %5959 = sbr.rel target = $region78
            $region77: #{ladmm_forward.1} parent=62 // pred_region
              _
            $region78: #{ladmm_forward.1} parent=62 // pred_fallthru
              _
          $region63: #{ladmm_forward.1} parent=58 // pred_fallthru
            _
          %5960 = vnop
        $region59: #{ladmm_forward.1} parent=50 // pred_fallthru
          _
      $region51: #{ladmm_forward.1} parent=5 // pred_fallthru
        _
      %p5961 = scmp.le.s32.totalorder 2, %s16
      // Predicated region
      $region79: #{ladmm_forward.1} parent=5 // pred_check
        %p5962 = pneg %p5961
      $region80: #{ladmm_forward.1} parent=5 // pred_check_branch
        %5964 = sbr.rel (%p5962) target = $region82
      $region81: #{ladmm_forward.1} parent=5 // pred_region
        %s5965 = ssub.s32 %s16, 2
        // Predicated region
        $region83: #{ladmm_forward.1} parent=81 // pred_check
          %p5966 = pneg %p113
        $region84: #{ladmm_forward.1} parent=81 // pred_check_branch
          %5968 = sbr.rel (%p5966) target = $region86
        $region85: #{ladmm_forward.1} parent=81 // pred_region
          %s5969 = sand.u32 %s98, 1
          %s5970 = sand.u32 %s98, 1
          %s5971 = smul.addr %s5970, 256
          %s5972 = scalar_lea.vmem [#allocation6], %s5971
        $region86: #{ladmm_forward.1} parent=81 // pred_fallthru
          _
      $region82: #{ladmm_forward.1} parent=5 // pred_fallthru
        _
    $region6: #{ladmm_forward.1} parent=1 // loop_footer
      %s20 = sadd.s32 1, %s16
    $region7: #{ladmm_forward.1} parent=1 // loop_footer_branch
      %15 = sbr.rel target = $region3
    $region8: #{ladmm_forward.1} parent=1 // loop_exit
      _

</llo_original>
